<compile_context>
chip_gen: v5e
topology: v5e:2x2
jax: 0.10.0
libtpu: 0.0.40
codegen_flags: <defaults>
</compile_context>

<pallas_src>
import jax
import jax.numpy as jnp
import numpy as np
from jax import lax
from jax.experimental import pallas as pl
from jax.experimental.pallas import tpu as pltpu

DILATIONS = (6, 12, 18)
# Halo for the largest dilation (18), rounded up to a multiple of 8 so the
# centre extraction and all kx==1 taps are sublane-aligned (no relayout copy).
PAD = 24
BN_EPS = 1e-5


def _round_up(x, m):
    return (x + m - 1) // m * m


# ----------------------------- Pallas kernel ------------------------------- #
def _aspp_kernel(xband_ref, w1_ref, wd_ref, wcat_ref, shifts_ref, catbias_ref,
                 out_ref, acc_ref, bacc_ref):
    THP, Wpt, Cin = xband_ref.shape
    TH = THP - 2 * PAD            # output rows in this band
    Wc = Wpt - 2 * PAD            # padded (multiple-of-8) output width
    Coutp = w1_ref.shape[1]       # lane-padded (multiple-of-128) out channels
    HW = TH * Wc

    def mm(a, b):
        # bf16 x bf16 -> f32 accumulation on the MXU (default precision).
        return jnp.dot(a, b, preferred_element_type=jnp.float32)

    # ---- branch 1: 1x1 conv (BN scale pre-folded) -> +shift -> ReLU; its
    # slice of the concat 1x1 conv initialises the fused accumulator. -------
    xc = xband_ref[pl.ds(PAD, TH), pl.ds(PAD, Wc), :].reshape(HW, Cin)
    b1 = jnp.maximum(mm(xc, w1_ref[...]) + shifts_ref[0][None, :], 0.0)
    acc_ref[...] = mm(b1.astype(jnp.bfloat16), wcat_ref[pl.ds(0, Coutp), :])

    # ---- branches 2-4: dilated 3x3 convs as 9 shifted matmuls each, fused
    # with their slice of the concat conv.  The sublane-unaligned column
    # shift is hoisted out of the ky loop: one column-shifted chunk per
    # (dilation, kx); the per-ky row taps are leading-dim slices (free).
    for di, d in enumerate(DILATIONS):
        first = True
        for kx in range(3):
            c0 = PAD + (kx - 1) * d
            xs = xband_ref[pl.ds(PAD - d, TH + 2 * d), pl.ds(c0, Wc), :]
            for ky in range(3):
                tap = xs[ky * d:ky * d + TH].reshape(HW, Cin)
                y = mm(tap, wd_ref[di, 3 * ky + kx])
                if first:
                    bacc_ref[...] = y              # init from first tap
                    first = False
                else:
                    bacc_ref[...] += y
        bi = jnp.maximum(bacc_ref[...] + shifts_ref[di + 1][None, :], 0.0)
        acc_ref[...] += mm(bi.astype(jnp.bfloat16),
                           wcat_ref[pl.ds((di + 1) * Coutp, Coutp), :])

    # ---- global-pool branch (collapsed per batch to one bias row in the
    # wrapper) + concat BN shift + ReLU; lane-dense store. ------------------
    out = jnp.maximum(acc_ref[...] + catbias_ref[0][None, :], 0.0)
    out_ref[...] = out.reshape(TH, Wc, Coutp).astype(out_ref.dtype)


# -------------------------- tile_h / VMEM budgeting ------------------------ #
def _pick_tile_h(H, Wp_, Cin, Coutp, out_itemsize, vmem_budget):
    cap = max(8, min(64, _round_up(H, 8)))
    best = 8
    for th in range(8, cap + 1, 8):
        thp = th + 2 * PAD
        wpt = Wp_ + 2 * PAD
        band = thp * wpt * Cin * 2                                   # bf16 band
        weights = (28 * Cin * Coutp + 4 * Coutp * Coutp) * 2 + 5 * Coutp * 4
        outb = th * Wp_ * Coutp * out_itemsize
        accs = 2 * th * Wp_ * Coutp * 4
        tap = (th + 2 * 18) * Wp_ * Cin * 2                          # transient chunk
        need = 2 * band + weights + 2 * outb + accs + tap + (2 << 20)
        if need <= vmem_budget:
            best = th
    return best


# ------------------------------ JAX wrapper -------------------------------- #
def aspp_pallas(x_nchw, p, tile_h=None, out_dtype=jnp.float32):
    B, Cin, H, W = x_nchw.shape
    Cout = p['b1_w'].shape[0]

    # Lane/sublane-friendly padded sizes (lane-dense output stores, free
    # reshapes).  NOTE: out_dtype can be set to bf16 to halve writeback if the
    # consumer accepts it; default f32 matches the PyTorch module.
    Coutp = _round_up(Cout, 128)
    Wp_ = _round_up(W, 8)

    # Per-chip VMEM capacity -> compiler limit & tile budget (v5e/v6e 128 MiB,
    # v7x 64 MiB).  Conservative fallback if the query is unavailable.
    try:
        vmem_cap = int(pltpu.get_tpu_info().vmem_capacity_bytes)
    except Exception:
        vmem_cap = 64 * 1024 * 1024
    vmem_limit = int(vmem_cap * 0.85)
    vmem_budget = int(vmem_cap * 0.70)

    if tile_h is None:
        tile_h = _pick_tile_h(H, Wp_, Cin, Coutp,
                              jnp.dtype(out_dtype).itemsize, vmem_budget)
    Hp_ = _round_up(H, tile_h)
    nbands = Hp_ // tile_h
    # TODO(synk): on v7x (2 TensorCores), keep B*nbands even for balanced
    # megacore sharding of the ("parallel","parallel") grid.

    # ---- fold conv bias + eval-mode BatchNorm into per-channel scale/shift.
    def fold(bias, bn):
        s = bn['gamma'] / jnp.sqrt(bn['var'] + BN_EPS)
        t = (bias - bn['mean']) * s + bn['beta']
        return s, t

    scales, shifts = {}, {}
    for name in ('b1', 'b2', 'b3', 'b4', 'b5', 'cat'):
        scales[name], shifts[name] = fold(p[f'{name}_b'], p[f'{name}_bn'])

    cpad = Coutp - Cout

    def pad_cols(a):                       # zero-pad the last (Cout) axis
        return jnp.pad(a, [(0, 0)] * (a.ndim - 1) + [(0, cpad)])

    # BN scale folded into conv-weight output columns; weights cast to bf16
    # (native MXU path + half the HBM/VMEM traffic), shifts stay f32.
    # TODO(synk): clamp the folded scale if BN stats are pathological for bf16.
    def fold_1x1(w_oihw, s):                               # -> (Cin, Coutp)
        return pad_cols(jnp.transpose(w_oihw[:, :, 0, 0], (1, 0)) * s[None, :])

    def fold_3x3(w_oihw, s):                               # -> (9, Cin, Coutp)
        w = jnp.transpose(w_oihw, (2, 3, 1, 0)).reshape(9, Cin, Cout)
        return pad_cols(w * s[None, None, :])

    w1 = fold_1x1(p['b1_w'], scales['b1']).astype(jnp.bfloat16)
    wd = jnp.stack([fold_3x3(p['b2_w'], scales['b2']),
                    fold_3x3(p['b3_w'], scales['b3']),
                    fold_3x3(p['b4_w'], scales['b4'])]).astype(jnp.bfloat16)
    w5 = jnp.transpose(p['b5_w'][:, :, 0, 0], (1, 0)) * scales['b5'][None, :]   # f32, wrapper-only

    wcat_full = jnp.transpose(p['cat_w'][:, :, 0, 0], (1, 0)) * scales['cat'][None, :]
    wcat4 = wcat_full[:4 * Cout].reshape(4, Cout, Cout)
    wcat4 = jnp.pad(wcat4, ((0, 0), (0, cpad), (0, cpad)))
    wcat4 = wcat4.reshape(4 * Coutp, Coutp).astype(jnp.bfloat16)                 # kernel
    wcat5 = wcat_full[4 * Cout:]                                                 # f32, wrapper-only

    shifts14 = pad_cols(jnp.stack([shifts['b1'], shifts['b2'],
                                   shifts['b3'], shifts['b4']]))                 # (4, Coutp) f32

    # branch5 (global avg pool -> 1x1 conv -> BN -> ReLU -> bilinear upsample
    # of a 1x1 map == broadcast) collapsed, together with the concat-conv
    # shift, into a single per-batch (Coutp,) bias row.
    x = jnp.transpose(x_nchw, (0, 2, 3, 1)).astype(jnp.float32)                  # NHWC f32
    gmean = jnp.mean(x, axis=(1, 2))                                             # (B, Cin)
    g5 = jnp.maximum(gmean @ w5 + shifts['b5'][None, :], 0.0)                    # (B, Cout)
    catbias = pad_cols(g5 @ wcat5 + shifts['cat'][None, :]).reshape(B, 1, Coutp)

    # ---- bf16 activations, zero-padded (halo + W/H alignment) and band-
    # replicated so a plain BlockSpec auto double-buffers each band (DMA
    # overlaps the 28 matmuls of the previous band).
    thp = tile_h + 2 * PAD
    wpt = Wp_ + 2 * PAD
    xpad = jnp.pad(x.astype(jnp.bfloat16),
                   ((0, 0), (PAD, PAD + (Hp_ - H)), (PAD, PAD + (Wp_ - W)), (0, 0)))
    xbands = jnp.stack([xpad[:, r * tile_h:r * tile_h + thp] for r in range(nbands)],
                       axis=1)                                 # (B, nbands, thp, wpt, Cin)

    buffered_once = pl.Buffered(buffer_count=1)    # grid-invariant: single VMEM copy

    out_padded = pl.pallas_call(
        _aspp_kernel,
        out_shape=jax.ShapeDtypeStruct((B, Hp_, Wp_, Coutp), out_dtype),
        grid=(B, nbands),
        in_specs=[
            pl.BlockSpec((None, None, thp, wpt, Cin),
                         lambda b, r: (b, r, 0, 0, 0)),                  # band (auto 2-buffered)
            pl.BlockSpec((Cin, Coutp), lambda b, r: (0, 0),
                         pipeline_mode=buffered_once),                   # w1
            pl.BlockSpec((3, 9, Cin, Coutp), lambda b, r: (0, 0, 0, 0),
                         pipeline_mode=buffered_once),                   # dilated taps
            pl.BlockSpec((4 * Coutp, Coutp), lambda b, r: (0, 0),
                         pipeline_mode=buffered_once),                   # concat conv (4 blocks)
            pl.BlockSpec((4, Coutp), lambda b, r: (0, 0),
                         pipeline_mode=buffered_once),                   # branch shifts
            pl.BlockSpec((None, 1, Coutp), lambda b, r: (b, 0, 0)),      # per-batch bias row
        ],
        out_specs=pl.BlockSpec((None, tile_h, Wp_, Coutp),
                               lambda b, r: (b, r, 0, 0)),
        scratch_shapes=[
            pltpu.VMEM((tile_h * Wp_, Coutp), jnp.float32),   # acc  (fused concat conv)
            pltpu.VMEM((tile_h * Wp_, Coutp), jnp.float32),   # bacc (per-dilation conv)
        ],
        compiler_params=pltpu.CompilerParams(
            dimension_semantics=("parallel", "parallel"),
            vmem_limit_bytes=vmem_limit),
    )(xbands, w1, wd, wcat4, shifts14, catbias)

    out = out_padded[:, :H, :W, :Cout].astype(jnp.float32)
    return jnp.transpose(out, (0, 3, 1, 2))  # back to NCHW


# ----------------------- deterministic parameter init ---------------------- #
def init_params(key, dim_in, dim_out):
    keys = iter(jax.random.split(key, 48))

    def w(shape):
        return 0.1 * jax.random.normal(next(keys), shape, jnp.float32)

    def bn(c):
        return dict(
            gamma=1.0 + 0.1 * jax.random.normal(next(keys), (c,), jnp.float32),
            beta=0.1 * jax.random.normal(next(keys), (c,), jnp.float32),
            mean=0.1 * jax.random.normal(next(keys), (c,), jnp.float32),
            var=0.5 + jnp.abs(jax.random.normal(next(keys), (c,), jnp.float32)),
        )

    return {
        'b1_w': w((dim_out, dim_in, 1, 1)), 'b1_b': w((dim_out,)), 'b1_bn': bn(dim_out),
        'b2_w': w((dim_out, dim_in, 3, 3)), 'b2_b': w((dim_out,)), 'b2_bn': bn(dim_out),
        'b3_w': w((dim_out, dim_in, 3, 3)), 'b3_b': w((dim_out,)), 'b3_bn': bn(dim_out),
        'b4_w': w((dim_out, dim_in, 3, 3)), 'b4_b': w((dim_out,)), 'b4_bn': bn(dim_out),
        'b5_w': w((dim_out, dim_in, 1, 1)), 'b5_b': w((dim_out,)), 'b5_bn': bn(dim_out),
        'cat_w': w((dim_out, dim_out * 5, 1, 1)), 'cat_b': w((dim_out,)), 'cat_bn': bn(dim_out),
    }


# ---------------------------- pure-JAX reference --------------------------- #
def _conv_nchw(x, w, b, dilation=1, padding=0):
    y = lax.conv_general_dilated(
        x, w, window_strides=(1, 1),
        padding=((padding, padding), (padding, padding)),
        rhs_dilation=(dilation, dilation),
        dimension_numbers=('NCHW', 'OIHW', 'NCHW'),
        precision=lax.Precision.HIGHEST)
    return y + b[None, :, None, None]


def _bn_relu_nchw(x, bn):
    s = bn['gamma'] / jnp.sqrt(bn['var'] + BN_EPS)
    y = (x - bn['mean'][None, :, None, None]) * s[None, :, None, None] \
        + bn['beta'][None, :, None, None]
    return jnp.maximum(y, 0.0)


def aspp_reference(x, p):
    B, _, H, W = x.shape
    b1 = _bn_relu_nchw(_conv_nchw(x, p['b1_w'], p['b1_b']), p['b1_bn'])
    b2 = _bn_relu_nchw(_conv_nchw(x, p['b2_w'], p['b2_b'], 6, 6), p['b2_bn'])
    b3 = _bn_relu_nchw(_conv_nchw(x, p['b3_w'], p['b3_b'], 12, 12), p['b3_bn'])
    b4 = _bn_relu_nchw(_conv_nchw(x, p['b4_w'], p['b4_b'], 18, 18), p['b4_bn'])
    g = jnp.mean(x, axis=(2, 3), keepdims=True)
    g = _bn_relu_nchw(_conv_nchw(g, p['b5_w'], p['b5_b']), p['b5_bn'])
    g = jnp.broadcast_to(g, (B, g.shape[1], H, W))  # bilinear upsample of a 1x1 map
    cat = jnp.concatenate([b1, b2, b3, b4, g], axis=1)
    return _bn_relu_nchw(_conv_nchw(cat, p['cat_w'], p['cat_b']), p['cat_bn'])


# ----------------------------------- main ---------------------------------- #
if __name__ == "__main__":
    key = jax.random.PRNGKey(0)
    kx, kp = jax.random.split(key)
    B, Cin, Cout, H, W = 2, 4, 8, 16, 16

    x = jax.random.normal(kx, (B, Cin, H, W), jnp.float32)
    params = init_params(kp, Cin, Cout)

    # tile_h=8 -> two row bands per image, exercising the banded grid.
    out = jax.block_until_ready(aspp_pallas(x, params, tile_h=8))
    ref = jax.block_until_ready(aspp_reference(x, params))
    # bf16 activations/weights + default MXU precision -> bf16-level tolerance
    np.testing.assert_allclose(np.asarray(out), np.asarray(ref), rtol=5e-2, atol=5e-2)
    print("KERNEL_OK")
</pallas_src>

<mosaic_0001>
module attributes {stable_mosaic.version = 11 : i64} {
  func.func @_aspp_kernel(%arg0: i32, %arg1: i32, %arg2: memref<1x1x56x64x4xbf16, #tpu.memory_space<vmem>>, %arg3: memref<4x128xbf16, #tpu.memory_space<vmem>>, %arg4: memref<3x9x4x128xbf16, #tpu.memory_space<vmem>>, %arg5: memref<512x128xbf16, #tpu.memory_space<vmem>>, %arg6: memref<4x128xf32, #tpu.memory_space<vmem>>, %arg7: memref<1x1x128xf32, #tpu.memory_space<vmem>>, %arg8: memref<1x8x16x128xf32, #tpu.memory_space<vmem>>, %arg9: memref<128x128xf32, #tpu.memory_space<vmem>>, %arg10: memref<128x128xf32, #tpu.memory_space<vmem>>) attributes {dimension_semantics = [#tpu.dimension_semantics<parallel>, #tpu.dimension_semantics<parallel>], iteration_bounds = array<i64: 2, 2>, scalar_prefetch = 0 : i64, scratch_operands = 2 : i64, tpu.core_type = #tpu.core_type<tc>, window_params = [{transform_indices = @transform_0, window_bounds = array<i64: 1, 1, 56, 64, 4>}, {pipeline_mode = #tpu.pipeline_mode<synchronous>, transform_indices = @transform_1, window_bounds = array<i64: 4, 128>}, {pipeline_mode = #tpu.pipeline_mode<synchronous>, transform_indices = @transform_2, window_bounds = array<i64: 3, 9, 4, 128>}, {pipeline_mode = #tpu.pipeline_mode<synchronous>, transform_indices = @transform_3, window_bounds = array<i64: 512, 128>}, {pipeline_mode = #tpu.pipeline_mode<synchronous>, transform_indices = @transform_4, window_bounds = array<i64: 4, 128>}, {transform_indices = @transform_5, window_bounds = array<i64: 1, 1, 128>}, {transform_indices = @transform_6, window_bounds = array<i64: 1, 8, 16, 128>}]} {
    %c0 = arith.constant 0 : index
    %c0_0 = arith.constant 0 : index
    %c24 = arith.constant 24 : index
    %c24_1 = arith.constant 24 : index
    %c0_2 = arith.constant 0 : index
    %0 = vector.load %arg2[%c0, %c0_0, %c24, %c24_1, %c0_2] : memref<1x1x56x64x4xbf16, #tpu.memory_space<vmem>>, vector<1x1x8x16x4xbf16>
    %1 = vector.shape_cast %0 : vector<1x1x8x16x4xbf16> to vector<8x16x4xbf16>
    %2 = vector.shape_cast %1 : vector<8x16x4xbf16> to vector<128x4xbf16>
    %c0_3 = arith.constant 0 : index
    %c0_4 = arith.constant 0 : index
    %3 = vector.load %arg3[%c0_3, %c0_4] : memref<4x128xbf16, #tpu.memory_space<vmem>>, vector<4x128xbf16>
    %cst = arith.constant dense<0.000000e+00> : vector<128x128xf32>
    %4 = tpu.matmul %2, %3, %cst {dimension_numbers = #tpu.dot_dimension_numbers<[1], [0], [0], [1], [0, 0, 1, 1], [], []>} : vector<128x4xbf16>, vector<4x128xbf16>, vector<128x128xf32> -> vector<128x128xf32>
    %c0_5 = arith.constant 0 : index
    %c0_6 = arith.constant 0 : index
    %5 = vector.load %arg6[%c0_5, %c0_6] : memref<4x128xf32, #tpu.memory_space<vmem>>, vector<1x128xf32>
    %6 = vector.shape_cast %5 : vector<1x128xf32> to vector<128xf32>
    %7 = vector.shape_cast %6 : vector<128xf32> to vector<1x128xf32>
    %8 = vector.broadcast %7 : vector<1x128xf32> to vector<128x128xf32>
    %9 = arith.addf %4, %8 : vector<128x128xf32>
    %cst_7 = arith.constant 0.000000e+00 : f32
    %10 = vector.broadcast %cst_7 : f32 to vector<128x128xf32>
    %11 = arith.maximumf %9, %10 : vector<128x128xf32>
    %12 = arith.truncf %11 : vector<128x128xf32> to vector<128x128xbf16>
    %c0_8 = arith.constant 0 : index
    %c0_9 = arith.constant 0 : index
    %13 = vector.load %arg5[%c0_8, %c0_9] : memref<512x128xbf16, #tpu.memory_space<vmem>>, vector<128x128xbf16>
    %cst_10 = arith.constant dense<0.000000e+00> : vector<128x128xf32>
    %14 = tpu.matmul %12, %13, %cst_10 {dimension_numbers = #tpu.dot_dimension_numbers<[1], [0], [0], [1], [0, 0, 1, 1], [], []>} : vector<128x128xbf16>, vector<128x128xbf16>, vector<128x128xf32> -> vector<128x128xf32>
    %c0_11 = arith.constant 0 : index
    %c0_12 = arith.constant 0 : index
    %15 = vector.load %arg9[%c0_11, %c0_12] : memref<128x128xf32, #tpu.memory_space<vmem>>, vector<128x128xf32>
    tpu.vector_store %arg9[%c0_11, %c0_12], %14 {strides = array<i32>} : memref<128x128xf32, #tpu.memory_space<vmem>>, vector<128x128xf32>,
    %c0_13 = arith.constant 0 : index
    %c0_14 = arith.constant 0 : index
    %c18 = arith.constant 18 : index
    %c18_15 = arith.constant 18 : index
    %c0_16 = arith.constant 0 : index
    %16 = vector.load %arg2[%c0_13, %c0_14, %c18, %c18_15, %c0_16] : memref<1x1x56x64x4xbf16, #tpu.memory_space<vmem>>, vector<1x1x20x16x4xbf16>
    %17 = vector.shape_cast %16 : vector<1x1x20x16x4xbf16> to vector<20x16x4xbf16>
    %18 = vector.extract_strided_slice %17 {offsets = [0, 0, 0], sizes = [8, 16, 4], strides = [1, 1, 1]} : vector<20x16x4xbf16> to vector<8x16x4xbf16>
    %19 = vector.shape_cast %18 : vector<8x16x4xbf16> to vector<128x4xbf16>
    %c0_17 = arith.constant 0 : index
    %c0_18 = arith.constant 0 : index
    %c0_19 = arith.constant 0 : index
    %c0_20 = arith.constant 0 : index
    %20 = vector.load %arg4[%c0_17, %c0_18, %c0_19, %c0_20] : memref<3x9x4x128xbf16, #tpu.memory_space<vmem>>, vector<1x1x4x128xbf16>
    %21 = vector.shape_cast %20 : vector<1x1x4x128xbf16> to vector<4x128xbf16>
    %cst_21 = arith.constant dense<0.000000e+00> : vector<128x128xf32>
    %22 = tpu.matmul %19, %21, %cst_21 {dimension_numbers = #tpu.dot_dimension_numbers<[1], [0], [0], [1], [0, 0, 1, 1], [], []>} : vector<128x4xbf16>, vector<4x128xbf16>, vector<128x128xf32> -> vector<128x128xf32>
    %c0_22 = arith.constant 0 : index
    %c0_23 = arith.constant 0 : index
    %23 = vector.load %arg10[%c0_22, %c0_23] : memref<128x128xf32, #tpu.memory_space<vmem>>, vector<128x128xf32>
    tpu.vector_store %arg10[%c0_22, %c0_23], %22 {strides = array<i32>} : memref<128x128xf32, #tpu.memory_space<vmem>>, vector<128x128xf32>,
    %24 = vector.extract_strided_slice %17 {offsets = [6, 0, 0], sizes = [8, 16, 4], strides = [1, 1, 1]} : vector<20x16x4xbf16> to vector<8x16x4xbf16>
    %25 = vector.shape_cast %24 : vector<8x16x4xbf16> to vector<128x4xbf16>
    %c0_24 = arith.constant 0 : index
    %c3 = arith.constant 3 : index
    %c0_25 = arith.constant 0 : index
    %c0_26 = arith.constant 0 : index
    %26 = vector.load %arg4[%c0_24, %c3, %c0_25, %c0_26] : memref<3x9x4x128xbf16, #tpu.memory_space<vmem>>, vector<1x1x4x128xbf16>
    %27 = vector.shape_cast %26 : vector<1x1x4x128xbf16> to vector<4x128xbf16>
    %cst_27 = arith.constant dense<0.000000e+00> : vector<128x128xf32>
    %28 = tpu.matmul %25, %27, %cst_27 {dimension_numbers = #tpu.dot_dimension_numbers<[1], [0], [0], [1], [0, 0, 1, 1], [], []>} : vector<128x4xbf16>, vector<4x128xbf16>, vector<128x128xf32> -> vector<128x128xf32>
    %c0_28 = arith.constant 0 : index
    %c0_29 = arith.constant 0 : index
    %29 = vector.load %arg10[%c0_28, %c0_29] : memref<128x128xf32, #tpu.memory_space<vmem>>, vector<128x128xf32>
    %30 = arith.addf %29, %28 : vector<128x128xf32>
    %c0_30 = arith.constant 0 : index
    %c0_31 = arith.constant 0 : index
    %31 = vector.load %arg10[%c0_30, %c0_31] : memref<128x128xf32, #tpu.memory_space<vmem>>, vector<128x128xf32>
    tpu.vector_store %arg10[%c0_30, %c0_31], %30 {strides = array<i32>} : memref<128x128xf32, #tpu.memory_space<vmem>>, vector<128x128xf32>,
    %32 = vector.extract_strided_slice %17 {offsets = [12, 0, 0], sizes = [8, 16, 4], strides = [1, 1, 1]} : vector<20x16x4xbf16> to vector<8x16x4xbf16>
    %33 = vector.shape_cast %32 : vector<8x16x4xbf16> to vector<128x4xbf16>
    %c0_32 = arith.constant 0 : index
    %c6 = arith.constant 6 : index
    %c0_33 = arith.constant 0 : index
    %c0_34 = arith.constant 0 : index
    %34 = vector.load %arg4[%c0_32, %c6, %c0_33, %c0_34] : memref<3x9x4x128xbf16, #tpu.memory_space<vmem>>, vector<1x1x4x128xbf16>
    %35 = vector.shape_cast %34 : vector<1x1x4x128xbf16> to vector<4x128xbf16>
    %cst_35 = arith.constant dense<0.000000e+00> : vector<128x128xf32>
    %36 = tpu.matmul %33, %35, %cst_35 {dimension_numbers = #tpu.dot_dimension_numbers<[1], [0], [0], [1], [0, 0, 1, 1], [], []>} : vector<128x4xbf16>, vector<4x128xbf16>, vector<128x128xf32> -> vector<128x128xf32>
    %c0_36 = arith.constant 0 : index
    %c0_37 = arith.constant 0 : index
    %37 = vector.load %arg10[%c0_36, %c0_37] : memref<128x128xf32, #tpu.memory_space<vmem>>, vector<128x128xf32>
    %38 = arith.addf %37, %36 : vector<128x128xf32>
    %c0_38 = arith.constant 0 : index
    %c0_39 = arith.constant 0 : index
    %39 = vector.load %arg10[%c0_38, %c0_39] : memref<128x128xf32, #tpu.memory_space<vmem>>, vector<128x128xf32>
    tpu.vector_store %arg10[%c0_38, %c0_39], %38 {strides = array<i32>} : memref<128x128xf32, #tpu.memory_space<vmem>>, vector<128x128xf32>,
    %c0_40 = arith.constant 0 : index
    %c0_41 = arith.constant 0 : index
    %c18_42 = arith.constant 18 : index
    %c24_43 = arith.constant 24 : index
    %c0_44 = arith.constant 0 : index
    %40 = vector.load %arg2[%c0_40, %c0_41, %c18_42, %c24_43, %c0_44] : memref<1x1x56x64x4xbf16, #tpu.memory_space<vmem>>, vector<1x1x20x16x4xbf16>
    %41 = vector.shape_cast %40 : vector<1x1x20x16x4xbf16> to vector<20x16x4xbf16>
    %42 = vector.extract_strided_slice %41 {offsets = [0, 0, 0], sizes = [8, 16, 4], strides = [1, 1, 1]} : vector<20x16x4xbf16> to vector<8x16x4xbf16>
    %43 = vector.shape_cast %42 : vector<8x16x4xbf16> to vector<128x4xbf16>
    %c0_45 = arith.constant 0 : index
    %c1 = arith.constant 1 : index
    %c0_46 = arith.constant 0 : index
    %c0_47 = arith.constant 0 : index
    %44 = vector.load %arg4[%c0_45, %c1, %c0_46, %c0_47] : memref<3x9x4x128xbf16, #tpu.memory_space<vmem>>, vector<1x1x4x128xbf16>
    %45 = vector.shape_cast %44 : vector<1x1x4x128xbf16> to vector<4x128xbf16>
    %cst_48 = arith.constant dense<0.000000e+00> : vector<128x128xf32>
    %46 = tpu.matmul %43, %45, %cst_48 {dimension_numbers = #tpu.dot_dimension_numbers<[1], [0], [0], [1], [0, 0, 1, 1], [], []>} : vector<128x4xbf16>, vector<4x128xbf16>, vector<128x128xf32> -> vector<128x128xf32>
    %c0_49 = arith.constant 0 : index
    %c0_50 = arith.constant 0 : index
    %47 = vector.load %arg10[%c0_49, %c0_50] : memref<128x128xf32, #tpu.memory_space<vmem>>, vector<128x128xf32>
    %48 = arith.addf %47, %46 : vector<128x128xf32>
    %c0_51 = arith.constant 0 : index
    %c0_52 = arith.constant 0 : index
    %49 = vector.load %arg10[%c0_51, %c0_52] : memref<128x128xf32, #tpu.memory_space<vmem>>, vector<128x128xf32>
    tpu.vector_store %arg10[%c0_51, %c0_52], %48 {strides = array<i32>} : memref<128x128xf32, #tpu.memory_space<vmem>>, vector<128x128xf32>,
    %50 = vector.extract_strided_slice %41 {offsets = [6, 0, 0], sizes = [8, 16, 4], strides = [1, 1, 1]} : vector<20x16x4xbf16> to vector<8x16x4xbf16>
    %51 = vector.shape_cast %50 : vector<8x16x4xbf16> to vector<128x4xbf16>
    %c0_53 = arith.constant 0 : index
    %c4 = arith.constant 4 : index
    %c0_54 = arith.constant 0 : index
    %c0_55 = arith.constant 0 : index
    %52 = vector.load %arg4[%c0_53, %c4, %c0_54, %c0_55] : memref<3x9x4x128xbf16, #tpu.memory_space<vmem>>, vector<1x1x4x128xbf16>
    %53 = vector.shape_cast %52 : vector<1x1x4x128xbf16> to vector<4x128xbf16>
    %cst_56 = arith.constant dense<0.000000e+00> : vector<128x128xf32>
    %54 = tpu.matmul %51, %53, %cst_56 {dimension_numbers = #tpu.dot_dimension_numbers<[1], [0], [0], [1], [0, 0, 1, 1], [], []>} : vector<128x4xbf16>, vector<4x128xbf16>, vector<128x128xf32> -> vector<128x128xf32>
    %c0_57 = arith.constant 0 : index
    %c0_58 = arith.constant 0 : index
    %55 = vector.load %arg10[%c0_57, %c0_58] : memref<128x128xf32, #tpu.memory_space<vmem>>, vector<128x128xf32>
    %56 = arith.addf %55, %54 : vector<128x128xf32>
    %c0_59 = arith.constant 0 : index
    %c0_60 = arith.constant 0 : index
    %57 = vector.load %arg10[%c0_59, %c0_60] : memref<128x128xf32, #tpu.memory_space<vmem>>, vector<128x128xf32>
    tpu.vector_store %arg10[%c0_59, %c0_60], %56 {strides = array<i32>} : memref<128x128xf32, #tpu.memory_space<vmem>>, vector<128x128xf32>,
    %58 = vector.extract_strided_slice %41 {offsets = [12, 0, 0], sizes = [8, 16, 4], strides = [1, 1, 1]} : vector<20x16x4xbf16> to vector<8x16x4xbf16>
    %59 = vector.shape_cast %58 : vector<8x16x4xbf16> to vector<128x4xbf16>
    %c0_61 = arith.constant 0 : index
    %c7 = arith.constant 7 : index
    %c0_62 = arith.constant 0 : index
    %c0_63 = arith.constant 0 : index
    %60 = vector.load %arg4[%c0_61, %c7, %c0_62, %c0_63] : memref<3x9x4x128xbf16, #tpu.memory_space<vmem>>, vector<1x1x4x128xbf16>
    %61 = vector.shape_cast %60 : vector<1x1x4x128xbf16> to vector<4x128xbf16>
    %cst_64 = arith.constant dense<0.000000e+00> : vector<128x128xf32>
    %62 = tpu.matmul %59, %61, %cst_64 {dimension_numbers = #tpu.dot_dimension_numbers<[1], [0], [0], [1], [0, 0, 1, 1], [], []>} : vector<128x4xbf16>, vector<4x128xbf16>, vector<128x128xf32> -> vector<128x128xf32>
    %c0_65 = arith.constant 0 : index
    %c0_66 = arith.constant 0 : index
    %63 = vector.load %arg10[%c0_65, %c0_66] : memref<128x128xf32, #tpu.memory_space<vmem>>, vector<128x128xf32>
    %64 = arith.addf %63, %62 : vector<128x128xf32>
    %c0_67 = arith.constant 0 : index
    %c0_68 = arith.constant 0 : index
    %65 = vector.load %arg10[%c0_67, %c0_68] : memref<128x128xf32, #tpu.memory_space<vmem>>, vector<128x128xf32>
    tpu.vector_store %arg10[%c0_67, %c0_68], %64 {strides = array<i32>} : memref<128x128xf32, #tpu.memory_space<vmem>>, vector<128x128xf32>,
    %c0_69 = arith.constant 0 : index
    %c0_70 = arith.constant 0 : index
    %c18_71 = arith.constant 18 : index
    %c30 = arith.constant 30 : index
    %c0_72 = arith.constant 0 : index
    %66 = vector.load %arg2[%c0_69, %c0_70, %c18_71, %c30, %c0_72] : memref<1x1x56x64x4xbf16, #tpu.memory_space<vmem>>, vector<1x1x20x16x4xbf16>
    %67 = vector.shape_cast %66 : vector<1x1x20x16x4xbf16> to vector<20x16x4xbf16>
    %68 = vector.extract_strided_slice %67 {offsets = [0, 0, 0], sizes = [8, 16, 4], strides = [1, 1, 1]} : vector<20x16x4xbf16> to vector<8x16x4xbf16>
    %69 = vector.shape_cast %68 : vector<8x16x4xbf16> to vector<128x4xbf16>
    %c0_73 = arith.constant 0 : index
    %c2 = arith.constant 2 : index
    %c0_74 = arith.constant 0 : index
    %c0_75 = arith.constant 0 : index
    %70 = vector.load %arg4[%c0_73, %c2, %c0_74, %c0_75] : memref<3x9x4x128xbf16, #tpu.memory_space<vmem>>, vector<1x1x4x128xbf16>
    %71 = vector.shape_cast %70 : vector<1x1x4x128xbf16> to vector<4x128xbf16>
    %cst_76 = arith.constant dense<0.000000e+00> : vector<128x128xf32>
    %72 = tpu.matmul %69, %71, %cst_76 {dimension_numbers = #tpu.dot_dimension_numbers<[1], [0], [0], [1], [0, 0, 1, 1], [], []>} : vector<128x4xbf16>, vector<4x128xbf16>, vector<128x128xf32> -> vector<128x128xf32>
    %c0_77 = arith.constant 0 : index
    %c0_78 = arith.constant 0 : index
    %73 = vector.load %arg10[%c0_77, %c0_78] : memref<128x128xf32, #tpu.memory_space<vmem>>, vector<128x128xf32>
    %74 = arith.addf %73, %72 : vector<128x128xf32>
    %c0_79 = arith.constant 0 : index
    %c0_80 = arith.constant 0 : index
    %75 = vector.load %arg10[%c0_79, %c0_80] : memref<128x128xf32, #tpu.memory_space<vmem>>, vector<128x128xf32>
    tpu.vector_store %arg10[%c0_79, %c0_80], %74 {strides = array<i32>} : memref<128x128xf32, #tpu.memory_space<vmem>>, vector<128x128xf32>,
    %76 = vector.extract_strided_slice %67 {offsets = [6, 0, 0], sizes = [8, 16, 4], strides = [1, 1, 1]} : vector<20x16x4xbf16> to vector<8x16x4xbf16>
    %77 = vector.shape_cast %76 : vector<8x16x4xbf16> to vector<128x4xbf16>
    %c0_81 = arith.constant 0 : index
    %c5 = arith.constant 5 : index
    %c0_82 = arith.constant 0 : index
    %c0_83 = arith.constant 0 : index
    %78 = vector.load %arg4[%c0_81, %c5, %c0_82, %c0_83] : memref<3x9x4x128xbf16, #tpu.memory_space<vmem>>, vector<1x1x4x128xbf16>
    %79 = vector.shape_cast %78 : vector<1x1x4x128xbf16> to vector<4x128xbf16>
    %cst_84 = arith.constant dense<0.000000e+00> : vector<128x128xf32>
    %80 = tpu.matmul %77, %79, %cst_84 {dimension_numbers = #tpu.dot_dimension_numbers<[1], [0], [0], [1], [0, 0, 1, 1], [], []>} : vector<128x4xbf16>, vector<4x128xbf16>, vector<128x128xf32> -> vector<128x128xf32>
    %c0_85 = arith.constant 0 : index
    %c0_86 = arith.constant 0 : index
    %81 = vector.load %arg10[%c0_85, %c0_86] : memref<128x128xf32, #tpu.memory_space<vmem>>, vector<128x128xf32>
    %82 = arith.addf %81, %80 : vector<128x128xf32>
    %c0_87 = arith.constant 0 : index
    %c0_88 = arith.constant 0 : index
    %83 = vector.load %arg10[%c0_87, %c0_88] : memref<128x128xf32, #tpu.memory_space<vmem>>, vector<128x128xf32>
    tpu.vector_store %arg10[%c0_87, %c0_88], %82 {strides = array<i32>} : memref<128x128xf32, #tpu.memory_space<vmem>>, vector<128x128xf32>,
    %84 = vector.extract_strided_slice %67 {offsets = [12, 0, 0], sizes = [8, 16, 4], strides = [1, 1, 1]} : vector<20x16x4xbf16> to vector<8x16x4xbf16>
    %85 = vector.shape_cast %84 : vector<8x16x4xbf16> to vector<128x4xbf16>
    %c0_89 = arith.constant 0 : index
    %c8 = arith.constant 8 : index
    %c0_90 = arith.constant 0 : index
    %c0_91 = arith.constant 0 : index
    %86 = vector.load %arg4[%c0_89, %c8, %c0_90, %c0_91] : memref<3x9x4x128xbf16, #tpu.memory_space<vmem>>, vector<1x1x4x128xbf16>
    %87 = vector.shape_cast %86 : vector<1x1x4x128xbf16> to vector<4x128xbf16>
    %cst_92 = arith.constant dense<0.000000e+00> : vector<128x128xf32>
    %88 = tpu.matmul %85, %87, %cst_92 {dimension_numbers = #tpu.dot_dimension_numbers<[1], [0], [0], [1], [0, 0, 1, 1], [], []>} : vector<128x4xbf16>, vector<4x128xbf16>, vector<128x128xf32> -> vector<128x128xf32>
    %c0_93 = arith.constant 0 : index
    %c0_94 = arith.constant 0 : index
    %89 = vector.load %arg10[%c0_93, %c0_94] : memref<128x128xf32, #tpu.memory_space<vmem>>, vector<128x128xf32>
    %90 = arith.addf %89, %88 : vector<128x128xf32>
    %c0_95 = arith.constant 0 : index
    %c0_96 = arith.constant 0 : index
    %91 = vector.load %arg10[%c0_95, %c0_96] : memref<128x128xf32, #tpu.memory_space<vmem>>, vector<128x128xf32>
    tpu.vector_store %arg10[%c0_95, %c0_96], %90 {strides = array<i32>} : memref<128x128xf32, #tpu.memory_space<vmem>>, vector<128x128xf32>,
    %c0_97 = arith.constant 0 : index
    %c0_98 = arith.constant 0 : index
    %92 = vector.load %arg10[%c0_97, %c0_98] : memref<128x128xf32, #tpu.memory_space<vmem>>, vector<128x128xf32>
    %c1_99 = arith.constant 1 : index
    %c0_100 = arith.constant 0 : index
    %93 = vector.load %arg6[%c1_99, %c0_100] : memref<4x128xf32, #tpu.memory_space<vmem>>, vector<1x128xf32>
    %94 = vector.shape_cast %93 : vector<1x128xf32> to vector<128xf32>
    %95 = vector.shape_cast %94 : vector<128xf32> to vector<1x128xf32>
    %96 = vector.broadcast %95 : vector<1x128xf32> to vector<128x128xf32>
    %97 = arith.addf %92, %96 : vector<128x128xf32>
    %cst_101 = arith.constant 0.000000e+00 : f32
    %98 = vector.broadcast %cst_101 : f32 to vector<128x128xf32>
    %99 = arith.maximumf %97, %98 : vector<128x128xf32>
    %c0_102 = arith.constant 0 : index
    %c0_103 = arith.constant 0 : index
    %100 = vector.load %arg9[%c0_102, %c0_103] : memref<128x128xf32, #tpu.memory_space<vmem>>, vector<128x128xf32>
    %101 = arith.truncf %99 : vector<128x128xf32> to vector<128x128xbf16>
    %c128 = arith.constant 128 : index
    %c0_104 = arith.constant 0 : index
    %102 = vector.load %arg5[%c128, %c0_104] : memref<512x128xbf16, #tpu.memory_space<vmem>>, vector<128x128xbf16>
    %cst_105 = arith.constant dense<0.000000e+00> : vector<128x128xf32>
    %103 = tpu.matmul %101, %102, %cst_105 {dimension_numbers = #tpu.dot_dimension_numbers<[1], [0], [0], [1], [0, 0, 1, 1], [], []>} : vector<128x128xbf16>, vector<128x128xbf16>, vector<128x128xf32> -> vector<128x128xf32>
    %104 = arith.addf %100, %103 : vector<128x128xf32>
    %c0_106 = arith.constant 0 : index
    %c0_107 = arith.constant 0 : index
    %105 = vector.load %arg9[%c0_106, %c0_107] : memref<128x128xf32, #tpu.memory_space<vmem>>, vector<128x128xf32>
    tpu.vector_store %arg9[%c0_106, %c0_107], %104 {strides = array<i32>} : memref<128x128xf32, #tpu.memory_space<vmem>>, vector<128x128xf32>,
    %c0_108 = arith.constant 0 : index
    %c0_109 = arith.constant 0 : index
    %c12 = arith.constant 12 : index
    %c12_110 = arith.constant 12 : index
    %c0_111 = arith.constant 0 : index
    %106 = vector.load %arg2[%c0_108, %c0_109, %c12, %c12_110, %c0_111] : memref<1x1x56x64x4xbf16, #tpu.memory_space<vmem>>, vector<1x1x32x16x4xbf16>
    %107 = vector.shape_cast %106 : vector<1x1x32x16x4xbf16> to vector<32x16x4xbf16>
    %108 = vector.extract_strided_slice %107 {offsets = [0, 0, 0], sizes = [8, 16, 4], strides = [1, 1, 1]} : vector<32x16x4xbf16> to vector<8x16x4xbf16>
    %109 = vector.shape_cast %108 : vector<8x16x4xbf16> to vector<128x4xbf16>
    %c1_112 = arith.constant 1 : index
    %c0_113 = arith.constant 0 : index
    %c0_114 = arith.constant 0 : index
    %c0_115 = arith.constant 0 : index
    %110 = vector.load %arg4[%c1_112, %c0_113, %c0_114, %c0_115] : memref<3x9x4x128xbf16, #tpu.memory_space<vmem>>, vector<1x1x4x128xbf16>
    %111 = vector.shape_cast %110 : vector<1x1x4x128xbf16> to vector<4x128xbf16>
    %cst_116 = arith.constant dense<0.000000e+00> : vector<128x128xf32>
    %112 = tpu.matmul %109, %111, %cst_116 {dimension_numbers = #tpu.dot_dimension_numbers<[1], [0], [0], [1], [0, 0, 1, 1], [], []>} : vector<128x4xbf16>, vector<4x128xbf16>, vector<128x128xf32> -> vector<128x128xf32>
    %c0_117 = arith.constant 0 : index
    %c0_118 = arith.constant 0 : index
    %113 = vector.load %arg10[%c0_117, %c0_118] : memref<128x128xf32, #tpu.memory_space<vmem>>, vector<128x128xf32>
    tpu.vector_store %arg10[%c0_117, %c0_118], %112 {strides = array<i32>} : memref<128x128xf32, #tpu.memory_space<vmem>>, vector<128x128xf32>,
    %114 = vector.extract_strided_slice %107 {offsets = [12, 0, 0], sizes = [8, 16, 4], strides = [1, 1, 1]} : vector<32x16x4xbf16> to vector<8x16x4xbf16>
    %115 = vector.shape_cast %114 : vector<8x16x4xbf16> to vector<128x4xbf16>
    %c1_119 = arith.constant 1 : index
    %c3_120 = arith.constant 3 : index
    %c0_121 = arith.constant 0 : index
    %c0_122 = arith.constant 0 : index
    %116 = vector.load %arg4[%c1_119, %c3_120, %c0_121, %c0_122] : memref<3x9x4x128xbf16, #tpu.memory_space<vmem>>, vector<1x1x4x128xbf16>
    %117 = vector.shape_cast %116 : vector<1x1x4x128xbf16> to vector<4x128xbf16>
    %cst_123 = arith.constant dense<0.000000e+00> : vector<128x128xf32>
    %118 = tpu.matmul %115, %117, %cst_123 {dimension_numbers = #tpu.dot_dimension_numbers<[1], [0], [0], [1], [0, 0, 1, 1], [], []>} : vector<128x4xbf16>, vector<4x128xbf16>, vector<128x128xf32> -> vector<128x128xf32>
    %c0_124 = arith.constant 0 : index
    %c0_125 = arith.constant 0 : index
    %119 = vector.load %arg10[%c0_124, %c0_125] : memref<128x128xf32, #tpu.memory_space<vmem>>, vector<128x128xf32>
    %120 = arith.addf %119, %118 : vector<128x128xf32>
    %c0_126 = arith.constant 0 : index
    %c0_127 = arith.constant 0 : index
    %121 = vector.load %arg10[%c0_126, %c0_127] : memref<128x128xf32, #tpu.memory_space<vmem>>, vector<128x128xf32>
    tpu.vector_store %arg10[%c0_126, %c0_127], %120 {strides = array<i32>} : memref<128x128xf32, #tpu.memory_space<vmem>>, vector<128x128xf32>,
    %122 = vector.extract_strided_slice %107 {offsets = [24, 0, 0], sizes = [8, 16, 4], strides = [1, 1, 1]} : vector<32x16x4xbf16> to vector<8x16x4xbf16>
    %123 = vector.shape_cast %122 : vector<8x16x4xbf16> to vector<128x4xbf16>
    %c1_128 = arith.constant 1 : index
    %c6_129 = arith.constant 6 : index
    %c0_130 = arith.constant 0 : index
    %c0_131 = arith.constant 0 : index
    %124 = vector.load %arg4[%c1_128, %c6_129, %c0_130, %c0_131] : memref<3x9x4x128xbf16, #tpu.memory_space<vmem>>, vector<1x1x4x128xbf16>
    %125 = vector.shape_cast %124 : vector<1x1x4x128xbf16> to vector<4x128xbf16>
    %cst_132 = arith.constant dense<0.000000e+00> : vector<128x128xf32>
    %126 = tpu.matmul %123, %125, %cst_132 {dimension_numbers = #tpu.dot_dimension_numbers<[1], [0], [0], [1], [0, 0, 1, 1], [], []>} : vector<128x4xbf16>, vector<4x128xbf16>, vector<128x128xf32> -> vector<128x128xf32>
    %c0_133 = arith.constant 0 : index
    %c0_134 = arith.constant 0 : index
    %127 = vector.load %arg10[%c0_133, %c0_134] : memref<128x128xf32, #tpu.memory_space<vmem>>, vector<128x128xf32>
    %128 = arith.addf %127, %126 : vector<128x128xf32>
    %c0_135 = arith.constant 0 : index
    %c0_136 = arith.constant 0 : index
    %129 = vector.load %arg10[%c0_135, %c0_136] : memref<128x128xf32, #tpu.memory_space<vmem>>, vector<128x128xf32>
    tpu.vector_store %arg10[%c0_135, %c0_136], %128 {strides = array<i32>} : memref<128x128xf32, #tpu.memory_space<vmem>>, vector<128x128xf32>,
    %c0_137 = arith.constant 0 : index
    %c0_138 = arith.constant 0 : index
    %c12_139 = arith.constant 12 : index
    %c24_140 = arith.constant 24 : index
    %c0_141 = arith.constant 0 : index
    %130 = vector.load %arg2[%c0_137, %c0_138, %c12_139, %c24_140, %c0_141] : memref<1x1x56x64x4xbf16, #tpu.memory_space<vmem>>, vector<1x1x32x16x4xbf16>
    %131 = vector.shape_cast %130 : vector<1x1x32x16x4xbf16> to vector<32x16x4xbf16>
    %132 = vector.extract_strided_slice %131 {offsets = [0, 0, 0], sizes = [8, 16, 4], strides = [1, 1, 1]} : vector<32x16x4xbf16> to vector<8x16x4xbf16>
    %133 = vector.shape_cast %132 : vector<8x16x4xbf16> to vector<128x4xbf16>
    %c1_142 = arith.constant 1 : index
    %c1_143 = arith.constant 1 : index
    %c0_144 = arith.constant 0 : index
    %c0_145 = arith.constant 0 : index
    %134 = vector.load %arg4[%c1_142, %c1_143, %c0_144, %c0_145] : memref<3x9x4x128xbf16, #tpu.memory_space<vmem>>, vector<1x1x4x128xbf16>
    %135 = vector.shape_cast %134 : vector<1x1x4x128xbf16> to vector<4x128xbf16>
    %cst_146 = arith.constant dense<0.000000e+00> : vector<128x128xf32>
    %136 = tpu.matmul %133, %135, %cst_146 {dimension_numbers = #tpu.dot_dimension_numbers<[1], [0], [0], [1], [0, 0, 1, 1], [], []>} : vector<128x4xbf16>, vector<4x128xbf16>, vector<128x128xf32> -> vector<128x128xf32>
    %c0_147 = arith.constant 0 : index
    %c0_148 = arith.constant 0 : index
    %137 = vector.load %arg10[%c0_147, %c0_148] : memref<128x128xf32, #tpu.memory_space<vmem>>, vector<128x128xf32>
    %138 = arith.addf %137, %136 : vector<128x128xf32>
    %c0_149 = arith.constant 0 : index
    %c0_150 = arith.constant 0 : index
    %139 = vector.load %arg10[%c0_149, %c0_150] : memref<128x128xf32, #tpu.memory_space<vmem>>, vector<128x128xf32>
    tpu.vector_store %arg10[%c0_149, %c0_150], %138 {strides = array<i32>} : memref<128x128xf32, #tpu.memory_space<vmem>>, vector<128x128xf32>,
    %140 = vector.extract_strided_slice %131 {offsets = [12, 0, 0], sizes = [8, 16, 4], strides = [1, 1, 1]} : vector<32x16x4xbf16> to vector<8x16x4xbf16>
    %141 = vector.shape_cast %140 : vector<8x16x4xbf16> to vector<128x4xbf16>
    %c1_151 = arith.constant 1 : index
    %c4_152 = arith.constant 4 : index
    %c0_153 = arith.constant 0 : index
    %c0_154 = arith.constant 0 : index
    %142 = vector.load %arg4[%c1_151, %c4_152, %c0_153, %c0_154] : memref<3x9x4x128xbf16, #tpu.memory_space<vmem>>, vector<1x1x4x128xbf16>
    %143 = vector.shape_cast %142 : vector<1x1x4x128xbf16> to vector<4x128xbf16>
    %cst_155 = arith.constant dense<0.000000e+00> : vector<128x128xf32>
    %144 = tpu.matmul %141, %143, %cst_155 {dimension_numbers = #tpu.dot_dimension_numbers<[1], [0], [0], [1], [0, 0, 1, 1], [], []>} : vector<128x4xbf16>, vector<4x128xbf16>, vector<128x128xf32> -> vector<128x128xf32>
    %c0_156 = arith.constant 0 : index
    %c0_157 = arith.constant 0 : index
    %145 = vector.load %arg10[%c0_156, %c0_157] : memref<128x128xf32, #tpu.memory_space<vmem>>, vector<128x128xf32>
    %146 = arith.addf %145, %144 : vector<128x128xf32>
    %c0_158 = arith.constant 0 : index
    %c0_159 = arith.constant 0 : index
    %147 = vector.load %arg10[%c0_158, %c0_159] : memref<128x128xf32, #tpu.memory_space<vmem>>, vector<128x128xf32>
    tpu.vector_store %arg10[%c0_158, %c0_159], %146 {strides = array<i32>} : memref<128x128xf32, #tpu.memory_space<vmem>>, vector<128x128xf32>,
    %148 = vector.extract_strided_slice %131 {offsets = [24, 0, 0], sizes = [8, 16, 4], strides = [1, 1, 1]} : vector<32x16x4xbf16> to vector<8x16x4xbf16>
    %149 = vector.shape_cast %148 : vector<8x16x4xbf16> to vector<128x4xbf16>
    %c1_160 = arith.constant 1 : index
    %c7_161 = arith.constant 7 : index
    %c0_162 = arith.constant 0 : index
    %c0_163 = arith.constant 0 : index
    %150 = vector.load %arg4[%c1_160, %c7_161, %c0_162, %c0_163] : memref<3x9x4x128xbf16, #tpu.memory_space<vmem>>, vector<1x1x4x128xbf16>
    %151 = vector.shape_cast %150 : vector<1x1x4x128xbf16> to vector<4x128xbf16>
    %cst_164 = arith.constant dense<0.000000e+00> : vector<128x128xf32>
    %152 = tpu.matmul %149, %151, %cst_164 {dimension_numbers = #tpu.dot_dimension_numbers<[1], [0], [0], [1], [0, 0, 1, 1], [], []>} : vector<128x4xbf16>, vector<4x128xbf16>, vector<128x128xf32> -> vector<128x128xf32>
    %c0_165 = arith.constant 0 : index
    %c0_166 = arith.constant 0 : index
    %153 = vector.load %arg10[%c0_165, %c0_166] : memref<128x128xf32, #tpu.memory_space<vmem>>, vector<128x128xf32>
    %154 = arith.addf %153, %152 : vector<128x128xf32>
    %c0_167 = arith.constant 0 : index
    %c0_168 = arith.constant 0 : index
    %155 = vector.load %arg10[%c0_167, %c0_168] : memref<128x128xf32, #tpu.memory_space<vmem>>, vector<128x128xf32>
    tpu.vector_store %arg10[%c0_167, %c0_168], %154 {strides = array<i32>} : memref<128x128xf32, #tpu.memory_space<vmem>>, vector<128x128xf32>,
    %c0_169 = arith.constant 0 : index
    %c0_170 = arith.constant 0 : index
    %c12_171 = arith.constant 12 : index
    %c36 = arith.constant 36 : index
    %c0_172 = arith.constant 0 : index
    %156 = vector.load %arg2[%c0_169, %c0_170, %c12_171, %c36, %c0_172] : memref<1x1x56x64x4xbf16, #tpu.memory_space<vmem>>, vector<1x1x32x16x4xbf16>
    %157 = vector.shape_cast %156 : vector<1x1x32x16x4xbf16> to vector<32x16x4xbf16>
    %158 = vector.extract_strided_slice %157 {offsets = [0, 0, 0], sizes = [8, 16, 4], strides = [1, 1, 1]} : vector<32x16x4xbf16> to vector<8x16x4xbf16>
    %159 = vector.shape_cast %158 : vector<8x16x4xbf16> to vector<128x4xbf16>
    %c1_173 = arith.constant 1 : index
    %c2_174 = arith.constant 2 : index
    %c0_175 = arith.constant 0 : index
    %c0_176 = arith.constant 0 : index
    %160 = vector.load %arg4[%c1_173, %c2_174, %c0_175, %c0_176] : memref<3x9x4x128xbf16, #tpu.memory_space<vmem>>, vector<1x1x4x128xbf16>
    %161 = vector.shape_cast %160 : vector<1x1x4x128xbf16> to vector<4x128xbf16>
    %cst_177 = arith.constant dense<0.000000e+00> : vector<128x128xf32>
    %162 = tpu.matmul %159, %161, %cst_177 {dimension_numbers = #tpu.dot_dimension_numbers<[1], [0], [0], [1], [0, 0, 1, 1], [], []>} : vector<128x4xbf16>, vector<4x128xbf16>, vector<128x128xf32> -> vector<128x128xf32>
    %c0_178 = arith.constant 0 : index
    %c0_179 = arith.constant 0 : index
    %163 = vector.load %arg10[%c0_178, %c0_179] : memref<128x128xf32, #tpu.memory_space<vmem>>, vector<128x128xf32>
    %164 = arith.addf %163, %162 : vector<128x128xf32>
    %c0_180 = arith.constant 0 : index
    %c0_181 = arith.constant 0 : index
    %165 = vector.load %arg10[%c0_180, %c0_181] : memref<128x128xf32, #tpu.memory_space<vmem>>, vector<128x128xf32>
    tpu.vector_store %arg10[%c0_180, %c0_181], %164 {strides = array<i32>} : memref<128x128xf32, #tpu.memory_space<vmem>>, vector<128x128xf32>,
    %166 = vector.extract_strided_slice %157 {offsets = [12, 0, 0], sizes = [8, 16, 4], strides = [1, 1, 1]} : vector<32x16x4xbf16> to vector<8x16x4xbf16>
    %167 = vector.shape_cast %166 : vector<8x16x4xbf16> to vector<128x4xbf16>
    %c1_182 = arith.constant 1 : index
    %c5_183 = arith.constant 5 : index
    %c0_184 = arith.constant 0 : index
    %c0_185 = arith.constant 0 : index
    %168 = vector.load %arg4[%c1_182, %c5_183, %c0_184, %c0_185] : memref<3x9x4x128xbf16, #tpu.memory_space<vmem>>, vector<1x1x4x128xbf16>
    %169 = vector.shape_cast %168 : vector<1x1x4x128xbf16> to vector<4x128xbf16>
    %cst_186 = arith.constant dense<0.000000e+00> : vector<128x128xf32>
    %170 = tpu.matmul %167, %169, %cst_186 {dimension_numbers = #tpu.dot_dimension_numbers<[1], [0], [0], [1], [0, 0, 1, 1], [], []>} : vector<128x4xbf16>, vector<4x128xbf16>, vector<128x128xf32> -> vector<128x128xf32>
    %c0_187 = arith.constant 0 : index
    %c0_188 = arith.constant 0 : index
    %171 = vector.load %arg10[%c0_187, %c0_188] : memref<128x128xf32, #tpu.memory_space<vmem>>, vector<128x128xf32>
    %172 = arith.addf %171, %170 : vector<128x128xf32>
    %c0_189 = arith.constant 0 : index
    %c0_190 = arith.constant 0 : index
    %173 = vector.load %arg10[%c0_189, %c0_190] : memref<128x128xf32, #tpu.memory_space<vmem>>, vector<128x128xf32>
    tpu.vector_store %arg10[%c0_189, %c0_190], %172 {strides = array<i32>} : memref<128x128xf32, #tpu.memory_space<vmem>>, vector<128x128xf32>,
    %174 = vector.extract_strided_slice %157 {offsets = [24, 0, 0], sizes = [8, 16, 4], strides = [1, 1, 1]} : vector<32x16x4xbf16> to vector<8x16x4xbf16>
    %175 = vector.shape_cast %174 : vector<8x16x4xbf16> to vector<128x4xbf16>
    %c1_191 = arith.constant 1 : index
    %c8_192 = arith.constant 8 : index
    %c0_193 = arith.constant 0 : index
    %c0_194 = arith.constant 0 : index
    %176 = vector.load %arg4[%c1_191, %c8_192, %c0_193, %c0_194] : memref<3x9x4x128xbf16, #tpu.memory_space<vmem>>, vector<1x1x4x128xbf16>
    %177 = vector.shape_cast %176 : vector<1x1x4x128xbf16> to vector<4x128xbf16>
    %cst_195 = arith.constant dense<0.000000e+00> : vector<128x128xf32>
    %178 = tpu.matmul %175, %177, %cst_195 {dimension_numbers = #tpu.dot_dimension_numbers<[1], [0], [0], [1], [0, 0, 1, 1], [], []>} : vector<128x4xbf16>, vector<4x128xbf16>, vector<128x128xf32> -> vector<128x128xf32>
    %c0_196 = arith.constant 0 : index
    %c0_197 = arith.constant 0 : index
    %179 = vector.load %arg10[%c0_196, %c0_197] : memref<128x128xf32, #tpu.memory_space<vmem>>, vector<128x128xf32>
    %180 = arith.addf %179, %178 : vector<128x128xf32>
    %c0_198 = arith.constant 0 : index
    %c0_199 = arith.constant 0 : index
    %181 = vector.load %arg10[%c0_198, %c0_199] : memref<128x128xf32, #tpu.memory_space<vmem>>, vector<128x128xf32>
    tpu.vector_store %arg10[%c0_198, %c0_199], %180 {strides = array<i32>} : memref<128x128xf32, #tpu.memory_space<vmem>>, vector<128x128xf32>,
    %c0_200 = arith.constant 0 : index
    %c0_201 = arith.constant 0 : index
    %182 = vector.load %arg10[%c0_200, %c0_201] : memref<128x128xf32, #tpu.memory_space<vmem>>, vector<128x128xf32>
    %c2_202 = arith.constant 2 : index
    %c0_203 = arith.constant 0 : index
    %183 = vector.load %arg6[%c2_202, %c0_203] : memref<4x128xf32, #tpu.memory_space<vmem>>, vector<1x128xf32>
    %184 = vector.shape_cast %183 : vector<1x128xf32> to vector<128xf32>
    %185 = vector.shape_cast %184 : vector<128xf32> to vector<1x128xf32>
    %186 = vector.broadcast %185 : vector<1x128xf32> to vector<128x128xf32>
    %187 = arith.addf %182, %186 : vector<128x128xf32>
    %cst_204 = arith.constant 0.000000e+00 : f32
    %188 = vector.broadcast %cst_204 : f32 to vector<128x128xf32>
    %189 = arith.maximumf %187, %188 : vector<128x128xf32>
    %c0_205 = arith.constant 0 : index
    %c0_206 = arith.constant 0 : index
    %190 = vector.load %arg9[%c0_205, %c0_206] : memref<128x128xf32, #tpu.memory_space<vmem>>, vector<128x128xf32>
    %191 = arith.truncf %189 : vector<128x128xf32> to vector<128x128xbf16>
    %c256 = arith.constant 256 : index
    %c0_207 = arith.constant 0 : index
    %192 = vector.load %arg5[%c256, %c0_207] : memref<512x128xbf16, #tpu.memory_space<vmem>>, vector<128x128xbf16>
    %cst_208 = arith.constant dense<0.000000e+00> : vector<128x128xf32>
    %193 = tpu.matmul %191, %192, %cst_208 {dimension_numbers = #tpu.dot_dimension_numbers<[1], [0], [0], [1], [0, 0, 1, 1], [], []>} : vector<128x128xbf16>, vector<128x128xbf16>, vector<128x128xf32> -> vector<128x128xf32>
    %194 = arith.addf %190, %193 : vector<128x128xf32>
    %c0_209 = arith.constant 0 : index
    %c0_210 = arith.constant 0 : index
    %195 = vector.load %arg9[%c0_209, %c0_210] : memref<128x128xf32, #tpu.memory_space<vmem>>, vector<128x128xf32>
    tpu.vector_store %arg9[%c0_209, %c0_210], %194 {strides = array<i32>} : memref<128x128xf32, #tpu.memory_space<vmem>>, vector<128x128xf32>,
    %c0_211 = arith.constant 0 : index
    %c0_212 = arith.constant 0 : index
    %c6_213 = arith.constant 6 : index
    %c6_214 = arith.constant 6 : index
    %c0_215 = arith.constant 0 : index
    %196 = vector.load %arg2[%c0_211, %c0_212, %c6_213, %c6_214, %c0_215] : memref<1x1x56x64x4xbf16, #tpu.memory_space<vmem>>, vector<1x1x44x16x4xbf16>
    %197 = vector.shape_cast %196 : vector<1x1x44x16x4xbf16> to vector<44x16x4xbf16>
    %198 = vector.extract_strided_slice %197 {offsets = [0, 0, 0], sizes = [8, 16, 4], strides = [1, 1, 1]} : vector<44x16x4xbf16> to vector<8x16x4xbf16>
    %199 = vector.shape_cast %198 : vector<8x16x4xbf16> to vector<128x4xbf16>
    %c2_216 = arith.constant 2 : index
    %c0_217 = arith.constant 0 : index
    %c0_218 = arith.constant 0 : index
    %c0_219 = arith.constant 0 : index
    %200 = vector.load %arg4[%c2_216, %c0_217, %c0_218, %c0_219] : memref<3x9x4x128xbf16, #tpu.memory_space<vmem>>, vector<1x1x4x128xbf16>
    %201 = vector.shape_cast %200 : vector<1x1x4x128xbf16> to vector<4x128xbf16>
    %cst_220 = arith.constant dense<0.000000e+00> : vector<128x128xf32>
    %202 = tpu.matmul %199, %201, %cst_220 {dimension_numbers = #tpu.dot_dimension_numbers<[1], [0], [0], [1], [0, 0, 1, 1], [], []>} : vector<128x4xbf16>, vector<4x128xbf16>, vector<128x128xf32> -> vector<128x128xf32>
    %c0_221 = arith.constant 0 : index
    %c0_222 = arith.constant 0 : index
    %203 = vector.load %arg10[%c0_221, %c0_222] : memref<128x128xf32, #tpu.memory_space<vmem>>, vector<128x128xf32>
    tpu.vector_store %arg10[%c0_221, %c0_222], %202 {strides = array<i32>} : memref<128x128xf32, #tpu.memory_space<vmem>>, vector<128x128xf32>,
    %204 = vector.extract_strided_slice %197 {offsets = [18, 0, 0], sizes = [8, 16, 4], strides = [1, 1, 1]} : vector<44x16x4xbf16> to vector<8x16x4xbf16>
    %205 = vector.shape_cast %204 : vector<8x16x4xbf16> to vector<128x4xbf16>
    %c2_223 = arith.constant 2 : index
    %c3_224 = arith.constant 3 : index
    %c0_225 = arith.constant 0 : index
    %c0_226 = arith.constant 0 : index
    %206 = vector.load %arg4[%c2_223, %c3_224, %c0_225, %c0_226] : memref<3x9x4x128xbf16, #tpu.memory_space<vmem>>, vector<1x1x4x128xbf16>
    %207 = vector.shape_cast %206 : vector<1x1x4x128xbf16> to vector<4x128xbf16>
    %cst_227 = arith.constant dense<0.000000e+00> : vector<128x128xf32>
    %208 = tpu.matmul %205, %207, %cst_227 {dimension_numbers = #tpu.dot_dimension_numbers<[1], [0], [0], [1], [0, 0, 1, 1], [], []>} : vector<128x4xbf16>, vector<4x128xbf16>, vector<128x128xf32> -> vector<128x128xf32>
    %c0_228 = arith.constant 0 : index
    %c0_229 = arith.constant 0 : index
    %209 = vector.load %arg10[%c0_228, %c0_229] : memref<128x128xf32, #tpu.memory_space<vmem>>, vector<128x128xf32>
    %210 = arith.addf %209, %208 : vector<128x128xf32>
    %c0_230 = arith.constant 0 : index
    %c0_231 = arith.constant 0 : index
    %211 = vector.load %arg10[%c0_230, %c0_231] : memref<128x128xf32, #tpu.memory_space<vmem>>, vector<128x128xf32>
    tpu.vector_store %arg10[%c0_230, %c0_231], %210 {strides = array<i32>} : memref<128x128xf32, #tpu.memory_space<vmem>>, vector<128x128xf32>,
    %212 = vector.extract_strided_slice %197 {offsets = [36, 0, 0], sizes = [8, 16, 4], strides = [1, 1, 1]} : vector<44x16x4xbf16> to vector<8x16x4xbf16>
    %213 = vector.shape_cast %212 : vector<8x16x4xbf16> to vector<128x4xbf16>
    %c2_232 = arith.constant 2 : index
    %c6_233 = arith.constant 6 : index
    %c0_234 = arith.constant 0 : index
    %c0_235 = arith.constant 0 : index
    %214 = vector.load %arg4[%c2_232, %c6_233, %c0_234, %c0_235] : memref<3x9x4x128xbf16, #tpu.memory_space<vmem>>, vector<1x1x4x128xbf16>
    %215 = vector.shape_cast %214 : vector<1x1x4x128xbf16> to vector<4x128xbf16>
    %cst_236 = arith.constant dense<0.000000e+00> : vector<128x128xf32>
    %216 = tpu.matmul %213, %215, %cst_236 {dimension_numbers = #tpu.dot_dimension_numbers<[1], [0], [0], [1], [0, 0, 1, 1], [], []>} : vector<128x4xbf16>, vector<4x128xbf16>, vector<128x128xf32> -> vector<128x128xf32>
    %c0_237 = arith.constant 0 : index
    %c0_238 = arith.constant 0 : index
    %217 = vector.load %arg10[%c0_237, %c0_238] : memref<128x128xf32, #tpu.memory_space<vmem>>, vector<128x128xf32>
    %218 = arith.addf %217, %216 : vector<128x128xf32>
    %c0_239 = arith.constant 0 : index
    %c0_240 = arith.constant 0 : index
    %219 = vector.load %arg10[%c0_239, %c0_240] : memref<128x128xf32, #tpu.memory_space<vmem>>, vector<128x128xf32>
    tpu.vector_store %arg10[%c0_239, %c0_240], %218 {strides = array<i32>} : memref<128x128xf32, #tpu.memory_space<vmem>>, vector<128x128xf32>,
    %c0_241 = arith.constant 0 : index
    %c0_242 = arith.constant 0 : index
    %c6_243 = arith.constant 6 : index
    %c24_244 = arith.constant 24 : index
    %c0_245 = arith.constant 0 : index
    %220 = vector.load %arg2[%c0_241, %c0_242, %c6_243, %c24_244, %c0_245] : memref<1x1x56x64x4xbf16, #tpu.memory_space<vmem>>, vector<1x1x44x16x4xbf16>
    %221 = vector.shape_cast %220 : vector<1x1x44x16x4xbf16> to vector<44x16x4xbf16>
    %222 = vector.extract_strided_slice %221 {offsets = [0, 0, 0], sizes = [8, 16, 4], strides = [1, 1, 1]} : vector<44x16x4xbf16> to vector<8x16x4xbf16>
    %223 = vector.shape_cast %222 : vector<8x16x4xbf16> to vector<128x4xbf16>
    %c2_246 = arith.constant 2 : index
    %c1_247 = arith.constant 1 : index
    %c0_248 = arith.constant 0 : index
    %c0_249 = arith.constant 0 : index
    %224 = vector.load %arg4[%c2_246, %c1_247, %c0_248, %c0_249] : memref<3x9x4x128xbf16, #tpu.memory_space<vmem>>, vector<1x1x4x128xbf16>
    %225 = vector.shape_cast %224 : vector<1x1x4x128xbf16> to vector<4x128xbf16>
    %cst_250 = arith.constant dense<0.000000e+00> : vector<128x128xf32>
    %226 = tpu.matmul %223, %225, %cst_250 {dimension_numbers = #tpu.dot_dimension_numbers<[1], [0], [0], [1], [0, 0, 1, 1], [], []>} : vector<128x4xbf16>, vector<4x128xbf16>, vector<128x128xf32> -> vector<128x128xf32>
    %c0_251 = arith.constant 0 : index
    %c0_252 = arith.constant 0 : index
    %227 = vector.load %arg10[%c0_251, %c0_252] : memref<128x128xf32, #tpu.memory_space<vmem>>, vector<128x128xf32>
    %228 = arith.addf %227, %226 : vector<128x128xf32>
    %c0_253 = arith.constant 0 : index
    %c0_254 = arith.constant 0 : index
    %229 = vector.load %arg10[%c0_253, %c0_254] : memref<128x128xf32, #tpu.memory_space<vmem>>, vector<128x128xf32>
    tpu.vector_store %arg10[%c0_253, %c0_254], %228 {strides = array<i32>} : memref<128x128xf32, #tpu.memory_space<vmem>>, vector<128x128xf32>,
    %230 = vector.extract_strided_slice %221 {offsets = [18, 0, 0], sizes = [8, 16, 4], strides = [1, 1, 1]} : vector<44x16x4xbf16> to vector<8x16x4xbf16>
    %231 = vector.shape_cast %230 : vector<8x16x4xbf16> to vector<128x4xbf16>
    %c2_255 = arith.constant 2 : index
    %c4_256 = arith.constant 4 : index
    %c0_257 = arith.constant 0 : index
    %c0_258 = arith.constant 0 : index
    %232 = vector.load %arg4[%c2_255, %c4_256, %c0_257, %c0_258] : memref<3x9x4x128xbf16, #tpu.memory_space<vmem>>, vector<1x1x4x128xbf16>
    %233 = vector.shape_cast %232 : vector<1x1x4x128xbf16> to vector<4x128xbf16>
    %cst_259 = arith.constant dense<0.000000e+00> : vector<128x128xf32>
    %234 = tpu.matmul %231, %233, %cst_259 {dimension_numbers = #tpu.dot_dimension_numbers<[1], [0], [0], [1], [0, 0, 1, 1], [], []>} : vector<128x4xbf16>, vector<4x128xbf16>, vector<128x128xf32> -> vector<128x128xf32>
    %c0_260 = arith.constant 0 : index
    %c0_261 = arith.constant 0 : index
    %235 = vector.load %arg10[%c0_260, %c0_261] : memref<128x128xf32, #tpu.memory_space<vmem>>, vector<128x128xf32>
    %236 = arith.addf %235, %234 : vector<128x128xf32>
    %c0_262 = arith.constant 0 : index
    %c0_263 = arith.constant 0 : index
    %237 = vector.load %arg10[%c0_262, %c0_263] : memref<128x128xf32, #tpu.memory_space<vmem>>, vector<128x128xf32>
    tpu.vector_store %arg10[%c0_262, %c0_263], %236 {strides = array<i32>} : memref<128x128xf32, #tpu.memory_space<vmem>>, vector<128x128xf32>,
    %238 = vector.extract_strided_slice %221 {offsets = [36, 0, 0], sizes = [8, 16, 4], strides = [1, 1, 1]} : vector<44x16x4xbf16> to vector<8x16x4xbf16>
    %239 = vector.shape_cast %238 : vector<8x16x4xbf16> to vector<128x4xbf16>
    %c2_264 = arith.constant 2 : index
    %c7_265 = arith.constant 7 : index
    %c0_266 = arith.constant 0 : index
    %c0_267 = arith.constant 0 : index
    %240 = vector.load %arg4[%c2_264, %c7_265, %c0_266, %c0_267] : memref<3x9x4x128xbf16, #tpu.memory_space<vmem>>, vector<1x1x4x128xbf16>
    %241 = vector.shape_cast %240 : vector<1x1x4x128xbf16> to vector<4x128xbf16>
    %cst_268 = arith.constant dense<0.000000e+00> : vector<128x128xf32>
    %242 = tpu.matmul %239, %241, %cst_268 {dimension_numbers = #tpu.dot_dimension_numbers<[1], [0], [0], [1], [0, 0, 1, 1], [], []>} : vector<128x4xbf16>, vector<4x128xbf16>, vector<128x128xf32> -> vector<128x128xf32>
    %c0_269 = arith.constant 0 : index
    %c0_270 = arith.constant 0 : index
    %243 = vector.load %arg10[%c0_269, %c0_270] : memref<128x128xf32, #tpu.memory_space<vmem>>, vector<128x128xf32>
    %244 = arith.addf %243, %242 : vector<128x128xf32>
    %c0_271 = arith.constant 0 : index
    %c0_272 = arith.constant 0 : index
    %245 = vector.load %arg10[%c0_271, %c0_272] : memref<128x128xf32, #tpu.memory_space<vmem>>, vector<128x128xf32>
    tpu.vector_store %arg10[%c0_271, %c0_272], %244 {strides = array<i32>} : memref<128x128xf32, #tpu.memory_space<vmem>>, vector<128x128xf32>,
    %c0_273 = arith.constant 0 : index
    %c0_274 = arith.constant 0 : index
    %c6_275 = arith.constant 6 : index
    %c42 = arith.constant 42 : index
    %c0_276 = arith.constant 0 : index
    %246 = vector.load %arg2[%c0_273, %c0_274, %c6_275, %c42, %c0_276] : memref<1x1x56x64x4xbf16, #tpu.memory_space<vmem>>, vector<1x1x44x16x4xbf16>
    %247 = vector.shape_cast %246 : vector<1x1x44x16x4xbf16> to vector<44x16x4xbf16>
    %248 = vector.extract_strided_slice %247 {offsets = [0, 0, 0], sizes = [8, 16, 4], strides = [1, 1, 1]} : vector<44x16x4xbf16> to vector<8x16x4xbf16>
    %249 = vector.shape_cast %248 : vector<8x16x4xbf16> to vector<128x4xbf16>
    %c2_277 = arith.constant 2 : index
    %c2_278 = arith.constant 2 : index
    %c0_279 = arith.constant 0 : index
    %c0_280 = arith.constant 0 : index
    %250 = vector.load %arg4[%c2_277, %c2_278, %c0_279, %c0_280] : memref<3x9x4x128xbf16, #tpu.memory_space<vmem>>, vector<1x1x4x128xbf16>
    %251 = vector.shape_cast %250 : vector<1x1x4x128xbf16> to vector<4x128xbf16>
    %cst_281 = arith.constant dense<0.000000e+00> : vector<128x128xf32>
    %252 = tpu.matmul %249, %251, %cst_281 {dimension_numbers = #tpu.dot_dimension_numbers<[1], [0], [0], [1], [0, 0, 1, 1], [], []>} : vector<128x4xbf16>, vector<4x128xbf16>, vector<128x128xf32> -> vector<128x128xf32>
    %c0_282 = arith.constant 0 : index
    %c0_283 = arith.constant 0 : index
    %253 = vector.load %arg10[%c0_282, %c0_283] : memref<128x128xf32, #tpu.memory_space<vmem>>, vector<128x128xf32>
    %254 = arith.addf %253, %252 : vector<128x128xf32>
    %c0_284 = arith.constant 0 : index
    %c0_285 = arith.constant 0 : index
    %255 = vector.load %arg10[%c0_284, %c0_285] : memref<128x128xf32, #tpu.memory_space<vmem>>, vector<128x128xf32>
    tpu.vector_store %arg10[%c0_284, %c0_285], %254 {strides = array<i32>} : memref<128x128xf32, #tpu.memory_space<vmem>>, vector<128x128xf32>,
    %256 = vector.extract_strided_slice %247 {offsets = [18, 0, 0], sizes = [8, 16, 4], strides = [1, 1, 1]} : vector<44x16x4xbf16> to vector<8x16x4xbf16>
    %257 = vector.shape_cast %256 : vector<8x16x4xbf16> to vector<128x4xbf16>
    %c2_286 = arith.constant 2 : index
    %c5_287 = arith.constant 5 : index
    %c0_288 = arith.constant 0 : index
    %c0_289 = arith.constant 0 : index
    %258 = vector.load %arg4[%c2_286, %c5_287, %c0_288, %c0_289] : memref<3x9x4x128xbf16, #tpu.memory_space<vmem>>, vector<1x1x4x128xbf16>
    %259 = vector.shape_cast %258 : vector<1x1x4x128xbf16> to vector<4x128xbf16>
    %cst_290 = arith.constant dense<0.000000e+00> : vector<128x128xf32>
    %260 = tpu.matmul %257, %259, %cst_290 {dimension_numbers = #tpu.dot_dimension_numbers<[1], [0], [0], [1], [0, 0, 1, 1], [], []>} : vector<128x4xbf16>, vector<4x128xbf16>, vector<128x128xf32> -> vector<128x128xf32>
    %c0_291 = arith.constant 0 : index
    %c0_292 = arith.constant 0 : index
    %261 = vector.load %arg10[%c0_291, %c0_292] : memref<128x128xf32, #tpu.memory_space<vmem>>, vector<128x128xf32>
    %262 = arith.addf %261, %260 : vector<128x128xf32>
    %c0_293 = arith.constant 0 : index
    %c0_294 = arith.constant 0 : index
    %263 = vector.load %arg10[%c0_293, %c0_294] : memref<128x128xf32, #tpu.memory_space<vmem>>, vector<128x128xf32>
    tpu.vector_store %arg10[%c0_293, %c0_294], %262 {strides = array<i32>} : memref<128x128xf32, #tpu.memory_space<vmem>>, vector<128x128xf32>,
    %264 = vector.extract_strided_slice %247 {offsets = [36, 0, 0], sizes = [8, 16, 4], strides = [1, 1, 1]} : vector<44x16x4xbf16> to vector<8x16x4xbf16>
    %265 = vector.shape_cast %264 : vector<8x16x4xbf16> to vector<128x4xbf16>
    %c2_295 = arith.constant 2 : index
    %c8_296 = arith.constant 8 : index
    %c0_297 = arith.constant 0 : index
    %c0_298 = arith.constant 0 : index
    %266 = vector.load %arg4[%c2_295, %c8_296, %c0_297, %c0_298] : memref<3x9x4x128xbf16, #tpu.memory_space<vmem>>, vector<1x1x4x128xbf16>
    %267 = vector.shape_cast %266 : vector<1x1x4x128xbf16> to vector<4x128xbf16>
    %cst_299 = arith.constant dense<0.000000e+00> : vector<128x128xf32>
    %268 = tpu.matmul %265, %267, %cst_299 {dimension_numbers = #tpu.dot_dimension_numbers<[1], [0], [0], [1], [0, 0, 1, 1], [], []>} : vector<128x4xbf16>, vector<4x128xbf16>, vector<128x128xf32> -> vector<128x128xf32>
    %c0_300 = arith.constant 0 : index
    %c0_301 = arith.constant 0 : index
    %269 = vector.load %arg10[%c0_300, %c0_301] : memref<128x128xf32, #tpu.memory_space<vmem>>, vector<128x128xf32>
    %270 = arith.addf %269, %268 : vector<128x128xf32>
    %c0_302 = arith.constant 0 : index
    %c0_303 = arith.constant 0 : index
    %271 = vector.load %arg10[%c0_302, %c0_303] : memref<128x128xf32, #tpu.memory_space<vmem>>, vector<128x128xf32>
    tpu.vector_store %arg10[%c0_302, %c0_303], %270 {strides = array<i32>} : memref<128x128xf32, #tpu.memory_space<vmem>>, vector<128x128xf32>,
    %c0_304 = arith.constant 0 : index
    %c0_305 = arith.constant 0 : index
    %272 = vector.load %arg10[%c0_304, %c0_305] : memref<128x128xf32, #tpu.memory_space<vmem>>, vector<128x128xf32>
    %c3_306 = arith.constant 3 : index
    %c0_307 = arith.constant 0 : index
    %273 = vector.load %arg6[%c3_306, %c0_307] : memref<4x128xf32, #tpu.memory_space<vmem>>, vector<1x128xf32>
    %274 = vector.shape_cast %273 : vector<1x128xf32> to vector<128xf32>
    %275 = vector.shape_cast %274 : vector<128xf32> to vector<1x128xf32>
    %276 = vector.broadcast %275 : vector<1x128xf32> to vector<128x128xf32>
    %277 = arith.addf %272, %276 : vector<128x128xf32>
    %cst_308 = arith.constant 0.000000e+00 : f32
    %278 = vector.broadcast %cst_308 : f32 to vector<128x128xf32>
    %279 = arith.maximumf %277, %278 : vector<128x128xf32>
    %c0_309 = arith.constant 0 : index
    %c0_310 = arith.constant 0 : index
    %280 = vector.load %arg9[%c0_309, %c0_310] : memref<128x128xf32, #tpu.memory_space<vmem>>, vector<128x128xf32>
    %281 = arith.truncf %279 : vector<128x128xf32> to vector<128x128xbf16>
    %c384 = arith.constant 384 : index
    %c0_311 = arith.constant 0 : index
    %282 = vector.load %arg5[%c384, %c0_311] : memref<512x128xbf16, #tpu.memory_space<vmem>>, vector<128x128xbf16>
    %cst_312 = arith.constant dense<0.000000e+00> : vector<128x128xf32>
    %283 = tpu.matmul %281, %282, %cst_312 {dimension_numbers = #tpu.dot_dimension_numbers<[1], [0], [0], [1], [0, 0, 1, 1], [], []>} : vector<128x128xbf16>, vector<128x128xbf16>, vector<128x128xf32> -> vector<128x128xf32>
    %284 = arith.addf %280, %283 : vector<128x128xf32>
    %c0_313 = arith.constant 0 : index
    %c0_314 = arith.constant 0 : index
    %285 = vector.load %arg9[%c0_313, %c0_314] : memref<128x128xf32, #tpu.memory_space<vmem>>, vector<128x128xf32>
    tpu.vector_store %arg9[%c0_313, %c0_314], %284 {strides = array<i32>} : memref<128x128xf32, #tpu.memory_space<vmem>>, vector<128x128xf32>,
    %c0_315 = arith.constant 0 : index
    %c0_316 = arith.constant 0 : index
    %286 = vector.load %arg9[%c0_315, %c0_316] : memref<128x128xf32, #tpu.memory_space<vmem>>, vector<128x128xf32>
    %c0_317 = arith.constant 0 : index
    %c0_318 = arith.constant 0 : index
    %c0_319 = arith.constant 0 : index
    %287 = vector.load %arg7[%c0_317, %c0_318, %c0_319] : memref<1x1x128xf32, #tpu.memory_space<vmem>>, vector<1x1x128xf32>
    %288 = vector.shape_cast %287 : vector<1x1x128xf32> to vector<128xf32>
    %289 = vector.shape_cast %288 : vector<128xf32> to vector<1x128xf32>
    %290 = vector.broadcast %289 : vector<1x128xf32> to vector<128x128xf32>
    %291 = arith.addf %286, %290 : vector<128x128xf32>
    %cst_320 = arith.constant 0.000000e+00 : f32
    %292 = vector.broadcast %cst_320 : f32 to vector<128x128xf32>
    %293 = arith.maximumf %291, %292 : vector<128x128xf32>
    %294 = vector.shape_cast %293 : vector<128x128xf32> to vector<8x16x128xf32>
    %c0_321 = arith.constant 0 : index
    %c0_322 = arith.constant 0 : index
    %c0_323 = arith.constant 0 : index
    %c0_324 = arith.constant 0 : index
    %295 = vector.load %arg8[%c0_321, %c0_322, %c0_323, %c0_324] : memref<1x8x16x128xf32, #tpu.memory_space<vmem>>, vector<1x8x16x128xf32>
    %296 = vector.shape_cast %295 : vector<1x8x16x128xf32> to vector<8x16x128xf32>
    %297 = vector.shape_cast %294 : vector<8x16x128xf32> to vector<1x8x16x128xf32>
    tpu.vector_store %arg8[%c0_321, %c0_322, %c0_323, %c0_324], %297 {strides = array<i32>} : memref<1x8x16x128xf32, #tpu.memory_space<vmem>>, vector<1x8x16x128xf32>,
    return
  }
  func.func @transform_0(%arg0: i32, %arg1: i32) -> (i32, i32, i32, i32, i32) {
    %c0_i32 = arith.constant 0 : i32
    %c0_i32_0 = arith.constant 0 : i32
    %c0_i32_1 = arith.constant 0 : i32
    %c0_i32_2 = arith.constant 0 : i32
    return %arg0, %arg1, %c0_i32, %c0_i32_0, %c0_i32_1 : i32, i32, i32, i32, i32
  }
  func.func @transform_1(%arg0: i32, %arg1: i32) -> (i32, i32) {
    %c0_i32 = arith.constant 0 : i32
    %c0_i32_0 = arith.constant 0 : i32
    %c0_i32_1 = arith.constant 0 : i32
    return %c0_i32, %c0_i32_0 : i32, i32
  }
  func.func @transform_2(%arg0: i32, %arg1: i32) -> (i32, i32, i32, i32) {
    %c0_i32 = arith.constant 0 : i32
    %c0_i32_0 = arith.constant 0 : i32
    %c0_i32_1 = arith.constant 0 : i32
    %c0_i32_2 = arith.constant 0 : i32
    %c0_i32_3 = arith.constant 0 : i32
    return %c0_i32, %c0_i32_0, %c0_i32_1, %c0_i32_2 : i32, i32, i32, i32
  }
  func.func @transform_3(%arg0: i32, %arg1: i32) -> (i32, i32) {
    %c0_i32 = arith.constant 0 : i32
    %c0_i32_0 = arith.constant 0 : i32
    %c0_i32_1 = arith.constant 0 : i32
    return %c0_i32, %c0_i32_0 : i32, i32
  }
  func.func @transform_4(%arg0: i32, %arg1: i32) -> (i32, i32) {
    %c0_i32 = arith.constant 0 : i32
    %c0_i32_0 = arith.constant 0 : i32
    %c0_i32_1 = arith.constant 0 : i32
    return %c0_i32, %c0_i32_0 : i32, i32
  }
  func.func @transform_5(%arg0: i32, %arg1: i32) -> (i32, i32, i32) {
    %c0_i32 = arith.constant 0 : i32
    %c0_i32_0 = arith.constant 0 : i32
    %c0_i32_1 = arith.constant 0 : i32
    return %arg0, %c0_i32, %c0_i32_0 : i32, i32, i32
  }
  func.func @transform_6(%arg0: i32, %arg1: i32) -> (i32, i32, i32, i32) {
    %c0_i32 = arith.constant 0 : i32
    %c0_i32_0 = arith.constant 0 : i32
    %c0_i32_1 = arith.constant 0 : i32
    return %arg0, %arg1, %c0_i32, %c0_i32_0 : i32, i32, i32, i32
  }
}

</mosaic_0001>

<llo_original>
// kernel: tpu_custom_call.1
$region0: #{tpu_custom_call.1}
  #allocation0 [shape = 'u32[]', space=smem, size = 0x4, offset = 0x4, fixed_abs, tag = 'smem constant byte address 0x4 - core index']
  #allocation1 [shape = 'u32[72,128]{1,0:T(1,128)}', space=vmem, size = 0x9000, scoped, tag = 'internal scratch']
  #allocation2 [shape = 'f32[128,128]{1,0:T(8,128)}', space=vmem, size = 0x10000, scoped, tag = 'scratch operand']
  #allocation3 [shape = 'f32[128,128]{1,0:T(8,128)}', space=vmem, size = 0x10000, scoped, tag = 'scratch operand']
  %s0 = inlined_call_operand.vmem [shape: bf16[2,2,56,64,4], index: 0, kind: input, shape index: {}]
  %s1 = inlined_call_operand.vmem [shape: bf16[4,128], index: 1, kind: input, shape index: {}]
  %s2 = inlined_call_operand.vmem [shape: bf16[3,9,4,128], index: 2, kind: input, shape index: {}]
  %s3 = inlined_call_operand.vmem [shape: bf16[512,128], index: 3, kind: input, shape index: {}]
  %s4 = inlined_call_operand.vmem [shape: f32[4,128], index: 4, kind: input, shape index: {}]
  %s5 = inlined_call_operand.vmem [shape: f32[2,1,128], index: 5, kind: input, shape index: {}]
  %s6 = inlined_call_operand.hbm [shape: f32[2,16,16,128], index: 6, kind: output, shape index: {}]
  %s7 = sld [smem:[#allocation0]]
  $region57: #{tpu_custom_call.1} parent=0
    _
  %s9 = ssub.s32 1, %s7
  %s10 = scalar_select 0, %s9, %s7
  $region1: #{tpu_custom_call.1} parent=0
    #allocation4 [shape = 'u8[131072]{0}', space=vmem, size = 0x20000, scoped, tag = 'output window, operand 0']
    #allocation5 [shape = 's32[2]{0}', space=sflag, size = 0x8, scoped, tag = 'scoped memory for tpu_custom_call.1']
    %11 = vsyncpa [#allocation5], 0
    %s12 = scalar_lea.sflag [#allocation5], 1
    %13 = vsyncpa %s12, 0
    loop: start=0, step=1, limit=6
    $region2: #{tpu_custom_call.1} parent=1 // loop_pre_header
      _
    $region3: #{tpu_custom_call.1} parent=1 // loop_header
      %s15 = sphi 0, %s19
      %p16 = scmp.ge.s32.totalorder %s15, 6
      %s22 = sphi 0, %s34
      %s23 = sphi 0, %s30
      %s24 = sphi 0, %s22
      %s25 = sphi 0, %s23
      %s26 = sphi 0, %s24
      %s27 = sphi 0, %s25
      %s39 = sphi 0, %s41
      %s42 = sphi 0, %s39
      %s43 = sphi 0, %s42
      %s59 = sphi 0, %s43
      %s63 = sphi 0, %s63
      %s65 = sphi 0, %s63
      %s66 = sphi 0, %s65
      %s80 = sphi 0, %s66
      %s84 = sphi 0, %s84
      %s86 = sphi 0, %s84
      %s87 = sphi 0, %s86
      %s101 = sphi 0, %s87
      %s105 = sphi 0, %s105
      %s107 = sphi 0, %s105
      %s108 = sphi 0, %s107
      %s122 = sphi 0, %s108
      %s126 = sphi 0, %s126
      %s128 = sphi 0, %s126
      %s129 = sphi 0, %s128
      %s143 = sphi 0, %s129
      %s149 = sphi 0, %s151
      %s152 = sphi 0, %s149
      %s153 = sphi 0, %s152
      %s169 = sphi 0, %s153
      %s177 = sphi 0, %s179
      %s180 = sphi 0, %s177
      %s181 = sphi 0, %s180
      %s197 = sphi 0, %s181
    $region4: #{tpu_custom_call.1} parent=1 // loop_header_branch
      %18 = sbr.rel (%p16) target = $region8
    $region5: #{tpu_custom_call.1} parent=1 // loop_body
      %s20 = ssub.s32 %s15, 1
      %s21 = ssub.s32 %s15, 2
      %s28 = sadd.s32 1, %s23
      %p29 = scmp.ge.s32.totalorder %s28, 2
      %s30 = scalar_select %p29, 0, %s28
      %s31 = sadd.s32 1, %s22
      %s32 = scalar_select %p29, %s31, %s22
      %p33 = scmp.ge.s32.totalorder %s32, 2
      %s34 = scalar_select %p33, 0, %s32
      %s35 = ssub.s32 %s22, %s34
      %s36 = ssub.s32 %s23, %s30
      %s37 = sor.u32 %s35, %s36
      %p38 = scmp.eq.s32.totalorder %s37, 0
      %s40 = sadd.s32 %s39, 1
      %s41 = scalar_select %p38, %s39, %s40
      %p44 = pneg %p38
      %p45 = scmp.eq.s32.totalorder %s15, 3
      %p46 = por %p44, %p45
      %p47 = scmp.ne.s32.totalorder %s39, %s42
      %p48 = scmp.eq.s32.totalorder %s15, 0
      %p49 = por %p47, %p48
      %p50 = scmp.ne.s32.totalorder %s39, %s42
      %p51 = scmp.eq.s32.totalorder %s20, 3
      %p52 = por %p50, %p51
      %p53 = scmp.ne.s32.totalorder %s42, %s43
      %p54 = scmp.eq.s32.totalorder %s20, 0
      %p55 = por %p53, %p54
      %p56 = scmp.ne.s32.totalorder %s42, %s43
      %p57 = scmp.eq.s32.totalorder %s21, 3
      %p58 = por %p56, %p57
      %p60 = scmp.ne.s32.totalorder %s43, %s59
      %p61 = scmp.eq.s32.totalorder %s21, 0
      %p62 = por %p60, %p61
      %s64 = sadd.s32 %s63, 1
      %p67 = scmp.eq.s32.totalorder %s15, 3
      %p68 = scmp.ne.s32.totalorder %s63, %s65
      %p69 = scmp.eq.s32.totalorder %s15, 0
      %p70 = por %p68, %p69
      %p71 = scmp.ne.s32.totalorder %s63, %s65
      %p72 = scmp.eq.s32.totalorder %s20, 3
      %p73 = por %p71, %p72
      %p74 = scmp.ne.s32.totalorder %s65, %s66
      %p75 = scmp.eq.s32.totalorder %s20, 0
      %p76 = por %p74, %p75
      %p77 = scmp.ne.s32.totalorder %s65, %s66
      %p78 = scmp.eq.s32.totalorder %s21, 3
      %p79 = por %p77, %p78
      %p81 = scmp.ne.s32.totalorder %s66, %s80
      %p82 = scmp.eq.s32.totalorder %s21, 0
      %p83 = por %p81, %p82
      %s85 = sadd.s32 %s84, 1
      %p88 = scmp.eq.s32.totalorder %s15, 3
      %p89 = scmp.ne.s32.totalorder %s84, %s86
      %p90 = scmp.eq.s32.totalorder %s15, 0
      %p91 = por %p89, %p90
      %p92 = scmp.ne.s32.totalorder %s84, %s86
      %p93 = scmp.eq.s32.totalorder %s20, 3
      %p94 = por %p92, %p93
      %p95 = scmp.ne.s32.totalorder %s86, %s87
      %p96 = scmp.eq.s32.totalorder %s20, 0
      %p97 = por %p95, %p96
      %p98 = scmp.ne.s32.totalorder %s86, %s87
      %p99 = scmp.eq.s32.totalorder %s21, 3
      %p100 = por %p98, %p99
      %p102 = scmp.ne.s32.totalorder %s87, %s101
      %p103 = scmp.eq.s32.totalorder %s21, 0
      %p104 = por %p102, %p103
      %s106 = sadd.s32 %s105, 1
      %p109 = scmp.eq.s32.totalorder %s15, 3
      %p110 = scmp.ne.s32.totalorder %s105, %s107
      %p111 = scmp.eq.s32.totalorder %s15, 0
      %p112 = por %p110, %p111
      %p113 = scmp.ne.s32.totalorder %s105, %s107
      %p114 = scmp.eq.s32.totalorder %s20, 3
      %p115 = por %p113, %p114
      %p116 = scmp.ne.s32.totalorder %s107, %s108
      %p117 = scmp.eq.s32.totalorder %s20, 0
      %p118 = por %p116, %p117
      %p119 = scmp.ne.s32.totalorder %s107, %s108
      %p120 = scmp.eq.s32.totalorder %s21, 3
      %p121 = por %p119, %p120
      %p123 = scmp.ne.s32.totalorder %s108, %s122
      %p124 = scmp.eq.s32.totalorder %s21, 0
      %p125 = por %p123, %p124
      %s127 = sadd.s32 %s126, 1
      %p130 = scmp.eq.s32.totalorder %s15, 3
      %p131 = scmp.ne.s32.totalorder %s126, %s128
      %p132 = scmp.eq.s32.totalorder %s15, 0
      %p133 = por %p131, %p132
      %p134 = scmp.ne.s32.totalorder %s126, %s128
      %p135 = scmp.eq.s32.totalorder %s20, 3
      %p136 = por %p134, %p135
      %p137 = scmp.ne.s32.totalorder %s128, %s129
      %p138 = scmp.eq.s32.totalorder %s20, 0
      %p139 = por %p137, %p138
      %p140 = scmp.ne.s32.totalorder %s128, %s129
      %p141 = scmp.eq.s32.totalorder %s21, 3
      %p142 = por %p140, %p141
      %p144 = scmp.ne.s32.totalorder %s129, %s143
      %p145 = scmp.eq.s32.totalorder %s21, 0
      %p146 = por %p144, %p145
      %s147 = ssub.s32 %s22, %s34
      %p148 = scmp.eq.s32.totalorder %s147, 0
      %s150 = sadd.s32 %s149, 1
      %s151 = scalar_select %p148, %s149, %s150
      %p154 = pneg %p148
      %p155 = scmp.eq.s32.totalorder %s15, 3
      %p156 = por %p154, %p155
      %p157 = scmp.ne.s32.totalorder %s149, %s152
      %p158 = scmp.eq.s32.totalorder %s15, 0
      %p159 = por %p157, %p158
      %p160 = scmp.ne.s32.totalorder %s149, %s152
      %p161 = scmp.eq.s32.totalorder %s20, 3
      %p162 = por %p160, %p161
      %p163 = scmp.ne.s32.totalorder %s152, %s153
      %p164 = scmp.eq.s32.totalorder %s20, 0
      %p165 = por %p163, %p164
      %p166 = scmp.ne.s32.totalorder %s152, %s153
      %p167 = scmp.eq.s32.totalorder %s21, 3
      %p168 = por %p166, %p167
      %p170 = scmp.ne.s32.totalorder %s153, %s169
      %p171 = scmp.eq.s32.totalorder %s21, 0
      %p172 = por %p170, %p171
      %s173 = ssub.s32 %s22, %s34
      %s174 = ssub.s32 %s23, %s30
      %s175 = sor.u32 %s173, %s174
      %p176 = scmp.eq.s32.totalorder %s175, 0
      %s178 = sadd.s32 %s177, 1
      %s179 = scalar_select %p176, %s177, %s178
      %p182 = pneg %p176
      %p183 = scmp.eq.s32.totalorder %s15, 3
      %p184 = por %p182, %p183
      %p185 = scmp.ne.s32.totalorder %s177, %s180
      %p186 = scmp.eq.s32.totalorder %s15, 0
      %p187 = por %p185, %p186
      %p188 = scmp.ne.s32.totalorder %s177, %s180
      %p189 = scmp.eq.s32.totalorder %s20, 3
      %p190 = por %p188, %p189
      %p191 = scmp.ne.s32.totalorder %s180, %s181
      %p192 = scmp.eq.s32.totalorder %s20, 0
      %p193 = por %p191, %p192
      %p194 = scmp.ne.s32.totalorder %s180, %s181
      %p195 = scmp.eq.s32.totalorder %s21, 3
      %p196 = por %p194, %p195
      %p198 = scmp.ne.s32.totalorder %s181, %s197
      %p199 = scmp.eq.s32.totalorder %s21, 0
      %p200 = por %p198, %p199
      %p201 = scmp.le.s32.totalorder 1, %s15
      %p202 = scmp.lt.s32.totalorder %s15, 5
      %p203 = pnand %p201, %p202
      %p204 = pneg %p203
      // Predicated region
      $region9: #{tpu_custom_call.1} parent=5 // pred_check
        _
      $region10: #{tpu_custom_call.1} parent=5 // pred_check_branch
        %206 = sbr.rel (%p203) target = $region12
      $region11: #{tpu_custom_call.1} parent=5 // pred_region
        %s207 = ssub.s32 %s15, 1
        // Predicated region
        $region13: #{tpu_custom_call.1} parent=11 // pred_check
          %p208 = pneg %p76
        $region14: #{tpu_custom_call.1} parent=11 // pred_check_branch
          %210 = sbr.rel (%p208) target = $region16
        $region15: #{tpu_custom_call.1} parent=11 // pred_region
          _
        $region16: #{tpu_custom_call.1} parent=11 // pred_fallthru
          _
        // Predicated region
        $region17: #{tpu_custom_call.1} parent=11 // pred_check
          %p211 = pneg %p97
        $region18: #{tpu_custom_call.1} parent=11 // pred_check_branch
          %213 = sbr.rel (%p211) target = $region20
        $region19: #{tpu_custom_call.1} parent=11 // pred_region
          _
        $region20: #{tpu_custom_call.1} parent=11 // pred_fallthru
          _
        // Predicated region
        $region21: #{tpu_custom_call.1} parent=11 // pred_check
          %p214 = pneg %p118
        $region22: #{tpu_custom_call.1} parent=11 // pred_check_branch
          %216 = sbr.rel (%p214) target = $region24
        $region23: #{tpu_custom_call.1} parent=11 // pred_region
          _
        $region24: #{tpu_custom_call.1} parent=11 // pred_fallthru
          _
        // Predicated region
        $region25: #{tpu_custom_call.1} parent=11 // pred_check
          %p217 = pneg %p139
        $region26: #{tpu_custom_call.1} parent=11 // pred_check_branch
          %219 = sbr.rel (%p217) target = $region28
        $region27: #{tpu_custom_call.1} parent=11 // pred_region
          _
        $region28: #{tpu_custom_call.1} parent=11 // pred_fallthru
          _
      $region12: #{tpu_custom_call.1} parent=5 // pred_fallthru
        _
      %p220 = scmp.lt.s32.totalorder %s15, 4
      // Predicated region
      $region29: #{tpu_custom_call.1} parent=5 // pred_check
        %p221 = pneg %p220
      $region30: #{tpu_custom_call.1} parent=5 // pred_check_branch
        %223 = sbr.rel (%p221) target = $region32
      $region31: #{tpu_custom_call.1} parent=5 // pred_region
        // Predicated region
        $region33: #{tpu_custom_call.1} parent=31 // pred_check
          %p224 = pneg %p49
        $region34: #{tpu_custom_call.1} parent=31 // pred_check_branch
          %226 = sbr.rel (%p224) target = $region36
        $region35: #{tpu_custom_call.1} parent=31 // pred_region
          %p227 = scmp.lt.s32.totalorder %s22, 1
          %s228 = scalar_select %p227, %s22, 1
          %p229 = scmp.lt.s32.totalorder %s23, 1
          %s230 = scalar_select %p229, %s23, 1
          %s231 = smul.addr %s230, 448
          %s232 = smul.addr %s228, 896
          %s233 = sadd.s32 %s231, %s232
          %s234 = smul.addr %s233, 4
          %s235 = scalar_lea.vmem %s0, %s234
        $region36: #{tpu_custom_call.1} parent=31 // pred_fallthru
          _
        // Predicated region
        $region37: #{tpu_custom_call.1} parent=31 // pred_check
          %p236 = pneg %p159
        $region38: #{tpu_custom_call.1} parent=31 // pred_check_branch
          %238 = sbr.rel (%p236) target = $region40
        $region39: #{tpu_custom_call.1} parent=31 // pred_region
          %p239 = scmp.lt.s32.totalorder %s22, 1
          %s240 = scalar_select %p239, %s22, 1
          %s241 = scalar_lea.vmem %s5, %s240
        $region40: #{tpu_custom_call.1} parent=31 // pred_fallthru
          _
      $region32: #{tpu_custom_call.1} parent=5 // pred_fallthru
        _
      %p242 = scmp.le.s32.totalorder 1, %s15
      %p243 = scmp.lt.s32.totalorder %s15, 5
      %p244 = pnand %p242, %p243
      %p245 = pneg %p244
      // Predicated region
      $region41: #{tpu_custom_call.1} parent=5 // pred_check
        _
      $region42: #{tpu_custom_call.1} parent=5 // pred_check_branch
        %247 = sbr.rel (%p244) target = $region44
      $region43: #{tpu_custom_call.1} parent=5 // pred_region
        %s248 = ssub.s32 %s15, 1
        %p249 = scmp.lt.s32.totalorder %s24, 1
        %s250 = scalar_select %p249, %s24, 1
        %p251 = scmp.lt.s32.totalorder %s25, 1
        %s252 = scalar_select %p251, %s25, 1
        %s253 = smul.addr %s252, 448
        %s254 = smul.addr %s250, 896
        %s255 = sadd.s32 %s253, %s254
        %s256 = smul.addr %s255, 4
        %s257 = scalar_lea.vmem %s0, %s256
        %p258 = pneg %p55
        %p259 = pneg %p52
        %p260 = pneg %p76
        %p261 = pneg %p73
        %p262 = pneg %p97
        %p263 = pneg %p94
        %p264 = pneg %p118
        %p265 = pneg %p115
        %p266 = pneg %p139
        %p267 = pneg %p136
        %p268 = scmp.lt.s32.totalorder %s24, 1
        %s269 = scalar_select %p268, %s24, 1
        %s270 = scalar_lea.vmem %s5, %s269
        %p271 = pneg %p165
        %p272 = pneg %p162
        %p273 = pneg %p193
        %p274 = pneg %p190
        %s275 = sand.u32 %s180, 1
        %s276 = scalar_lea.sflag [#allocation5], %s275
        %s277 = sand.u32 %s180, 1
        %s278 = smul.addr %s277, 128
        %s279 = scalar_lea.vmem [#allocation4], %s278
        %p280 = scmp.lt.s32.totalorder %s24, 1
        %s281 = scalar_select %p280, %s24, 1
        %p282 = scmp.lt.s32.totalorder %s25, 1
        %s283 = scalar_select %p282, %s25, 1
        %s284 = smul.addr %s283, 448
        %s285 = smul.addr %s281, 896
        %s286 = sadd.s32 %s284, %s285
        %s287 = smul.addr %s286, 4
        %s288 = scalar_lea.vmem %s0, %s287
        %p289 = scmp.lt.s32.totalorder %s24, 1
        %s290 = scalar_select %p289, %s24, 1
        %s291 = scalar_lea.vmem %s5, %s290
        %s292 = smul.u32 8, %s25
        %s294 = scalar_lea.vmem %s288, 768
        %v295 = vld [vmem:[%s294 + $0xc] sm:$0xf]
        %v296 = vld [vmem:[%s294 + $0x10] sm:$0xf]
        %v297 = vld [vmem:[%s294 + $0x2c] sm:$0xf]
        %v298 = vld [vmem:[%s294 + $0x30] sm:$0xf]
        %v299 = vld [vmem:[%s294 + $0x4c] sm:$0xf]
        %v300 = vld [vmem:[%s294 + $0x50] sm:$0xf]
        %v301 = vld [vmem:[%s294 + $0x6c] sm:$0xf]
        %v302 = vld [vmem:[%s294 + $0x70] sm:$0xf]
        %v303 = vld [vmem:[%s294 + $0x8c] sm:$0xf]
        %v304 = vld [vmem:[%s294 + $0x90] sm:$0xf]
        %v305 = vld [vmem:[%s294 + $0xac] sm:$0xf]
        %v306 = vld [vmem:[%s294 + $0xb0] sm:$0xf]
        %v307 = vld [vmem:[%s294 + $0xcc] sm:$0xf]
        %v308 = vld [vmem:[%s294 + $0xd0] sm:$0xf]
        %v309 = vld [vmem:[%s294 + $0xec] sm:$0xf]
        %v310 = vld [vmem:[%s294 + $0xf0] sm:$0xf]
        %v311 = vld [vmem:[%s1] sm:$0x3]
        %v312 = vld [vmem:[%s4] sm:$0x1]
        %v313 = vperm.slane %v312, 0
        %v330 = vunpack.c.l.b16 %v295
        %v331 = vunpack.c.l.b16 %v296
        %v332 = vunpack.c.l.b16 %v297
        %v333 = vunpack.c.l.b16 %v298
        %v334 = vunpack.c.l.b16 %v299
        %v335 = vunpack.c.l.b16 %v300
        %v336 = vunpack.c.l.b16 %v301
        %v337 = vunpack.c.l.b16 %v302
        %v338 = vunpack.c.l.b16 %v303
        %v339 = vunpack.c.l.b16 %v304
        %v340 = vunpack.c.l.b16 %v305
        %v341 = vunpack.c.l.b16 %v306
        %v342 = vunpack.c.l.b16 %v307
        %v343 = vunpack.c.l.b16 %v308
        %v344 = vunpack.c.l.b16 %v309
        %v345 = vunpack.c.l.b16 %v310
        %v346 = vpack.c.b16 %v331, %v330
        %v347 = vpack.c.b16 %v333, %v332
        %v348 = vpack.c.b16 %v335, %v334
        %v349 = vpack.c.b16 %v337, %v336
        %v350 = vpack.c.b16 %v339, %v338
        %v351 = vpack.c.b16 %v341, %v340
        %v352 = vpack.c.b16 %v343, %v342
        %v353 = vpack.c.b16 %v345, %v344
        %vm354 = vcmask 31744
        %v356 = vsel %vm354, %v346, 0
        %v359 = vsel %vm354, %v347, 0
        %v362 = vsel %vm354, %v348, 0
        %v365 = vsel %vm354, %v349, 0
        %v368 = vsel %vm354, %v350, 0
        %v371 = vsel %vm354, %v351, 0
        %v374 = vsel %vm354, %v352, 0
        %v377 = vsel %vm354, %v353, 0
        %vm379 = vcmask 1041408
        %v381 = vsel %vm379, %v311, 0
        %383 = vmatpush.bf16.msra.mxu0 0
        %384 = vmatpush.bf16.msra.mxu0 0
        %385 = vmatpush.bf16.msra.mxu0 0
        %386 = vmatpush.bf16.msra.mxu0 0
        %387 = vmatpush.bf16.msra.mxu0 0
        %388 = vmatpush.bf16.msra.mxu0 0
        %389 = vmatpush.bf16.msra.mxu0 0
        %390 = vmatpush.bf16.msra.mxu0 %v381
        %391 = vmatmul.bf16.gmra.mxu0 %v356
        %v392 = vpop.f32.mrf.mxu0
        %v393 = vadd.f32 %v313, %v392
        %v394 = vpop.f32.mrf.mxu0
        %v395 = vadd.f32 %v313, %v394
        %396 = vmatmul.bf16.gmra.mxu0 %v359
        %v397 = vpop.f32.mrf.mxu0
        %v398 = vadd.f32 %v313, %v397
        %v399 = vpop.f32.mrf.mxu0
        %v400 = vadd.f32 %v313, %v399
        %401 = vmatmul.bf16.gmra.mxu0 %v362
        %v402 = vpop.f32.mrf.mxu0
        %v403 = vadd.f32 %v313, %v402
        %v404 = vpop.f32.mrf.mxu0
        %v405 = vadd.f32 %v313, %v404
        %406 = vmatmul.bf16.gmra.mxu0 %v365
        %v407 = vpop.f32.mrf.mxu0
        %v408 = vadd.f32 %v313, %v407
        %v409 = vpop.f32.mrf.mxu0
        %v410 = vadd.f32 %v313, %v409
        %411 = vmatmul.bf16.gmra.mxu0 %v368
        %v412 = vpop.f32.mrf.mxu0
        %v413 = vadd.f32 %v313, %v412
        %v414 = vpop.f32.mrf.mxu0
        %v415 = vadd.f32 %v313, %v414
        %416 = vmatmul.bf16.gmra.mxu0 %v371
        %v417 = vpop.f32.mrf.mxu0
        %v418 = vadd.f32 %v313, %v417
        %v419 = vpop.f32.mrf.mxu0
        %v420 = vadd.f32 %v313, %v419
        %421 = vmatmul.bf16.gmra.mxu0 %v374
        %v422 = vpop.f32.mrf.mxu0
        %v423 = vadd.f32 %v313, %v422
        %v424 = vpop.f32.mrf.mxu0
        %v425 = vadd.f32 %v313, %v424
        %426 = vmatmul.bf16.gmra.mxu0 %v377
        %v427 = vpop.f32.mrf.mxu0
        %v428 = vadd.f32 %v313, %v427
        %v429 = vpop.f32.mrf.mxu0
        %v430 = vadd.f32 %v313, %v429
        %431 = vdwg.mxu0
        %v432 = vmax.f32 %v393, 0.0
        %v433 = vmax.f32 %v395, 0.0
        %v434 = vmax.f32 %v398, 0.0
        %v435 = vmax.f32 %v400, 0.0
        %v436 = vmax.f32 %v403, 0.0
        %v437 = vmax.f32 %v405, 0.0
        %v438 = vmax.f32 %v408, 0.0
        %v439 = vmax.f32 %v410, 0.0
        %v440 = vmax.f32 %v413, 0.0
        %v441 = vmax.f32 %v415, 0.0
        %v442 = vmax.f32 %v418, 0.0
        %v443 = vmax.f32 %v420, 0.0
        %v444 = vmax.f32 %v423, 0.0
        %v445 = vmax.f32 %v425, 0.0
        %v446 = vmax.f32 %v428, 0.0
        %v447 = vmax.f32 %v430, 0.0
        %v448 = vpack.c.bf16 %v433, %v432
        %v449 = vpack.c.bf16 %v435, %v434
        %v450 = vpack.c.bf16 %v437, %v436
        %v451 = vpack.c.bf16 %v439, %v438
        %v452 = vpack.c.bf16 %v441, %v440
        %v453 = vpack.c.bf16 %v443, %v442
        %v454 = vpack.c.bf16 %v445, %v444
        %v455 = vpack.c.bf16 %v447, %v446
        %v456 = vld [vmem:[%s3] sm:$0xf]
        %v457 = vld [vmem:[%s3 + $0x4] sm:$0xf]
        %v458 = vld [vmem:[%s3 + $0x8] sm:$0xf]
        %v459 = vld [vmem:[%s3 + $0xc] sm:$0xf]
        %v460 = vld [vmem:[%s3 + $0x10] sm:$0xf]
        %v461 = vld [vmem:[%s3 + $0x14] sm:$0xf]
        %v462 = vld [vmem:[%s3 + $0x18] sm:$0xf]
        %v463 = vld [vmem:[%s3 + $0x1c] sm:$0xf]
        %v464 = vld [vmem:[%s3 + $0x20] sm:$0xf]
        %v465 = vld [vmem:[%s3 + $0x24] sm:$0xf]
        %v466 = vld [vmem:[%s3 + $0x28] sm:$0xf]
        %v467 = vld [vmem:[%s3 + $0x2c] sm:$0xf]
        %v468 = vld [vmem:[%s3 + $0x30] sm:$0xf]
        %v469 = vld [vmem:[%s3 + $0x34] sm:$0xf]
        %v470 = vld [vmem:[%s3 + $0x38] sm:$0xf]
        %v471 = vld [vmem:[%s3 + $0x3c] sm:$0xf]
        %v488 = vunpack.c.l.b16 %v456
        %v489 = vunpack.c.l.b16 %v457
        %v490 = vunpack.c.l.b16 %v458
        %v491 = vunpack.c.l.b16 %v459
        %v492 = vunpack.c.l.b16 %v460
        %v493 = vunpack.c.l.b16 %v461
        %v494 = vunpack.c.l.b16 %v462
        %v495 = vunpack.c.l.b16 %v463
        %v496 = vunpack.c.l.b16 %v464
        %v497 = vunpack.c.l.b16 %v465
        %v498 = vunpack.c.l.b16 %v466
        %v499 = vunpack.c.l.b16 %v467
        %v500 = vunpack.c.l.b16 %v468
        %v501 = vunpack.c.l.b16 %v469
        %v502 = vunpack.c.l.b16 %v470
        %v503 = vunpack.c.l.b16 %v471
        %v504 = vpack.c.b16 %v489, %v488
        %v505 = vpack.c.b16 %v491, %v490
        %v506 = vpack.c.b16 %v493, %v492
        %v507 = vpack.c.b16 %v495, %v494
        %v508 = vpack.c.b16 %v497, %v496
        %v509 = vpack.c.b16 %v499, %v498
        %v510 = vpack.c.b16 %v501, %v500
        %v511 = vpack.c.b16 %v503, %v502
        %520 = vmatpush.bf16.msra.mxu0 %v511
        %521 = vmatpush.bf16.msra.mxu0 %v510
        %522 = vmatpush.bf16.msra.mxu0 %v509
        %523 = vmatpush.bf16.msra.mxu0 %v508
        %524 = vmatpush.bf16.msra.mxu0 %v507
        %525 = vmatpush.bf16.msra.mxu0 %v506
        %526 = vmatpush.bf16.msra.mxu0 %v505
        %527 = vmatpush.bf16.msra.mxu0 %v504
        %528 = vmatmul.bf16.gmra.mxu0 %v448
        %v529 = vpop.f32.mrf.mxu0
        %v530 = vadd.f32 0.0, %v529
        %v531 = vpop.f32.mrf.mxu0
        %v532 = vadd.f32 0.0, %v531
        %533 = vmatmul.bf16.gmra.mxu0 %v449
        %v534 = vpop.f32.mrf.mxu0
        %v535 = vadd.f32 0.0, %v534
        %v536 = vpop.f32.mrf.mxu0
        %v537 = vadd.f32 0.0, %v536
        %538 = vmatmul.bf16.gmra.mxu0 %v450
        %v539 = vpop.f32.mrf.mxu0
        %v540 = vadd.f32 0.0, %v539
        %v541 = vpop.f32.mrf.mxu0
        %v542 = vadd.f32 0.0, %v541
        %543 = vmatmul.bf16.gmra.mxu0 %v451
        %v544 = vpop.f32.mrf.mxu0
        %v545 = vadd.f32 0.0, %v544
        %v546 = vpop.f32.mrf.mxu0
        %v547 = vadd.f32 0.0, %v546
        %548 = vmatmul.bf16.gmra.mxu0 %v452
        %v549 = vpop.f32.mrf.mxu0
        %v550 = vadd.f32 0.0, %v549
        %v551 = vpop.f32.mrf.mxu0
        %v552 = vadd.f32 0.0, %v551
        %553 = vmatmul.bf16.gmra.mxu0 %v453
        %v554 = vpop.f32.mrf.mxu0
        %v555 = vadd.f32 0.0, %v554
        %v556 = vpop.f32.mrf.mxu0
        %v557 = vadd.f32 0.0, %v556
        %558 = vmatmul.bf16.gmra.mxu0 %v454
        %v559 = vpop.f32.mrf.mxu0
        %v560 = vadd.f32 0.0, %v559
        %v561 = vpop.f32.mrf.mxu0
        %v562 = vadd.f32 0.0, %v561
        %563 = vmatmul.bf16.gmra.mxu0 %v455
        %v564 = vpop.f32.mrf.mxu0
        %v565 = vadd.f32 0.0, %v564
        %v566 = vpop.f32.mrf.mxu0
        %v567 = vadd.f32 0.0, %v566
        %568 = vdwg.mxu0
        %569 = vst [vmem:[#allocation2] sm:$0xff] %v530
        %570 = vst [vmem:[#allocation2 + $0x8] sm:$0xff] %v532
        %571 = vst [vmem:[#allocation2 + $0x10] sm:$0xff] %v535
        %572 = vst [vmem:[#allocation2 + $0x18] sm:$0xff] %v537
        %573 = vst [vmem:[#allocation2 + $0x20] sm:$0xff] %v540
        %574 = vst [vmem:[#allocation2 + $0x28] sm:$0xff] %v542
        %575 = vst [vmem:[#allocation2 + $0x30] sm:$0xff] %v545
        %576 = vst [vmem:[#allocation2 + $0x38] sm:$0xff] %v547
        %577 = vst [vmem:[#allocation2 + $0x40] sm:$0xff] %v550
        %578 = vst [vmem:[#allocation2 + $0x48] sm:$0xff] %v552
        %579 = vst [vmem:[#allocation2 + $0x50] sm:$0xff] %v555
        %580 = vst [vmem:[#allocation2 + $0x58] sm:$0xff] %v557
        %581 = vst [vmem:[#allocation2 + $0x60] sm:$0xff] %v560
        %582 = vst [vmem:[#allocation2 + $0x68] sm:$0xff] %v562
        %583 = vst [vmem:[#allocation2 + $0x70] sm:$0xff] %v565
        %584 = vst [vmem:[#allocation2 + $0x78] sm:$0xff] %v567
        %s585 = scalar_lea.vmem %s288, 576
        %v586 = vld [vmem:[%s585 + $0x8] sm:$0xe]
        %v587 = vld [vmem:[%s585 + $0xc] sm:$0xf]
        %v588 = vld [vmem:[%s585 + $0x10] sm:$0x1]
        %v589 = vld [vmem:[%s585 + $0x28] sm:$0xe]
        %v590 = vld [vmem:[%s585 + $0x2c] sm:$0xf]
        %v591 = vld [vmem:[%s585 + $0x30] sm:$0x1]
        %v592 = vld [vmem:[%s585 + $0x48] sm:$0xe]
        %v593 = vld [vmem:[%s585 + $0x4c] sm:$0xf]
        %v594 = vld [vmem:[%s585 + $0x50] sm:$0x1]
        %v595 = vld [vmem:[%s585 + $0x68] sm:$0xe]
        %v596 = vld [vmem:[%s585 + $0x6c] sm:$0xf]
        %v597 = vld [vmem:[%s585 + $0x70] sm:$0x1]
        %v598 = vld [vmem:[%s585 + $0x88] sm:$0xe]
        %v599 = vld [vmem:[%s585 + $0x8c] sm:$0xf]
        %v600 = vld [vmem:[%s585 + $0x90] sm:$0x1]
        %v601 = vld [vmem:[%s585 + $0xa8] sm:$0xe]
        %v602 = vld [vmem:[%s585 + $0xac] sm:$0xf]
        %v603 = vld [vmem:[%s585 + $0xb0] sm:$0x1]
        %v604 = vld [vmem:[%s585 + $0xc8] sm:$0xe]
        %v605 = vld [vmem:[%s585 + $0xcc] sm:$0xf]
        %v606 = vld [vmem:[%s585 + $0xd0] sm:$0x1]
        %v607 = vld [vmem:[%s585 + $0xe8] sm:$0xe]
        %v608 = vld [vmem:[%s585 + $0xec] sm:$0xf]
        %v609 = vld [vmem:[%s585 + $0xf0] sm:$0x1]
        %v610 = vld [vmem:[%s585 + $0x108] sm:$0xe]
        %v611 = vld [vmem:[%s585 + $0x10c] sm:$0xf]
        %v612 = vld [vmem:[%s585 + $0x110] sm:$0x1]
        %v613 = vld [vmem:[%s585 + $0x128] sm:$0xe]
        %v614 = vld [vmem:[%s585 + $0x12c] sm:$0xf]
        %v615 = vld [vmem:[%s585 + $0x130] sm:$0x1]
        %v616 = vld [vmem:[%s585 + $0x148] sm:$0xe]
        %v617 = vld [vmem:[%s585 + $0x14c] sm:$0xf]
        %v618 = vld [vmem:[%s585 + $0x150] sm:$0x1]
        %v619 = vld [vmem:[%s585 + $0x168] sm:$0xe]
        %v620 = vld [vmem:[%s585 + $0x16c] sm:$0xf]
        %v621 = vld [vmem:[%s585 + $0x170] sm:$0x1]
        %v622 = vld [vmem:[%s585 + $0x188] sm:$0xe]
        %v623 = vld [vmem:[%s585 + $0x18c] sm:$0xf]
        %v624 = vld [vmem:[%s585 + $0x190] sm:$0x1]
        %v625 = vld [vmem:[%s585 + $0x1a8] sm:$0xe]
        %v626 = vld [vmem:[%s585 + $0x1ac] sm:$0xf]
        %v627 = vld [vmem:[%s585 + $0x1b0] sm:$0x1]
        %v628 = vld [vmem:[%s585 + $0x1c8] sm:$0xe]
        %v629 = vld [vmem:[%s585 + $0x1cc] sm:$0xf]
        %v630 = vld [vmem:[%s585 + $0x1d0] sm:$0x1]
        %v631 = vld [vmem:[%s585 + $0x1e8] sm:$0xe]
        %v632 = vld [vmem:[%s585 + $0x1ec] sm:$0xf]
        %v633 = vld [vmem:[%s585 + $0x1f0] sm:$0x1]
        %v634 = vld [vmem:[%s585 + $0x208] sm:$0xe]
        %v635 = vld [vmem:[%s585 + $0x20c] sm:$0xf]
        %v636 = vld [vmem:[%s585 + $0x210] sm:$0x1]
        %v637 = vld [vmem:[%s585 + $0x228] sm:$0xe]
        %v638 = vld [vmem:[%s585 + $0x22c] sm:$0xf]
        %v639 = vld [vmem:[%s585 + $0x230] sm:$0x1]
        %v640 = vld [vmem:[%s585 + $0x248] sm:$0xe]
        %v641 = vld [vmem:[%s585 + $0x24c] sm:$0xf]
        %v642 = vld [vmem:[%s585 + $0x250] sm:$0x1]
        %v643 = vld [vmem:[%s585 + $0x268] sm:$0xe]
        %v644 = vld [vmem:[%s585 + $0x26c] sm:$0xf]
        %v645 = vld [vmem:[%s585 + $0x270] sm:$0x1]
        %vm670 = vcmask 1042432
        %vm671 = vcmask 1046532
        %vm672 = vmor %vm670, %vm671
        %v673 = vrot.slane %v586, 5
        %v674 = vrot.slane %v673, 4
        %v675 = vrot.slane %v587, 5
        %v676 = vsel %vm672, %v674, %v675
        %v677 = vrot.slane %v675, 4
        %v678 = vrot.slane %v588, 5
        %v679 = vsel %vm672, %v677, %v678
        %v680 = vrot.slane %v589, 5
        %v681 = vrot.slane %v680, 4
        %v682 = vrot.slane %v590, 5
        %v683 = vsel %vm672, %v681, %v682
        %v684 = vrot.slane %v682, 4
        %v685 = vrot.slane %v591, 5
        %v686 = vsel %vm672, %v684, %v685
        %v687 = vrot.slane %v592, 5
        %v688 = vrot.slane %v687, 4
        %v689 = vrot.slane %v593, 5
        %v690 = vsel %vm672, %v688, %v689
        %v691 = vrot.slane %v689, 4
        %v692 = vrot.slane %v594, 5
        %v693 = vsel %vm672, %v691, %v692
        %v694 = vrot.slane %v595, 5
        %v695 = vrot.slane %v694, 4
        %v696 = vrot.slane %v596, 5
        %v697 = vsel %vm672, %v695, %v696
        %v698 = vrot.slane %v696, 4
        %v699 = vrot.slane %v597, 5
        %v700 = vsel %vm672, %v698, %v699
        %v701 = vrot.slane %v598, 5
        %v702 = vrot.slane %v701, 4
        %v703 = vrot.slane %v599, 5
        %v704 = vsel %vm672, %v702, %v703
        %v705 = vrot.slane %v703, 4
        %v706 = vrot.slane %v600, 5
        %v707 = vsel %vm672, %v705, %v706
        %v708 = vrot.slane %v601, 5
        %v709 = vrot.slane %v708, 4
        %v710 = vrot.slane %v602, 5
        %v711 = vsel %vm672, %v709, %v710
        %v712 = vrot.slane %v710, 4
        %v713 = vrot.slane %v603, 5
        %v714 = vsel %vm672, %v712, %v713
        %v715 = vrot.slane %v604, 5
        %v716 = vrot.slane %v715, 4
        %v717 = vrot.slane %v605, 5
        %v718 = vsel %vm672, %v716, %v717
        %v719 = vrot.slane %v717, 4
        %v720 = vrot.slane %v606, 5
        %v721 = vsel %vm672, %v719, %v720
        %v722 = vrot.slane %v607, 5
        %v723 = vrot.slane %v722, 4
        %v724 = vrot.slane %v608, 5
        %v725 = vsel %vm672, %v723, %v724
        %v726 = vrot.slane %v724, 4
        %v727 = vrot.slane %v609, 5
        %v728 = vsel %vm672, %v726, %v727
        %v729 = vld [vmem:[%s2] sm:$0x3]
        %v730 = vunpack.c.l.b16 %v676
        %v731 = vunpack.c.l.b16 %v679
        %v732 = vunpack.c.l.b16 %v683
        %v733 = vunpack.c.l.b16 %v686
        %v734 = vunpack.c.l.b16 %v690
        %v735 = vunpack.c.l.b16 %v693
        %v736 = vunpack.c.l.b16 %v697
        %v737 = vunpack.c.l.b16 %v700
        %v738 = vunpack.c.l.b16 %v704
        %v739 = vunpack.c.l.b16 %v707
        %v740 = vunpack.c.l.b16 %v711
        %v741 = vunpack.c.l.b16 %v714
        %v742 = vunpack.c.l.b16 %v718
        %v743 = vunpack.c.l.b16 %v721
        %v744 = vunpack.c.l.b16 %v725
        %v745 = vunpack.c.l.b16 %v728
        %v746 = vpack.c.b16 %v731, %v730
        %v747 = vpack.c.b16 %v733, %v732
        %v748 = vpack.c.b16 %v735, %v734
        %v749 = vpack.c.b16 %v737, %v736
        %v750 = vpack.c.b16 %v739, %v738
        %v751 = vpack.c.b16 %v741, %v740
        %v752 = vpack.c.b16 %v743, %v742
        %v753 = vpack.c.b16 %v745, %v744
        %v755 = vsel %vm354, %v746, 0
        %v758 = vsel %vm354, %v747, 0
        %v761 = vsel %vm354, %v748, 0
        %v764 = vsel %vm354, %v749, 0
        %v767 = vsel %vm354, %v750, 0
        %v770 = vsel %vm354, %v751, 0
        %v773 = vsel %vm354, %v752, 0
        %v776 = vsel %vm354, %v753, 0
        %v779 = vsel %vm379, %v729, 0
        %781 = vmatpush.bf16.msra.mxu0 0
        %782 = vmatpush.bf16.msra.mxu0 0
        %783 = vmatpush.bf16.msra.mxu0 0
        %784 = vmatpush.bf16.msra.mxu0 0
        %785 = vmatpush.bf16.msra.mxu0 0
        %786 = vmatpush.bf16.msra.mxu0 0
        %787 = vmatpush.bf16.msra.mxu0 0
        %788 = vmatpush.bf16.msra.mxu0 %v779
        %789 = vmatmul.bf16.gmra.mxu0 %v755
        %v790 = vpop.f32.mrf.mxu0
        %v791 = vadd.f32 0.0, %v790
        %v792 = vpop.f32.mrf.mxu0
        %v793 = vadd.f32 0.0, %v792
        %794 = vmatmul.bf16.gmra.mxu0 %v758
        %v795 = vpop.f32.mrf.mxu0
        %v796 = vadd.f32 0.0, %v795
        %v797 = vpop.f32.mrf.mxu0
        %v798 = vadd.f32 0.0, %v797
        %799 = vmatmul.bf16.gmra.mxu0 %v761
        %v800 = vpop.f32.mrf.mxu0
        %v801 = vadd.f32 0.0, %v800
        %v802 = vpop.f32.mrf.mxu0
        %v803 = vadd.f32 0.0, %v802
        %804 = vmatmul.bf16.gmra.mxu0 %v764
        %v805 = vpop.f32.mrf.mxu0
        %v806 = vadd.f32 0.0, %v805
        %v807 = vpop.f32.mrf.mxu0
        %v808 = vadd.f32 0.0, %v807
        %809 = vmatmul.bf16.gmra.mxu0 %v767
        %v810 = vpop.f32.mrf.mxu0
        %v811 = vadd.f32 0.0, %v810
        %v812 = vpop.f32.mrf.mxu0
        %v813 = vadd.f32 0.0, %v812
        %814 = vmatmul.bf16.gmra.mxu0 %v770
        %v815 = vpop.f32.mrf.mxu0
        %v816 = vadd.f32 0.0, %v815
        %v817 = vpop.f32.mrf.mxu0
        %v818 = vadd.f32 0.0, %v817
        %819 = vmatmul.bf16.gmra.mxu0 %v773
        %v820 = vpop.f32.mrf.mxu0
        %v821 = vadd.f32 0.0, %v820
        %v822 = vpop.f32.mrf.mxu0
        %v823 = vadd.f32 0.0, %v822
        %824 = vmatmul.bf16.gmra.mxu0 %v776
        %v825 = vpop.f32.mrf.mxu0
        %v826 = vadd.f32 0.0, %v825
        %v827 = vpop.f32.mrf.mxu0
        %v828 = vadd.f32 0.0, %v827
        %829 = vdwg.mxu0
        %830 = vst [vmem:[#allocation3] sm:$0xff] %v791
        %831 = vst [vmem:[#allocation3 + $0x8] sm:$0xff] %v793
        %832 = vst [vmem:[#allocation3 + $0x10] sm:$0xff] %v796
        %833 = vst [vmem:[#allocation3 + $0x18] sm:$0xff] %v798
        %834 = vst [vmem:[#allocation3 + $0x20] sm:$0xff] %v801
        %835 = vst [vmem:[#allocation3 + $0x28] sm:$0xff] %v803
        %836 = vst [vmem:[#allocation3 + $0x30] sm:$0xff] %v806
        %837 = vst [vmem:[#allocation3 + $0x38] sm:$0xff] %v808
        %838 = vst [vmem:[#allocation3 + $0x40] sm:$0xff] %v811
        %839 = vst [vmem:[#allocation3 + $0x48] sm:$0xff] %v813
        %840 = vst [vmem:[#allocation3 + $0x50] sm:$0xff] %v816
        %841 = vst [vmem:[#allocation3 + $0x58] sm:$0xff] %v818
        %842 = vst [vmem:[#allocation3 + $0x60] sm:$0xff] %v821
        %843 = vst [vmem:[#allocation3 + $0x68] sm:$0xff] %v823
        %844 = vst [vmem:[#allocation3 + $0x70] sm:$0xff] %v826
        %845 = vst [vmem:[#allocation3 + $0x78] sm:$0xff] %v828
        %v864 = vrot.slane %v610, 5
        %v865 = vrot.slane %v864, 4
        %v866 = vrot.slane %v611, 5
        %v867 = vsel %vm672, %v865, %v866
        %v868 = vrot.slane %v866, 4
        %v869 = vrot.slane %v612, 5
        %v870 = vsel %vm672, %v868, %v869
        %v871 = vrot.slane %v613, 5
        %v872 = vrot.slane %v871, 4
        %v873 = vrot.slane %v614, 5
        %v874 = vsel %vm672, %v872, %v873
        %v875 = vrot.slane %v873, 4
        %v876 = vrot.slane %v615, 5
        %v877 = vsel %vm672, %v875, %v876
        %v878 = vrot.slane %v616, 5
        %v879 = vrot.slane %v878, 4
        %v880 = vrot.slane %v617, 5
        %v881 = vsel %vm672, %v879, %v880
        %v882 = vrot.slane %v880, 4
        %v883 = vrot.slane %v618, 5
        %v884 = vsel %vm672, %v882, %v883
        %v885 = vrot.slane %v619, 5
        %v886 = vrot.slane %v885, 4
        %v887 = vrot.slane %v620, 5
        %v888 = vsel %vm672, %v886, %v887
        %v889 = vrot.slane %v887, 4
        %v890 = vrot.slane %v621, 5
        %v891 = vsel %vm672, %v889, %v890
        %v892 = vrot.slane %v622, 5
        %v893 = vrot.slane %v892, 4
        %v894 = vrot.slane %v623, 5
        %v895 = vsel %vm672, %v893, %v894
        %v896 = vrot.slane %v894, 4
        %v897 = vrot.slane %v624, 5
        %v898 = vsel %vm672, %v896, %v897
        %v899 = vrot.slane %v625, 5
        %v900 = vrot.slane %v899, 4
        %v901 = vrot.slane %v626, 5
        %v902 = vsel %vm672, %v900, %v901
        %v903 = vrot.slane %v901, 4
        %v904 = vrot.slane %v627, 5
        %v905 = vsel %vm672, %v903, %v904
        %s906 = scalar_lea.vmem %s2, 6
        %v907 = vld [vmem:[%s906] sm:$0x3]
        %v908 = vunpack.c.l.b16 %v867
        %v909 = vunpack.c.l.b16 %v870
        %v910 = vunpack.c.l.b16 %v874
        %v911 = vunpack.c.l.b16 %v877
        %v912 = vunpack.c.l.b16 %v881
        %v913 = vunpack.c.l.b16 %v884
        %v914 = vunpack.c.l.b16 %v888
        %v915 = vunpack.c.l.b16 %v891
        %v916 = vunpack.c.l.b16 %v895
        %v917 = vunpack.c.l.b16 %v898
        %v918 = vunpack.c.l.b16 %v902
        %v919 = vunpack.c.l.b16 %v905
        %v920 = vpack.c.b16 %v909, %v908
        %v921 = vpack.c.b16 %v911, %v910
        %v922 = vpack.c.b16 %v913, %v912
        %v923 = vpack.c.b16 %v915, %v914
        %v924 = vpack.c.b16 %v917, %v916
        %v925 = vpack.c.b16 %v919, %v918
        %v927 = vsel %vm354, %v920, 0
        %v930 = vsel %vm354, %v921, 0
        %v933 = vsel %vm354, %v922, 0
        %v936 = vsel %vm354, %v923, 0
        %v939 = vsel %vm354, %v924, 0
        %v942 = vsel %vm354, %v925, 0
        %v945 = vsel %vm379, %v907, 0
        %947 = vmatpush.bf16.msra.mxu0 0
        %948 = vmatpush.bf16.msra.mxu0 0
        %949 = vmatpush.bf16.msra.mxu0 0
        %950 = vmatpush.bf16.msra.mxu0 0
        %951 = vmatpush.bf16.msra.mxu0 0
        %952 = vmatpush.bf16.msra.mxu0 0
        %953 = vmatpush.bf16.msra.mxu0 0
        %954 = vmatpush.bf16.msra.mxu0 %v945
        %955 = vmatmul.bf16.gmra.mxu0 %v773
        %v956 = vpop.f32.mrf.mxu0
        %v957 = vadd.f32 0.0, %v956
        %v958 = vpop.f32.mrf.mxu0
        %v959 = vadd.f32 0.0, %v958
        %960 = vmatmul.bf16.gmra.mxu0 %v776
        %v961 = vpop.f32.mrf.mxu0
        %v962 = vadd.f32 0.0, %v961
        %v963 = vpop.f32.mrf.mxu0
        %v964 = vadd.f32 0.0, %v963
        %965 = vmatmul.bf16.gmra.mxu0 %v927
        %v966 = vpop.f32.mrf.mxu0
        %v967 = vadd.f32 0.0, %v966
        %v968 = vpop.f32.mrf.mxu0
        %v969 = vadd.f32 0.0, %v968
        %970 = vmatmul.bf16.gmra.mxu0 %v930
        %v971 = vpop.f32.mrf.mxu0
        %v972 = vadd.f32 0.0, %v971
        %v973 = vpop.f32.mrf.mxu0
        %v974 = vadd.f32 0.0, %v973
        %975 = vmatmul.bf16.gmra.mxu0 %v933
        %v976 = vpop.f32.mrf.mxu0
        %v977 = vadd.f32 0.0, %v976
        %v978 = vpop.f32.mrf.mxu0
        %v979 = vadd.f32 0.0, %v978
        %980 = vmatmul.bf16.gmra.mxu0 %v936
        %v981 = vpop.f32.mrf.mxu0
        %v982 = vadd.f32 0.0, %v981
        %v983 = vpop.f32.mrf.mxu0
        %v984 = vadd.f32 0.0, %v983
        %985 = vmatmul.bf16.gmra.mxu0 %v939
        %v986 = vpop.f32.mrf.mxu0
        %v987 = vadd.f32 0.0, %v986
        %v988 = vpop.f32.mrf.mxu0
        %v989 = vadd.f32 0.0, %v988
        %990 = vmatmul.bf16.gmra.mxu0 %v942
        %v991 = vpop.f32.mrf.mxu0
        %v992 = vadd.f32 0.0, %v991
        %v993 = vpop.f32.mrf.mxu0
        %v994 = vadd.f32 0.0, %v993
        %995 = vdwg.mxu0
        %v996 = vld [vmem:[#allocation3] sm:$0xff]
        %v997 = vld [vmem:[#allocation3 + $0x8] sm:$0xff]
        %v998 = vld [vmem:[#allocation3 + $0x10] sm:$0xff]
        %v999 = vld [vmem:[#allocation3 + $0x18] sm:$0xff]
        %v1000 = vld [vmem:[#allocation3 + $0x20] sm:$0xff]
        %v1001 = vld [vmem:[#allocation3 + $0x28] sm:$0xff]
        %v1002 = vld [vmem:[#allocation3 + $0x30] sm:$0xff]
        %v1003 = vld [vmem:[#allocation3 + $0x38] sm:$0xff]
        %v1004 = vld [vmem:[#allocation3 + $0x40] sm:$0xff]
        %v1005 = vld [vmem:[#allocation3 + $0x48] sm:$0xff]
        %v1006 = vld [vmem:[#allocation3 + $0x50] sm:$0xff]
        %v1007 = vld [vmem:[#allocation3 + $0x58] sm:$0xff]
        %v1008 = vld [vmem:[#allocation3 + $0x60] sm:$0xff]
        %v1009 = vld [vmem:[#allocation3 + $0x68] sm:$0xff]
        %v1010 = vld [vmem:[#allocation3 + $0x70] sm:$0xff]
        %v1011 = vld [vmem:[#allocation3 + $0x78] sm:$0xff]
        %v1012 = vadd.f32 %v996, %v957
        %v1013 = vadd.f32 %v997, %v959
        %v1014 = vadd.f32 %v998, %v962
        %v1015 = vadd.f32 %v999, %v964
        %v1016 = vadd.f32 %v1000, %v967
        %v1017 = vadd.f32 %v1001, %v969
        %v1018 = vadd.f32 %v1002, %v972
        %v1019 = vadd.f32 %v1003, %v974
        %v1020 = vadd.f32 %v1004, %v977
        %v1021 = vadd.f32 %v1005, %v979
        %v1022 = vadd.f32 %v1006, %v982
        %v1023 = vadd.f32 %v1007, %v984
        %v1024 = vadd.f32 %v1008, %v987
        %v1025 = vadd.f32 %v1009, %v989
        %v1026 = vadd.f32 %v1010, %v992
        %v1027 = vadd.f32 %v1011, %v994
        %1028 = vst [vmem:[#allocation3] sm:$0xff] %v1012
        %1029 = vst [vmem:[#allocation3 + $0x8] sm:$0xff] %v1013
        %1030 = vst [vmem:[#allocation3 + $0x10] sm:$0xff] %v1014
        %1031 = vst [vmem:[#allocation3 + $0x18] sm:$0xff] %v1015
        %1032 = vst [vmem:[#allocation3 + $0x20] sm:$0xff] %v1016
        %1033 = vst [vmem:[#allocation3 + $0x28] sm:$0xff] %v1017
        %1034 = vst [vmem:[#allocation3 + $0x30] sm:$0xff] %v1018
        %1035 = vst [vmem:[#allocation3 + $0x38] sm:$0xff] %v1019
        %1036 = vst [vmem:[#allocation3 + $0x40] sm:$0xff] %v1020
        %1037 = vst [vmem:[#allocation3 + $0x48] sm:$0xff] %v1021
        %1038 = vst [vmem:[#allocation3 + $0x50] sm:$0xff] %v1022
        %1039 = vst [vmem:[#allocation3 + $0x58] sm:$0xff] %v1023
        %1040 = vst [vmem:[#allocation3 + $0x60] sm:$0xff] %v1024
        %1041 = vst [vmem:[#allocation3 + $0x68] sm:$0xff] %v1025
        %1042 = vst [vmem:[#allocation3 + $0x70] sm:$0xff] %v1026
        %1043 = vst [vmem:[#allocation3 + $0x78] sm:$0xff] %v1027
        %v1062 = vrot.slane %v628, 5
        %v1063 = vrot.slane %v1062, 4
        %v1064 = vrot.slane %v629, 5
        %v1065 = vsel %vm672, %v1063, %v1064
        %v1066 = vrot.slane %v1064, 4
        %v1067 = vrot.slane %v630, 5
        %v1068 = vsel %vm672, %v1066, %v1067
        %v1069 = vrot.slane %v631, 5
        %v1070 = vrot.slane %v1069, 4
        %v1071 = vrot.slane %v632, 5
        %v1072 = vsel %vm672, %v1070, %v1071
        %v1073 = vrot.slane %v1071, 4
        %v1074 = vrot.slane %v633, 5
        %v1075 = vsel %vm672, %v1073, %v1074
        %v1076 = vrot.slane %v634, 5
        %v1077 = vrot.slane %v1076, 4
        %v1078 = vrot.slane %v635, 5
        %v1079 = vsel %vm672, %v1077, %v1078
        %v1080 = vrot.slane %v1078, 4
        %v1081 = vrot.slane %v636, 5
        %v1082 = vsel %vm672, %v1080, %v1081
        %v1083 = vrot.slane %v637, 5
        %v1084 = vrot.slane %v1083, 4
        %v1085 = vrot.slane %v638, 5
        %v1086 = vsel %vm672, %v1084, %v1085
        %v1087 = vrot.slane %v1085, 4
        %v1088 = vrot.slane %v639, 5
        %v1089 = vsel %vm672, %v1087, %v1088
        %v1090 = vrot.slane %v640, 5
        %v1091 = vrot.slane %v1090, 4
        %v1092 = vrot.slane %v641, 5
        %v1093 = vsel %vm672, %v1091, %v1092
        %v1094 = vrot.slane %v1092, 4
        %v1095 = vrot.slane %v642, 5
        %v1096 = vsel %vm672, %v1094, %v1095
        %v1097 = vrot.slane %v643, 5
        %v1098 = vrot.slane %v1097, 4
        %v1099 = vrot.slane %v644, 5
        %v1100 = vsel %vm672, %v1098, %v1099
        %v1101 = vrot.slane %v1099, 4
        %v1102 = vrot.slane %v645, 5
        %v1103 = vsel %vm672, %v1101, %v1102
        %s1104 = scalar_lea.vmem %s2, 12
        %v1105 = vld [vmem:[%s1104] sm:$0x3]
        %v1106 = vunpack.c.l.b16 %v1065
        %v1107 = vunpack.c.l.b16 %v1068
        %v1108 = vunpack.c.l.b16 %v1072
        %v1109 = vunpack.c.l.b16 %v1075
        %v1110 = vunpack.c.l.b16 %v1079
        %v1111 = vunpack.c.l.b16 %v1082
        %v1112 = vunpack.c.l.b16 %v1086
        %v1113 = vunpack.c.l.b16 %v1089
        %v1114 = vunpack.c.l.b16 %v1093
        %v1115 = vunpack.c.l.b16 %v1096
        %v1116 = vunpack.c.l.b16 %v1100
        %v1117 = vunpack.c.l.b16 %v1103
        %v1118 = vpack.c.b16 %v1107, %v1106
        %v1119 = vpack.c.b16 %v1109, %v1108
        %v1120 = vpack.c.b16 %v1111, %v1110
        %v1121 = vpack.c.b16 %v1113, %v1112
        %v1122 = vpack.c.b16 %v1115, %v1114
        %v1123 = vpack.c.b16 %v1117, %v1116
        %v1125 = vsel %vm354, %v1118, 0
        %v1128 = vsel %vm354, %v1119, 0
        %v1131 = vsel %vm354, %v1120, 0
        %v1134 = vsel %vm354, %v1121, 0
        %v1137 = vsel %vm354, %v1122, 0
        %v1140 = vsel %vm354, %v1123, 0
        %v1143 = vsel %vm379, %v1105, 0
        %1145 = vmatpush.bf16.msra.mxu0 0
        %1146 = vmatpush.bf16.msra.mxu0 0
        %1147 = vmatpush.bf16.msra.mxu0 0
        %1148 = vmatpush.bf16.msra.mxu0 0
        %1149 = vmatpush.bf16.msra.mxu0 0
        %1150 = vmatpush.bf16.msra.mxu0 0
        %1151 = vmatpush.bf16.msra.mxu0 0
        %1152 = vmatpush.bf16.msra.mxu0 %v1143
        %1153 = vmatmul.bf16.gmra.mxu0 %v939
        %v1154 = vpop.f32.mrf.mxu0
        %v1155 = vadd.f32 0.0, %v1154
        %v1156 = vpop.f32.mrf.mxu0
        %v1157 = vadd.f32 0.0, %v1156
        %1158 = vmatmul.bf16.gmra.mxu0 %v942
        %v1159 = vpop.f32.mrf.mxu0
        %v1160 = vadd.f32 0.0, %v1159
        %v1161 = vpop.f32.mrf.mxu0
        %v1162 = vadd.f32 0.0, %v1161
        %1163 = vmatmul.bf16.gmra.mxu0 %v1125
        %v1164 = vpop.f32.mrf.mxu0
        %v1165 = vadd.f32 0.0, %v1164
        %v1166 = vpop.f32.mrf.mxu0
        %v1167 = vadd.f32 0.0, %v1166
        %1168 = vmatmul.bf16.gmra.mxu0 %v1128
        %v1169 = vpop.f32.mrf.mxu0
        %v1170 = vadd.f32 0.0, %v1169
        %v1171 = vpop.f32.mrf.mxu0
        %v1172 = vadd.f32 0.0, %v1171
        %1173 = vmatmul.bf16.gmra.mxu0 %v1131
        %v1174 = vpop.f32.mrf.mxu0
        %v1175 = vadd.f32 0.0, %v1174
        %v1176 = vpop.f32.mrf.mxu0
        %v1177 = vadd.f32 0.0, %v1176
        %1178 = vmatmul.bf16.gmra.mxu0 %v1134
        %v1179 = vpop.f32.mrf.mxu0
        %v1180 = vadd.f32 0.0, %v1179
        %v1181 = vpop.f32.mrf.mxu0
        %v1182 = vadd.f32 0.0, %v1181
        %1183 = vmatmul.bf16.gmra.mxu0 %v1137
        %v1184 = vpop.f32.mrf.mxu0
        %v1185 = vadd.f32 0.0, %v1184
        %v1186 = vpop.f32.mrf.mxu0
        %v1187 = vadd.f32 0.0, %v1186
        %1188 = vmatmul.bf16.gmra.mxu0 %v1140
        %v1189 = vpop.f32.mrf.mxu0
        %v1190 = vadd.f32 0.0, %v1189
        %v1191 = vpop.f32.mrf.mxu0
        %v1192 = vadd.f32 0.0, %v1191
        %1193 = vdwg.mxu0
        %v1194 = vld [vmem:[#allocation3] sm:$0xff]
        %v1195 = vld [vmem:[#allocation3 + $0x8] sm:$0xff]
        %v1196 = vld [vmem:[#allocation3 + $0x10] sm:$0xff]
        %v1197 = vld [vmem:[#allocation3 + $0x18] sm:$0xff]
        %v1198 = vld [vmem:[#allocation3 + $0x20] sm:$0xff]
        %v1199 = vld [vmem:[#allocation3 + $0x28] sm:$0xff]
        %v1200 = vld [vmem:[#allocation3 + $0x30] sm:$0xff]
        %v1201 = vld [vmem:[#allocation3 + $0x38] sm:$0xff]
        %v1202 = vld [vmem:[#allocation3 + $0x40] sm:$0xff]
        %v1203 = vld [vmem:[#allocation3 + $0x48] sm:$0xff]
        %v1204 = vld [vmem:[#allocation3 + $0x50] sm:$0xff]
        %v1205 = vld [vmem:[#allocation3 + $0x58] sm:$0xff]
        %v1206 = vld [vmem:[#allocation3 + $0x60] sm:$0xff]
        %v1207 = vld [vmem:[#allocation3 + $0x68] sm:$0xff]
        %v1208 = vld [vmem:[#allocation3 + $0x70] sm:$0xff]
        %v1209 = vld [vmem:[#allocation3 + $0x78] sm:$0xff]
        %v1210 = vadd.f32 %v1194, %v1155
        %v1211 = vadd.f32 %v1195, %v1157
        %v1212 = vadd.f32 %v1196, %v1160
        %v1213 = vadd.f32 %v1197, %v1162
        %v1214 = vadd.f32 %v1198, %v1165
        %v1215 = vadd.f32 %v1199, %v1167
        %v1216 = vadd.f32 %v1200, %v1170
        %v1217 = vadd.f32 %v1201, %v1172
        %v1218 = vadd.f32 %v1202, %v1175
        %v1219 = vadd.f32 %v1203, %v1177
        %v1220 = vadd.f32 %v1204, %v1180
        %v1221 = vadd.f32 %v1205, %v1182
        %v1222 = vadd.f32 %v1206, %v1185
        %v1223 = vadd.f32 %v1207, %v1187
        %v1224 = vadd.f32 %v1208, %v1190
        %v1225 = vadd.f32 %v1209, %v1192
        %1226 = vst [vmem:[#allocation3] sm:$0xff] %v1210
        %1227 = vst [vmem:[#allocation3 + $0x8] sm:$0xff] %v1211
        %1228 = vst [vmem:[#allocation3 + $0x10] sm:$0xff] %v1212
        %1229 = vst [vmem:[#allocation3 + $0x18] sm:$0xff] %v1213
        %1230 = vst [vmem:[#allocation3 + $0x20] sm:$0xff] %v1214
        %1231 = vst [vmem:[#allocation3 + $0x28] sm:$0xff] %v1215
        %1232 = vst [vmem:[#allocation3 + $0x30] sm:$0xff] %v1216
        %1233 = vst [vmem:[#allocation3 + $0x38] sm:$0xff] %v1217
        %1234 = vst [vmem:[#allocation3 + $0x40] sm:$0xff] %v1218
        %1235 = vst [vmem:[#allocation3 + $0x48] sm:$0xff] %v1219
        %1236 = vst [vmem:[#allocation3 + $0x50] sm:$0xff] %v1220
        %1237 = vst [vmem:[#allocation3 + $0x58] sm:$0xff] %v1221
        %1238 = vst [vmem:[#allocation3 + $0x60] sm:$0xff] %v1222
        %1239 = vst [vmem:[#allocation3 + $0x68] sm:$0xff] %v1223
        %1240 = vst [vmem:[#allocation3 + $0x70] sm:$0xff] %v1224
        %1241 = vst [vmem:[#allocation3 + $0x78] sm:$0xff] %v1225
        %v1242 = vld [vmem:[%s585 + $0xc] sm:$0xf]
        %v1243 = vld [vmem:[%s585 + $0x10] sm:$0xf]
        %v1244 = vld [vmem:[%s585 + $0x2c] sm:$0xf]
        %v1245 = vld [vmem:[%s585 + $0x30] sm:$0xf]
        %v1246 = vld [vmem:[%s585 + $0x4c] sm:$0xf]
        %v1247 = vld [vmem:[%s585 + $0x50] sm:$0xf]
        %v1248 = vld [vmem:[%s585 + $0x6c] sm:$0xf]
        %v1249 = vld [vmem:[%s585 + $0x70] sm:$0xf]
        %v1250 = vld [vmem:[%s585 + $0x8c] sm:$0xf]
        %v1251 = vld [vmem:[%s585 + $0x90] sm:$0xf]
        %v1252 = vld [vmem:[%s585 + $0xac] sm:$0xf]
        %v1253 = vld [vmem:[%s585 + $0xb0] sm:$0xf]
        %v1254 = vld [vmem:[%s585 + $0xcc] sm:$0xf]
        %v1255 = vld [vmem:[%s585 + $0xd0] sm:$0xf]
        %v1256 = vld [vmem:[%s585 + $0xec] sm:$0xf]
        %v1257 = vld [vmem:[%s585 + $0xf0] sm:$0xf]
        %v1258 = vld [vmem:[%s585 + $0x10c] sm:$0xf]
        %v1259 = vld [vmem:[%s585 + $0x110] sm:$0xf]
        %v1260 = vld [vmem:[%s585 + $0x12c] sm:$0xf]
        %v1261 = vld [vmem:[%s585 + $0x130] sm:$0xf]
        %v1262 = vld [vmem:[%s585 + $0x14c] sm:$0xf]
        %v1263 = vld [vmem:[%s585 + $0x150] sm:$0xf]
        %v1264 = vld [vmem:[%s585 + $0x16c] sm:$0xf]
        %v1265 = vld [vmem:[%s585 + $0x170] sm:$0xf]
        %v1266 = vld [vmem:[%s585 + $0x18c] sm:$0xf]
        %v1267 = vld [vmem:[%s585 + $0x190] sm:$0xf]
        %v1268 = vld [vmem:[%s585 + $0x1ac] sm:$0xf]
        %v1269 = vld [vmem:[%s585 + $0x1b0] sm:$0xf]
        %v1270 = vld [vmem:[%s585 + $0x1cc] sm:$0xf]
        %v1271 = vld [vmem:[%s585 + $0x1d0] sm:$0xf]
        %v1272 = vld [vmem:[%s585 + $0x1ec] sm:$0xf]
        %v1273 = vld [vmem:[%s585 + $0x1f0] sm:$0xf]
        %v1274 = vld [vmem:[%s585 + $0x20c] sm:$0xf]
        %v1275 = vld [vmem:[%s585 + $0x210] sm:$0xf]
        %v1276 = vld [vmem:[%s585 + $0x22c] sm:$0xf]
        %v1277 = vld [vmem:[%s585 + $0x230] sm:$0xf]
        %v1278 = vld [vmem:[%s585 + $0x24c] sm:$0xf]
        %v1279 = vld [vmem:[%s585 + $0x250] sm:$0xf]
        %v1280 = vld [vmem:[%s585 + $0x26c] sm:$0xf]
        %v1281 = vld [vmem:[%s585 + $0x270] sm:$0xf]
        %s1282 = scalar_lea.vmem %s2, 2
        %v1283 = vld [vmem:[%s1282] sm:$0x3]
        %v1300 = vunpack.c.l.b16 %v1242
        %v1301 = vunpack.c.l.b16 %v1243
        %v1302 = vunpack.c.l.b16 %v1244
        %v1303 = vunpack.c.l.b16 %v1245
        %v1304 = vunpack.c.l.b16 %v1246
        %v1305 = vunpack.c.l.b16 %v1247
        %v1306 = vunpack.c.l.b16 %v1248
        %v1307 = vunpack.c.l.b16 %v1249
        %v1308 = vunpack.c.l.b16 %v1250
        %v1309 = vunpack.c.l.b16 %v1251
        %v1310 = vunpack.c.l.b16 %v1252
        %v1311 = vunpack.c.l.b16 %v1253
        %v1312 = vunpack.c.l.b16 %v1254
        %v1313 = vunpack.c.l.b16 %v1255
        %v1314 = vunpack.c.l.b16 %v1256
        %v1315 = vunpack.c.l.b16 %v1257
        %v1316 = vpack.c.b16 %v1301, %v1300
        %v1317 = vpack.c.b16 %v1303, %v1302
        %v1318 = vpack.c.b16 %v1305, %v1304
        %v1319 = vpack.c.b16 %v1307, %v1306
        %v1320 = vpack.c.b16 %v1309, %v1308
        %v1321 = vpack.c.b16 %v1311, %v1310
        %v1322 = vpack.c.b16 %v1313, %v1312
        %v1323 = vpack.c.b16 %v1315, %v1314
        %v1325 = vsel %vm354, %v1316, 0
        %v1328 = vsel %vm354, %v1317, 0
        %v1331 = vsel %vm354, %v1318, 0
        %v1334 = vsel %vm354, %v1319, 0
        %v1337 = vsel %vm354, %v1320, 0
        %v1340 = vsel %vm354, %v1321, 0
        %v1343 = vsel %vm354, %v1322, 0
        %v1346 = vsel %vm354, %v1323, 0
        %v1349 = vsel %vm379, %v1283, 0
        %1351 = vmatpush.bf16.msra.mxu0 0
        %1352 = vmatpush.bf16.msra.mxu0 0
        %1353 = vmatpush.bf16.msra.mxu0 0
        %1354 = vmatpush.bf16.msra.mxu0 0
        %1355 = vmatpush.bf16.msra.mxu0 0
        %1356 = vmatpush.bf16.msra.mxu0 0
        %1357 = vmatpush.bf16.msra.mxu0 0
        %1358 = vmatpush.bf16.msra.mxu0 %v1349
        %1359 = vmatmul.bf16.gmra.mxu0 %v1325
        %v1360 = vpop.f32.mrf.mxu0
        %v1361 = vadd.f32 0.0, %v1360
        %v1362 = vpop.f32.mrf.mxu0
        %v1363 = vadd.f32 0.0, %v1362
        %1364 = vmatmul.bf16.gmra.mxu0 %v1328
        %v1365 = vpop.f32.mrf.mxu0
        %v1366 = vadd.f32 0.0, %v1365
        %v1367 = vpop.f32.mrf.mxu0
        %v1368 = vadd.f32 0.0, %v1367
        %1369 = vmatmul.bf16.gmra.mxu0 %v1331
        %v1370 = vpop.f32.mrf.mxu0
        %v1371 = vadd.f32 0.0, %v1370
        %v1372 = vpop.f32.mrf.mxu0
        %v1373 = vadd.f32 0.0, %v1372
        %1374 = vmatmul.bf16.gmra.mxu0 %v1334
        %v1375 = vpop.f32.mrf.mxu0
        %v1376 = vadd.f32 0.0, %v1375
        %v1377 = vpop.f32.mrf.mxu0
        %v1378 = vadd.f32 0.0, %v1377
        %1379 = vmatmul.bf16.gmra.mxu0 %v1337
        %v1380 = vpop.f32.mrf.mxu0
        %v1381 = vadd.f32 0.0, %v1380
        %v1382 = vpop.f32.mrf.mxu0
        %v1383 = vadd.f32 0.0, %v1382
        %1384 = vmatmul.bf16.gmra.mxu0 %v1340
        %v1385 = vpop.f32.mrf.mxu0
        %v1386 = vadd.f32 0.0, %v1385
        %v1387 = vpop.f32.mrf.mxu0
        %v1388 = vadd.f32 0.0, %v1387
        %1389 = vmatmul.bf16.gmra.mxu0 %v1343
        %v1390 = vpop.f32.mrf.mxu0
        %v1391 = vadd.f32 0.0, %v1390
        %v1392 = vpop.f32.mrf.mxu0
        %v1393 = vadd.f32 0.0, %v1392
        %1394 = vmatmul.bf16.gmra.mxu0 %v1346
        %v1395 = vpop.f32.mrf.mxu0
        %v1396 = vadd.f32 0.0, %v1395
        %v1397 = vpop.f32.mrf.mxu0
        %v1398 = vadd.f32 0.0, %v1397
        %1399 = vdwg.mxu0
        %v1400 = vld [vmem:[#allocation3] sm:$0xff]
        %v1401 = vld [vmem:[#allocation3 + $0x8] sm:$0xff]
        %v1402 = vld [vmem:[#allocation3 + $0x10] sm:$0xff]
        %v1403 = vld [vmem:[#allocation3 + $0x18] sm:$0xff]
        %v1404 = vld [vmem:[#allocation3 + $0x20] sm:$0xff]
        %v1405 = vld [vmem:[#allocation3 + $0x28] sm:$0xff]
        %v1406 = vld [vmem:[#allocation3 + $0x30] sm:$0xff]
        %v1407 = vld [vmem:[#allocation3 + $0x38] sm:$0xff]
        %v1408 = vld [vmem:[#allocation3 + $0x40] sm:$0xff]
        %v1409 = vld [vmem:[#allocation3 + $0x48] sm:$0xff]
        %v1410 = vld [vmem:[#allocation3 + $0x50] sm:$0xff]
        %v1411 = vld [vmem:[#allocation3 + $0x58] sm:$0xff]
        %v1412 = vld [vmem:[#allocation3 + $0x60] sm:$0xff]
        %v1413 = vld [vmem:[#allocation3 + $0x68] sm:$0xff]
        %v1414 = vld [vmem:[#allocation3 + $0x70] sm:$0xff]
        %v1415 = vld [vmem:[#allocation3 + $0x78] sm:$0xff]
        %v1416 = vadd.f32 %v1400, %v1361
        %v1417 = vadd.f32 %v1401, %v1363
        %v1418 = vadd.f32 %v1402, %v1366
        %v1419 = vadd.f32 %v1403, %v1368
        %v1420 = vadd.f32 %v1404, %v1371
        %v1421 = vadd.f32 %v1405, %v1373
        %v1422 = vadd.f32 %v1406, %v1376
        %v1423 = vadd.f32 %v1407, %v1378
        %v1424 = vadd.f32 %v1408, %v1381
        %v1425 = vadd.f32 %v1409, %v1383
        %v1426 = vadd.f32 %v1410, %v1386
        %v1427 = vadd.f32 %v1411, %v1388
        %v1428 = vadd.f32 %v1412, %v1391
        %v1429 = vadd.f32 %v1413, %v1393
        %v1430 = vadd.f32 %v1414, %v1396
        %v1431 = vadd.f32 %v1415, %v1398
        %1432 = vst [vmem:[#allocation3] sm:$0xff] %v1416
        %1433 = vst [vmem:[#allocation3 + $0x8] sm:$0xff] %v1417
        %1434 = vst [vmem:[#allocation3 + $0x10] sm:$0xff] %v1418
        %1435 = vst [vmem:[#allocation3 + $0x18] sm:$0xff] %v1419
        %1436 = vst [vmem:[#allocation3 + $0x20] sm:$0xff] %v1420
        %1437 = vst [vmem:[#allocation3 + $0x28] sm:$0xff] %v1421
        %1438 = vst [vmem:[#allocation3 + $0x30] sm:$0xff] %v1422
        %1439 = vst [vmem:[#allocation3 + $0x38] sm:$0xff] %v1423
        %1440 = vst [vmem:[#allocation3 + $0x40] sm:$0xff] %v1424
        %1441 = vst [vmem:[#allocation3 + $0x48] sm:$0xff] %v1425
        %1442 = vst [vmem:[#allocation3 + $0x50] sm:$0xff] %v1426
        %1443 = vst [vmem:[#allocation3 + $0x58] sm:$0xff] %v1427
        %1444 = vst [vmem:[#allocation3 + $0x60] sm:$0xff] %v1428
        %1445 = vst [vmem:[#allocation3 + $0x68] sm:$0xff] %v1429
        %1446 = vst [vmem:[#allocation3 + $0x70] sm:$0xff] %v1430
        %1447 = vst [vmem:[#allocation3 + $0x78] sm:$0xff] %v1431
        %s1448 = scalar_lea.vmem %s2, 8
        %v1449 = vld [vmem:[%s1448] sm:$0x3]
        %v1462 = vunpack.c.l.b16 %v1258
        %v1463 = vunpack.c.l.b16 %v1259
        %v1464 = vunpack.c.l.b16 %v1260
        %v1465 = vunpack.c.l.b16 %v1261
        %v1466 = vunpack.c.l.b16 %v1262
        %v1467 = vunpack.c.l.b16 %v1263
        %v1468 = vunpack.c.l.b16 %v1264
        %v1469 = vunpack.c.l.b16 %v1265
        %v1470 = vunpack.c.l.b16 %v1266
        %v1471 = vunpack.c.l.b16 %v1267
        %v1472 = vunpack.c.l.b16 %v1268
        %v1473 = vunpack.c.l.b16 %v1269
        %v1474 = vpack.c.b16 %v1463, %v1462
        %v1475 = vpack.c.b16 %v1465, %v1464
        %v1476 = vpack.c.b16 %v1467, %v1466
        %v1477 = vpack.c.b16 %v1469, %v1468
        %v1478 = vpack.c.b16 %v1471, %v1470
        %v1479 = vpack.c.b16 %v1473, %v1472
        %v1481 = vsel %vm354, %v1474, 0
        %v1484 = vsel %vm354, %v1475, 0
        %v1487 = vsel %vm354, %v1476, 0
        %v1490 = vsel %vm354, %v1477, 0
        %v1493 = vsel %vm354, %v1478, 0
        %v1496 = vsel %vm354, %v1479, 0
        %v1499 = vsel %vm379, %v1449, 0
        %1501 = vmatpush.bf16.msra.mxu0 0
        %1502 = vmatpush.bf16.msra.mxu0 0
        %1503 = vmatpush.bf16.msra.mxu0 0
        %1504 = vmatpush.bf16.msra.mxu0 0
        %1505 = vmatpush.bf16.msra.mxu0 0
        %1506 = vmatpush.bf16.msra.mxu0 0
        %1507 = vmatpush.bf16.msra.mxu0 0
        %1508 = vmatpush.bf16.msra.mxu0 %v1499
        %1509 = vmatmul.bf16.gmra.mxu0 %v1343
        %v1510 = vpop.f32.mrf.mxu0
        %v1511 = vadd.f32 0.0, %v1510
        %v1512 = vpop.f32.mrf.mxu0
        %v1513 = vadd.f32 0.0, %v1512
        %1514 = vmatmul.bf16.gmra.mxu0 %v1346
        %v1515 = vpop.f32.mrf.mxu0
        %v1516 = vadd.f32 0.0, %v1515
        %v1517 = vpop.f32.mrf.mxu0
        %v1518 = vadd.f32 0.0, %v1517
        %1519 = vmatmul.bf16.gmra.mxu0 %v1481
        %v1520 = vpop.f32.mrf.mxu0
        %v1521 = vadd.f32 0.0, %v1520
        %v1522 = vpop.f32.mrf.mxu0
        %v1523 = vadd.f32 0.0, %v1522
        %1524 = vmatmul.bf16.gmra.mxu0 %v1484
        %v1525 = vpop.f32.mrf.mxu0
        %v1526 = vadd.f32 0.0, %v1525
        %v1527 = vpop.f32.mrf.mxu0
        %v1528 = vadd.f32 0.0, %v1527
        %1529 = vmatmul.bf16.gmra.mxu0 %v1487
        %v1530 = vpop.f32.mrf.mxu0
        %v1531 = vadd.f32 0.0, %v1530
        %v1532 = vpop.f32.mrf.mxu0
        %v1533 = vadd.f32 0.0, %v1532
        %1534 = vmatmul.bf16.gmra.mxu0 %v1490
        %v1535 = vpop.f32.mrf.mxu0
        %v1536 = vadd.f32 0.0, %v1535
        %v1537 = vpop.f32.mrf.mxu0
        %v1538 = vadd.f32 0.0, %v1537
        %1539 = vmatmul.bf16.gmra.mxu0 %v1493
        %v1540 = vpop.f32.mrf.mxu0
        %v1541 = vadd.f32 0.0, %v1540
        %v1542 = vpop.f32.mrf.mxu0
        %v1543 = vadd.f32 0.0, %v1542
        %1544 = vmatmul.bf16.gmra.mxu0 %v1496
        %v1545 = vpop.f32.mrf.mxu0
        %v1546 = vadd.f32 0.0, %v1545
        %v1547 = vpop.f32.mrf.mxu0
        %v1548 = vadd.f32 0.0, %v1547
        %1549 = vdwg.mxu0
        %v1550 = vld [vmem:[#allocation3] sm:$0xff]
        %v1551 = vld [vmem:[#allocation3 + $0x8] sm:$0xff]
        %v1552 = vld [vmem:[#allocation3 + $0x10] sm:$0xff]
        %v1553 = vld [vmem:[#allocation3 + $0x18] sm:$0xff]
        %v1554 = vld [vmem:[#allocation3 + $0x20] sm:$0xff]
        %v1555 = vld [vmem:[#allocation3 + $0x28] sm:$0xff]
        %v1556 = vld [vmem:[#allocation3 + $0x30] sm:$0xff]
        %v1557 = vld [vmem:[#allocation3 + $0x38] sm:$0xff]
        %v1558 = vld [vmem:[#allocation3 + $0x40] sm:$0xff]
        %v1559 = vld [vmem:[#allocation3 + $0x48] sm:$0xff]
        %v1560 = vld [vmem:[#allocation3 + $0x50] sm:$0xff]
        %v1561 = vld [vmem:[#allocation3 + $0x58] sm:$0xff]
        %v1562 = vld [vmem:[#allocation3 + $0x60] sm:$0xff]
        %v1563 = vld [vmem:[#allocation3 + $0x68] sm:$0xff]
        %v1564 = vld [vmem:[#allocation3 + $0x70] sm:$0xff]
        %v1565 = vld [vmem:[#allocation3 + $0x78] sm:$0xff]
        %v1566 = vadd.f32 %v1550, %v1511
        %v1567 = vadd.f32 %v1551, %v1513
        %v1568 = vadd.f32 %v1552, %v1516
        %v1569 = vadd.f32 %v1553, %v1518
        %v1570 = vadd.f32 %v1554, %v1521
        %v1571 = vadd.f32 %v1555, %v1523
        %v1572 = vadd.f32 %v1556, %v1526
        %v1573 = vadd.f32 %v1557, %v1528
        %v1574 = vadd.f32 %v1558, %v1531
        %v1575 = vadd.f32 %v1559, %v1533
        %v1576 = vadd.f32 %v1560, %v1536
        %v1577 = vadd.f32 %v1561, %v1538
        %v1578 = vadd.f32 %v1562, %v1541
        %v1579 = vadd.f32 %v1563, %v1543
        %v1580 = vadd.f32 %v1564, %v1546
        %v1581 = vadd.f32 %v1565, %v1548
        %1582 = vst [vmem:[#allocation3] sm:$0xff] %v1566
        %1583 = vst [vmem:[#allocation3 + $0x8] sm:$0xff] %v1567
        %1584 = vst [vmem:[#allocation3 + $0x10] sm:$0xff] %v1568
        %1585 = vst [vmem:[#allocation3 + $0x18] sm:$0xff] %v1569
        %1586 = vst [vmem:[#allocation3 + $0x20] sm:$0xff] %v1570
        %1587 = vst [vmem:[#allocation3 + $0x28] sm:$0xff] %v1571
        %1588 = vst [vmem:[#allocation3 + $0x30] sm:$0xff] %v1572
        %1589 = vst [vmem:[#allocation3 + $0x38] sm:$0xff] %v1573
        %1590 = vst [vmem:[#allocation3 + $0x40] sm:$0xff] %v1574
        %1591 = vst [vmem:[#allocation3 + $0x48] sm:$0xff] %v1575
        %1592 = vst [vmem:[#allocation3 + $0x50] sm:$0xff] %v1576
        %1593 = vst [vmem:[#allocation3 + $0x58] sm:$0xff] %v1577
        %1594 = vst [vmem:[#allocation3 + $0x60] sm:$0xff] %v1578
        %1595 = vst [vmem:[#allocation3 + $0x68] sm:$0xff] %v1579
        %1596 = vst [vmem:[#allocation3 + $0x70] sm:$0xff] %v1580
        %1597 = vst [vmem:[#allocation3 + $0x78] sm:$0xff] %v1581
        %s1598 = scalar_lea.vmem %s2, 14
        %v1599 = vld [vmem:[%s1598] sm:$0x3]
        %v1612 = vunpack.c.l.b16 %v1270
        %v1613 = vunpack.c.l.b16 %v1271
        %v1614 = vunpack.c.l.b16 %v1272
        %v1615 = vunpack.c.l.b16 %v1273
        %v1616 = vunpack.c.l.b16 %v1274
        %v1617 = vunpack.c.l.b16 %v1275
        %v1618 = vunpack.c.l.b16 %v1276
        %v1619 = vunpack.c.l.b16 %v1277
        %v1620 = vunpack.c.l.b16 %v1278
        %v1621 = vunpack.c.l.b16 %v1279
        %v1622 = vunpack.c.l.b16 %v1280
        %v1623 = vunpack.c.l.b16 %v1281
        %v1624 = vpack.c.b16 %v1613, %v1612
        %v1625 = vpack.c.b16 %v1615, %v1614
        %v1626 = vpack.c.b16 %v1617, %v1616
        %v1627 = vpack.c.b16 %v1619, %v1618
        %v1628 = vpack.c.b16 %v1621, %v1620
        %v1629 = vpack.c.b16 %v1623, %v1622
        %v1631 = vsel %vm354, %v1624, 0
        %v1634 = vsel %vm354, %v1625, 0
        %v1637 = vsel %vm354, %v1626, 0
        %v1640 = vsel %vm354, %v1627, 0
        %v1643 = vsel %vm354, %v1628, 0
        %v1646 = vsel %vm354, %v1629, 0
        %v1649 = vsel %vm379, %v1599, 0
        %1651 = vmatpush.bf16.msra.mxu0 0
        %1652 = vmatpush.bf16.msra.mxu0 0
        %1653 = vmatpush.bf16.msra.mxu0 0
        %1654 = vmatpush.bf16.msra.mxu0 0
        %1655 = vmatpush.bf16.msra.mxu0 0
        %1656 = vmatpush.bf16.msra.mxu0 0
        %1657 = vmatpush.bf16.msra.mxu0 0
        %1658 = vmatpush.bf16.msra.mxu0 %v1649
        %1659 = vmatmul.bf16.gmra.mxu0 %v1493
        %v1660 = vpop.f32.mrf.mxu0
        %v1661 = vadd.f32 0.0, %v1660
        %v1662 = vpop.f32.mrf.mxu0
        %v1663 = vadd.f32 0.0, %v1662
        %1664 = vmatmul.bf16.gmra.mxu0 %v1496
        %v1665 = vpop.f32.mrf.mxu0
        %v1666 = vadd.f32 0.0, %v1665
        %v1667 = vpop.f32.mrf.mxu0
        %v1668 = vadd.f32 0.0, %v1667
        %1669 = vmatmul.bf16.gmra.mxu0 %v1631
        %v1670 = vpop.f32.mrf.mxu0
        %v1671 = vadd.f32 0.0, %v1670
        %v1672 = vpop.f32.mrf.mxu0
        %v1673 = vadd.f32 0.0, %v1672
        %1674 = vmatmul.bf16.gmra.mxu0 %v1634
        %v1675 = vpop.f32.mrf.mxu0
        %v1676 = vadd.f32 0.0, %v1675
        %v1677 = vpop.f32.mrf.mxu0
        %v1678 = vadd.f32 0.0, %v1677
        %1679 = vmatmul.bf16.gmra.mxu0 %v1637
        %v1680 = vpop.f32.mrf.mxu0
        %v1681 = vadd.f32 0.0, %v1680
        %v1682 = vpop.f32.mrf.mxu0
        %v1683 = vadd.f32 0.0, %v1682
        %1684 = vmatmul.bf16.gmra.mxu0 %v1640
        %v1685 = vpop.f32.mrf.mxu0
        %v1686 = vadd.f32 0.0, %v1685
        %v1687 = vpop.f32.mrf.mxu0
        %v1688 = vadd.f32 0.0, %v1687
        %1689 = vmatmul.bf16.gmra.mxu0 %v1643
        %v1690 = vpop.f32.mrf.mxu0
        %v1691 = vadd.f32 0.0, %v1690
        %v1692 = vpop.f32.mrf.mxu0
        %v1693 = vadd.f32 0.0, %v1692
        %1694 = vmatmul.bf16.gmra.mxu0 %v1646
        %v1695 = vpop.f32.mrf.mxu0
        %v1696 = vadd.f32 0.0, %v1695
        %v1697 = vpop.f32.mrf.mxu0
        %v1698 = vadd.f32 0.0, %v1697
        %1699 = vdwg.mxu0
        %v1700 = vld [vmem:[#allocation3] sm:$0xff]
        %v1701 = vld [vmem:[#allocation3 + $0x8] sm:$0xff]
        %v1702 = vld [vmem:[#allocation3 + $0x10] sm:$0xff]
        %v1703 = vld [vmem:[#allocation3 + $0x18] sm:$0xff]
        %v1704 = vld [vmem:[#allocation3 + $0x20] sm:$0xff]
        %v1705 = vld [vmem:[#allocation3 + $0x28] sm:$0xff]
        %v1706 = vld [vmem:[#allocation3 + $0x30] sm:$0xff]
        %v1707 = vld [vmem:[#allocation3 + $0x38] sm:$0xff]
        %v1708 = vld [vmem:[#allocation3 + $0x40] sm:$0xff]
        %v1709 = vld [vmem:[#allocation3 + $0x48] sm:$0xff]
        %v1710 = vld [vmem:[#allocation3 + $0x50] sm:$0xff]
        %v1711 = vld [vmem:[#allocation3 + $0x58] sm:$0xff]
        %v1712 = vld [vmem:[#allocation3 + $0x60] sm:$0xff]
        %v1713 = vld [vmem:[#allocation3 + $0x68] sm:$0xff]
        %v1714 = vld [vmem:[#allocation3 + $0x70] sm:$0xff]
        %v1715 = vld [vmem:[#allocation3 + $0x78] sm:$0xff]
        %v1716 = vadd.f32 %v1700, %v1661
        %v1717 = vadd.f32 %v1701, %v1663
        %v1718 = vadd.f32 %v1702, %v1666
        %v1719 = vadd.f32 %v1703, %v1668
        %v1720 = vadd.f32 %v1704, %v1671
        %v1721 = vadd.f32 %v1705, %v1673
        %v1722 = vadd.f32 %v1706, %v1676
        %v1723 = vadd.f32 %v1707, %v1678
        %v1724 = vadd.f32 %v1708, %v1681
        %v1725 = vadd.f32 %v1709, %v1683
        %v1726 = vadd.f32 %v1710, %v1686
        %v1727 = vadd.f32 %v1711, %v1688
        %v1728 = vadd.f32 %v1712, %v1691
        %v1729 = vadd.f32 %v1713, %v1693
        %v1730 = vadd.f32 %v1714, %v1696
        %v1731 = vadd.f32 %v1715, %v1698
        %1732 = vst [vmem:[#allocation3] sm:$0xff] %v1716
        %1733 = vst [vmem:[#allocation3 + $0x8] sm:$0xff] %v1717
        %1734 = vst [vmem:[#allocation3 + $0x10] sm:$0xff] %v1718
        %1735 = vst [vmem:[#allocation3 + $0x18] sm:$0xff] %v1719
        %1736 = vst [vmem:[#allocation3 + $0x20] sm:$0xff] %v1720
        %1737 = vst [vmem:[#allocation3 + $0x28] sm:$0xff] %v1721
        %1738 = vst [vmem:[#allocation3 + $0x30] sm:$0xff] %v1722
        %1739 = vst [vmem:[#allocation3 + $0x38] sm:$0xff] %v1723
        %1740 = vst [vmem:[#allocation3 + $0x40] sm:$0xff] %v1724
        %1741 = vst [vmem:[#allocation3 + $0x48] sm:$0xff] %v1725
        %1742 = vst [vmem:[#allocation3 + $0x50] sm:$0xff] %v1726
        %1743 = vst [vmem:[#allocation3 + $0x58] sm:$0xff] %v1727
        %1744 = vst [vmem:[#allocation3 + $0x60] sm:$0xff] %v1728
        %1745 = vst [vmem:[#allocation3 + $0x68] sm:$0xff] %v1729
        %1746 = vst [vmem:[#allocation3 + $0x70] sm:$0xff] %v1730
        %1747 = vst [vmem:[#allocation3 + $0x78] sm:$0xff] %v1731
        %v1748 = vld [vmem:[%s585 + $0xc] sm:$0x8]
        %v1749 = vld [vmem:[%s585 + $0x10] sm:$0xf]
        %v1750 = vld [vmem:[%s585 + $0x14] sm:$0x7]
        %v1751 = vld [vmem:[%s585 + $0x2c] sm:$0x8]
        %v1752 = vld [vmem:[%s585 + $0x30] sm:$0xf]
        %v1753 = vld [vmem:[%s585 + $0x34] sm:$0x7]
        %v1754 = vld [vmem:[%s585 + $0x4c] sm:$0x8]
        %v1755 = vld [vmem:[%s585 + $0x50] sm:$0xf]
        %v1756 = vld [vmem:[%s585 + $0x54] sm:$0x7]
        %v1757 = vld [vmem:[%s585 + $0x6c] sm:$0x8]
        %v1758 = vld [vmem:[%s585 + $0x70] sm:$0xf]
        %v1759 = vld [vmem:[%s585 + $0x74] sm:$0x7]
        %v1760 = vld [vmem:[%s585 + $0x8c] sm:$0x8]
        %v1761 = vld [vmem:[%s585 + $0x90] sm:$0xf]
        %v1762 = vld [vmem:[%s585 + $0x94] sm:$0x7]
        %v1763 = vld [vmem:[%s585 + $0xac] sm:$0x8]
        %v1764 = vld [vmem:[%s585 + $0xb0] sm:$0xf]
        %v1765 = vld [vmem:[%s585 + $0xb4] sm:$0x7]
        %v1766 = vld [vmem:[%s585 + $0xcc] sm:$0x8]
        %v1767 = vld [vmem:[%s585 + $0xd0] sm:$0xf]
        %v1768 = vld [vmem:[%s585 + $0xd4] sm:$0x7]
        %v1769 = vld [vmem:[%s585 + $0xec] sm:$0x8]
        %v1770 = vld [vmem:[%s585 + $0xf0] sm:$0xf]
        %v1771 = vld [vmem:[%s585 + $0xf4] sm:$0x7]
        %v1772 = vld [vmem:[%s585 + $0x10c] sm:$0x8]
        %v1773 = vld [vmem:[%s585 + $0x110] sm:$0xf]
        %v1774 = vld [vmem:[%s585 + $0x114] sm:$0x7]
        %v1775 = vld [vmem:[%s585 + $0x12c] sm:$0x8]
        %v1776 = vld [vmem:[%s585 + $0x130] sm:$0xf]
        %v1777 = vld [vmem:[%s585 + $0x134] sm:$0x7]
        %v1778 = vld [vmem:[%s585 + $0x14c] sm:$0x8]
        %v1779 = vld [vmem:[%s585 + $0x150] sm:$0xf]
        %v1780 = vld [vmem:[%s585 + $0x154] sm:$0x7]
        %v1781 = vld [vmem:[%s585 + $0x16c] sm:$0x8]
        %v1782 = vld [vmem:[%s585 + $0x170] sm:$0xf]
        %v1783 = vld [vmem:[%s585 + $0x174] sm:$0x7]
        %v1784 = vld [vmem:[%s585 + $0x18c] sm:$0x8]
        %v1785 = vld [vmem:[%s585 + $0x190] sm:$0xf]
        %v1786 = vld [vmem:[%s585 + $0x194] sm:$0x7]
        %v1787 = vld [vmem:[%s585 + $0x1ac] sm:$0x8]
        %v1788 = vld [vmem:[%s585 + $0x1b0] sm:$0xf]
        %v1789 = vld [vmem:[%s585 + $0x1b4] sm:$0x7]
        %v1790 = vld [vmem:[%s585 + $0x1cc] sm:$0x8]
        %v1791 = vld [vmem:[%s585 + $0x1d0] sm:$0xf]
        %v1792 = vld [vmem:[%s585 + $0x1d4] sm:$0x7]
        %v1793 = vld [vmem:[%s585 + $0x1ec] sm:$0x8]
        %v1794 = vld [vmem:[%s585 + $0x1f0] sm:$0xf]
        %v1795 = vld [vmem:[%s585 + $0x1f4] sm:$0x7]
        %v1796 = vld [vmem:[%s585 + $0x20c] sm:$0x8]
        %v1797 = vld [vmem:[%s585 + $0x210] sm:$0xf]
        %v1798 = vld [vmem:[%s585 + $0x214] sm:$0x7]
        %v1799 = vld [vmem:[%s585 + $0x22c] sm:$0x8]
        %v1800 = vld [vmem:[%s585 + $0x230] sm:$0xf]
        %v1801 = vld [vmem:[%s585 + $0x234] sm:$0x7]
        %v1802 = vld [vmem:[%s585 + $0x24c] sm:$0x8]
        %v1803 = vld [vmem:[%s585 + $0x250] sm:$0xf]
        %v1804 = vld [vmem:[%s585 + $0x254] sm:$0x7]
        %v1805 = vld [vmem:[%s585 + $0x26c] sm:$0x8]
        %v1806 = vld [vmem:[%s585 + $0x270] sm:$0xf]
        %v1807 = vld [vmem:[%s585 + $0x274] sm:$0x7]
        %vm1832 = vcmask 1040384
        %vm1833 = vcmask 1044484
        %vm1834 = vmor %vm1832, %vm1833
        %v1835 = vrot.slane %v1748, 7
        %v1836 = vrot.slane %v1835, 4
        %v1837 = vrot.slane %v1749, 7
        %v1838 = vsel %vm1834, %v1836, %v1837
        %v1839 = vrot.slane %v1837, 4
        %v1840 = vrot.slane %v1750, 7
        %v1841 = vsel %vm1834, %v1839, %v1840
        %v1842 = vrot.slane %v1751, 7
        %v1843 = vrot.slane %v1842, 4
        %v1844 = vrot.slane %v1752, 7
        %v1845 = vsel %vm1834, %v1843, %v1844
        %v1846 = vrot.slane %v1844, 4
        %v1847 = vrot.slane %v1753, 7
        %v1848 = vsel %vm1834, %v1846, %v1847
        %v1849 = vrot.slane %v1754, 7
        %v1850 = vrot.slane %v1849, 4
        %v1851 = vrot.slane %v1755, 7
        %v1852 = vsel %vm1834, %v1850, %v1851
        %v1853 = vrot.slane %v1851, 4
        %v1854 = vrot.slane %v1756, 7
        %v1855 = vsel %vm1834, %v1853, %v1854
        %v1856 = vrot.slane %v1757, 7
        %v1857 = vrot.slane %v1856, 4
        %v1858 = vrot.slane %v1758, 7
        %v1859 = vsel %vm1834, %v1857, %v1858
        %v1860 = vrot.slane %v1858, 4
        %v1861 = vrot.slane %v1759, 7
        %v1862 = vsel %vm1834, %v1860, %v1861
        %v1863 = vrot.slane %v1760, 7
        %v1864 = vrot.slane %v1863, 4
        %v1865 = vrot.slane %v1761, 7
        %v1866 = vsel %vm1834, %v1864, %v1865
        %v1867 = vrot.slane %v1865, 4
        %v1868 = vrot.slane %v1762, 7
        %v1869 = vsel %vm1834, %v1867, %v1868
        %v1870 = vrot.slane %v1763, 7
        %v1871 = vrot.slane %v1870, 4
        %v1872 = vrot.slane %v1764, 7
        %v1873 = vsel %vm1834, %v1871, %v1872
        %v1874 = vrot.slane %v1872, 4
        %v1875 = vrot.slane %v1765, 7
        %v1876 = vsel %vm1834, %v1874, %v1875
        %v1877 = vrot.slane %v1766, 7
        %v1878 = vrot.slane %v1877, 4
        %v1879 = vrot.slane %v1767, 7
        %v1880 = vsel %vm1834, %v1878, %v1879
        %v1881 = vrot.slane %v1879, 4
        %v1882 = vrot.slane %v1768, 7
        %v1883 = vsel %vm1834, %v1881, %v1882
        %v1884 = vrot.slane %v1769, 7
        %v1885 = vrot.slane %v1884, 4
        %v1886 = vrot.slane %v1770, 7
        %v1887 = vsel %vm1834, %v1885, %v1886
        %v1888 = vrot.slane %v1886, 4
        %v1889 = vrot.slane %v1771, 7
        %v1890 = vsel %vm1834, %v1888, %v1889
        %s1891 = scalar_lea.vmem %s2, 4
        %v1892 = vld [vmem:[%s1891] sm:$0x3]
        %v1893 = vunpack.c.l.b16 %v1838
        %v1894 = vunpack.c.l.b16 %v1841
        %v1895 = vunpack.c.l.b16 %v1845
        %v1896 = vunpack.c.l.b16 %v1848
        %v1897 = vunpack.c.l.b16 %v1852
        %v1898 = vunpack.c.l.b16 %v1855
        %v1899 = vunpack.c.l.b16 %v1859
        %v1900 = vunpack.c.l.b16 %v1862
        %v1901 = vunpack.c.l.b16 %v1866
        %v1902 = vunpack.c.l.b16 %v1869
        %v1903 = vunpack.c.l.b16 %v1873
        %v1904 = vunpack.c.l.b16 %v1876
        %v1905 = vunpack.c.l.b16 %v1880
        %v1906 = vunpack.c.l.b16 %v1883
        %v1907 = vunpack.c.l.b16 %v1887
        %v1908 = vunpack.c.l.b16 %v1890
        %v1909 = vpack.c.b16 %v1894, %v1893
        %v1910 = vpack.c.b16 %v1896, %v1895
        %v1911 = vpack.c.b16 %v1898, %v1897
        %v1912 = vpack.c.b16 %v1900, %v1899
        %v1913 = vpack.c.b16 %v1902, %v1901
        %v1914 = vpack.c.b16 %v1904, %v1903
        %v1915 = vpack.c.b16 %v1906, %v1905
        %v1916 = vpack.c.b16 %v1908, %v1907
        %v1918 = vsel %vm354, %v1909, 0
        %v1921 = vsel %vm354, %v1910, 0
        %v1924 = vsel %vm354, %v1911, 0
        %v1927 = vsel %vm354, %v1912, 0
        %v1930 = vsel %vm354, %v1913, 0
        %v1933 = vsel %vm354, %v1914, 0
        %v1936 = vsel %vm354, %v1915, 0
        %v1939 = vsel %vm354, %v1916, 0
        %v1942 = vsel %vm379, %v1892, 0
        %1944 = vmatpush.bf16.msra.mxu0 0
        %1945 = vmatpush.bf16.msra.mxu0 0
        %1946 = vmatpush.bf16.msra.mxu0 0
        %1947 = vmatpush.bf16.msra.mxu0 0
        %1948 = vmatpush.bf16.msra.mxu0 0
        %1949 = vmatpush.bf16.msra.mxu0 0
        %1950 = vmatpush.bf16.msra.mxu0 0
        %1951 = vmatpush.bf16.msra.mxu0 %v1942
        %1952 = vmatmul.bf16.gmra.mxu0 %v1918
        %v1953 = vpop.f32.mrf.mxu0
        %v1954 = vadd.f32 0.0, %v1953
        %v1955 = vpop.f32.mrf.mxu0
        %v1956 = vadd.f32 0.0, %v1955
        %1957 = vmatmul.bf16.gmra.mxu0 %v1921
        %v1958 = vpop.f32.mrf.mxu0
        %v1959 = vadd.f32 0.0, %v1958
        %v1960 = vpop.f32.mrf.mxu0
        %v1961 = vadd.f32 0.0, %v1960
        %1962 = vmatmul.bf16.gmra.mxu0 %v1924
        %v1963 = vpop.f32.mrf.mxu0
        %v1964 = vadd.f32 0.0, %v1963
        %v1965 = vpop.f32.mrf.mxu0
        %v1966 = vadd.f32 0.0, %v1965
        %1967 = vmatmul.bf16.gmra.mxu0 %v1927
        %v1968 = vpop.f32.mrf.mxu0
        %v1969 = vadd.f32 0.0, %v1968
        %v1970 = vpop.f32.mrf.mxu0
        %v1971 = vadd.f32 0.0, %v1970
        %1972 = vmatmul.bf16.gmra.mxu0 %v1930
        %v1973 = vpop.f32.mrf.mxu0
        %v1974 = vadd.f32 0.0, %v1973
        %v1975 = vpop.f32.mrf.mxu0
        %v1976 = vadd.f32 0.0, %v1975
        %1977 = vmatmul.bf16.gmra.mxu0 %v1933
        %v1978 = vpop.f32.mrf.mxu0
        %v1979 = vadd.f32 0.0, %v1978
        %v1980 = vpop.f32.mrf.mxu0
        %v1981 = vadd.f32 0.0, %v1980
        %1982 = vmatmul.bf16.gmra.mxu0 %v1936
        %v1983 = vpop.f32.mrf.mxu0
        %v1984 = vadd.f32 0.0, %v1983
        %v1985 = vpop.f32.mrf.mxu0
        %v1986 = vadd.f32 0.0, %v1985
        %1987 = vmatmul.bf16.gmra.mxu0 %v1939
        %v1988 = vpop.f32.mrf.mxu0
        %v1989 = vadd.f32 0.0, %v1988
        %v1990 = vpop.f32.mrf.mxu0
        %v1991 = vadd.f32 0.0, %v1990
        %1992 = vdwg.mxu0
        %v1993 = vld [vmem:[#allocation3] sm:$0xff]
        %v1994 = vld [vmem:[#allocation3 + $0x8] sm:$0xff]
        %v1995 = vld [vmem:[#allocation3 + $0x10] sm:$0xff]
        %v1996 = vld [vmem:[#allocation3 + $0x18] sm:$0xff]
        %v1997 = vld [vmem:[#allocation3 + $0x20] sm:$0xff]
        %v1998 = vld [vmem:[#allocation3 + $0x28] sm:$0xff]
        %v1999 = vld [vmem:[#allocation3 + $0x30] sm:$0xff]
        %v2000 = vld [vmem:[#allocation3 + $0x38] sm:$0xff]
        %v2001 = vld [vmem:[#allocation3 + $0x40] sm:$0xff]
        %v2002 = vld [vmem:[#allocation3 + $0x48] sm:$0xff]
        %v2003 = vld [vmem:[#allocation3 + $0x50] sm:$0xff]
        %v2004 = vld [vmem:[#allocation3 + $0x58] sm:$0xff]
        %v2005 = vld [vmem:[#allocation3 + $0x60] sm:$0xff]
        %v2006 = vld [vmem:[#allocation3 + $0x68] sm:$0xff]
        %v2007 = vld [vmem:[#allocation3 + $0x70] sm:$0xff]
        %v2008 = vld [vmem:[#allocation3 + $0x78] sm:$0xff]
        %v2009 = vadd.f32 %v1993, %v1954
        %v2010 = vadd.f32 %v1994, %v1956
        %v2011 = vadd.f32 %v1995, %v1959
        %v2012 = vadd.f32 %v1996, %v1961
        %v2013 = vadd.f32 %v1997, %v1964
        %v2014 = vadd.f32 %v1998, %v1966
        %v2015 = vadd.f32 %v1999, %v1969
        %v2016 = vadd.f32 %v2000, %v1971
        %v2017 = vadd.f32 %v2001, %v1974
        %v2018 = vadd.f32 %v2002, %v1976
        %v2019 = vadd.f32 %v2003, %v1979
        %v2020 = vadd.f32 %v2004, %v1981
        %v2021 = vadd.f32 %v2005, %v1984
        %v2022 = vadd.f32 %v2006, %v1986
        %v2023 = vadd.f32 %v2007, %v1989
        %v2024 = vadd.f32 %v2008, %v1991
        %2025 = vst [vmem:[#allocation3] sm:$0xff] %v2009
        %2026 = vst [vmem:[#allocation3 + $0x8] sm:$0xff] %v2010
        %2027 = vst [vmem:[#allocation3 + $0x10] sm:$0xff] %v2011
        %2028 = vst [vmem:[#allocation3 + $0x18] sm:$0xff] %v2012
        %2029 = vst [vmem:[#allocation3 + $0x20] sm:$0xff] %v2013
        %2030 = vst [vmem:[#allocation3 + $0x28] sm:$0xff] %v2014
        %2031 = vst [vmem:[#allocation3 + $0x30] sm:$0xff] %v2015
        %2032 = vst [vmem:[#allocation3 + $0x38] sm:$0xff] %v2016
        %2033 = vst [vmem:[#allocation3 + $0x40] sm:$0xff] %v2017
        %2034 = vst [vmem:[#allocation3 + $0x48] sm:$0xff] %v2018
        %2035 = vst [vmem:[#allocation3 + $0x50] sm:$0xff] %v2019
        %2036 = vst [vmem:[#allocation3 + $0x58] sm:$0xff] %v2020
        %2037 = vst [vmem:[#allocation3 + $0x60] sm:$0xff] %v2021
        %2038 = vst [vmem:[#allocation3 + $0x68] sm:$0xff] %v2022
        %2039 = vst [vmem:[#allocation3 + $0x70] sm:$0xff] %v2023
        %2040 = vst [vmem:[#allocation3 + $0x78] sm:$0xff] %v2024
        %v2059 = vrot.slane %v1772, 7
        %v2060 = vrot.slane %v2059, 4
        %v2061 = vrot.slane %v1773, 7
        %v2062 = vsel %vm1834, %v2060, %v2061
        %v2063 = vrot.slane %v2061, 4
        %v2064 = vrot.slane %v1774, 7
        %v2065 = vsel %vm1834, %v2063, %v2064
        %v2066 = vrot.slane %v1775, 7
        %v2067 = vrot.slane %v2066, 4
        %v2068 = vrot.slane %v1776, 7
        %v2069 = vsel %vm1834, %v2067, %v2068
        %v2070 = vrot.slane %v2068, 4
        %v2071 = vrot.slane %v1777, 7
        %v2072 = vsel %vm1834, %v2070, %v2071
        %v2073 = vrot.slane %v1778, 7
        %v2074 = vrot.slane %v2073, 4
        %v2075 = vrot.slane %v1779, 7
        %v2076 = vsel %vm1834, %v2074, %v2075
        %v2077 = vrot.slane %v2075, 4
        %v2078 = vrot.slane %v1780, 7
        %v2079 = vsel %vm1834, %v2077, %v2078
        %v2080 = vrot.slane %v1781, 7
        %v2081 = vrot.slane %v2080, 4
        %v2082 = vrot.slane %v1782, 7
        %v2083 = vsel %vm1834, %v2081, %v2082
        %v2084 = vrot.slane %v2082, 4
        %v2085 = vrot.slane %v1783, 7
        %v2086 = vsel %vm1834, %v2084, %v2085
        %v2087 = vrot.slane %v1784, 7
        %v2088 = vrot.slane %v2087, 4
        %v2089 = vrot.slane %v1785, 7
        %v2090 = vsel %vm1834, %v2088, %v2089
        %v2091 = vrot.slane %v2089, 4
        %v2092 = vrot.slane %v1786, 7
        %v2093 = vsel %vm1834, %v2091, %v2092
        %v2094 = vrot.slane %v1787, 7
        %v2095 = vrot.slane %v2094, 4
        %v2096 = vrot.slane %v1788, 7
        %v2097 = vsel %vm1834, %v2095, %v2096
        %v2098 = vrot.slane %v2096, 4
        %v2099 = vrot.slane %v1789, 7
        %v2100 = vsel %vm1834, %v2098, %v2099
        %s2101 = scalar_lea.vmem %s2, 10
        %v2102 = vld [vmem:[%s2101] sm:$0x3]
        %v2103 = vunpack.c.l.b16 %v2062
        %v2104 = vunpack.c.l.b16 %v2065
        %v2105 = vunpack.c.l.b16 %v2069
        %v2106 = vunpack.c.l.b16 %v2072
        %v2107 = vunpack.c.l.b16 %v2076
        %v2108 = vunpack.c.l.b16 %v2079
        %v2109 = vunpack.c.l.b16 %v2083
        %v2110 = vunpack.c.l.b16 %v2086
        %v2111 = vunpack.c.l.b16 %v2090
        %v2112 = vunpack.c.l.b16 %v2093
        %v2113 = vunpack.c.l.b16 %v2097
        %v2114 = vunpack.c.l.b16 %v2100
        %v2115 = vpack.c.b16 %v2104, %v2103
        %v2116 = vpack.c.b16 %v2106, %v2105
        %v2117 = vpack.c.b16 %v2108, %v2107
        %v2118 = vpack.c.b16 %v2110, %v2109
        %v2119 = vpack.c.b16 %v2112, %v2111
        %v2120 = vpack.c.b16 %v2114, %v2113
        %v2122 = vsel %vm354, %v2115, 0
        %v2125 = vsel %vm354, %v2116, 0
        %v2128 = vsel %vm354, %v2117, 0
        %v2131 = vsel %vm354, %v2118, 0
        %v2134 = vsel %vm354, %v2119, 0
        %v2137 = vsel %vm354, %v2120, 0
        %v2140 = vsel %vm379, %v2102, 0
        %2142 = vmatpush.bf16.msra.mxu0 0
        %2143 = vmatpush.bf16.msra.mxu0 0
        %2144 = vmatpush.bf16.msra.mxu0 0
        %2145 = vmatpush.bf16.msra.mxu0 0
        %2146 = vmatpush.bf16.msra.mxu0 0
        %2147 = vmatpush.bf16.msra.mxu0 0
        %2148 = vmatpush.bf16.msra.mxu0 0
        %2149 = vmatpush.bf16.msra.mxu0 %v2140
        %2150 = vmatmul.bf16.gmra.mxu0 %v1936
        %v2151 = vpop.f32.mrf.mxu0
        %v2152 = vadd.f32 0.0, %v2151
        %v2153 = vpop.f32.mrf.mxu0
        %v2154 = vadd.f32 0.0, %v2153
        %2155 = vmatmul.bf16.gmra.mxu0 %v1939
        %v2156 = vpop.f32.mrf.mxu0
        %v2157 = vadd.f32 0.0, %v2156
        %v2158 = vpop.f32.mrf.mxu0
        %v2159 = vadd.f32 0.0, %v2158
        %2160 = vmatmul.bf16.gmra.mxu0 %v2122
        %v2161 = vpop.f32.mrf.mxu0
        %v2162 = vadd.f32 0.0, %v2161
        %v2163 = vpop.f32.mrf.mxu0
        %v2164 = vadd.f32 0.0, %v2163
        %2165 = vmatmul.bf16.gmra.mxu0 %v2125
        %v2166 = vpop.f32.mrf.mxu0
        %v2167 = vadd.f32 0.0, %v2166
        %v2168 = vpop.f32.mrf.mxu0
        %v2169 = vadd.f32 0.0, %v2168
        %2170 = vmatmul.bf16.gmra.mxu0 %v2128
        %v2171 = vpop.f32.mrf.mxu0
        %v2172 = vadd.f32 0.0, %v2171
        %v2173 = vpop.f32.mrf.mxu0
        %v2174 = vadd.f32 0.0, %v2173
        %2175 = vmatmul.bf16.gmra.mxu0 %v2131
        %v2176 = vpop.f32.mrf.mxu0
        %v2177 = vadd.f32 0.0, %v2176
        %v2178 = vpop.f32.mrf.mxu0
        %v2179 = vadd.f32 0.0, %v2178
        %2180 = vmatmul.bf16.gmra.mxu0 %v2134
        %v2181 = vpop.f32.mrf.mxu0
        %v2182 = vadd.f32 0.0, %v2181
        %v2183 = vpop.f32.mrf.mxu0
        %v2184 = vadd.f32 0.0, %v2183
        %2185 = vmatmul.bf16.gmra.mxu0 %v2137
        %v2186 = vpop.f32.mrf.mxu0
        %v2187 = vadd.f32 0.0, %v2186
        %v2188 = vpop.f32.mrf.mxu0
        %v2189 = vadd.f32 0.0, %v2188
        %2190 = vdwg.mxu0
        %v2191 = vld [vmem:[#allocation3] sm:$0xff]
        %v2192 = vld [vmem:[#allocation3 + $0x8] sm:$0xff]
        %v2193 = vld [vmem:[#allocation3 + $0x10] sm:$0xff]
        %v2194 = vld [vmem:[#allocation3 + $0x18] sm:$0xff]
        %v2195 = vld [vmem:[#allocation3 + $0x20] sm:$0xff]
        %v2196 = vld [vmem:[#allocation3 + $0x28] sm:$0xff]
        %v2197 = vld [vmem:[#allocation3 + $0x30] sm:$0xff]
        %v2198 = vld [vmem:[#allocation3 + $0x38] sm:$0xff]
        %v2199 = vld [vmem:[#allocation3 + $0x40] sm:$0xff]
        %v2200 = vld [vmem:[#allocation3 + $0x48] sm:$0xff]
        %v2201 = vld [vmem:[#allocation3 + $0x50] sm:$0xff]
        %v2202 = vld [vmem:[#allocation3 + $0x58] sm:$0xff]
        %v2203 = vld [vmem:[#allocation3 + $0x60] sm:$0xff]
        %v2204 = vld [vmem:[#allocation3 + $0x68] sm:$0xff]
        %v2205 = vld [vmem:[#allocation3 + $0x70] sm:$0xff]
        %v2206 = vld [vmem:[#allocation3 + $0x78] sm:$0xff]
        %v2207 = vadd.f32 %v2191, %v2152
        %v2208 = vadd.f32 %v2192, %v2154
        %v2209 = vadd.f32 %v2193, %v2157
        %v2210 = vadd.f32 %v2194, %v2159
        %v2211 = vadd.f32 %v2195, %v2162
        %v2212 = vadd.f32 %v2196, %v2164
        %v2213 = vadd.f32 %v2197, %v2167
        %v2214 = vadd.f32 %v2198, %v2169
        %v2215 = vadd.f32 %v2199, %v2172
        %v2216 = vadd.f32 %v2200, %v2174
        %v2217 = vadd.f32 %v2201, %v2177
        %v2218 = vadd.f32 %v2202, %v2179
        %v2219 = vadd.f32 %v2203, %v2182
        %v2220 = vadd.f32 %v2204, %v2184
        %v2221 = vadd.f32 %v2205, %v2187
        %v2222 = vadd.f32 %v2206, %v2189
        %2223 = vst [vmem:[#allocation3] sm:$0xff] %v2207
        %2224 = vst [vmem:[#allocation3 + $0x8] sm:$0xff] %v2208
        %2225 = vst [vmem:[#allocation3 + $0x10] sm:$0xff] %v2209
        %2226 = vst [vmem:[#allocation3 + $0x18] sm:$0xff] %v2210
        %2227 = vst [vmem:[#allocation3 + $0x20] sm:$0xff] %v2211
        %2228 = vst [vmem:[#allocation3 + $0x28] sm:$0xff] %v2212
        %2229 = vst [vmem:[#allocation3 + $0x30] sm:$0xff] %v2213
        %2230 = vst [vmem:[#allocation3 + $0x38] sm:$0xff] %v2214
        %2231 = vst [vmem:[#allocation3 + $0x40] sm:$0xff] %v2215
        %2232 = vst [vmem:[#allocation3 + $0x48] sm:$0xff] %v2216
        %2233 = vst [vmem:[#allocation3 + $0x50] sm:$0xff] %v2217
        %2234 = vst [vmem:[#allocation3 + $0x58] sm:$0xff] %v2218
        %2235 = vst [vmem:[#allocation3 + $0x60] sm:$0xff] %v2219
        %2236 = vst [vmem:[#allocation3 + $0x68] sm:$0xff] %v2220
        %2237 = vst [vmem:[#allocation3 + $0x70] sm:$0xff] %v2221
        %2238 = vst [vmem:[#allocation3 + $0x78] sm:$0xff] %v2222
        %v2257 = vrot.slane %v1790, 7
        %v2258 = vrot.slane %v2257, 4
        %v2259 = vrot.slane %v1791, 7
        %v2260 = vsel %vm1834, %v2258, %v2259
        %v2261 = vrot.slane %v2259, 4
        %v2262 = vrot.slane %v1792, 7
        %v2263 = vsel %vm1834, %v2261, %v2262
        %v2264 = vrot.slane %v1793, 7
        %v2265 = vrot.slane %v2264, 4
        %v2266 = vrot.slane %v1794, 7
        %v2267 = vsel %vm1834, %v2265, %v2266
        %v2268 = vrot.slane %v2266, 4
        %v2269 = vrot.slane %v1795, 7
        %v2270 = vsel %vm1834, %v2268, %v2269
        %v2271 = vrot.slane %v1796, 7
        %v2272 = vrot.slane %v2271, 4
        %v2273 = vrot.slane %v1797, 7
        %v2274 = vsel %vm1834, %v2272, %v2273
        %v2275 = vrot.slane %v2273, 4
        %v2276 = vrot.slane %v1798, 7
        %v2277 = vsel %vm1834, %v2275, %v2276
        %v2278 = vrot.slane %v1799, 7
        %v2279 = vrot.slane %v2278, 4
        %v2280 = vrot.slane %v1800, 7
        %v2281 = vsel %vm1834, %v2279, %v2280
        %v2282 = vrot.slane %v2280, 4
        %v2283 = vrot.slane %v1801, 7
        %v2284 = vsel %vm1834, %v2282, %v2283
        %v2285 = vrot.slane %v1802, 7
        %v2286 = vrot.slane %v2285, 4
        %v2287 = vrot.slane %v1803, 7
        %v2288 = vsel %vm1834, %v2286, %v2287
        %v2289 = vrot.slane %v2287, 4
        %v2290 = vrot.slane %v1804, 7
        %v2291 = vsel %vm1834, %v2289, %v2290
        %v2292 = vrot.slane %v1805, 7
        %v2293 = vrot.slane %v2292, 4
        %v2294 = vrot.slane %v1806, 7
        %v2295 = vsel %vm1834, %v2293, %v2294
        %v2296 = vrot.slane %v2294, 4
        %v2297 = vrot.slane %v1807, 7
        %v2298 = vsel %vm1834, %v2296, %v2297
        %s2299 = scalar_lea.vmem %s2, 16
        %v2300 = vld [vmem:[%s2299] sm:$0x3]
        %v2301 = vunpack.c.l.b16 %v2260
        %v2302 = vunpack.c.l.b16 %v2263
        %v2303 = vunpack.c.l.b16 %v2267
        %v2304 = vunpack.c.l.b16 %v2270
        %v2305 = vunpack.c.l.b16 %v2274
        %v2306 = vunpack.c.l.b16 %v2277
        %v2307 = vunpack.c.l.b16 %v2281
        %v2308 = vunpack.c.l.b16 %v2284
        %v2309 = vunpack.c.l.b16 %v2288
        %v2310 = vunpack.c.l.b16 %v2291
        %v2311 = vunpack.c.l.b16 %v2295
        %v2312 = vunpack.c.l.b16 %v2298
        %v2313 = vpack.c.b16 %v2302, %v2301
        %v2314 = vpack.c.b16 %v2304, %v2303
        %v2315 = vpack.c.b16 %v2306, %v2305
        %v2316 = vpack.c.b16 %v2308, %v2307
        %v2317 = vpack.c.b16 %v2310, %v2309
        %v2318 = vpack.c.b16 %v2312, %v2311
        %v2320 = vsel %vm354, %v2313, 0
        %v2323 = vsel %vm354, %v2314, 0
        %v2326 = vsel %vm354, %v2315, 0
        %v2329 = vsel %vm354, %v2316, 0
        %v2332 = vsel %vm354, %v2317, 0
        %v2335 = vsel %vm354, %v2318, 0
        %v2338 = vsel %vm379, %v2300, 0
        %2340 = vmatpush.bf16.msra.mxu0 0
        %2341 = vmatpush.bf16.msra.mxu0 0
        %2342 = vmatpush.bf16.msra.mxu0 0
        %2343 = vmatpush.bf16.msra.mxu0 0
        %2344 = vmatpush.bf16.msra.mxu0 0
        %2345 = vmatpush.bf16.msra.mxu0 0
        %2346 = vmatpush.bf16.msra.mxu0 0
        %2347 = vmatpush.bf16.msra.mxu0 %v2338
        %2348 = vmatmul.bf16.gmra.mxu0 %v2134
        %v2349 = vpop.f32.mrf.mxu0
        %v2350 = vadd.f32 0.0, %v2349
        %v2351 = vpop.f32.mrf.mxu0
        %v2352 = vadd.f32 0.0, %v2351
        %2353 = vmatmul.bf16.gmra.mxu0 %v2137
        %v2354 = vpop.f32.mrf.mxu0
        %v2355 = vadd.f32 0.0, %v2354
        %v2356 = vpop.f32.mrf.mxu0
        %v2357 = vadd.f32 0.0, %v2356
        %2358 = vmatmul.bf16.gmra.mxu0 %v2320
        %v2359 = vpop.f32.mrf.mxu0
        %v2360 = vadd.f32 0.0, %v2359
        %v2361 = vpop.f32.mrf.mxu0
        %v2362 = vadd.f32 0.0, %v2361
        %2363 = vmatmul.bf16.gmra.mxu0 %v2323
        %v2364 = vpop.f32.mrf.mxu0
        %v2365 = vadd.f32 0.0, %v2364
        %v2366 = vpop.f32.mrf.mxu0
        %v2367 = vadd.f32 0.0, %v2366
        %2368 = vmatmul.bf16.gmra.mxu0 %v2326
        %v2369 = vpop.f32.mrf.mxu0
        %v2370 = vadd.f32 0.0, %v2369
        %v2371 = vpop.f32.mrf.mxu0
        %v2372 = vadd.f32 0.0, %v2371
        %2373 = vmatmul.bf16.gmra.mxu0 %v2329
        %v2374 = vpop.f32.mrf.mxu0
        %v2375 = vadd.f32 0.0, %v2374
        %v2376 = vpop.f32.mrf.mxu0
        %v2377 = vadd.f32 0.0, %v2376
        %2378 = vmatmul.bf16.gmra.mxu0 %v2332
        %v2379 = vpop.f32.mrf.mxu0
        %v2380 = vadd.f32 0.0, %v2379
        %v2381 = vpop.f32.mrf.mxu0
        %v2382 = vadd.f32 0.0, %v2381
        %2383 = vmatmul.bf16.gmra.mxu0 %v2335
        %v2384 = vpop.f32.mrf.mxu0
        %v2385 = vadd.f32 0.0, %v2384
        %v2386 = vpop.f32.mrf.mxu0
        %v2387 = vadd.f32 0.0, %v2386
        %2388 = vdwg.mxu0
        %v2389 = vld [vmem:[#allocation3] sm:$0xff]
        %v2390 = vld [vmem:[#allocation3 + $0x8] sm:$0xff]
        %v2391 = vld [vmem:[#allocation3 + $0x10] sm:$0xff]
        %v2392 = vld [vmem:[#allocation3 + $0x18] sm:$0xff]
        %v2393 = vld [vmem:[#allocation3 + $0x20] sm:$0xff]
        %v2394 = vld [vmem:[#allocation3 + $0x28] sm:$0xff]
        %v2395 = vld [vmem:[#allocation3 + $0x30] sm:$0xff]
        %v2396 = vld [vmem:[#allocation3 + $0x38] sm:$0xff]
        %v2397 = vld [vmem:[#allocation3 + $0x40] sm:$0xff]
        %v2398 = vld [vmem:[#allocation3 + $0x48] sm:$0xff]
        %v2399 = vld [vmem:[#allocation3 + $0x50] sm:$0xff]
        %v2400 = vld [vmem:[#allocation3 + $0x58] sm:$0xff]
        %v2401 = vld [vmem:[#allocation3 + $0x60] sm:$0xff]
        %v2402 = vld [vmem:[#allocation3 + $0x68] sm:$0xff]
        %v2403 = vld [vmem:[#allocation3 + $0x70] sm:$0xff]
        %v2404 = vld [vmem:[#allocation3 + $0x78] sm:$0xff]
        %v2405 = vadd.f32 %v2389, %v2350
        %v2406 = vadd.f32 %v2390, %v2352
        %v2407 = vadd.f32 %v2391, %v2355
        %v2408 = vadd.f32 %v2392, %v2357
        %v2409 = vadd.f32 %v2393, %v2360
        %v2410 = vadd.f32 %v2394, %v2362
        %v2411 = vadd.f32 %v2395, %v2365
        %v2412 = vadd.f32 %v2396, %v2367
        %v2413 = vadd.f32 %v2397, %v2370
        %v2414 = vadd.f32 %v2398, %v2372
        %v2415 = vadd.f32 %v2399, %v2375
        %v2416 = vadd.f32 %v2400, %v2377
        %v2417 = vadd.f32 %v2401, %v2380
        %v2418 = vadd.f32 %v2402, %v2382
        %v2419 = vadd.f32 %v2403, %v2385
        %v2420 = vadd.f32 %v2404, %v2387
        %2421 = vst [vmem:[#allocation3] sm:$0xff] %v2405
        %2422 = vst [vmem:[#allocation3 + $0x8] sm:$0xff] %v2406
        %2423 = vst [vmem:[#allocation3 + $0x10] sm:$0xff] %v2407
        %2424 = vst [vmem:[#allocation3 + $0x18] sm:$0xff] %v2408
        %2425 = vst [vmem:[#allocation3 + $0x20] sm:$0xff] %v2409
        %2426 = vst [vmem:[#allocation3 + $0x28] sm:$0xff] %v2410
        %2427 = vst [vmem:[#allocation3 + $0x30] sm:$0xff] %v2411
        %2428 = vst [vmem:[#allocation3 + $0x38] sm:$0xff] %v2412
        %2429 = vst [vmem:[#allocation3 + $0x40] sm:$0xff] %v2413
        %2430 = vst [vmem:[#allocation3 + $0x48] sm:$0xff] %v2414
        %2431 = vst [vmem:[#allocation3 + $0x50] sm:$0xff] %v2415
        %2432 = vst [vmem:[#allocation3 + $0x58] sm:$0xff] %v2416
        %2433 = vst [vmem:[#allocation3 + $0x60] sm:$0xff] %v2417
        %2434 = vst [vmem:[#allocation3 + $0x68] sm:$0xff] %v2418
        %2435 = vst [vmem:[#allocation3 + $0x70] sm:$0xff] %v2419
        %2436 = vst [vmem:[#allocation3 + $0x78] sm:$0xff] %v2420
        %v2437 = vld [vmem:[#allocation3] sm:$0xff]
        %v2438 = vld [vmem:[#allocation3 + $0x8] sm:$0xff]
        %v2439 = vld [vmem:[#allocation3 + $0x10] sm:$0xff]
        %v2440 = vld [vmem:[#allocation3 + $0x18] sm:$0xff]
        %v2441 = vld [vmem:[#allocation3 + $0x20] sm:$0xff]
        %v2442 = vld [vmem:[#allocation3 + $0x28] sm:$0xff]
        %v2443 = vld [vmem:[#allocation3 + $0x30] sm:$0xff]
        %v2444 = vld [vmem:[#allocation3 + $0x38] sm:$0xff]
        %v2445 = vld [vmem:[#allocation3 + $0x40] sm:$0xff]
        %v2446 = vld [vmem:[#allocation3 + $0x48] sm:$0xff]
        %v2447 = vld [vmem:[#allocation3 + $0x50] sm:$0xff]
        %v2448 = vld [vmem:[#allocation3 + $0x58] sm:$0xff]
        %v2449 = vld [vmem:[#allocation3 + $0x60] sm:$0xff]
        %v2450 = vld [vmem:[#allocation3 + $0x68] sm:$0xff]
        %v2451 = vld [vmem:[#allocation3 + $0x70] sm:$0xff]
        %v2452 = vld [vmem:[#allocation3 + $0x78] sm:$0xff]
        %v2453 = vld [vmem:[%s4 + $0x1] sm:$0x1]
        %v2454 = vperm.slane %v2453, 0
        %v2455 = vadd.f32 %v2437, %v2454
        %v2456 = vadd.f32 %v2438, %v2454
        %v2457 = vadd.f32 %v2439, %v2454
        %v2458 = vadd.f32 %v2440, %v2454
        %v2459 = vadd.f32 %v2441, %v2454
        %v2460 = vadd.f32 %v2442, %v2454
        %v2461 = vadd.f32 %v2443, %v2454
        %v2462 = vadd.f32 %v2444, %v2454
        %v2463 = vadd.f32 %v2445, %v2454
        %v2464 = vadd.f32 %v2446, %v2454
        %v2465 = vadd.f32 %v2447, %v2454
        %v2466 = vadd.f32 %v2448, %v2454
        %v2467 = vadd.f32 %v2449, %v2454
        %v2468 = vadd.f32 %v2450, %v2454
        %v2469 = vadd.f32 %v2451, %v2454
        %v2470 = vadd.f32 %v2452, %v2454
        %v2471 = vmax.f32 %v2455, 0.0
        %v2472 = vmax.f32 %v2456, 0.0
        %v2473 = vmax.f32 %v2457, 0.0
        %v2474 = vmax.f32 %v2458, 0.0
        %v2475 = vmax.f32 %v2459, 0.0
        %v2476 = vmax.f32 %v2460, 0.0
        %v2477 = vmax.f32 %v2461, 0.0
        %v2478 = vmax.f32 %v2462, 0.0
        %v2479 = vmax.f32 %v2463, 0.0
        %v2480 = vmax.f32 %v2464, 0.0
        %v2481 = vmax.f32 %v2465, 0.0
        %v2482 = vmax.f32 %v2466, 0.0
        %v2483 = vmax.f32 %v2467, 0.0
        %v2484 = vmax.f32 %v2468, 0.0
        %v2485 = vmax.f32 %v2469, 0.0
        %v2486 = vmax.f32 %v2470, 0.0
        %v2487 = vld [vmem:[#allocation2] sm:$0xff]
        %v2488 = vld [vmem:[#allocation2 + $0x8] sm:$0xff]
        %v2489 = vld [vmem:[#allocation2 + $0x10] sm:$0xff]
        %v2490 = vld [vmem:[#allocation2 + $0x18] sm:$0xff]
        %v2491 = vld [vmem:[#allocation2 + $0x20] sm:$0xff]
        %v2492 = vld [vmem:[#allocation2 + $0x28] sm:$0xff]
        %v2493 = vld [vmem:[#allocation2 + $0x30] sm:$0xff]
        %v2494 = vld [vmem:[#allocation2 + $0x38] sm:$0xff]
        %v2495 = vld [vmem:[#allocation2 + $0x40] sm:$0xff]
        %v2496 = vld [vmem:[#allocation2 + $0x48] sm:$0xff]
        %v2497 = vld [vmem:[#allocation2 + $0x50] sm:$0xff]
        %v2498 = vld [vmem:[#allocation2 + $0x58] sm:$0xff]
        %v2499 = vld [vmem:[#allocation2 + $0x60] sm:$0xff]
        %v2500 = vld [vmem:[#allocation2 + $0x68] sm:$0xff]
        %v2501 = vld [vmem:[#allocation2 + $0x70] sm:$0xff]
        %v2502 = vld [vmem:[#allocation2 + $0x78] sm:$0xff]
        %v2503 = vpack.c.bf16 %v2472, %v2471
        %v2504 = vpack.c.bf16 %v2474, %v2473
        %v2505 = vpack.c.bf16 %v2476, %v2475
        %v2506 = vpack.c.bf16 %v2478, %v2477
        %v2507 = vpack.c.bf16 %v2480, %v2479
        %v2508 = vpack.c.bf16 %v2482, %v2481
        %v2509 = vpack.c.bf16 %v2484, %v2483
        %v2510 = vpack.c.bf16 %v2486, %v2485
        %v2511 = vld [vmem:[%s3 + $0x40] sm:$0xf]
        %v2512 = vld [vmem:[%s3 + $0x44] sm:$0xf]
        %v2513 = vld [vmem:[%s3 + $0x48] sm:$0xf]
        %v2514 = vld [vmem:[%s3 + $0x4c] sm:$0xf]
        %v2515 = vld [vmem:[%s3 + $0x50] sm:$0xf]
        %v2516 = vld [vmem:[%s3 + $0x54] sm:$0xf]
        %v2517 = vld [vmem:[%s3 + $0x58] sm:$0xf]
        %v2518 = vld [vmem:[%s3 + $0x5c] sm:$0xf]
        %v2519 = vld [vmem:[%s3 + $0x60] sm:$0xf]
        %v2520 = vld [vmem:[%s3 + $0x64] sm:$0xf]
        %v2521 = vld [vmem:[%s3 + $0x68] sm:$0xf]
        %v2522 = vld [vmem:[%s3 + $0x6c] sm:$0xf]
        %v2523 = vld [vmem:[%s3 + $0x70] sm:$0xf]
        %v2524 = vld [vmem:[%s3 + $0x74] sm:$0xf]
        %v2525 = vld [vmem:[%s3 + $0x78] sm:$0xf]
        %v2526 = vld [vmem:[%s3 + $0x7c] sm:$0xf]
        %v2543 = vunpack.c.l.b16 %v2511
        %v2544 = vunpack.c.l.b16 %v2512
        %v2545 = vunpack.c.l.b16 %v2513
        %v2546 = vunpack.c.l.b16 %v2514
        %v2547 = vunpack.c.l.b16 %v2515
        %v2548 = vunpack.c.l.b16 %v2516
        %v2549 = vunpack.c.l.b16 %v2517
        %v2550 = vunpack.c.l.b16 %v2518
        %v2551 = vunpack.c.l.b16 %v2519
        %v2552 = vunpack.c.l.b16 %v2520
        %v2553 = vunpack.c.l.b16 %v2521
        %v2554 = vunpack.c.l.b16 %v2522
        %v2555 = vunpack.c.l.b16 %v2523
        %v2556 = vunpack.c.l.b16 %v2524
        %v2557 = vunpack.c.l.b16 %v2525
        %v2558 = vunpack.c.l.b16 %v2526
        %v2559 = vpack.c.b16 %v2544, %v2543
        %v2560 = vpack.c.b16 %v2546, %v2545
        %v2561 = vpack.c.b16 %v2548, %v2547
        %v2562 = vpack.c.b16 %v2550, %v2549
        %v2563 = vpack.c.b16 %v2552, %v2551
        %v2564 = vpack.c.b16 %v2554, %v2553
        %v2565 = vpack.c.b16 %v2556, %v2555
        %v2566 = vpack.c.b16 %v2558, %v2557
        %2575 = vmatpush.bf16.msra.mxu0 %v2566
        %2576 = vmatpush.bf16.msra.mxu0 %v2565
        %2577 = vmatpush.bf16.msra.mxu0 %v2564
        %2578 = vmatpush.bf16.msra.mxu0 %v2563
        %2579 = vmatpush.bf16.msra.mxu0 %v2562
        %2580 = vmatpush.bf16.msra.mxu0 %v2561
        %2581 = vmatpush.bf16.msra.mxu0 %v2560
        %2582 = vmatpush.bf16.msra.mxu0 %v2559
        %2583 = vmatmul.bf16.gmra.mxu0 %v2503
        %v2584 = vpop.f32.mrf.mxu0
        %v2585 = vadd.f32 0.0, %v2584
        %v2586 = vpop.f32.mrf.mxu0
        %v2587 = vadd.f32 0.0, %v2586
        %2588 = vmatmul.bf16.gmra.mxu0 %v2504
        %v2589 = vpop.f32.mrf.mxu0
        %v2590 = vadd.f32 0.0, %v2589
        %v2591 = vpop.f32.mrf.mxu0
        %v2592 = vadd.f32 0.0, %v2591
        %2593 = vmatmul.bf16.gmra.mxu0 %v2505
        %v2594 = vpop.f32.mrf.mxu0
        %v2595 = vadd.f32 0.0, %v2594
        %v2596 = vpop.f32.mrf.mxu0
        %v2597 = vadd.f32 0.0, %v2596
        %2598 = vmatmul.bf16.gmra.mxu0 %v2506
        %v2599 = vpop.f32.mrf.mxu0
        %v2600 = vadd.f32 0.0, %v2599
        %v2601 = vpop.f32.mrf.mxu0
        %v2602 = vadd.f32 0.0, %v2601
        %2603 = vmatmul.bf16.gmra.mxu0 %v2507
        %v2604 = vpop.f32.mrf.mxu0
        %v2605 = vadd.f32 0.0, %v2604
        %v2606 = vpop.f32.mrf.mxu0
        %v2607 = vadd.f32 0.0, %v2606
        %2608 = vmatmul.bf16.gmra.mxu0 %v2508
        %v2609 = vpop.f32.mrf.mxu0
        %v2610 = vadd.f32 0.0, %v2609
        %v2611 = vpop.f32.mrf.mxu0
        %v2612 = vadd.f32 0.0, %v2611
        %2613 = vmatmul.bf16.gmra.mxu0 %v2509
        %v2614 = vpop.f32.mrf.mxu0
        %v2615 = vadd.f32 0.0, %v2614
        %v2616 = vpop.f32.mrf.mxu0
        %v2617 = vadd.f32 0.0, %v2616
        %2618 = vmatmul.bf16.gmra.mxu0 %v2510
        %v2619 = vpop.f32.mrf.mxu0
        %v2620 = vadd.f32 0.0, %v2619
        %v2621 = vpop.f32.mrf.mxu0
        %v2622 = vadd.f32 0.0, %v2621
        %2623 = vdwg.mxu0
        %v2624 = vadd.f32 %v2487, %v2585
        %v2625 = vadd.f32 %v2488, %v2587
        %v2626 = vadd.f32 %v2489, %v2590
        %v2627 = vadd.f32 %v2490, %v2592
        %v2628 = vadd.f32 %v2491, %v2595
        %v2629 = vadd.f32 %v2492, %v2597
        %v2630 = vadd.f32 %v2493, %v2600
        %v2631 = vadd.f32 %v2494, %v2602
        %v2632 = vadd.f32 %v2495, %v2605
        %v2633 = vadd.f32 %v2496, %v2607
        %v2634 = vadd.f32 %v2497, %v2610
        %v2635 = vadd.f32 %v2498, %v2612
        %v2636 = vadd.f32 %v2499, %v2615
        %v2637 = vadd.f32 %v2500, %v2617
        %v2638 = vadd.f32 %v2501, %v2620
        %v2639 = vadd.f32 %v2502, %v2622
        %2640 = vst [vmem:[#allocation2] sm:$0xff] %v2624
        %2641 = vst [vmem:[#allocation2 + $0x8] sm:$0xff] %v2625
        %2642 = vst [vmem:[#allocation2 + $0x10] sm:$0xff] %v2626
        %2643 = vst [vmem:[#allocation2 + $0x18] sm:$0xff] %v2627
        %2644 = vst [vmem:[#allocation2 + $0x20] sm:$0xff] %v2628
        %2645 = vst [vmem:[#allocation2 + $0x28] sm:$0xff] %v2629
        %2646 = vst [vmem:[#allocation2 + $0x30] sm:$0xff] %v2630
        %2647 = vst [vmem:[#allocation2 + $0x38] sm:$0xff] %v2631
        %2648 = vst [vmem:[#allocation2 + $0x40] sm:$0xff] %v2632
        %2649 = vst [vmem:[#allocation2 + $0x48] sm:$0xff] %v2633
        %2650 = vst [vmem:[#allocation2 + $0x50] sm:$0xff] %v2634
        %2651 = vst [vmem:[#allocation2 + $0x58] sm:$0xff] %v2635
        %2652 = vst [vmem:[#allocation2 + $0x60] sm:$0xff] %v2636
        %2653 = vst [vmem:[#allocation2 + $0x68] sm:$0xff] %v2637
        %2654 = vst [vmem:[#allocation2 + $0x70] sm:$0xff] %v2638
        %2655 = vst [vmem:[#allocation2 + $0x78] sm:$0xff] %v2639
        %s2656 = scalar_lea.vmem %s288, 384
        %v2657 = vld [vmem:[%s2656 + $0x4] sm:$0xc]
        %v2658 = vld [vmem:[%s2656 + $0x8] sm:$0xf]
        %v2659 = vld [vmem:[%s2656 + $0xc] sm:$0x3]
        %v2660 = vld [vmem:[%s2656 + $0x24] sm:$0xc]
        %v2661 = vld [vmem:[%s2656 + $0x28] sm:$0xf]
        %v2662 = vld [vmem:[%s2656 + $0x2c] sm:$0x3]
        %v2663 = vld [vmem:[%s2656 + $0x44] sm:$0xc]
        %v2664 = vld [vmem:[%s2656 + $0x48] sm:$0xf]
        %v2665 = vld [vmem:[%s2656 + $0x4c] sm:$0x3]
        %v2666 = vld [vmem:[%s2656 + $0x64] sm:$0xc]
        %v2667 = vld [vmem:[%s2656 + $0x68] sm:$0xf]
        %v2668 = vld [vmem:[%s2656 + $0x6c] sm:$0x3]
        %v2669 = vld [vmem:[%s2656 + $0x84] sm:$0xc]
        %v2670 = vld [vmem:[%s2656 + $0x88] sm:$0xf]
        %v2671 = vld [vmem:[%s2656 + $0x8c] sm:$0x3]
        %v2672 = vld [vmem:[%s2656 + $0xa4] sm:$0xc]
        %v2673 = vld [vmem:[%s2656 + $0xa8] sm:$0xf]
        %v2674 = vld [vmem:[%s2656 + $0xac] sm:$0x3]
        %v2675 = vld [vmem:[%s2656 + $0xc4] sm:$0xc]
        %v2676 = vld [vmem:[%s2656 + $0xc8] sm:$0xf]
        %v2677 = vld [vmem:[%s2656 + $0xcc] sm:$0x3]
        %v2678 = vld [vmem:[%s2656 + $0xe4] sm:$0xc]
        %v2679 = vld [vmem:[%s2656 + $0xe8] sm:$0xf]
        %v2680 = vld [vmem:[%s2656 + $0xec] sm:$0x3]
        %v2681 = vld [vmem:[%s2656 + $0x184] sm:$0xc]
        %v2682 = vld [vmem:[%s2656 + $0x188] sm:$0xf]
        %v2683 = vld [vmem:[%s2656 + $0x18c] sm:$0x3]
        %v2684 = vld [vmem:[%s2656 + $0x1a4] sm:$0xc]
        %v2685 = vld [vmem:[%s2656 + $0x1a8] sm:$0xf]
        %v2686 = vld [vmem:[%s2656 + $0x1ac] sm:$0x3]
        %v2687 = vld [vmem:[%s2656 + $0x1c4] sm:$0xc]
        %v2688 = vld [vmem:[%s2656 + $0x1c8] sm:$0xf]
        %v2689 = vld [vmem:[%s2656 + $0x1cc] sm:$0x3]
        %v2690 = vld [vmem:[%s2656 + $0x1e4] sm:$0xc]
        %v2691 = vld [vmem:[%s2656 + $0x1e8] sm:$0xf]
        %v2692 = vld [vmem:[%s2656 + $0x1ec] sm:$0x3]
        %v2693 = vld [vmem:[%s2656 + $0x204] sm:$0xc]
        %v2694 = vld [vmem:[%s2656 + $0x208] sm:$0xf]
        %v2695 = vld [vmem:[%s2656 + $0x20c] sm:$0x3]
        %v2696 = vld [vmem:[%s2656 + $0x224] sm:$0xc]
        %v2697 = vld [vmem:[%s2656 + $0x228] sm:$0xf]
        %v2698 = vld [vmem:[%s2656 + $0x22c] sm:$0x3]
        %v2699 = vld [vmem:[%s2656 + $0x244] sm:$0xc]
        %v2700 = vld [vmem:[%s2656 + $0x248] sm:$0xf]
        %v2701 = vld [vmem:[%s2656 + $0x24c] sm:$0x3]
        %v2702 = vld [vmem:[%s2656 + $0x264] sm:$0xc]
        %v2703 = vld [vmem:[%s2656 + $0x268] sm:$0xf]
        %v2704 = vld [vmem:[%s2656 + $0x26c] sm:$0x3]
        %v2705 = vld [vmem:[%s2656 + $0x304] sm:$0xc]
        %v2706 = vld [vmem:[%s2656 + $0x308] sm:$0xf]
        %v2707 = vld [vmem:[%s2656 + $0x30c] sm:$0x3]
        %v2708 = vld [vmem:[%s2656 + $0x324] sm:$0xc]
        %v2709 = vld [vmem:[%s2656 + $0x328] sm:$0xf]
        %v2710 = vld [vmem:[%s2656 + $0x32c] sm:$0x3]
        %v2711 = vld [vmem:[%s2656 + $0x344] sm:$0xc]
        %v2712 = vld [vmem:[%s2656 + $0x348] sm:$0xf]
        %v2713 = vld [vmem:[%s2656 + $0x34c] sm:$0x3]
        %v2714 = vld [vmem:[%s2656 + $0x364] sm:$0xc]
        %v2715 = vld [vmem:[%s2656 + $0x368] sm:$0xf]
        %v2716 = vld [vmem:[%s2656 + $0x36c] sm:$0x3]
        %v2717 = vld [vmem:[%s2656 + $0x384] sm:$0xc]
        %v2718 = vld [vmem:[%s2656 + $0x388] sm:$0xf]
        %v2719 = vld [vmem:[%s2656 + $0x38c] sm:$0x3]
        %v2720 = vld [vmem:[%s2656 + $0x3a4] sm:$0xc]
        %v2721 = vld [vmem:[%s2656 + $0x3a8] sm:$0xf]
        %v2722 = vld [vmem:[%s2656 + $0x3ac] sm:$0x3]
        %v2723 = vld [vmem:[%s2656 + $0x3c4] sm:$0xc]
        %v2724 = vld [vmem:[%s2656 + $0x3c8] sm:$0xf]
        %v2725 = vld [vmem:[%s2656 + $0x3cc] sm:$0x3]
        %v2726 = vld [vmem:[%s2656 + $0x3e4] sm:$0xc]
        %v2727 = vld [vmem:[%s2656 + $0x3e8] sm:$0xf]
        %v2728 = vld [vmem:[%s2656 + $0x3ec] sm:$0x3]
        %vm2753 = vcmask 1041408
        %vm2754 = vcmask 1045508
        %vm2755 = vmor %vm2753, %vm2754
        %v2756 = vrot.slane %v2657, 6
        %v2757 = vrot.slane %v2756, 4
        %v2758 = vrot.slane %v2658, 6
        %v2759 = vsel %vm2755, %v2757, %v2758
        %v2760 = vrot.slane %v2758, 4
        %v2761 = vrot.slane %v2659, 6
        %v2762 = vsel %vm2755, %v2760, %v2761
        %v2763 = vrot.slane %v2660, 6
        %v2764 = vrot.slane %v2763, 4
        %v2765 = vrot.slane %v2661, 6
        %v2766 = vsel %vm2755, %v2764, %v2765
        %v2767 = vrot.slane %v2765, 4
        %v2768 = vrot.slane %v2662, 6
        %v2769 = vsel %vm2755, %v2767, %v2768
        %v2770 = vrot.slane %v2663, 6
        %v2771 = vrot.slane %v2770, 4
        %v2772 = vrot.slane %v2664, 6
        %v2773 = vsel %vm2755, %v2771, %v2772
        %v2774 = vrot.slane %v2772, 4
        %v2775 = vrot.slane %v2665, 6
        %v2776 = vsel %vm2755, %v2774, %v2775
        %v2777 = vrot.slane %v2666, 6
        %v2778 = vrot.slane %v2777, 4
        %v2779 = vrot.slane %v2667, 6
        %v2780 = vsel %vm2755, %v2778, %v2779
        %v2781 = vrot.slane %v2779, 4
        %v2782 = vrot.slane %v2668, 6
        %v2783 = vsel %vm2755, %v2781, %v2782
        %v2784 = vrot.slane %v2669, 6
        %v2785 = vrot.slane %v2784, 4
        %v2786 = vrot.slane %v2670, 6
        %v2787 = vsel %vm2755, %v2785, %v2786
        %v2788 = vrot.slane %v2786, 4
        %v2789 = vrot.slane %v2671, 6
        %v2790 = vsel %vm2755, %v2788, %v2789
        %v2791 = vrot.slane %v2672, 6
        %v2792 = vrot.slane %v2791, 4
        %v2793 = vrot.slane %v2673, 6
        %v2794 = vsel %vm2755, %v2792, %v2793
        %v2795 = vrot.slane %v2793, 4
        %v2796 = vrot.slane %v2674, 6
        %v2797 = vsel %vm2755, %v2795, %v2796
        %v2798 = vrot.slane %v2675, 6
        %v2799 = vrot.slane %v2798, 4
        %v2800 = vrot.slane %v2676, 6
        %v2801 = vsel %vm2755, %v2799, %v2800
        %v2802 = vrot.slane %v2800, 4
        %v2803 = vrot.slane %v2677, 6
        %v2804 = vsel %vm2755, %v2802, %v2803
        %v2805 = vrot.slane %v2678, 6
        %v2806 = vrot.slane %v2805, 4
        %v2807 = vrot.slane %v2679, 6
        %v2808 = vsel %vm2755, %v2806, %v2807
        %v2809 = vrot.slane %v2807, 4
        %v2810 = vrot.slane %v2680, 6
        %v2811 = vsel %vm2755, %v2809, %v2810
        %s2812 = scalar_lea.vmem %s2, 18
        %v2813 = vld [vmem:[%s2812] sm:$0x3]
        %v2814 = vunpack.c.l.b16 %v2759
        %v2815 = vunpack.c.l.b16 %v2762
        %v2816 = vunpack.c.l.b16 %v2766
        %v2817 = vunpack.c.l.b16 %v2769
        %v2818 = vunpack.c.l.b16 %v2773
        %v2819 = vunpack.c.l.b16 %v2776
        %v2820 = vunpack.c.l.b16 %v2780
        %v2821 = vunpack.c.l.b16 %v2783
        %v2822 = vunpack.c.l.b16 %v2787
        %v2823 = vunpack.c.l.b16 %v2790
        %v2824 = vunpack.c.l.b16 %v2794
        %v2825 = vunpack.c.l.b16 %v2797
        %v2826 = vunpack.c.l.b16 %v2801
        %v2827 = vunpack.c.l.b16 %v2804
        %v2828 = vunpack.c.l.b16 %v2808
        %v2829 = vunpack.c.l.b16 %v2811
        %v2830 = vpack.c.b16 %v2815, %v2814
        %v2831 = vpack.c.b16 %v2817, %v2816
        %v2832 = vpack.c.b16 %v2819, %v2818
        %v2833 = vpack.c.b16 %v2821, %v2820
        %v2834 = vpack.c.b16 %v2823, %v2822
        %v2835 = vpack.c.b16 %v2825, %v2824
        %v2836 = vpack.c.b16 %v2827, %v2826
        %v2837 = vpack.c.b16 %v2829, %v2828
        %v2839 = vsel %vm354, %v2830, 0
        %v2842 = vsel %vm354, %v2831, 0
        %v2845 = vsel %vm354, %v2832, 0
        %v2848 = vsel %vm354, %v2833, 0
        %v2851 = vsel %vm354, %v2834, 0
        %v2854 = vsel %vm354, %v2835, 0
        %v2857 = vsel %vm354, %v2836, 0
        %v2860 = vsel %vm354, %v2837, 0
        %v2863 = vsel %vm379, %v2813, 0
        %2865 = vmatpush.bf16.msra.mxu0 0
        %2866 = vmatpush.bf16.msra.mxu0 0
        %2867 = vmatpush.bf16.msra.mxu0 0
        %2868 = vmatpush.bf16.msra.mxu0 0
        %2869 = vmatpush.bf16.msra.mxu0 0
        %2870 = vmatpush.bf16.msra.mxu0 0
        %2871 = vmatpush.bf16.msra.mxu0 0
        %2872 = vmatpush.bf16.msra.mxu0 %v2863
        %2873 = vmatmul.bf16.gmra.mxu0 %v2839
        %v2874 = vpop.f32.mrf.mxu0
        %v2875 = vadd.f32 0.0, %v2874
        %v2876 = vpop.f32.mrf.mxu0
        %v2877 = vadd.f32 0.0, %v2876
        %2878 = vmatmul.bf16.gmra.mxu0 %v2842
        %v2879 = vpop.f32.mrf.mxu0
        %v2880 = vadd.f32 0.0, %v2879
        %v2881 = vpop.f32.mrf.mxu0
        %v2882 = vadd.f32 0.0, %v2881
        %2883 = vmatmul.bf16.gmra.mxu0 %v2845
        %v2884 = vpop.f32.mrf.mxu0
        %v2885 = vadd.f32 0.0, %v2884
        %v2886 = vpop.f32.mrf.mxu0
        %v2887 = vadd.f32 0.0, %v2886
        %2888 = vmatmul.bf16.gmra.mxu0 %v2848
        %v2889 = vpop.f32.mrf.mxu0
        %v2890 = vadd.f32 0.0, %v2889
        %v2891 = vpop.f32.mrf.mxu0
        %v2892 = vadd.f32 0.0, %v2891
        %2893 = vmatmul.bf16.gmra.mxu0 %v2851
        %v2894 = vpop.f32.mrf.mxu0
        %v2895 = vadd.f32 0.0, %v2894
        %v2896 = vpop.f32.mrf.mxu0
        %v2897 = vadd.f32 0.0, %v2896
        %2898 = vmatmul.bf16.gmra.mxu0 %v2854
        %v2899 = vpop.f32.mrf.mxu0
        %v2900 = vadd.f32 0.0, %v2899
        %v2901 = vpop.f32.mrf.mxu0
        %v2902 = vadd.f32 0.0, %v2901
        %2903 = vmatmul.bf16.gmra.mxu0 %v2857
        %v2904 = vpop.f32.mrf.mxu0
        %v2905 = vadd.f32 0.0, %v2904
        %v2906 = vpop.f32.mrf.mxu0
        %v2907 = vadd.f32 0.0, %v2906
        %2908 = vmatmul.bf16.gmra.mxu0 %v2860
        %v2909 = vpop.f32.mrf.mxu0
        %v2910 = vadd.f32 0.0, %v2909
        %v2911 = vpop.f32.mrf.mxu0
        %v2912 = vadd.f32 0.0, %v2911
        %2913 = vdwg.mxu0
        %2914 = vst [vmem:[#allocation3] sm:$0xff] %v2875
        %2915 = vst [vmem:[#allocation3 + $0x8] sm:$0xff] %v2877
        %2916 = vst [vmem:[#allocation3 + $0x10] sm:$0xff] %v2880
        %2917 = vst [vmem:[#allocation3 + $0x18] sm:$0xff] %v2882
        %2918 = vst [vmem:[#allocation3 + $0x20] sm:$0xff] %v2885
        %2919 = vst [vmem:[#allocation3 + $0x28] sm:$0xff] %v2887
        %2920 = vst [vmem:[#allocation3 + $0x30] sm:$0xff] %v2890
        %2921 = vst [vmem:[#allocation3 + $0x38] sm:$0xff] %v2892
        %2922 = vst [vmem:[#allocation3 + $0x40] sm:$0xff] %v2895
        %2923 = vst [vmem:[#allocation3 + $0x48] sm:$0xff] %v2897
        %2924 = vst [vmem:[#allocation3 + $0x50] sm:$0xff] %v2900
        %2925 = vst [vmem:[#allocation3 + $0x58] sm:$0xff] %v2902
        %2926 = vst [vmem:[#allocation3 + $0x60] sm:$0xff] %v2905
        %2927 = vst [vmem:[#allocation3 + $0x68] sm:$0xff] %v2907
        %2928 = vst [vmem:[#allocation3 + $0x70] sm:$0xff] %v2910
        %2929 = vst [vmem:[#allocation3 + $0x78] sm:$0xff] %v2912
        %v2954 = vrot.slane %v2681, 6
        %v2955 = vrot.slane %v2954, 4
        %v2956 = vrot.slane %v2682, 6
        %v2957 = vsel %vm2755, %v2955, %v2956
        %v2958 = vrot.slane %v2956, 4
        %v2959 = vrot.slane %v2683, 6
        %v2960 = vsel %vm2755, %v2958, %v2959
        %v2961 = vrot.slane %v2684, 6
        %v2962 = vrot.slane %v2961, 4
        %v2963 = vrot.slane %v2685, 6
        %v2964 = vsel %vm2755, %v2962, %v2963
        %v2965 = vrot.slane %v2963, 4
        %v2966 = vrot.slane %v2686, 6
        %v2967 = vsel %vm2755, %v2965, %v2966
        %v2968 = vrot.slane %v2687, 6
        %v2969 = vrot.slane %v2968, 4
        %v2970 = vrot.slane %v2688, 6
        %v2971 = vsel %vm2755, %v2969, %v2970
        %v2972 = vrot.slane %v2970, 4
        %v2973 = vrot.slane %v2689, 6
        %v2974 = vsel %vm2755, %v2972, %v2973
        %v2975 = vrot.slane %v2690, 6
        %v2976 = vrot.slane %v2975, 4
        %v2977 = vrot.slane %v2691, 6
        %v2978 = vsel %vm2755, %v2976, %v2977
        %v2979 = vrot.slane %v2977, 4
        %v2980 = vrot.slane %v2692, 6
        %v2981 = vsel %vm2755, %v2979, %v2980
        %v2982 = vrot.slane %v2693, 6
        %v2983 = vrot.slane %v2982, 4
        %v2984 = vrot.slane %v2694, 6
        %v2985 = vsel %vm2755, %v2983, %v2984
        %v2986 = vrot.slane %v2984, 4
        %v2987 = vrot.slane %v2695, 6
        %v2988 = vsel %vm2755, %v2986, %v2987
        %v2989 = vrot.slane %v2696, 6
        %v2990 = vrot.slane %v2989, 4
        %v2991 = vrot.slane %v2697, 6
        %v2992 = vsel %vm2755, %v2990, %v2991
        %v2993 = vrot.slane %v2991, 4
        %v2994 = vrot.slane %v2698, 6
        %v2995 = vsel %vm2755, %v2993, %v2994
        %v2996 = vrot.slane %v2699, 6
        %v2997 = vrot.slane %v2996, 4
        %v2998 = vrot.slane %v2700, 6
        %v2999 = vsel %vm2755, %v2997, %v2998
        %v3000 = vrot.slane %v2998, 4
        %v3001 = vrot.slane %v2701, 6
        %v3002 = vsel %vm2755, %v3000, %v3001
        %v3003 = vrot.slane %v2702, 6
        %v3004 = vrot.slane %v3003, 4
        %v3005 = vrot.slane %v2703, 6
        %v3006 = vsel %vm2755, %v3004, %v3005
        %v3007 = vrot.slane %v3005, 4
        %v3008 = vrot.slane %v2704, 6
        %v3009 = vsel %vm2755, %v3007, %v3008
        %s3010 = scalar_lea.vmem %s2, 24
        %v3011 = vld [vmem:[%s3010] sm:$0x3]
        %v3012 = vunpack.c.l.b16 %v2957
        %v3013 = vunpack.c.l.b16 %v2960
        %v3014 = vunpack.c.l.b16 %v2964
        %v3015 = vunpack.c.l.b16 %v2967
        %v3016 = vunpack.c.l.b16 %v2971
        %v3017 = vunpack.c.l.b16 %v2974
        %v3018 = vunpack.c.l.b16 %v2978
        %v3019 = vunpack.c.l.b16 %v2981
        %v3020 = vunpack.c.l.b16 %v2985
        %v3021 = vunpack.c.l.b16 %v2988
        %v3022 = vunpack.c.l.b16 %v2992
        %v3023 = vunpack.c.l.b16 %v2995
        %v3024 = vunpack.c.l.b16 %v2999
        %v3025 = vunpack.c.l.b16 %v3002
        %v3026 = vunpack.c.l.b16 %v3006
        %v3027 = vunpack.c.l.b16 %v3009
        %v3028 = vpack.c.b16 %v3013, %v3012
        %v3029 = vpack.c.b16 %v3015, %v3014
        %v3030 = vpack.c.b16 %v3017, %v3016
        %v3031 = vpack.c.b16 %v3019, %v3018
        %v3032 = vpack.c.b16 %v3021, %v3020
        %v3033 = vpack.c.b16 %v3023, %v3022
        %v3034 = vpack.c.b16 %v3025, %v3024
        %v3035 = vpack.c.b16 %v3027, %v3026
        %v3037 = vsel %vm354, %v3028, 0
        %v3040 = vsel %vm354, %v3029, 0
        %v3043 = vsel %vm354, %v3030, 0
        %v3046 = vsel %vm354, %v3031, 0
        %v3049 = vsel %vm354, %v3032, 0
        %v3052 = vsel %vm354, %v3033, 0
        %v3055 = vsel %vm354, %v3034, 0
        %v3058 = vsel %vm354, %v3035, 0
        %v3061 = vsel %vm379, %v3011, 0
        %3063 = vmatpush.bf16.msra.mxu0 0
        %3064 = vmatpush.bf16.msra.mxu0 0
        %3065 = vmatpush.bf16.msra.mxu0 0
        %3066 = vmatpush.bf16.msra.mxu0 0
        %3067 = vmatpush.bf16.msra.mxu0 0
        %3068 = vmatpush.bf16.msra.mxu0 0
        %3069 = vmatpush.bf16.msra.mxu0 0
        %3070 = vmatpush.bf16.msra.mxu0 %v3061
        %3071 = vmatmul.bf16.gmra.mxu0 %v3037
        %v3072 = vpop.f32.mrf.mxu0
        %v3073 = vadd.f32 0.0, %v3072
        %v3074 = vpop.f32.mrf.mxu0
        %v3075 = vadd.f32 0.0, %v3074
        %3076 = vmatmul.bf16.gmra.mxu0 %v3040
        %v3077 = vpop.f32.mrf.mxu0
        %v3078 = vadd.f32 0.0, %v3077
        %v3079 = vpop.f32.mrf.mxu0
        %v3080 = vadd.f32 0.0, %v3079
        %3081 = vmatmul.bf16.gmra.mxu0 %v3043
        %v3082 = vpop.f32.mrf.mxu0
        %v3083 = vadd.f32 0.0, %v3082
        %v3084 = vpop.f32.mrf.mxu0
        %v3085 = vadd.f32 0.0, %v3084
        %3086 = vmatmul.bf16.gmra.mxu0 %v3046
        %v3087 = vpop.f32.mrf.mxu0
        %v3088 = vadd.f32 0.0, %v3087
        %v3089 = vpop.f32.mrf.mxu0
        %v3090 = vadd.f32 0.0, %v3089
        %3091 = vmatmul.bf16.gmra.mxu0 %v3049
        %v3092 = vpop.f32.mrf.mxu0
        %v3093 = vadd.f32 0.0, %v3092
        %v3094 = vpop.f32.mrf.mxu0
        %v3095 = vadd.f32 0.0, %v3094
        %3096 = vmatmul.bf16.gmra.mxu0 %v3052
        %v3097 = vpop.f32.mrf.mxu0
        %v3098 = vadd.f32 0.0, %v3097
        %v3099 = vpop.f32.mrf.mxu0
        %v3100 = vadd.f32 0.0, %v3099
        %3101 = vmatmul.bf16.gmra.mxu0 %v3055
        %v3102 = vpop.f32.mrf.mxu0
        %v3103 = vadd.f32 0.0, %v3102
        %v3104 = vpop.f32.mrf.mxu0
        %v3105 = vadd.f32 0.0, %v3104
        %3106 = vmatmul.bf16.gmra.mxu0 %v3058
        %v3107 = vpop.f32.mrf.mxu0
        %v3108 = vadd.f32 0.0, %v3107
        %v3109 = vpop.f32.mrf.mxu0
        %v3110 = vadd.f32 0.0, %v3109
        %3111 = vdwg.mxu0
        %v3112 = vld [vmem:[#allocation3] sm:$0xff]
        %v3113 = vld [vmem:[#allocation3 + $0x8] sm:$0xff]
        %v3114 = vld [vmem:[#allocation3 + $0x10] sm:$0xff]
        %v3115 = vld [vmem:[#allocation3 + $0x18] sm:$0xff]
        %v3116 = vld [vmem:[#allocation3 + $0x20] sm:$0xff]
        %v3117 = vld [vmem:[#allocation3 + $0x28] sm:$0xff]
        %v3118 = vld [vmem:[#allocation3 + $0x30] sm:$0xff]
        %v3119 = vld [vmem:[#allocation3 + $0x38] sm:$0xff]
        %v3120 = vld [vmem:[#allocation3 + $0x40] sm:$0xff]
        %v3121 = vld [vmem:[#allocation3 + $0x48] sm:$0xff]
        %v3122 = vld [vmem:[#allocation3 + $0x50] sm:$0xff]
        %v3123 = vld [vmem:[#allocation3 + $0x58] sm:$0xff]
        %v3124 = vld [vmem:[#allocation3 + $0x60] sm:$0xff]
        %v3125 = vld [vmem:[#allocation3 + $0x68] sm:$0xff]
        %v3126 = vld [vmem:[#allocation3 + $0x70] sm:$0xff]
        %v3127 = vld [vmem:[#allocation3 + $0x78] sm:$0xff]
        %v3128 = vadd.f32 %v3112, %v3073
        %v3129 = vadd.f32 %v3113, %v3075
        %v3130 = vadd.f32 %v3114, %v3078
        %v3131 = vadd.f32 %v3115, %v3080
        %v3132 = vadd.f32 %v3116, %v3083
        %v3133 = vadd.f32 %v3117, %v3085
        %v3134 = vadd.f32 %v3118, %v3088
        %v3135 = vadd.f32 %v3119, %v3090
        %v3136 = vadd.f32 %v3120, %v3093
        %v3137 = vadd.f32 %v3121, %v3095
        %v3138 = vadd.f32 %v3122, %v3098
        %v3139 = vadd.f32 %v3123, %v3100
        %v3140 = vadd.f32 %v3124, %v3103
        %v3141 = vadd.f32 %v3125, %v3105
        %v3142 = vadd.f32 %v3126, %v3108
        %v3143 = vadd.f32 %v3127, %v3110
        %3144 = vst [vmem:[#allocation3] sm:$0xff] %v3128
        %3145 = vst [vmem:[#allocation3 + $0x8] sm:$0xff] %v3129
        %3146 = vst [vmem:[#allocation3 + $0x10] sm:$0xff] %v3130
        %3147 = vst [vmem:[#allocation3 + $0x18] sm:$0xff] %v3131
        %3148 = vst [vmem:[#allocation3 + $0x20] sm:$0xff] %v3132
        %3149 = vst [vmem:[#allocation3 + $0x28] sm:$0xff] %v3133
        %3150 = vst [vmem:[#allocation3 + $0x30] sm:$0xff] %v3134
        %3151 = vst [vmem:[#allocation3 + $0x38] sm:$0xff] %v3135
        %3152 = vst [vmem:[#allocation3 + $0x40] sm:$0xff] %v3136
        %3153 = vst [vmem:[#allocation3 + $0x48] sm:$0xff] %v3137
        %3154 = vst [vmem:[#allocation3 + $0x50] sm:$0xff] %v3138
        %3155 = vst [vmem:[#allocation3 + $0x58] sm:$0xff] %v3139
        %3156 = vst [vmem:[#allocation3 + $0x60] sm:$0xff] %v3140
        %3157 = vst [vmem:[#allocation3 + $0x68] sm:$0xff] %v3141
        %3158 = vst [vmem:[#allocation3 + $0x70] sm:$0xff] %v3142
        %3159 = vst [vmem:[#allocation3 + $0x78] sm:$0xff] %v3143
        %v3184 = vrot.slane %v2705, 6
        %v3185 = vrot.slane %v3184, 4
        %v3186 = vrot.slane %v2706, 6
        %v3187 = vsel %vm2755, %v3185, %v3186
        %v3188 = vrot.slane %v3186, 4
        %v3189 = vrot.slane %v2707, 6
        %v3190 = vsel %vm2755, %v3188, %v3189
        %v3191 = vrot.slane %v2708, 6
        %v3192 = vrot.slane %v3191, 4
        %v3193 = vrot.slane %v2709, 6
        %v3194 = vsel %vm2755, %v3192, %v3193
        %v3195 = vrot.slane %v3193, 4
        %v3196 = vrot.slane %v2710, 6
        %v3197 = vsel %vm2755, %v3195, %v3196
        %v3198 = vrot.slane %v2711, 6
        %v3199 = vrot.slane %v3198, 4
        %v3200 = vrot.slane %v2712, 6
        %v3201 = vsel %vm2755, %v3199, %v3200
        %v3202 = vrot.slane %v3200, 4
        %v3203 = vrot.slane %v2713, 6
        %v3204 = vsel %vm2755, %v3202, %v3203
        %v3205 = vrot.slane %v2714, 6
        %v3206 = vrot.slane %v3205, 4
        %v3207 = vrot.slane %v2715, 6
        %v3208 = vsel %vm2755, %v3206, %v3207
        %v3209 = vrot.slane %v3207, 4
        %v3210 = vrot.slane %v2716, 6
        %v3211 = vsel %vm2755, %v3209, %v3210
        %v3212 = vrot.slane %v2717, 6
        %v3213 = vrot.slane %v3212, 4
        %v3214 = vrot.slane %v2718, 6
        %v3215 = vsel %vm2755, %v3213, %v3214
        %v3216 = vrot.slane %v3214, 4
        %v3217 = vrot.slane %v2719, 6
        %v3218 = vsel %vm2755, %v3216, %v3217
        %v3219 = vrot.slane %v2720, 6
        %v3220 = vrot.slane %v3219, 4
        %v3221 = vrot.slane %v2721, 6
        %v3222 = vsel %vm2755, %v3220, %v3221
        %v3223 = vrot.slane %v3221, 4
        %v3224 = vrot.slane %v2722, 6
        %v3225 = vsel %vm2755, %v3223, %v3224
        %v3226 = vrot.slane %v2723, 6
        %v3227 = vrot.slane %v3226, 4
        %v3228 = vrot.slane %v2724, 6
        %v3229 = vsel %vm2755, %v3227, %v3228
        %v3230 = vrot.slane %v3228, 4
        %v3231 = vrot.slane %v2725, 6
        %v3232 = vsel %vm2755, %v3230, %v3231
        %v3233 = vrot.slane %v2726, 6
        %v3234 = vrot.slane %v3233, 4
        %v3235 = vrot.slane %v2727, 6
        %v3236 = vsel %vm2755, %v3234, %v3235
        %v3237 = vrot.slane %v3235, 4
        %v3238 = vrot.slane %v2728, 6
        %v3239 = vsel %vm2755, %v3237, %v3238
        %s3240 = scalar_lea.vmem %s2, 30
        %v3241 = vld [vmem:[%s3240] sm:$0x3]
        %v3242 = vunpack.c.l.b16 %v3187
        %v3243 = vunpack.c.l.b16 %v3190
        %v3244 = vunpack.c.l.b16 %v3194
        %v3245 = vunpack.c.l.b16 %v3197
        %v3246 = vunpack.c.l.b16 %v3201
        %v3247 = vunpack.c.l.b16 %v3204
        %v3248 = vunpack.c.l.b16 %v3208
        %v3249 = vunpack.c.l.b16 %v3211
        %v3250 = vunpack.c.l.b16 %v3215
        %v3251 = vunpack.c.l.b16 %v3218
        %v3252 = vunpack.c.l.b16 %v3222
        %v3253 = vunpack.c.l.b16 %v3225
        %v3254 = vunpack.c.l.b16 %v3229
        %v3255 = vunpack.c.l.b16 %v3232
        %v3256 = vunpack.c.l.b16 %v3236
        %v3257 = vunpack.c.l.b16 %v3239
        %v3258 = vpack.c.b16 %v3243, %v3242
        %v3259 = vpack.c.b16 %v3245, %v3244
        %v3260 = vpack.c.b16 %v3247, %v3246
        %v3261 = vpack.c.b16 %v3249, %v3248
        %v3262 = vpack.c.b16 %v3251, %v3250
        %v3263 = vpack.c.b16 %v3253, %v3252
        %v3264 = vpack.c.b16 %v3255, %v3254
        %v3265 = vpack.c.b16 %v3257, %v3256
        %v3267 = vsel %vm354, %v3258, 0
        %v3270 = vsel %vm354, %v3259, 0
        %v3273 = vsel %vm354, %v3260, 0
        %v3276 = vsel %vm354, %v3261, 0
        %v3279 = vsel %vm354, %v3262, 0
        %v3282 = vsel %vm354, %v3263, 0
        %v3285 = vsel %vm354, %v3264, 0
        %v3288 = vsel %vm354, %v3265, 0
        %v3291 = vsel %vm379, %v3241, 0
        %3293 = vmatpush.bf16.msra.mxu0 0
        %3294 = vmatpush.bf16.msra.mxu0 0
        %3295 = vmatpush.bf16.msra.mxu0 0
        %3296 = vmatpush.bf16.msra.mxu0 0
        %3297 = vmatpush.bf16.msra.mxu0 0
        %3298 = vmatpush.bf16.msra.mxu0 0
        %3299 = vmatpush.bf16.msra.mxu0 0
        %3300 = vmatpush.bf16.msra.mxu0 %v3291
        %3301 = vmatmul.bf16.gmra.mxu0 %v3267
        %v3302 = vpop.f32.mrf.mxu0
        %v3303 = vadd.f32 0.0, %v3302
        %v3304 = vpop.f32.mrf.mxu0
        %v3305 = vadd.f32 0.0, %v3304
        %3306 = vmatmul.bf16.gmra.mxu0 %v3270
        %v3307 = vpop.f32.mrf.mxu0
        %v3308 = vadd.f32 0.0, %v3307
        %v3309 = vpop.f32.mrf.mxu0
        %v3310 = vadd.f32 0.0, %v3309
        %3311 = vmatmul.bf16.gmra.mxu0 %v3273
        %v3312 = vpop.f32.mrf.mxu0
        %v3313 = vadd.f32 0.0, %v3312
        %v3314 = vpop.f32.mrf.mxu0
        %v3315 = vadd.f32 0.0, %v3314
        %3316 = vmatmul.bf16.gmra.mxu0 %v3276
        %v3317 = vpop.f32.mrf.mxu0
        %v3318 = vadd.f32 0.0, %v3317
        %v3319 = vpop.f32.mrf.mxu0
        %v3320 = vadd.f32 0.0, %v3319
        %3321 = vmatmul.bf16.gmra.mxu0 %v3279
        %v3322 = vpop.f32.mrf.mxu0
        %v3323 = vadd.f32 0.0, %v3322
        %v3324 = vpop.f32.mrf.mxu0
        %v3325 = vadd.f32 0.0, %v3324
        %3326 = vmatmul.bf16.gmra.mxu0 %v3282
        %v3327 = vpop.f32.mrf.mxu0
        %v3328 = vadd.f32 0.0, %v3327
        %v3329 = vpop.f32.mrf.mxu0
        %v3330 = vadd.f32 0.0, %v3329
        %3331 = vmatmul.bf16.gmra.mxu0 %v3285
        %v3332 = vpop.f32.mrf.mxu0
        %v3333 = vadd.f32 0.0, %v3332
        %v3334 = vpop.f32.mrf.mxu0
        %v3335 = vadd.f32 0.0, %v3334
        %3336 = vmatmul.bf16.gmra.mxu0 %v3288
        %v3337 = vpop.f32.mrf.mxu0
        %v3338 = vadd.f32 0.0, %v3337
        %v3339 = vpop.f32.mrf.mxu0
        %v3340 = vadd.f32 0.0, %v3339
        %3341 = vdwg.mxu0
        %v3342 = vld [vmem:[#allocation3] sm:$0xff]
        %v3343 = vld [vmem:[#allocation3 + $0x8] sm:$0xff]
        %v3344 = vld [vmem:[#allocation3 + $0x10] sm:$0xff]
        %v3345 = vld [vmem:[#allocation3 + $0x18] sm:$0xff]
        %v3346 = vld [vmem:[#allocation3 + $0x20] sm:$0xff]
        %v3347 = vld [vmem:[#allocation3 + $0x28] sm:$0xff]
        %v3348 = vld [vmem:[#allocation3 + $0x30] sm:$0xff]
        %v3349 = vld [vmem:[#allocation3 + $0x38] sm:$0xff]
        %v3350 = vld [vmem:[#allocation3 + $0x40] sm:$0xff]
        %v3351 = vld [vmem:[#allocation3 + $0x48] sm:$0xff]
        %v3352 = vld [vmem:[#allocation3 + $0x50] sm:$0xff]
        %v3353 = vld [vmem:[#allocation3 + $0x58] sm:$0xff]
        %v3354 = vld [vmem:[#allocation3 + $0x60] sm:$0xff]
        %v3355 = vld [vmem:[#allocation3 + $0x68] sm:$0xff]
        %v3356 = vld [vmem:[#allocation3 + $0x70] sm:$0xff]
        %v3357 = vld [vmem:[#allocation3 + $0x78] sm:$0xff]
        %v3358 = vadd.f32 %v3342, %v3303
        %v3359 = vadd.f32 %v3343, %v3305
        %v3360 = vadd.f32 %v3344, %v3308
        %v3361 = vadd.f32 %v3345, %v3310
        %v3362 = vadd.f32 %v3346, %v3313
        %v3363 = vadd.f32 %v3347, %v3315
        %v3364 = vadd.f32 %v3348, %v3318
        %v3365 = vadd.f32 %v3349, %v3320
        %v3366 = vadd.f32 %v3350, %v3323
        %v3367 = vadd.f32 %v3351, %v3325
        %v3368 = vadd.f32 %v3352, %v3328
        %v3369 = vadd.f32 %v3353, %v3330
        %v3370 = vadd.f32 %v3354, %v3333
        %v3371 = vadd.f32 %v3355, %v3335
        %v3372 = vadd.f32 %v3356, %v3338
        %v3373 = vadd.f32 %v3357, %v3340
        %3374 = vst [vmem:[#allocation3] sm:$0xff] %v3358
        %3375 = vst [vmem:[#allocation3 + $0x8] sm:$0xff] %v3359
        %3376 = vst [vmem:[#allocation3 + $0x10] sm:$0xff] %v3360
        %3377 = vst [vmem:[#allocation3 + $0x18] sm:$0xff] %v3361
        %3378 = vst [vmem:[#allocation3 + $0x20] sm:$0xff] %v3362
        %3379 = vst [vmem:[#allocation3 + $0x28] sm:$0xff] %v3363
        %3380 = vst [vmem:[#allocation3 + $0x30] sm:$0xff] %v3364
        %3381 = vst [vmem:[#allocation3 + $0x38] sm:$0xff] %v3365
        %3382 = vst [vmem:[#allocation3 + $0x40] sm:$0xff] %v3366
        %3383 = vst [vmem:[#allocation3 + $0x48] sm:$0xff] %v3367
        %3384 = vst [vmem:[#allocation3 + $0x50] sm:$0xff] %v3368
        %3385 = vst [vmem:[#allocation3 + $0x58] sm:$0xff] %v3369
        %3386 = vst [vmem:[#allocation3 + $0x60] sm:$0xff] %v3370
        %3387 = vst [vmem:[#allocation3 + $0x68] sm:$0xff] %v3371
        %3388 = vst [vmem:[#allocation3 + $0x70] sm:$0xff] %v3372
        %3389 = vst [vmem:[#allocation3 + $0x78] sm:$0xff] %v3373
        %v3390 = vld [vmem:[%s2656 + $0xc] sm:$0xf]
        %v3391 = vld [vmem:[%s2656 + $0x10] sm:$0xf]
        %v3392 = vld [vmem:[%s2656 + $0x2c] sm:$0xf]
        %v3393 = vld [vmem:[%s2656 + $0x30] sm:$0xf]
        %v3394 = vld [vmem:[%s2656 + $0x4c] sm:$0xf]
        %v3395 = vld [vmem:[%s2656 + $0x50] sm:$0xf]
        %v3396 = vld [vmem:[%s2656 + $0x6c] sm:$0xf]
        %v3397 = vld [vmem:[%s2656 + $0x70] sm:$0xf]
        %v3398 = vld [vmem:[%s2656 + $0x8c] sm:$0xf]
        %v3399 = vld [vmem:[%s2656 + $0x90] sm:$0xf]
        %v3400 = vld [vmem:[%s2656 + $0xac] sm:$0xf]
        %v3401 = vld [vmem:[%s2656 + $0xb0] sm:$0xf]
        %v3402 = vld [vmem:[%s2656 + $0xcc] sm:$0xf]
        %v3403 = vld [vmem:[%s2656 + $0xd0] sm:$0xf]
        %v3404 = vld [vmem:[%s2656 + $0xec] sm:$0xf]
        %v3405 = vld [vmem:[%s2656 + $0xf0] sm:$0xf]
        %v3406 = vld [vmem:[%s2656 + $0x18c] sm:$0xf]
        %v3407 = vld [vmem:[%s2656 + $0x190] sm:$0xf]
        %v3408 = vld [vmem:[%s2656 + $0x1ac] sm:$0xf]
        %v3409 = vld [vmem:[%s2656 + $0x1b0] sm:$0xf]
        %v3410 = vld [vmem:[%s2656 + $0x1cc] sm:$0xf]
        %v3411 = vld [vmem:[%s2656 + $0x1d0] sm:$0xf]
        %v3412 = vld [vmem:[%s2656 + $0x1ec] sm:$0xf]
        %v3413 = vld [vmem:[%s2656 + $0x1f0] sm:$0xf]
        %v3414 = vld [vmem:[%s2656 + $0x20c] sm:$0xf]
        %v3415 = vld [vmem:[%s2656 + $0x210] sm:$0xf]
        %v3416 = vld [vmem:[%s2656 + $0x22c] sm:$0xf]
        %v3417 = vld [vmem:[%s2656 + $0x230] sm:$0xf]
        %v3418 = vld [vmem:[%s2656 + $0x24c] sm:$0xf]
        %v3419 = vld [vmem:[%s2656 + $0x250] sm:$0xf]
        %v3420 = vld [vmem:[%s2656 + $0x26c] sm:$0xf]
        %v3421 = vld [vmem:[%s2656 + $0x270] sm:$0xf]
        %v3422 = vld [vmem:[%s2656 + $0x30c] sm:$0xf]
        %v3423 = vld [vmem:[%s2656 + $0x310] sm:$0xf]
        %v3424 = vld [vmem:[%s2656 + $0x32c] sm:$0xf]
        %v3425 = vld [vmem:[%s2656 + $0x330] sm:$0xf]
        %v3426 = vld [vmem:[%s2656 + $0x34c] sm:$0xf]
        %v3427 = vld [vmem:[%s2656 + $0x350] sm:$0xf]
        %v3428 = vld [vmem:[%s2656 + $0x36c] sm:$0xf]
        %v3429 = vld [vmem:[%s2656 + $0x370] sm:$0xf]
        %v3430 = vld [vmem:[%s2656 + $0x38c] sm:$0xf]
        %v3431 = vld [vmem:[%s2656 + $0x390] sm:$0xf]
        %v3432 = vld [vmem:[%s2656 + $0x3ac] sm:$0xf]
        %v3433 = vld [vmem:[%s2656 + $0x3b0] sm:$0xf]
        %v3434 = vld [vmem:[%s2656 + $0x3cc] sm:$0xf]
        %v3435 = vld [vmem:[%s2656 + $0x3d0] sm:$0xf]
        %v3436 = vld [vmem:[%s2656 + $0x3ec] sm:$0xf]
        %v3437 = vld [vmem:[%s2656 + $0x3f0] sm:$0xf]
        %s3438 = scalar_lea.vmem %s2, 20
        %v3439 = vld [vmem:[%s3438] sm:$0x3]
        %v3456 = vunpack.c.l.b16 %v3390
        %v3457 = vunpack.c.l.b16 %v3391
        %v3458 = vunpack.c.l.b16 %v3392
        %v3459 = vunpack.c.l.b16 %v3393
        %v3460 = vunpack.c.l.b16 %v3394
        %v3461 = vunpack.c.l.b16 %v3395
        %v3462 = vunpack.c.l.b16 %v3396
        %v3463 = vunpack.c.l.b16 %v3397
        %v3464 = vunpack.c.l.b16 %v3398
        %v3465 = vunpack.c.l.b16 %v3399
        %v3466 = vunpack.c.l.b16 %v3400
        %v3467 = vunpack.c.l.b16 %v3401
        %v3468 = vunpack.c.l.b16 %v3402
        %v3469 = vunpack.c.l.b16 %v3403
        %v3470 = vunpack.c.l.b16 %v3404
        %v3471 = vunpack.c.l.b16 %v3405
        %v3472 = vpack.c.b16 %v3457, %v3456
        %v3473 = vpack.c.b16 %v3459, %v3458
        %v3474 = vpack.c.b16 %v3461, %v3460
        %v3475 = vpack.c.b16 %v3463, %v3462
        %v3476 = vpack.c.b16 %v3465, %v3464
        %v3477 = vpack.c.b16 %v3467, %v3466
        %v3478 = vpack.c.b16 %v3469, %v3468
        %v3479 = vpack.c.b16 %v3471, %v3470
        %v3481 = vsel %vm354, %v3472, 0
        %v3484 = vsel %vm354, %v3473, 0
        %v3487 = vsel %vm354, %v3474, 0
        %v3490 = vsel %vm354, %v3475, 0
        %v3493 = vsel %vm354, %v3476, 0
        %v3496 = vsel %vm354, %v3477, 0
        %v3499 = vsel %vm354, %v3478, 0
        %v3502 = vsel %vm354, %v3479, 0
        %v3505 = vsel %vm379, %v3439, 0
        %3507 = vmatpush.bf16.msra.mxu0 0
        %3508 = vmatpush.bf16.msra.mxu0 0
        %3509 = vmatpush.bf16.msra.mxu0 0
        %3510 = vmatpush.bf16.msra.mxu0 0
        %3511 = vmatpush.bf16.msra.mxu0 0
        %3512 = vmatpush.bf16.msra.mxu0 0
        %3513 = vmatpush.bf16.msra.mxu0 0
        %3514 = vmatpush.bf16.msra.mxu0 %v3505
        %3515 = vmatmul.bf16.gmra.mxu0 %v3481
        %v3516 = vpop.f32.mrf.mxu0
        %v3517 = vadd.f32 0.0, %v3516
        %v3518 = vpop.f32.mrf.mxu0
        %v3519 = vadd.f32 0.0, %v3518
        %3520 = vmatmul.bf16.gmra.mxu0 %v3484
        %v3521 = vpop.f32.mrf.mxu0
        %v3522 = vadd.f32 0.0, %v3521
        %v3523 = vpop.f32.mrf.mxu0
        %v3524 = vadd.f32 0.0, %v3523
        %3525 = vmatmul.bf16.gmra.mxu0 %v3487
        %v3526 = vpop.f32.mrf.mxu0
        %v3527 = vadd.f32 0.0, %v3526
        %v3528 = vpop.f32.mrf.mxu0
        %v3529 = vadd.f32 0.0, %v3528
        %3530 = vmatmul.bf16.gmra.mxu0 %v3490
        %v3531 = vpop.f32.mrf.mxu0
        %v3532 = vadd.f32 0.0, %v3531
        %v3533 = vpop.f32.mrf.mxu0
        %v3534 = vadd.f32 0.0, %v3533
        %3535 = vmatmul.bf16.gmra.mxu0 %v3493
        %v3536 = vpop.f32.mrf.mxu0
        %v3537 = vadd.f32 0.0, %v3536
        %v3538 = vpop.f32.mrf.mxu0
        %v3539 = vadd.f32 0.0, %v3538
        %3540 = vmatmul.bf16.gmra.mxu0 %v3496
        %v3541 = vpop.f32.mrf.mxu0
        %v3542 = vadd.f32 0.0, %v3541
        %v3543 = vpop.f32.mrf.mxu0
        %v3544 = vadd.f32 0.0, %v3543
        %3545 = vmatmul.bf16.gmra.mxu0 %v3499
        %v3546 = vpop.f32.mrf.mxu0
        %v3547 = vadd.f32 0.0, %v3546
        %v3548 = vpop.f32.mrf.mxu0
        %v3549 = vadd.f32 0.0, %v3548
        %3550 = vmatmul.bf16.gmra.mxu0 %v3502
        %v3551 = vpop.f32.mrf.mxu0
        %v3552 = vadd.f32 0.0, %v3551
        %v3553 = vpop.f32.mrf.mxu0
        %v3554 = vadd.f32 0.0, %v3553
        %3555 = vdwg.mxu0
        %v3556 = vld [vmem:[#allocation3] sm:$0xff]
        %v3557 = vld [vmem:[#allocation3 + $0x8] sm:$0xff]
        %v3558 = vld [vmem:[#allocation3 + $0x10] sm:$0xff]
        %v3559 = vld [vmem:[#allocation3 + $0x18] sm:$0xff]
        %v3560 = vld [vmem:[#allocation3 + $0x20] sm:$0xff]
        %v3561 = vld [vmem:[#allocation3 + $0x28] sm:$0xff]
        %v3562 = vld [vmem:[#allocation3 + $0x30] sm:$0xff]
        %v3563 = vld [vmem:[#allocation3 + $0x38] sm:$0xff]
        %v3564 = vld [vmem:[#allocation3 + $0x40] sm:$0xff]
        %v3565 = vld [vmem:[#allocation3 + $0x48] sm:$0xff]
        %v3566 = vld [vmem:[#allocation3 + $0x50] sm:$0xff]
        %v3567 = vld [vmem:[#allocation3 + $0x58] sm:$0xff]
        %v3568 = vld [vmem:[#allocation3 + $0x60] sm:$0xff]
        %v3569 = vld [vmem:[#allocation3 + $0x68] sm:$0xff]
        %v3570 = vld [vmem:[#allocation3 + $0x70] sm:$0xff]
        %v3571 = vld [vmem:[#allocation3 + $0x78] sm:$0xff]
        %v3572 = vadd.f32 %v3556, %v3517
        %v3573 = vadd.f32 %v3557, %v3519
        %v3574 = vadd.f32 %v3558, %v3522
        %v3575 = vadd.f32 %v3559, %v3524
        %v3576 = vadd.f32 %v3560, %v3527
        %v3577 = vadd.f32 %v3561, %v3529
        %v3578 = vadd.f32 %v3562, %v3532
        %v3579 = vadd.f32 %v3563, %v3534
        %v3580 = vadd.f32 %v3564, %v3537
        %v3581 = vadd.f32 %v3565, %v3539
        %v3582 = vadd.f32 %v3566, %v3542
        %v3583 = vadd.f32 %v3567, %v3544
        %v3584 = vadd.f32 %v3568, %v3547
        %v3585 = vadd.f32 %v3569, %v3549
        %v3586 = vadd.f32 %v3570, %v3552
        %v3587 = vadd.f32 %v3571, %v3554
        %3588 = vst [vmem:[#allocation3] sm:$0xff] %v3572
        %3589 = vst [vmem:[#allocation3 + $0x8] sm:$0xff] %v3573
        %3590 = vst [vmem:[#allocation3 + $0x10] sm:$0xff] %v3574
        %3591 = vst [vmem:[#allocation3 + $0x18] sm:$0xff] %v3575
        %3592 = vst [vmem:[#allocation3 + $0x20] sm:$0xff] %v3576
        %3593 = vst [vmem:[#allocation3 + $0x28] sm:$0xff] %v3577
        %3594 = vst [vmem:[#allocation3 + $0x30] sm:$0xff] %v3578
        %3595 = vst [vmem:[#allocation3 + $0x38] sm:$0xff] %v3579
        %3596 = vst [vmem:[#allocation3 + $0x40] sm:$0xff] %v3580
        %3597 = vst [vmem:[#allocation3 + $0x48] sm:$0xff] %v3581
        %3598 = vst [vmem:[#allocation3 + $0x50] sm:$0xff] %v3582
        %3599 = vst [vmem:[#allocation3 + $0x58] sm:$0xff] %v3583
        %3600 = vst [vmem:[#allocation3 + $0x60] sm:$0xff] %v3584
        %3601 = vst [vmem:[#allocation3 + $0x68] sm:$0xff] %v3585
        %3602 = vst [vmem:[#allocation3 + $0x70] sm:$0xff] %v3586
        %3603 = vst [vmem:[#allocation3 + $0x78] sm:$0xff] %v3587
        %s3604 = scalar_lea.vmem %s2, 26
        %v3605 = vld [vmem:[%s3604] sm:$0x3]
        %v3622 = vunpack.c.l.b16 %v3406
        %v3623 = vunpack.c.l.b16 %v3407
        %v3624 = vunpack.c.l.b16 %v3408
        %v3625 = vunpack.c.l.b16 %v3409
        %v3626 = vunpack.c.l.b16 %v3410
        %v3627 = vunpack.c.l.b16 %v3411
        %v3628 = vunpack.c.l.b16 %v3412
        %v3629 = vunpack.c.l.b16 %v3413
        %v3630 = vunpack.c.l.b16 %v3414
        %v3631 = vunpack.c.l.b16 %v3415
        %v3632 = vunpack.c.l.b16 %v3416
        %v3633 = vunpack.c.l.b16 %v3417
        %v3634 = vunpack.c.l.b16 %v3418
        %v3635 = vunpack.c.l.b16 %v3419
        %v3636 = vunpack.c.l.b16 %v3420
        %v3637 = vunpack.c.l.b16 %v3421
        %v3638 = vpack.c.b16 %v3623, %v3622
        %v3639 = vpack.c.b16 %v3625, %v3624
        %v3640 = vpack.c.b16 %v3627, %v3626
        %v3641 = vpack.c.b16 %v3629, %v3628
        %v3642 = vpack.c.b16 %v3631, %v3630
        %v3643 = vpack.c.b16 %v3633, %v3632
        %v3644 = vpack.c.b16 %v3635, %v3634
        %v3645 = vpack.c.b16 %v3637, %v3636
        %v3647 = vsel %vm354, %v3638, 0
        %v3650 = vsel %vm354, %v3639, 0
        %v3653 = vsel %vm354, %v3640, 0
        %v3656 = vsel %vm354, %v3641, 0
        %v3659 = vsel %vm354, %v3642, 0
        %v3662 = vsel %vm354, %v3643, 0
        %v3665 = vsel %vm354, %v3644, 0
        %v3668 = vsel %vm354, %v3645, 0
        %v3671 = vsel %vm379, %v3605, 0
        %3673 = vmatpush.bf16.msra.mxu0 0
        %3674 = vmatpush.bf16.msra.mxu0 0
        %3675 = vmatpush.bf16.msra.mxu0 0
        %3676 = vmatpush.bf16.msra.mxu0 0
        %3677 = vmatpush.bf16.msra.mxu0 0
        %3678 = vmatpush.bf16.msra.mxu0 0
        %3679 = vmatpush.bf16.msra.mxu0 0
        %3680 = vmatpush.bf16.msra.mxu0 %v3671
        %3681 = vmatmul.bf16.gmra.mxu0 %v3647
        %v3682 = vpop.f32.mrf.mxu0
        %v3683 = vadd.f32 0.0, %v3682
        %v3684 = vpop.f32.mrf.mxu0
        %v3685 = vadd.f32 0.0, %v3684
        %3686 = vmatmul.bf16.gmra.mxu0 %v3650
        %v3687 = vpop.f32.mrf.mxu0
        %v3688 = vadd.f32 0.0, %v3687
        %v3689 = vpop.f32.mrf.mxu0
        %v3690 = vadd.f32 0.0, %v3689
        %3691 = vmatmul.bf16.gmra.mxu0 %v3653
        %v3692 = vpop.f32.mrf.mxu0
        %v3693 = vadd.f32 0.0, %v3692
        %v3694 = vpop.f32.mrf.mxu0
        %v3695 = vadd.f32 0.0, %v3694
        %3696 = vmatmul.bf16.gmra.mxu0 %v3656
        %v3697 = vpop.f32.mrf.mxu0
        %v3698 = vadd.f32 0.0, %v3697
        %v3699 = vpop.f32.mrf.mxu0
        %v3700 = vadd.f32 0.0, %v3699
        %3701 = vmatmul.bf16.gmra.mxu0 %v3659
        %v3702 = vpop.f32.mrf.mxu0
        %v3703 = vadd.f32 0.0, %v3702
        %v3704 = vpop.f32.mrf.mxu0
        %v3705 = vadd.f32 0.0, %v3704
        %3706 = vmatmul.bf16.gmra.mxu0 %v3662
        %v3707 = vpop.f32.mrf.mxu0
        %v3708 = vadd.f32 0.0, %v3707
        %v3709 = vpop.f32.mrf.mxu0
        %v3710 = vadd.f32 0.0, %v3709
        %3711 = vmatmul.bf16.gmra.mxu0 %v3665
        %v3712 = vpop.f32.mrf.mxu0
        %v3713 = vadd.f32 0.0, %v3712
        %v3714 = vpop.f32.mrf.mxu0
        %v3715 = vadd.f32 0.0, %v3714
        %3716 = vmatmul.bf16.gmra.mxu0 %v3668
        %v3717 = vpop.f32.mrf.mxu0
        %v3718 = vadd.f32 0.0, %v3717
        %v3719 = vpop.f32.mrf.mxu0
        %v3720 = vadd.f32 0.0, %v3719
        %3721 = vdwg.mxu0
        %v3722 = vld [vmem:[#allocation3] sm:$0xff]
        %v3723 = vld [vmem:[#allocation3 + $0x8] sm:$0xff]
        %v3724 = vld [vmem:[#allocation3 + $0x10] sm:$0xff]
        %v3725 = vld [vmem:[#allocation3 + $0x18] sm:$0xff]
        %v3726 = vld [vmem:[#allocation3 + $0x20] sm:$0xff]
        %v3727 = vld [vmem:[#allocation3 + $0x28] sm:$0xff]
        %v3728 = vld [vmem:[#allocation3 + $0x30] sm:$0xff]
        %v3729 = vld [vmem:[#allocation3 + $0x38] sm:$0xff]
        %v3730 = vld [vmem:[#allocation3 + $0x40] sm:$0xff]
        %v3731 = vld [vmem:[#allocation3 + $0x48] sm:$0xff]
        %v3732 = vld [vmem:[#allocation3 + $0x50] sm:$0xff]
        %v3733 = vld [vmem:[#allocation3 + $0x58] sm:$0xff]
        %v3734 = vld [vmem:[#allocation3 + $0x60] sm:$0xff]
        %v3735 = vld [vmem:[#allocation3 + $0x68] sm:$0xff]
        %v3736 = vld [vmem:[#allocation3 + $0x70] sm:$0xff]
        %v3737 = vld [vmem:[#allocation3 + $0x78] sm:$0xff]
        %v3738 = vadd.f32 %v3722, %v3683
        %v3739 = vadd.f32 %v3723, %v3685
        %v3740 = vadd.f32 %v3724, %v3688
        %v3741 = vadd.f32 %v3725, %v3690
        %v3742 = vadd.f32 %v3726, %v3693
        %v3743 = vadd.f32 %v3727, %v3695
        %v3744 = vadd.f32 %v3728, %v3698
        %v3745 = vadd.f32 %v3729, %v3700
        %v3746 = vadd.f32 %v3730, %v3703
        %v3747 = vadd.f32 %v3731, %v3705
        %v3748 = vadd.f32 %v3732, %v3708
        %v3749 = vadd.f32 %v3733, %v3710
        %v3750 = vadd.f32 %v3734, %v3713
        %v3751 = vadd.f32 %v3735, %v3715
        %v3752 = vadd.f32 %v3736, %v3718
        %v3753 = vadd.f32 %v3737, %v3720
        %3754 = vst [vmem:[#allocation3] sm:$0xff] %v3738
        %3755 = vst [vmem:[#allocation3 + $0x8] sm:$0xff] %v3739
        %3756 = vst [vmem:[#allocation3 + $0x10] sm:$0xff] %v3740
        %3757 = vst [vmem:[#allocation3 + $0x18] sm:$0xff] %v3741
        %3758 = vst [vmem:[#allocation3 + $0x20] sm:$0xff] %v3742
        %3759 = vst [vmem:[#allocation3 + $0x28] sm:$0xff] %v3743
        %3760 = vst [vmem:[#allocation3 + $0x30] sm:$0xff] %v3744
        %3761 = vst [vmem:[#allocation3 + $0x38] sm:$0xff] %v3745
        %3762 = vst [vmem:[#allocation3 + $0x40] sm:$0xff] %v3746
        %3763 = vst [vmem:[#allocation3 + $0x48] sm:$0xff] %v3747
        %3764 = vst [vmem:[#allocation3 + $0x50] sm:$0xff] %v3748
        %3765 = vst [vmem:[#allocation3 + $0x58] sm:$0xff] %v3749
        %3766 = vst [vmem:[#allocation3 + $0x60] sm:$0xff] %v3750
        %3767 = vst [vmem:[#allocation3 + $0x68] sm:$0xff] %v3751
        %3768 = vst [vmem:[#allocation3 + $0x70] sm:$0xff] %v3752
        %3769 = vst [vmem:[#allocation3 + $0x78] sm:$0xff] %v3753
        %s3770 = scalar_lea.vmem %s2, 32
        %v3771 = vld [vmem:[%s3770] sm:$0x3]
        %v3788 = vunpack.c.l.b16 %v3422
        %v3789 = vunpack.c.l.b16 %v3423
        %v3790 = vunpack.c.l.b16 %v3424
        %v3791 = vunpack.c.l.b16 %v3425
        %v3792 = vunpack.c.l.b16 %v3426
        %v3793 = vunpack.c.l.b16 %v3427
        %v3794 = vunpack.c.l.b16 %v3428
        %v3795 = vunpack.c.l.b16 %v3429
        %v3796 = vunpack.c.l.b16 %v3430
        %v3797 = vunpack.c.l.b16 %v3431
        %v3798 = vunpack.c.l.b16 %v3432
        %v3799 = vunpack.c.l.b16 %v3433
        %v3800 = vunpack.c.l.b16 %v3434
        %v3801 = vunpack.c.l.b16 %v3435
        %v3802 = vunpack.c.l.b16 %v3436
        %v3803 = vunpack.c.l.b16 %v3437
        %v3804 = vpack.c.b16 %v3789, %v3788
        %v3805 = vpack.c.b16 %v3791, %v3790
        %v3806 = vpack.c.b16 %v3793, %v3792
        %v3807 = vpack.c.b16 %v3795, %v3794
        %v3808 = vpack.c.b16 %v3797, %v3796
        %v3809 = vpack.c.b16 %v3799, %v3798
        %v3810 = vpack.c.b16 %v3801, %v3800
        %v3811 = vpack.c.b16 %v3803, %v3802
        %v3813 = vsel %vm354, %v3804, 0
        %v3816 = vsel %vm354, %v3805, 0
        %v3819 = vsel %vm354, %v3806, 0
        %v3822 = vsel %vm354, %v3807, 0
        %v3825 = vsel %vm354, %v3808, 0
        %v3828 = vsel %vm354, %v3809, 0
        %v3831 = vsel %vm354, %v3810, 0
        %v3834 = vsel %vm354, %v3811, 0
        %v3837 = vsel %vm379, %v3771, 0
        %3839 = vmatpush.bf16.msra.mxu0 0
        %3840 = vmatpush.bf16.msra.mxu0 0
        %3841 = vmatpush.bf16.msra.mxu0 0
        %3842 = vmatpush.bf16.msra.mxu0 0
        %3843 = vmatpush.bf16.msra.mxu0 0
        %3844 = vmatpush.bf16.msra.mxu0 0
        %3845 = vmatpush.bf16.msra.mxu0 0
        %3846 = vmatpush.bf16.msra.mxu0 %v3837
        %3847 = vmatmul.bf16.gmra.mxu0 %v3813
        %v3848 = vpop.f32.mrf.mxu0
        %v3849 = vadd.f32 0.0, %v3848
        %v3850 = vpop.f32.mrf.mxu0
        %v3851 = vadd.f32 0.0, %v3850
        %3852 = vmatmul.bf16.gmra.mxu0 %v3816
        %v3853 = vpop.f32.mrf.mxu0
        %v3854 = vadd.f32 0.0, %v3853
        %v3855 = vpop.f32.mrf.mxu0
        %v3856 = vadd.f32 0.0, %v3855
        %3857 = vmatmul.bf16.gmra.mxu0 %v3819
        %v3858 = vpop.f32.mrf.mxu0
        %v3859 = vadd.f32 0.0, %v3858
        %v3860 = vpop.f32.mrf.mxu0
        %v3861 = vadd.f32 0.0, %v3860
        %3862 = vmatmul.bf16.gmra.mxu0 %v3822
        %v3863 = vpop.f32.mrf.mxu0
        %v3864 = vadd.f32 0.0, %v3863
        %v3865 = vpop.f32.mrf.mxu0
        %v3866 = vadd.f32 0.0, %v3865
        %3867 = vmatmul.bf16.gmra.mxu0 %v3825
        %v3868 = vpop.f32.mrf.mxu0
        %v3869 = vadd.f32 0.0, %v3868
        %v3870 = vpop.f32.mrf.mxu0
        %v3871 = vadd.f32 0.0, %v3870
        %3872 = vmatmul.bf16.gmra.mxu0 %v3828
        %v3873 = vpop.f32.mrf.mxu0
        %v3874 = vadd.f32 0.0, %v3873
        %v3875 = vpop.f32.mrf.mxu0
        %v3876 = vadd.f32 0.0, %v3875
        %3877 = vmatmul.bf16.gmra.mxu0 %v3831
        %v3878 = vpop.f32.mrf.mxu0
        %v3879 = vadd.f32 0.0, %v3878
        %v3880 = vpop.f32.mrf.mxu0
        %v3881 = vadd.f32 0.0, %v3880
        %3882 = vmatmul.bf16.gmra.mxu0 %v3834
        %v3883 = vpop.f32.mrf.mxu0
        %v3884 = vadd.f32 0.0, %v3883
        %v3885 = vpop.f32.mrf.mxu0
        %v3886 = vadd.f32 0.0, %v3885
        %3887 = vdwg.mxu0
        %v3888 = vld [vmem:[#allocation3] sm:$0xff]
        %v3889 = vld [vmem:[#allocation3 + $0x8] sm:$0xff]
        %v3890 = vld [vmem:[#allocation3 + $0x10] sm:$0xff]
        %v3891 = vld [vmem:[#allocation3 + $0x18] sm:$0xff]
        %v3892 = vld [vmem:[#allocation3 + $0x20] sm:$0xff]
        %v3893 = vld [vmem:[#allocation3 + $0x28] sm:$0xff]
        %v3894 = vld [vmem:[#allocation3 + $0x30] sm:$0xff]
        %v3895 = vld [vmem:[#allocation3 + $0x38] sm:$0xff]
        %v3896 = vld [vmem:[#allocation3 + $0x40] sm:$0xff]
        %v3897 = vld [vmem:[#allocation3 + $0x48] sm:$0xff]
        %v3898 = vld [vmem:[#allocation3 + $0x50] sm:$0xff]
        %v3899 = vld [vmem:[#allocation3 + $0x58] sm:$0xff]
        %v3900 = vld [vmem:[#allocation3 + $0x60] sm:$0xff]
        %v3901 = vld [vmem:[#allocation3 + $0x68] sm:$0xff]
        %v3902 = vld [vmem:[#allocation3 + $0x70] sm:$0xff]
        %v3903 = vld [vmem:[#allocation3 + $0x78] sm:$0xff]
        %v3904 = vadd.f32 %v3888, %v3849
        %v3905 = vadd.f32 %v3889, %v3851
        %v3906 = vadd.f32 %v3890, %v3854
        %v3907 = vadd.f32 %v3891, %v3856
        %v3908 = vadd.f32 %v3892, %v3859
        %v3909 = vadd.f32 %v3893, %v3861
        %v3910 = vadd.f32 %v3894, %v3864
        %v3911 = vadd.f32 %v3895, %v3866
        %v3912 = vadd.f32 %v3896, %v3869
        %v3913 = vadd.f32 %v3897, %v3871
        %v3914 = vadd.f32 %v3898, %v3874
        %v3915 = vadd.f32 %v3899, %v3876
        %v3916 = vadd.f32 %v3900, %v3879
        %v3917 = vadd.f32 %v3901, %v3881
        %v3918 = vadd.f32 %v3902, %v3884
        %v3919 = vadd.f32 %v3903, %v3886
        %3920 = vst [vmem:[#allocation3] sm:$0xff] %v3904
        %3921 = vst [vmem:[#allocation3 + $0x8] sm:$0xff] %v3905
        %3922 = vst [vmem:[#allocation3 + $0x10] sm:$0xff] %v3906
        %3923 = vst [vmem:[#allocation3 + $0x18] sm:$0xff] %v3907
        %3924 = vst [vmem:[#allocation3 + $0x20] sm:$0xff] %v3908
        %3925 = vst [vmem:[#allocation3 + $0x28] sm:$0xff] %v3909
        %3926 = vst [vmem:[#allocation3 + $0x30] sm:$0xff] %v3910
        %3927 = vst [vmem:[#allocation3 + $0x38] sm:$0xff] %v3911
        %3928 = vst [vmem:[#allocation3 + $0x40] sm:$0xff] %v3912
        %3929 = vst [vmem:[#allocation3 + $0x48] sm:$0xff] %v3913
        %3930 = vst [vmem:[#allocation3 + $0x50] sm:$0xff] %v3914
        %3931 = vst [vmem:[#allocation3 + $0x58] sm:$0xff] %v3915
        %3932 = vst [vmem:[#allocation3 + $0x60] sm:$0xff] %v3916
        %3933 = vst [vmem:[#allocation3 + $0x68] sm:$0xff] %v3917
        %3934 = vst [vmem:[#allocation3 + $0x70] sm:$0xff] %v3918
        %3935 = vst [vmem:[#allocation3 + $0x78] sm:$0xff] %v3919
        %v3936 = vld [vmem:[%s2656 + $0x10] sm:$0xc]
        %v3937 = vld [vmem:[%s2656 + $0x14] sm:$0xf]
        %v3938 = vld [vmem:[%s2656 + $0x18] sm:$0x3]
        %v3939 = vld [vmem:[%s2656 + $0x30] sm:$0xc]
        %v3940 = vld [vmem:[%s2656 + $0x34] sm:$0xf]
        %v3941 = vld [vmem:[%s2656 + $0x38] sm:$0x3]
        %v3942 = vld [vmem:[%s2656 + $0x50] sm:$0xc]
        %v3943 = vld [vmem:[%s2656 + $0x54] sm:$0xf]
        %v3944 = vld [vmem:[%s2656 + $0x58] sm:$0x3]
        %v3945 = vld [vmem:[%s2656 + $0x70] sm:$0xc]
        %v3946 = vld [vmem:[%s2656 + $0x74] sm:$0xf]
        %v3947 = vld [vmem:[%s2656 + $0x78] sm:$0x3]
        %v3948 = vld [vmem:[%s2656 + $0x90] sm:$0xc]
        %v3949 = vld [vmem:[%s2656 + $0x94] sm:$0xf]
        %v3950 = vld [vmem:[%s2656 + $0x98] sm:$0x3]
        %v3951 = vld [vmem:[%s2656 + $0xb0] sm:$0xc]
        %v3952 = vld [vmem:[%s2656 + $0xb4] sm:$0xf]
        %v3953 = vld [vmem:[%s2656 + $0xb8] sm:$0x3]
        %v3954 = vld [vmem:[%s2656 + $0xd0] sm:$0xc]
        %v3955 = vld [vmem:[%s2656 + $0xd4] sm:$0xf]
        %v3956 = vld [vmem:[%s2656 + $0xd8] sm:$0x3]
        %v3957 = vld [vmem:[%s2656 + $0xf0] sm:$0xc]
        %v3958 = vld [vmem:[%s2656 + $0xf4] sm:$0xf]
        %v3959 = vld [vmem:[%s2656 + $0xf8] sm:$0x3]
        %v3960 = vld [vmem:[%s2656 + $0x190] sm:$0xc]
        %v3961 = vld [vmem:[%s2656 + $0x194] sm:$0xf]
        %v3962 = vld [vmem:[%s2656 + $0x198] sm:$0x3]
        %v3963 = vld [vmem:[%s2656 + $0x1b0] sm:$0xc]
        %v3964 = vld [vmem:[%s2656 + $0x1b4] sm:$0xf]
        %v3965 = vld [vmem:[%s2656 + $0x1b8] sm:$0x3]
        %v3966 = vld [vmem:[%s2656 + $0x1d0] sm:$0xc]
        %v3967 = vld [vmem:[%s2656 + $0x1d4] sm:$0xf]
        %v3968 = vld [vmem:[%s2656 + $0x1d8] sm:$0x3]
        %v3969 = vld [vmem:[%s2656 + $0x1f0] sm:$0xc]
        %v3970 = vld [vmem:[%s2656 + $0x1f4] sm:$0xf]
        %v3971 = vld [vmem:[%s2656 + $0x1f8] sm:$0x3]
        %v3972 = vld [vmem:[%s2656 + $0x210] sm:$0xc]
        %v3973 = vld [vmem:[%s2656 + $0x214] sm:$0xf]
        %v3974 = vld [vmem:[%s2656 + $0x218] sm:$0x3]
        %v3975 = vld [vmem:[%s2656 + $0x230] sm:$0xc]
        %v3976 = vld [vmem:[%s2656 + $0x234] sm:$0xf]
        %v3977 = vld [vmem:[%s2656 + $0x238] sm:$0x3]
        %v3978 = vld [vmem:[%s2656 + $0x250] sm:$0xc]
        %v3979 = vld [vmem:[%s2656 + $0x254] sm:$0xf]
        %v3980 = vld [vmem:[%s2656 + $0x258] sm:$0x3]
        %v3981 = vld [vmem:[%s2656 + $0x270] sm:$0xc]
        %v3982 = vld [vmem:[%s2656 + $0x274] sm:$0xf]
        %v3983 = vld [vmem:[%s2656 + $0x278] sm:$0x3]
        %v3984 = vld [vmem:[%s2656 + $0x310] sm:$0xc]
        %v3985 = vld [vmem:[%s2656 + $0x314] sm:$0xf]
        %v3986 = vld [vmem:[%s2656 + $0x318] sm:$0x3]
        %v3987 = vld [vmem:[%s2656 + $0x330] sm:$0xc]
        %v3988 = vld [vmem:[%s2656 + $0x334] sm:$0xf]
        %v3989 = vld [vmem:[%s2656 + $0x338] sm:$0x3]
        %v3990 = vld [vmem:[%s2656 + $0x350] sm:$0xc]
        %v3991 = vld [vmem:[%s2656 + $0x354] sm:$0xf]
        %v3992 = vld [vmem:[%s2656 + $0x358] sm:$0x3]
        %v3993 = vld [vmem:[%s2656 + $0x370] sm:$0xc]
        %v3994 = vld [vmem:[%s2656 + $0x374] sm:$0xf]
        %v3995 = vld [vmem:[%s2656 + $0x378] sm:$0x3]
        %v3996 = vld [vmem:[%s2656 + $0x390] sm:$0xc]
        %v3997 = vld [vmem:[%s2656 + $0x394] sm:$0xf]
        %v3998 = vld [vmem:[%s2656 + $0x398] sm:$0x3]
        %v3999 = vld [vmem:[%s2656 + $0x3b0] sm:$0xc]
        %v4000 = vld [vmem:[%s2656 + $0x3b4] sm:$0xf]
        %v4001 = vld [vmem:[%s2656 + $0x3b8] sm:$0x3]
        %v4002 = vld [vmem:[%s2656 + $0x3d0] sm:$0xc]
        %v4003 = vld [vmem:[%s2656 + $0x3d4] sm:$0xf]
        %v4004 = vld [vmem:[%s2656 + $0x3d8] sm:$0x3]
        %v4005 = vld [vmem:[%s2656 + $0x3f0] sm:$0xc]
        %v4006 = vld [vmem:[%s2656 + $0x3f4] sm:$0xf]
        %v4007 = vld [vmem:[%s2656 + $0x3f8] sm:$0x3]
        %v4032 = vrot.slane %v3936, 6
        %v4033 = vrot.slane %v4032, 4
        %v4034 = vrot.slane %v3937, 6
        %v4035 = vsel %vm2755, %v4033, %v4034
        %v4036 = vrot.slane %v4034, 4
        %v4037 = vrot.slane %v3938, 6
        %v4038 = vsel %vm2755, %v4036, %v4037
        %v4039 = vrot.slane %v3939, 6
        %v4040 = vrot.slane %v4039, 4
        %v4041 = vrot.slane %v3940, 6
        %v4042 = vsel %vm2755, %v4040, %v4041
        %v4043 = vrot.slane %v4041, 4
        %v4044 = vrot.slane %v3941, 6
        %v4045 = vsel %vm2755, %v4043, %v4044
        %v4046 = vrot.slane %v3942, 6
        %v4047 = vrot.slane %v4046, 4
        %v4048 = vrot.slane %v3943, 6
        %v4049 = vsel %vm2755, %v4047, %v4048
        %v4050 = vrot.slane %v4048, 4
        %v4051 = vrot.slane %v3944, 6
        %v4052 = vsel %vm2755, %v4050, %v4051
        %v4053 = vrot.slane %v3945, 6
        %v4054 = vrot.slane %v4053, 4
        %v4055 = vrot.slane %v3946, 6
        %v4056 = vsel %vm2755, %v4054, %v4055
        %v4057 = vrot.slane %v4055, 4
        %v4058 = vrot.slane %v3947, 6
        %v4059 = vsel %vm2755, %v4057, %v4058
        %v4060 = vrot.slane %v3948, 6
        %v4061 = vrot.slane %v4060, 4
        %v4062 = vrot.slane %v3949, 6
        %v4063 = vsel %vm2755, %v4061, %v4062
        %v4064 = vrot.slane %v4062, 4
        %v4065 = vrot.slane %v3950, 6
        %v4066 = vsel %vm2755, %v4064, %v4065
        %v4067 = vrot.slane %v3951, 6
        %v4068 = vrot.slane %v4067, 4
        %v4069 = vrot.slane %v3952, 6
        %v4070 = vsel %vm2755, %v4068, %v4069
        %v4071 = vrot.slane %v4069, 4
        %v4072 = vrot.slane %v3953, 6
        %v4073 = vsel %vm2755, %v4071, %v4072
        %v4074 = vrot.slane %v3954, 6
        %v4075 = vrot.slane %v4074, 4
        %v4076 = vrot.slane %v3955, 6
        %v4077 = vsel %vm2755, %v4075, %v4076
        %v4078 = vrot.slane %v4076, 4
        %v4079 = vrot.slane %v3956, 6
        %v4080 = vsel %vm2755, %v4078, %v4079
        %v4081 = vrot.slane %v3957, 6
        %v4082 = vrot.slane %v4081, 4
        %v4083 = vrot.slane %v3958, 6
        %v4084 = vsel %vm2755, %v4082, %v4083
        %v4085 = vrot.slane %v4083, 4
        %v4086 = vrot.slane %v3959, 6
        %v4087 = vsel %vm2755, %v4085, %v4086
        %s4088 = scalar_lea.vmem %s2, 22
        %v4089 = vld [vmem:[%s4088] sm:$0x3]
        %v4090 = vunpack.c.l.b16 %v4035
        %v4091 = vunpack.c.l.b16 %v4038
        %v4092 = vunpack.c.l.b16 %v4042
        %v4093 = vunpack.c.l.b16 %v4045
        %v4094 = vunpack.c.l.b16 %v4049
        %v4095 = vunpack.c.l.b16 %v4052
        %v4096 = vunpack.c.l.b16 %v4056
        %v4097 = vunpack.c.l.b16 %v4059
        %v4098 = vunpack.c.l.b16 %v4063
        %v4099 = vunpack.c.l.b16 %v4066
        %v4100 = vunpack.c.l.b16 %v4070
        %v4101 = vunpack.c.l.b16 %v4073
        %v4102 = vunpack.c.l.b16 %v4077
        %v4103 = vunpack.c.l.b16 %v4080
        %v4104 = vunpack.c.l.b16 %v4084
        %v4105 = vunpack.c.l.b16 %v4087
        %v4106 = vpack.c.b16 %v4091, %v4090
        %v4107 = vpack.c.b16 %v4093, %v4092
        %v4108 = vpack.c.b16 %v4095, %v4094
        %v4109 = vpack.c.b16 %v4097, %v4096
        %v4110 = vpack.c.b16 %v4099, %v4098
        %v4111 = vpack.c.b16 %v4101, %v4100
        %v4112 = vpack.c.b16 %v4103, %v4102
        %v4113 = vpack.c.b16 %v4105, %v4104
        %v4115 = vsel %vm354, %v4106, 0
        %v4118 = vsel %vm354, %v4107, 0
        %v4121 = vsel %vm354, %v4108, 0
        %v4124 = vsel %vm354, %v4109, 0
        %v4127 = vsel %vm354, %v4110, 0
        %v4130 = vsel %vm354, %v4111, 0
        %v4133 = vsel %vm354, %v4112, 0
        %v4136 = vsel %vm354, %v4113, 0
        %v4139 = vsel %vm379, %v4089, 0
        %4141 = vmatpush.bf16.msra.mxu0 0
        %4142 = vmatpush.bf16.msra.mxu0 0
        %4143 = vmatpush.bf16.msra.mxu0 0
        %4144 = vmatpush.bf16.msra.mxu0 0
        %4145 = vmatpush.bf16.msra.mxu0 0
        %4146 = vmatpush.bf16.msra.mxu0 0
        %4147 = vmatpush.bf16.msra.mxu0 0
        %4148 = vmatpush.bf16.msra.mxu0 %v4139
        %4149 = vmatmul.bf16.gmra.mxu0 %v4115
        %v4150 = vpop.f32.mrf.mxu0
        %v4151 = vadd.f32 0.0, %v4150
        %v4152 = vpop.f32.mrf.mxu0
        %v4153 = vadd.f32 0.0, %v4152
        %4154 = vmatmul.bf16.gmra.mxu0 %v4118
        %v4155 = vpop.f32.mrf.mxu0
        %v4156 = vadd.f32 0.0, %v4155
        %v4157 = vpop.f32.mrf.mxu0
        %v4158 = vadd.f32 0.0, %v4157
        %4159 = vmatmul.bf16.gmra.mxu0 %v4121
        %v4160 = vpop.f32.mrf.mxu0
        %v4161 = vadd.f32 0.0, %v4160
        %v4162 = vpop.f32.mrf.mxu0
        %v4163 = vadd.f32 0.0, %v4162
        %4164 = vmatmul.bf16.gmra.mxu0 %v4124
        %v4165 = vpop.f32.mrf.mxu0
        %v4166 = vadd.f32 0.0, %v4165
        %v4167 = vpop.f32.mrf.mxu0
        %v4168 = vadd.f32 0.0, %v4167
        %4169 = vmatmul.bf16.gmra.mxu0 %v4127
        %v4170 = vpop.f32.mrf.mxu0
        %v4171 = vadd.f32 0.0, %v4170
        %v4172 = vpop.f32.mrf.mxu0
        %v4173 = vadd.f32 0.0, %v4172
        %4174 = vmatmul.bf16.gmra.mxu0 %v4130
        %v4175 = vpop.f32.mrf.mxu0
        %v4176 = vadd.f32 0.0, %v4175
        %v4177 = vpop.f32.mrf.mxu0
        %v4178 = vadd.f32 0.0, %v4177
        %4179 = vmatmul.bf16.gmra.mxu0 %v4133
        %v4180 = vpop.f32.mrf.mxu0
        %v4181 = vadd.f32 0.0, %v4180
        %v4182 = vpop.f32.mrf.mxu0
        %v4183 = vadd.f32 0.0, %v4182
        %4184 = vmatmul.bf16.gmra.mxu0 %v4136
        %v4185 = vpop.f32.mrf.mxu0
        %v4186 = vadd.f32 0.0, %v4185
        %v4187 = vpop.f32.mrf.mxu0
        %v4188 = vadd.f32 0.0, %v4187
        %4189 = vdwg.mxu0
        %v4190 = vld [vmem:[#allocation3] sm:$0xff]
        %v4191 = vld [vmem:[#allocation3 + $0x8] sm:$0xff]
        %v4192 = vld [vmem:[#allocation3 + $0x10] sm:$0xff]
        %v4193 = vld [vmem:[#allocation3 + $0x18] sm:$0xff]
        %v4194 = vld [vmem:[#allocation3 + $0x20] sm:$0xff]
        %v4195 = vld [vmem:[#allocation3 + $0x28] sm:$0xff]
        %v4196 = vld [vmem:[#allocation3 + $0x30] sm:$0xff]
        %v4197 = vld [vmem:[#allocation3 + $0x38] sm:$0xff]
        %v4198 = vld [vmem:[#allocation3 + $0x40] sm:$0xff]
        %v4199 = vld [vmem:[#allocation3 + $0x48] sm:$0xff]
        %v4200 = vld [vmem:[#allocation3 + $0x50] sm:$0xff]
        %v4201 = vld [vmem:[#allocation3 + $0x58] sm:$0xff]
        %v4202 = vld [vmem:[#allocation3 + $0x60] sm:$0xff]
        %v4203 = vld [vmem:[#allocation3 + $0x68] sm:$0xff]
        %v4204 = vld [vmem:[#allocation3 + $0x70] sm:$0xff]
        %v4205 = vld [vmem:[#allocation3 + $0x78] sm:$0xff]
        %v4206 = vadd.f32 %v4190, %v4151
        %v4207 = vadd.f32 %v4191, %v4153
        %v4208 = vadd.f32 %v4192, %v4156
        %v4209 = vadd.f32 %v4193, %v4158
        %v4210 = vadd.f32 %v4194, %v4161
        %v4211 = vadd.f32 %v4195, %v4163
        %v4212 = vadd.f32 %v4196, %v4166
        %v4213 = vadd.f32 %v4197, %v4168
        %v4214 = vadd.f32 %v4198, %v4171
        %v4215 = vadd.f32 %v4199, %v4173
        %v4216 = vadd.f32 %v4200, %v4176
        %v4217 = vadd.f32 %v4201, %v4178
        %v4218 = vadd.f32 %v4202, %v4181
        %v4219 = vadd.f32 %v4203, %v4183
        %v4220 = vadd.f32 %v4204, %v4186
        %v4221 = vadd.f32 %v4205, %v4188
        %4222 = vst [vmem:[#allocation3] sm:$0xff] %v4206
        %4223 = vst [vmem:[#allocation3 + $0x8] sm:$0xff] %v4207
        %4224 = vst [vmem:[#allocation3 + $0x10] sm:$0xff] %v4208
        %4225 = vst [vmem:[#allocation3 + $0x18] sm:$0xff] %v4209
        %4226 = vst [vmem:[#allocation3 + $0x20] sm:$0xff] %v4210
        %4227 = vst [vmem:[#allocation3 + $0x28] sm:$0xff] %v4211
        %4228 = vst [vmem:[#allocation3 + $0x30] sm:$0xff] %v4212
        %4229 = vst [vmem:[#allocation3 + $0x38] sm:$0xff] %v4213
        %4230 = vst [vmem:[#allocation3 + $0x40] sm:$0xff] %v4214
        %4231 = vst [vmem:[#allocation3 + $0x48] sm:$0xff] %v4215
        %4232 = vst [vmem:[#allocation3 + $0x50] sm:$0xff] %v4216
        %4233 = vst [vmem:[#allocation3 + $0x58] sm:$0xff] %v4217
        %4234 = vst [vmem:[#allocation3 + $0x60] sm:$0xff] %v4218
        %4235 = vst [vmem:[#allocation3 + $0x68] sm:$0xff] %v4219
        %4236 = vst [vmem:[#allocation3 + $0x70] sm:$0xff] %v4220
        %4237 = vst [vmem:[#allocation3 + $0x78] sm:$0xff] %v4221
        %v4262 = vrot.slane %v3960, 6
        %v4263 = vrot.slane %v4262, 4
        %v4264 = vrot.slane %v3961, 6
        %v4265 = vsel %vm2755, %v4263, %v4264
        %v4266 = vrot.slane %v4264, 4
        %v4267 = vrot.slane %v3962, 6
        %v4268 = vsel %vm2755, %v4266, %v4267
        %v4269 = vrot.slane %v3963, 6
        %v4270 = vrot.slane %v4269, 4
        %v4271 = vrot.slane %v3964, 6
        %v4272 = vsel %vm2755, %v4270, %v4271
        %v4273 = vrot.slane %v4271, 4
        %v4274 = vrot.slane %v3965, 6
        %v4275 = vsel %vm2755, %v4273, %v4274
        %v4276 = vrot.slane %v3966, 6
        %v4277 = vrot.slane %v4276, 4
        %v4278 = vrot.slane %v3967, 6
        %v4279 = vsel %vm2755, %v4277, %v4278
        %v4280 = vrot.slane %v4278, 4
        %v4281 = vrot.slane %v3968, 6
        %v4282 = vsel %vm2755, %v4280, %v4281
        %v4283 = vrot.slane %v3969, 6
        %v4284 = vrot.slane %v4283, 4
        %v4285 = vrot.slane %v3970, 6
        %v4286 = vsel %vm2755, %v4284, %v4285
        %v4287 = vrot.slane %v4285, 4
        %v4288 = vrot.slane %v3971, 6
        %v4289 = vsel %vm2755, %v4287, %v4288
        %v4290 = vrot.slane %v3972, 6
        %v4291 = vrot.slane %v4290, 4
        %v4292 = vrot.slane %v3973, 6
        %v4293 = vsel %vm2755, %v4291, %v4292
        %v4294 = vrot.slane %v4292, 4
        %v4295 = vrot.slane %v3974, 6
        %v4296 = vsel %vm2755, %v4294, %v4295
        %v4297 = vrot.slane %v3975, 6
        %v4298 = vrot.slane %v4297, 4
        %v4299 = vrot.slane %v3976, 6
        %v4300 = vsel %vm2755, %v4298, %v4299
        %v4301 = vrot.slane %v4299, 4
        %v4302 = vrot.slane %v3977, 6
        %v4303 = vsel %vm2755, %v4301, %v4302
        %v4304 = vrot.slane %v3978, 6
        %v4305 = vrot.slane %v4304, 4
        %v4306 = vrot.slane %v3979, 6
        %v4307 = vsel %vm2755, %v4305, %v4306
        %v4308 = vrot.slane %v4306, 4
        %v4309 = vrot.slane %v3980, 6
        %v4310 = vsel %vm2755, %v4308, %v4309
        %v4311 = vrot.slane %v3981, 6
        %v4312 = vrot.slane %v4311, 4
        %v4313 = vrot.slane %v3982, 6
        %v4314 = vsel %vm2755, %v4312, %v4313
        %v4315 = vrot.slane %v4313, 4
        %v4316 = vrot.slane %v3983, 6
        %v4317 = vsel %vm2755, %v4315, %v4316
        %s4318 = scalar_lea.vmem %s2, 28
        %v4319 = vld [vmem:[%s4318] sm:$0x3]
        %v4320 = vunpack.c.l.b16 %v4265
        %v4321 = vunpack.c.l.b16 %v4268
        %v4322 = vunpack.c.l.b16 %v4272
        %v4323 = vunpack.c.l.b16 %v4275
        %v4324 = vunpack.c.l.b16 %v4279
        %v4325 = vunpack.c.l.b16 %v4282
        %v4326 = vunpack.c.l.b16 %v4286
        %v4327 = vunpack.c.l.b16 %v4289
        %v4328 = vunpack.c.l.b16 %v4293
        %v4329 = vunpack.c.l.b16 %v4296
        %v4330 = vunpack.c.l.b16 %v4300
        %v4331 = vunpack.c.l.b16 %v4303
        %v4332 = vunpack.c.l.b16 %v4307
        %v4333 = vunpack.c.l.b16 %v4310
        %v4334 = vunpack.c.l.b16 %v4314
        %v4335 = vunpack.c.l.b16 %v4317
        %v4336 = vpack.c.b16 %v4321, %v4320
        %v4337 = vpack.c.b16 %v4323, %v4322
        %v4338 = vpack.c.b16 %v4325, %v4324
        %v4339 = vpack.c.b16 %v4327, %v4326
        %v4340 = vpack.c.b16 %v4329, %v4328
        %v4341 = vpack.c.b16 %v4331, %v4330
        %v4342 = vpack.c.b16 %v4333, %v4332
        %v4343 = vpack.c.b16 %v4335, %v4334
        %v4345 = vsel %vm354, %v4336, 0
        %v4348 = vsel %vm354, %v4337, 0
        %v4351 = vsel %vm354, %v4338, 0
        %v4354 = vsel %vm354, %v4339, 0
        %v4357 = vsel %vm354, %v4340, 0
        %v4360 = vsel %vm354, %v4341, 0
        %v4363 = vsel %vm354, %v4342, 0
        %v4366 = vsel %vm354, %v4343, 0
        %v4369 = vsel %vm379, %v4319, 0
        %4371 = vmatpush.bf16.msra.mxu0 0
        %4372 = vmatpush.bf16.msra.mxu0 0
        %4373 = vmatpush.bf16.msra.mxu0 0
        %4374 = vmatpush.bf16.msra.mxu0 0
        %4375 = vmatpush.bf16.msra.mxu0 0
        %4376 = vmatpush.bf16.msra.mxu0 0
        %4377 = vmatpush.bf16.msra.mxu0 0
        %4378 = vmatpush.bf16.msra.mxu0 %v4369
        %4379 = vmatmul.bf16.gmra.mxu0 %v4345
        %v4380 = vpop.f32.mrf.mxu0
        %v4381 = vadd.f32 0.0, %v4380
        %v4382 = vpop.f32.mrf.mxu0
        %v4383 = vadd.f32 0.0, %v4382
        %4384 = vmatmul.bf16.gmra.mxu0 %v4348
        %v4385 = vpop.f32.mrf.mxu0
        %v4386 = vadd.f32 0.0, %v4385
        %v4387 = vpop.f32.mrf.mxu0
        %v4388 = vadd.f32 0.0, %v4387
        %4389 = vmatmul.bf16.gmra.mxu0 %v4351
        %v4390 = vpop.f32.mrf.mxu0
        %v4391 = vadd.f32 0.0, %v4390
        %v4392 = vpop.f32.mrf.mxu0
        %v4393 = vadd.f32 0.0, %v4392
        %4394 = vmatmul.bf16.gmra.mxu0 %v4354
        %v4395 = vpop.f32.mrf.mxu0
        %v4396 = vadd.f32 0.0, %v4395
        %v4397 = vpop.f32.mrf.mxu0
        %v4398 = vadd.f32 0.0, %v4397
        %4399 = vmatmul.bf16.gmra.mxu0 %v4357
        %v4400 = vpop.f32.mrf.mxu0
        %v4401 = vadd.f32 0.0, %v4400
        %v4402 = vpop.f32.mrf.mxu0
        %v4403 = vadd.f32 0.0, %v4402
        %4404 = vmatmul.bf16.gmra.mxu0 %v4360
        %v4405 = vpop.f32.mrf.mxu0
        %v4406 = vadd.f32 0.0, %v4405
        %v4407 = vpop.f32.mrf.mxu0
        %v4408 = vadd.f32 0.0, %v4407
        %4409 = vmatmul.bf16.gmra.mxu0 %v4363
        %v4410 = vpop.f32.mrf.mxu0
        %v4411 = vadd.f32 0.0, %v4410
        %v4412 = vpop.f32.mrf.mxu0
        %v4413 = vadd.f32 0.0, %v4412
        %4414 = vmatmul.bf16.gmra.mxu0 %v4366
        %v4415 = vpop.f32.mrf.mxu0
        %v4416 = vadd.f32 0.0, %v4415
        %v4417 = vpop.f32.mrf.mxu0
        %v4418 = vadd.f32 0.0, %v4417
        %4419 = vdwg.mxu0
        %v4420 = vld [vmem:[#allocation3] sm:$0xff]
        %v4421 = vld [vmem:[#allocation3 + $0x8] sm:$0xff]
        %v4422 = vld [vmem:[#allocation3 + $0x10] sm:$0xff]
        %v4423 = vld [vmem:[#allocation3 + $0x18] sm:$0xff]
        %v4424 = vld [vmem:[#allocation3 + $0x20] sm:$0xff]
        %v4425 = vld [vmem:[#allocation3 + $0x28] sm:$0xff]
        %v4426 = vld [vmem:[#allocation3 + $0x30] sm:$0xff]
        %v4427 = vld [vmem:[#allocation3 + $0x38] sm:$0xff]
        %v4428 = vld [vmem:[#allocation3 + $0x40] sm:$0xff]
        %v4429 = vld [vmem:[#allocation3 + $0x48] sm:$0xff]
        %v4430 = vld [vmem:[#allocation3 + $0x50] sm:$0xff]
        %v4431 = vld [vmem:[#allocation3 + $0x58] sm:$0xff]
        %v4432 = vld [vmem:[#allocation3 + $0x60] sm:$0xff]
        %v4433 = vld [vmem:[#allocation3 + $0x68] sm:$0xff]
        %v4434 = vld [vmem:[#allocation3 + $0x70] sm:$0xff]
        %v4435 = vld [vmem:[#allocation3 + $0x78] sm:$0xff]
        %v4436 = vadd.f32 %v4420, %v4381
        %v4437 = vadd.f32 %v4421, %v4383
        %v4438 = vadd.f32 %v4422, %v4386
        %v4439 = vadd.f32 %v4423, %v4388
        %v4440 = vadd.f32 %v4424, %v4391
        %v4441 = vadd.f32 %v4425, %v4393
        %v4442 = vadd.f32 %v4426, %v4396
        %v4443 = vadd.f32 %v4427, %v4398
        %v4444 = vadd.f32 %v4428, %v4401
        %v4445 = vadd.f32 %v4429, %v4403
        %v4446 = vadd.f32 %v4430, %v4406
        %v4447 = vadd.f32 %v4431, %v4408
        %v4448 = vadd.f32 %v4432, %v4411
        %v4449 = vadd.f32 %v4433, %v4413
        %v4450 = vadd.f32 %v4434, %v4416
        %v4451 = vadd.f32 %v4435, %v4418
        %4452 = vst [vmem:[#allocation3] sm:$0xff] %v4436
        %4453 = vst [vmem:[#allocation3 + $0x8] sm:$0xff] %v4437
        %4454 = vst [vmem:[#allocation3 + $0x10] sm:$0xff] %v4438
        %4455 = vst [vmem:[#allocation3 + $0x18] sm:$0xff] %v4439
        %4456 = vst [vmem:[#allocation3 + $0x20] sm:$0xff] %v4440
        %4457 = vst [vmem:[#allocation3 + $0x28] sm:$0xff] %v4441
        %4458 = vst [vmem:[#allocation3 + $0x30] sm:$0xff] %v4442
        %4459 = vst [vmem:[#allocation3 + $0x38] sm:$0xff] %v4443
        %4460 = vst [vmem:[#allocation3 + $0x40] sm:$0xff] %v4444
        %4461 = vst [vmem:[#allocation3 + $0x48] sm:$0xff] %v4445
        %4462 = vst [vmem:[#allocation3 + $0x50] sm:$0xff] %v4446
        %4463 = vst [vmem:[#allocation3 + $0x58] sm:$0xff] %v4447
        %4464 = vst [vmem:[#allocation3 + $0x60] sm:$0xff] %v4448
        %4465 = vst [vmem:[#allocation3 + $0x68] sm:$0xff] %v4449
        %4466 = vst [vmem:[#allocation3 + $0x70] sm:$0xff] %v4450
        %4467 = vst [vmem:[#allocation3 + $0x78] sm:$0xff] %v4451
        %v4492 = vrot.slane %v3984, 6
        %v4493 = vrot.slane %v4492, 4
        %v4494 = vrot.slane %v3985, 6
        %v4495 = vsel %vm2755, %v4493, %v4494
        %v4496 = vrot.slane %v4494, 4
        %v4497 = vrot.slane %v3986, 6
        %v4498 = vsel %vm2755, %v4496, %v4497
        %v4499 = vrot.slane %v3987, 6
        %v4500 = vrot.slane %v4499, 4
        %v4501 = vrot.slane %v3988, 6
        %v4502 = vsel %vm2755, %v4500, %v4501
        %v4503 = vrot.slane %v4501, 4
        %v4504 = vrot.slane %v3989, 6
        %v4505 = vsel %vm2755, %v4503, %v4504
        %v4506 = vrot.slane %v3990, 6
        %v4507 = vrot.slane %v4506, 4
        %v4508 = vrot.slane %v3991, 6
        %v4509 = vsel %vm2755, %v4507, %v4508
        %v4510 = vrot.slane %v4508, 4
        %v4511 = vrot.slane %v3992, 6
        %v4512 = vsel %vm2755, %v4510, %v4511
        %v4513 = vrot.slane %v3993, 6
        %v4514 = vrot.slane %v4513, 4
        %v4515 = vrot.slane %v3994, 6
        %v4516 = vsel %vm2755, %v4514, %v4515
        %v4517 = vrot.slane %v4515, 4
        %v4518 = vrot.slane %v3995, 6
        %v4519 = vsel %vm2755, %v4517, %v4518
        %v4520 = vrot.slane %v3996, 6
        %v4521 = vrot.slane %v4520, 4
        %v4522 = vrot.slane %v3997, 6
        %v4523 = vsel %vm2755, %v4521, %v4522
        %v4524 = vrot.slane %v4522, 4
        %v4525 = vrot.slane %v3998, 6
        %v4526 = vsel %vm2755, %v4524, %v4525
        %v4527 = vrot.slane %v3999, 6
        %v4528 = vrot.slane %v4527, 4
        %v4529 = vrot.slane %v4000, 6
        %v4530 = vsel %vm2755, %v4528, %v4529
        %v4531 = vrot.slane %v4529, 4
        %v4532 = vrot.slane %v4001, 6
        %v4533 = vsel %vm2755, %v4531, %v4532
        %v4534 = vrot.slane %v4002, 6
        %v4535 = vrot.slane %v4534, 4
        %v4536 = vrot.slane %v4003, 6
        %v4537 = vsel %vm2755, %v4535, %v4536
        %v4538 = vrot.slane %v4536, 4
        %v4539 = vrot.slane %v4004, 6
        %v4540 = vsel %vm2755, %v4538, %v4539
        %v4541 = vrot.slane %v4005, 6
        %v4542 = vrot.slane %v4541, 4
        %v4543 = vrot.slane %v4006, 6
        %v4544 = vsel %vm2755, %v4542, %v4543
        %v4545 = vrot.slane %v4543, 4
        %v4546 = vrot.slane %v4007, 6
        %v4547 = vsel %vm2755, %v4545, %v4546
        %s4548 = scalar_lea.vmem %s2, 34
        %v4549 = vld [vmem:[%s4548] sm:$0x3]
        %v4550 = vunpack.c.l.b16 %v4495
        %v4551 = vunpack.c.l.b16 %v4498
        %v4552 = vunpack.c.l.b16 %v4502
        %v4553 = vunpack.c.l.b16 %v4505
        %v4554 = vunpack.c.l.b16 %v4509
        %v4555 = vunpack.c.l.b16 %v4512
        %v4556 = vunpack.c.l.b16 %v4516
        %v4557 = vunpack.c.l.b16 %v4519
        %v4558 = vunpack.c.l.b16 %v4523
        %v4559 = vunpack.c.l.b16 %v4526
        %v4560 = vunpack.c.l.b16 %v4530
        %v4561 = vunpack.c.l.b16 %v4533
        %v4562 = vunpack.c.l.b16 %v4537
        %v4563 = vunpack.c.l.b16 %v4540
        %v4564 = vunpack.c.l.b16 %v4544
        %v4565 = vunpack.c.l.b16 %v4547
        %v4566 = vpack.c.b16 %v4551, %v4550
        %v4567 = vpack.c.b16 %v4553, %v4552
        %v4568 = vpack.c.b16 %v4555, %v4554
        %v4569 = vpack.c.b16 %v4557, %v4556
        %v4570 = vpack.c.b16 %v4559, %v4558
        %v4571 = vpack.c.b16 %v4561, %v4560
        %v4572 = vpack.c.b16 %v4563, %v4562
        %v4573 = vpack.c.b16 %v4565, %v4564
        %v4575 = vsel %vm354, %v4566, 0
        %v4578 = vsel %vm354, %v4567, 0
        %v4581 = vsel %vm354, %v4568, 0
        %v4584 = vsel %vm354, %v4569, 0
        %v4587 = vsel %vm354, %v4570, 0
        %v4590 = vsel %vm354, %v4571, 0
        %v4593 = vsel %vm354, %v4572, 0
        %v4596 = vsel %vm354, %v4573, 0
        %v4599 = vsel %vm379, %v4549, 0
        %4601 = vmatpush.bf16.msra.mxu0 0
        %4602 = vmatpush.bf16.msra.mxu0 0
        %4603 = vmatpush.bf16.msra.mxu0 0
        %4604 = vmatpush.bf16.msra.mxu0 0
        %4605 = vmatpush.bf16.msra.mxu0 0
        %4606 = vmatpush.bf16.msra.mxu0 0
        %4607 = vmatpush.bf16.msra.mxu0 0
        %4608 = vmatpush.bf16.msra.mxu0 %v4599
        %4609 = vmatmul.bf16.gmra.mxu0 %v4575
        %v4610 = vpop.f32.mrf.mxu0
        %v4611 = vadd.f32 0.0, %v4610
        %v4612 = vpop.f32.mrf.mxu0
        %v4613 = vadd.f32 0.0, %v4612
        %4614 = vmatmul.bf16.gmra.mxu0 %v4578
        %v4615 = vpop.f32.mrf.mxu0
        %v4616 = vadd.f32 0.0, %v4615
        %v4617 = vpop.f32.mrf.mxu0
        %v4618 = vadd.f32 0.0, %v4617
        %4619 = vmatmul.bf16.gmra.mxu0 %v4581
        %v4620 = vpop.f32.mrf.mxu0
        %v4621 = vadd.f32 0.0, %v4620
        %v4622 = vpop.f32.mrf.mxu0
        %v4623 = vadd.f32 0.0, %v4622
        %4624 = vmatmul.bf16.gmra.mxu0 %v4584
        %v4625 = vpop.f32.mrf.mxu0
        %v4626 = vadd.f32 0.0, %v4625
        %v4627 = vpop.f32.mrf.mxu0
        %v4628 = vadd.f32 0.0, %v4627
        %4629 = vmatmul.bf16.gmra.mxu0 %v4587
        %v4630 = vpop.f32.mrf.mxu0
        %v4631 = vadd.f32 0.0, %v4630
        %v4632 = vpop.f32.mrf.mxu0
        %v4633 = vadd.f32 0.0, %v4632
        %4634 = vmatmul.bf16.gmra.mxu0 %v4590
        %v4635 = vpop.f32.mrf.mxu0
        %v4636 = vadd.f32 0.0, %v4635
        %v4637 = vpop.f32.mrf.mxu0
        %v4638 = vadd.f32 0.0, %v4637
        %4639 = vmatmul.bf16.gmra.mxu0 %v4593
        %v4640 = vpop.f32.mrf.mxu0
        %v4641 = vadd.f32 0.0, %v4640
        %v4642 = vpop.f32.mrf.mxu0
        %v4643 = vadd.f32 0.0, %v4642
        %4644 = vmatmul.bf16.gmra.mxu0 %v4596
        %v4645 = vpop.f32.mrf.mxu0
        %v4646 = vadd.f32 0.0, %v4645
        %v4647 = vpop.f32.mrf.mxu0
        %v4648 = vadd.f32 0.0, %v4647
        %4649 = vdwg.mxu0
        %v4650 = vld [vmem:[#allocation3] sm:$0xff]
        %v4651 = vld [vmem:[#allocation3 + $0x8] sm:$0xff]
        %v4652 = vld [vmem:[#allocation3 + $0x10] sm:$0xff]
        %v4653 = vld [vmem:[#allocation3 + $0x18] sm:$0xff]
        %v4654 = vld [vmem:[#allocation3 + $0x20] sm:$0xff]
        %v4655 = vld [vmem:[#allocation3 + $0x28] sm:$0xff]
        %v4656 = vld [vmem:[#allocation3 + $0x30] sm:$0xff]
        %v4657 = vld [vmem:[#allocation3 + $0x38] sm:$0xff]
        %v4658 = vld [vmem:[#allocation3 + $0x40] sm:$0xff]
        %v4659 = vld [vmem:[#allocation3 + $0x48] sm:$0xff]
        %v4660 = vld [vmem:[#allocation3 + $0x50] sm:$0xff]
        %v4661 = vld [vmem:[#allocation3 + $0x58] sm:$0xff]
        %v4662 = vld [vmem:[#allocation3 + $0x60] sm:$0xff]
        %v4663 = vld [vmem:[#allocation3 + $0x68] sm:$0xff]
        %v4664 = vld [vmem:[#allocation3 + $0x70] sm:$0xff]
        %v4665 = vld [vmem:[#allocation3 + $0x78] sm:$0xff]
        %v4666 = vadd.f32 %v4650, %v4611
        %v4667 = vadd.f32 %v4651, %v4613
        %v4668 = vadd.f32 %v4652, %v4616
        %v4669 = vadd.f32 %v4653, %v4618
        %v4670 = vadd.f32 %v4654, %v4621
        %v4671 = vadd.f32 %v4655, %v4623
        %v4672 = vadd.f32 %v4656, %v4626
        %v4673 = vadd.f32 %v4657, %v4628
        %v4674 = vadd.f32 %v4658, %v4631
        %v4675 = vadd.f32 %v4659, %v4633
        %v4676 = vadd.f32 %v4660, %v4636
        %v4677 = vadd.f32 %v4661, %v4638
        %v4678 = vadd.f32 %v4662, %v4641
        %v4679 = vadd.f32 %v4663, %v4643
        %v4680 = vadd.f32 %v4664, %v4646
        %v4681 = vadd.f32 %v4665, %v4648
        %4682 = vst [vmem:[#allocation3] sm:$0xff] %v4666
        %4683 = vst [vmem:[#allocation3 + $0x8] sm:$0xff] %v4667
        %4684 = vst [vmem:[#allocation3 + $0x10] sm:$0xff] %v4668
        %4685 = vst [vmem:[#allocation3 + $0x18] sm:$0xff] %v4669
        %4686 = vst [vmem:[#allocation3 + $0x20] sm:$0xff] %v4670
        %4687 = vst [vmem:[#allocation3 + $0x28] sm:$0xff] %v4671
        %4688 = vst [vmem:[#allocation3 + $0x30] sm:$0xff] %v4672
        %4689 = vst [vmem:[#allocation3 + $0x38] sm:$0xff] %v4673
        %4690 = vst [vmem:[#allocation3 + $0x40] sm:$0xff] %v4674
        %4691 = vst [vmem:[#allocation3 + $0x48] sm:$0xff] %v4675
        %4692 = vst [vmem:[#allocation3 + $0x50] sm:$0xff] %v4676
        %4693 = vst [vmem:[#allocation3 + $0x58] sm:$0xff] %v4677
        %4694 = vst [vmem:[#allocation3 + $0x60] sm:$0xff] %v4678
        %4695 = vst [vmem:[#allocation3 + $0x68] sm:$0xff] %v4679
        %4696 = vst [vmem:[#allocation3 + $0x70] sm:$0xff] %v4680
        %4697 = vst [vmem:[#allocation3 + $0x78] sm:$0xff] %v4681
        %v4698 = vld [vmem:[#allocation3] sm:$0xff]
        %v4699 = vld [vmem:[#allocation3 + $0x8] sm:$0xff]
        %v4700 = vld [vmem:[#allocation3 + $0x10] sm:$0xff]
        %v4701 = vld [vmem:[#allocation3 + $0x18] sm:$0xff]
        %v4702 = vld [vmem:[#allocation3 + $0x20] sm:$0xff]
        %v4703 = vld [vmem:[#allocation3 + $0x28] sm:$0xff]
        %v4704 = vld [vmem:[#allocation3 + $0x30] sm:$0xff]
        %v4705 = vld [vmem:[#allocation3 + $0x38] sm:$0xff]
        %v4706 = vld [vmem:[#allocation3 + $0x40] sm:$0xff]
        %v4707 = vld [vmem:[#allocation3 + $0x48] sm:$0xff]
        %v4708 = vld [vmem:[#allocation3 + $0x50] sm:$0xff]
        %v4709 = vld [vmem:[#allocation3 + $0x58] sm:$0xff]
        %v4710 = vld [vmem:[#allocation3 + $0x60] sm:$0xff]
        %v4711 = vld [vmem:[#allocation3 + $0x68] sm:$0xff]
        %v4712 = vld [vmem:[#allocation3 + $0x70] sm:$0xff]
        %v4713 = vld [vmem:[#allocation3 + $0x78] sm:$0xff]
        %v4714 = vld [vmem:[%s4 + $0x2] sm:$0x1]
        %v4715 = vperm.slane %v4714, 0
        %v4716 = vadd.f32 %v4698, %v4715
        %v4717 = vadd.f32 %v4699, %v4715
        %v4718 = vadd.f32 %v4700, %v4715
        %v4719 = vadd.f32 %v4701, %v4715
        %v4720 = vadd.f32 %v4702, %v4715
        %v4721 = vadd.f32 %v4703, %v4715
        %v4722 = vadd.f32 %v4704, %v4715
        %v4723 = vadd.f32 %v4705, %v4715
        %v4724 = vadd.f32 %v4706, %v4715
        %v4725 = vadd.f32 %v4707, %v4715
        %v4726 = vadd.f32 %v4708, %v4715
        %v4727 = vadd.f32 %v4709, %v4715
        %v4728 = vadd.f32 %v4710, %v4715
        %v4729 = vadd.f32 %v4711, %v4715
        %v4730 = vadd.f32 %v4712, %v4715
        %v4731 = vadd.f32 %v4713, %v4715
        %v4732 = vmax.f32 %v4716, 0.0
        %v4733 = vmax.f32 %v4717, 0.0
        %v4734 = vmax.f32 %v4718, 0.0
        %v4735 = vmax.f32 %v4719, 0.0
        %v4736 = vmax.f32 %v4720, 0.0
        %v4737 = vmax.f32 %v4721, 0.0
        %v4738 = vmax.f32 %v4722, 0.0
        %v4739 = vmax.f32 %v4723, 0.0
        %v4740 = vmax.f32 %v4724, 0.0
        %v4741 = vmax.f32 %v4725, 0.0
        %v4742 = vmax.f32 %v4726, 0.0
        %v4743 = vmax.f32 %v4727, 0.0
        %v4744 = vmax.f32 %v4728, 0.0
        %v4745 = vmax.f32 %v4729, 0.0
        %v4746 = vmax.f32 %v4730, 0.0
        %v4747 = vmax.f32 %v4731, 0.0
        %v4748 = vld [vmem:[#allocation2] sm:$0xff]
        %v4749 = vld [vmem:[#allocation2 + $0x8] sm:$0xff]
        %v4750 = vld [vmem:[#allocation2 + $0x10] sm:$0xff]
        %v4751 = vld [vmem:[#allocation2 + $0x18] sm:$0xff]
        %v4752 = vld [vmem:[#allocation2 + $0x20] sm:$0xff]
        %v4753 = vld [vmem:[#allocation2 + $0x28] sm:$0xff]
        %v4754 = vld [vmem:[#allocation2 + $0x30] sm:$0xff]
        %v4755 = vld [vmem:[#allocation2 + $0x38] sm:$0xff]
        %v4756 = vld [vmem:[#allocation2 + $0x40] sm:$0xff]
        %v4757 = vld [vmem:[#allocation2 + $0x48] sm:$0xff]
        %v4758 = vld [vmem:[#allocation2 + $0x50] sm:$0xff]
        %v4759 = vld [vmem:[#allocation2 + $0x58] sm:$0xff]
        %v4760 = vld [vmem:[#allocation2 + $0x60] sm:$0xff]
        %v4761 = vld [vmem:[#allocation2 + $0x68] sm:$0xff]
        %v4762 = vld [vmem:[#allocation2 + $0x70] sm:$0xff]
        %v4763 = vld [vmem:[#allocation2 + $0x78] sm:$0xff]
        %v4764 = vpack.c.bf16 %v4733, %v4732
        %v4765 = vpack.c.bf16 %v4735, %v4734
        %v4766 = vpack.c.bf16 %v4737, %v4736
        %v4767 = vpack.c.bf16 %v4739, %v4738
        %v4768 = vpack.c.bf16 %v4741, %v4740
        %v4769 = vpack.c.bf16 %v4743, %v4742
        %v4770 = vpack.c.bf16 %v4745, %v4744
        %v4771 = vpack.c.bf16 %v4747, %v4746
        %v4772 = vld [vmem:[%s3 + $0x80] sm:$0xf]
        %v4773 = vld [vmem:[%s3 + $0x84] sm:$0xf]
        %v4774 = vld [vmem:[%s3 + $0x88] sm:$0xf]
        %v4775 = vld [vmem:[%s3 + $0x8c] sm:$0xf]
        %v4776 = vld [vmem:[%s3 + $0x90] sm:$0xf]
        %v4777 = vld [vmem:[%s3 + $0x94] sm:$0xf]
        %v4778 = vld [vmem:[%s3 + $0x98] sm:$0xf]
        %v4779 = vld [vmem:[%s3 + $0x9c] sm:$0xf]
        %v4780 = vld [vmem:[%s3 + $0xa0] sm:$0xf]
        %v4781 = vld [vmem:[%s3 + $0xa4] sm:$0xf]
        %v4782 = vld [vmem:[%s3 + $0xa8] sm:$0xf]
        %v4783 = vld [vmem:[%s3 + $0xac] sm:$0xf]
        %v4784 = vld [vmem:[%s3 + $0xb0] sm:$0xf]
        %v4785 = vld [vmem:[%s3 + $0xb4] sm:$0xf]
        %v4786 = vld [vmem:[%s3 + $0xb8] sm:$0xf]
        %v4787 = vld [vmem:[%s3 + $0xbc] sm:$0xf]
        %v4804 = vunpack.c.l.b16 %v4772
        %v4805 = vunpack.c.l.b16 %v4773
        %v4806 = vunpack.c.l.b16 %v4774
        %v4807 = vunpack.c.l.b16 %v4775
        %v4808 = vunpack.c.l.b16 %v4776
        %v4809 = vunpack.c.l.b16 %v4777
        %v4810 = vunpack.c.l.b16 %v4778
        %v4811 = vunpack.c.l.b16 %v4779
        %v4812 = vunpack.c.l.b16 %v4780
        %v4813 = vunpack.c.l.b16 %v4781
        %v4814 = vunpack.c.l.b16 %v4782
        %v4815 = vunpack.c.l.b16 %v4783
        %v4816 = vunpack.c.l.b16 %v4784
        %v4817 = vunpack.c.l.b16 %v4785
        %v4818 = vunpack.c.l.b16 %v4786
        %v4819 = vunpack.c.l.b16 %v4787
        %v4820 = vpack.c.b16 %v4805, %v4804
        %v4821 = vpack.c.b16 %v4807, %v4806
        %v4822 = vpack.c.b16 %v4809, %v4808
        %v4823 = vpack.c.b16 %v4811, %v4810
        %v4824 = vpack.c.b16 %v4813, %v4812
        %v4825 = vpack.c.b16 %v4815, %v4814
        %v4826 = vpack.c.b16 %v4817, %v4816
        %v4827 = vpack.c.b16 %v4819, %v4818
        %4836 = vmatpush.bf16.msra.mxu0 %v4827
        %4837 = vmatpush.bf16.msra.mxu0 %v4826
        %4838 = vmatpush.bf16.msra.mxu0 %v4825
        %4839 = vmatpush.bf16.msra.mxu0 %v4824
        %4840 = vmatpush.bf16.msra.mxu0 %v4823
        %4841 = vmatpush.bf16.msra.mxu0 %v4822
        %4842 = vmatpush.bf16.msra.mxu0 %v4821
        %4843 = vmatpush.bf16.msra.mxu0 %v4820
        %4844 = vmatmul.bf16.gmra.mxu0 %v4764
        %v4845 = vpop.f32.mrf.mxu0
        %v4846 = vadd.f32 0.0, %v4845
        %v4847 = vpop.f32.mrf.mxu0
        %v4848 = vadd.f32 0.0, %v4847
        %4849 = vmatmul.bf16.gmra.mxu0 %v4765
        %v4850 = vpop.f32.mrf.mxu0
        %v4851 = vadd.f32 0.0, %v4850
        %v4852 = vpop.f32.mrf.mxu0
        %v4853 = vadd.f32 0.0, %v4852
        %4854 = vmatmul.bf16.gmra.mxu0 %v4766
        %v4855 = vpop.f32.mrf.mxu0
        %v4856 = vadd.f32 0.0, %v4855
        %v4857 = vpop.f32.mrf.mxu0
        %v4858 = vadd.f32 0.0, %v4857
        %4859 = vmatmul.bf16.gmra.mxu0 %v4767
        %v4860 = vpop.f32.mrf.mxu0
        %v4861 = vadd.f32 0.0, %v4860
        %v4862 = vpop.f32.mrf.mxu0
        %v4863 = vadd.f32 0.0, %v4862
        %4864 = vmatmul.bf16.gmra.mxu0 %v4768
        %v4865 = vpop.f32.mrf.mxu0
        %v4866 = vadd.f32 0.0, %v4865
        %v4867 = vpop.f32.mrf.mxu0
        %v4868 = vadd.f32 0.0, %v4867
        %4869 = vmatmul.bf16.gmra.mxu0 %v4769
        %v4870 = vpop.f32.mrf.mxu0
        %v4871 = vadd.f32 0.0, %v4870
        %v4872 = vpop.f32.mrf.mxu0
        %v4873 = vadd.f32 0.0, %v4872
        %4874 = vmatmul.bf16.gmra.mxu0 %v4770
        %v4875 = vpop.f32.mrf.mxu0
        %v4876 = vadd.f32 0.0, %v4875
        %v4877 = vpop.f32.mrf.mxu0
        %v4878 = vadd.f32 0.0, %v4877
        %4879 = vmatmul.bf16.gmra.mxu0 %v4771
        %v4880 = vpop.f32.mrf.mxu0
        %v4881 = vadd.f32 0.0, %v4880
        %v4882 = vpop.f32.mrf.mxu0
        %v4883 = vadd.f32 0.0, %v4882
        %4884 = vdwg.mxu0
        %v4885 = vadd.f32 %v4748, %v4846
        %v4886 = vadd.f32 %v4749, %v4848
        %v4887 = vadd.f32 %v4750, %v4851
        %v4888 = vadd.f32 %v4751, %v4853
        %v4889 = vadd.f32 %v4752, %v4856
        %v4890 = vadd.f32 %v4753, %v4858
        %v4891 = vadd.f32 %v4754, %v4861
        %v4892 = vadd.f32 %v4755, %v4863
        %v4893 = vadd.f32 %v4756, %v4866
        %v4894 = vadd.f32 %v4757, %v4868
        %v4895 = vadd.f32 %v4758, %v4871
        %v4896 = vadd.f32 %v4759, %v4873
        %v4897 = vadd.f32 %v4760, %v4876
        %v4898 = vadd.f32 %v4761, %v4878
        %v4899 = vadd.f32 %v4762, %v4881
        %v4900 = vadd.f32 %v4763, %v4883
        %4901 = vst [vmem:[#allocation2] sm:$0xff] %v4885
        %4902 = vst [vmem:[#allocation2 + $0x8] sm:$0xff] %v4886
        %4903 = vst [vmem:[#allocation2 + $0x10] sm:$0xff] %v4887
        %4904 = vst [vmem:[#allocation2 + $0x18] sm:$0xff] %v4888
        %4905 = vst [vmem:[#allocation2 + $0x20] sm:$0xff] %v4889
        %4906 = vst [vmem:[#allocation2 + $0x28] sm:$0xff] %v4890
        %4907 = vst [vmem:[#allocation2 + $0x30] sm:$0xff] %v4891
        %4908 = vst [vmem:[#allocation2 + $0x38] sm:$0xff] %v4892
        %4909 = vst [vmem:[#allocation2 + $0x40] sm:$0xff] %v4893
        %4910 = vst [vmem:[#allocation2 + $0x48] sm:$0xff] %v4894
        %4911 = vst [vmem:[#allocation2 + $0x50] sm:$0xff] %v4895
        %4912 = vst [vmem:[#allocation2 + $0x58] sm:$0xff] %v4896
        %4913 = vst [vmem:[#allocation2 + $0x60] sm:$0xff] %v4897
        %4914 = vst [vmem:[#allocation2 + $0x68] sm:$0xff] %v4898
        %4915 = vst [vmem:[#allocation2 + $0x70] sm:$0xff] %v4899
        %4916 = vst [vmem:[#allocation2 + $0x78] sm:$0xff] %v4900
        %s4917 = scalar_lea.vmem %s288, 192
        %v4918 = vld [vmem:[%s4917] sm:$0x8]
        %v4919 = vld [vmem:[%s4917 + $0x4] sm:$0xf]
        %v4920 = vld [vmem:[%s4917 + $0x8] sm:$0x7]
        %v4921 = vld [vmem:[%s4917 + $0x20] sm:$0x8]
        %v4922 = vld [vmem:[%s4917 + $0x24] sm:$0xf]
        %v4923 = vld [vmem:[%s4917 + $0x28] sm:$0x7]
        %v4924 = vld [vmem:[%s4917 + $0x40] sm:$0x8]
        %v4925 = vld [vmem:[%s4917 + $0x44] sm:$0xf]
        %v4926 = vld [vmem:[%s4917 + $0x48] sm:$0x7]
        %v4927 = vld [vmem:[%s4917 + $0x60] sm:$0x8]
        %v4928 = vld [vmem:[%s4917 + $0x64] sm:$0xf]
        %v4929 = vld [vmem:[%s4917 + $0x68] sm:$0x7]
        %v4930 = vld [vmem:[%s4917 + $0x80] sm:$0x8]
        %v4931 = vld [vmem:[%s4917 + $0x84] sm:$0xf]
        %v4932 = vld [vmem:[%s4917 + $0x88] sm:$0x7]
        %v4933 = vld [vmem:[%s4917 + $0xa0] sm:$0x8]
        %v4934 = vld [vmem:[%s4917 + $0xa4] sm:$0xf]
        %v4935 = vld [vmem:[%s4917 + $0xa8] sm:$0x7]
        %v4936 = vld [vmem:[%s4917 + $0xc0] sm:$0x8]
        %v4937 = vld [vmem:[%s4917 + $0xc4] sm:$0xf]
        %v4938 = vld [vmem:[%s4917 + $0xc8] sm:$0x7]
        %v4939 = vld [vmem:[%s4917 + $0xe0] sm:$0x8]
        %v4940 = vld [vmem:[%s4917 + $0xe4] sm:$0xf]
        %v4941 = vld [vmem:[%s4917 + $0xe8] sm:$0x7]
        %v4942 = vld [vmem:[%s4917 + $0x240] sm:$0x8]
        %v4943 = vld [vmem:[%s4917 + $0x244] sm:$0xf]
        %v4944 = vld [vmem:[%s4917 + $0x248] sm:$0x7]
        %v4945 = vld [vmem:[%s4917 + $0x260] sm:$0x8]
        %v4946 = vld [vmem:[%s4917 + $0x264] sm:$0xf]
        %v4947 = vld [vmem:[%s4917 + $0x268] sm:$0x7]
        %v4948 = vld [vmem:[%s4917 + $0x280] sm:$0x8]
        %v4949 = vld [vmem:[%s4917 + $0x284] sm:$0xf]
        %v4950 = vld [vmem:[%s4917 + $0x288] sm:$0x7]
        %v4951 = vld [vmem:[%s4917 + $0x2a0] sm:$0x8]
        %v4952 = vld [vmem:[%s4917 + $0x2a4] sm:$0xf]
        %v4953 = vld [vmem:[%s4917 + $0x2a8] sm:$0x7]
        %v4954 = vld [vmem:[%s4917 + $0x2c0] sm:$0x8]
        %v4955 = vld [vmem:[%s4917 + $0x2c4] sm:$0xf]
        %v4956 = vld [vmem:[%s4917 + $0x2c8] sm:$0x7]
        %v4957 = vld [vmem:[%s4917 + $0x2e0] sm:$0x8]
        %v4958 = vld [vmem:[%s4917 + $0x2e4] sm:$0xf]
        %v4959 = vld [vmem:[%s4917 + $0x2e8] sm:$0x7]
        %v4960 = vld [vmem:[%s4917 + $0x300] sm:$0x8]
        %v4961 = vld [vmem:[%s4917 + $0x304] sm:$0xf]
        %v4962 = vld [vmem:[%s4917 + $0x308] sm:$0x7]
        %v4963 = vld [vmem:[%s4917 + $0x320] sm:$0x8]
        %v4964 = vld [vmem:[%s4917 + $0x324] sm:$0xf]
        %v4965 = vld [vmem:[%s4917 + $0x328] sm:$0x7]
        %v4966 = vld [vmem:[%s4917 + $0x480] sm:$0x8]
        %v4967 = vld [vmem:[%s4917 + $0x484] sm:$0xf]
        %v4968 = vld [vmem:[%s4917 + $0x488] sm:$0x7]
        %v4969 = vld [vmem:[%s4917 + $0x4a0] sm:$0x8]
        %v4970 = vld [vmem:[%s4917 + $0x4a4] sm:$0xf]
        %v4971 = vld [vmem:[%s4917 + $0x4a8] sm:$0x7]
        %v4972 = vld [vmem:[%s4917 + $0x4c0] sm:$0x8]
        %v4973 = vld [vmem:[%s4917 + $0x4c4] sm:$0xf]
        %v4974 = vld [vmem:[%s4917 + $0x4c8] sm:$0x7]
        %v4975 = vld [vmem:[%s4917 + $0x4e0] sm:$0x8]
        %v4976 = vld [vmem:[%s4917 + $0x4e4] sm:$0xf]
        %v4977 = vld [vmem:[%s4917 + $0x4e8] sm:$0x7]
        %v4978 = vld [vmem:[%s4917 + $0x500] sm:$0x8]
        %v4979 = vld [vmem:[%s4917 + $0x504] sm:$0xf]
        %v4980 = vld [vmem:[%s4917 + $0x508] sm:$0x7]
        %v4981 = vld [vmem:[%s4917 + $0x520] sm:$0x8]
        %v4982 = vld [vmem:[%s4917 + $0x524] sm:$0xf]
        %v4983 = vld [vmem:[%s4917 + $0x528] sm:$0x7]
        %v4984 = vld [vmem:[%s4917 + $0x540] sm:$0x8]
        %v4985 = vld [vmem:[%s4917 + $0x544] sm:$0xf]
        %v4986 = vld [vmem:[%s4917 + $0x548] sm:$0x7]
        %v4987 = vld [vmem:[%s4917 + $0x560] sm:$0x8]
        %v4988 = vld [vmem:[%s4917 + $0x564] sm:$0xf]
        %v4989 = vld [vmem:[%s4917 + $0x568] sm:$0x7]
        %v5014 = vrot.slane %v4918, 7
        %v5015 = vrot.slane %v5014, 4
        %v5016 = vrot.slane %v4919, 7
        %v5017 = vsel %vm1834, %v5015, %v5016
        %v5018 = vrot.slane %v5016, 4
        %v5019 = vrot.slane %v4920, 7
        %v5020 = vsel %vm1834, %v5018, %v5019
        %v5021 = vrot.slane %v4921, 7
        %v5022 = vrot.slane %v5021, 4
        %v5023 = vrot.slane %v4922, 7
        %v5024 = vsel %vm1834, %v5022, %v5023
        %v5025 = vrot.slane %v5023, 4
        %v5026 = vrot.slane %v4923, 7
        %v5027 = vsel %vm1834, %v5025, %v5026
        %v5028 = vrot.slane %v4924, 7
        %v5029 = vrot.slane %v5028, 4
        %v5030 = vrot.slane %v4925, 7
        %v5031 = vsel %vm1834, %v5029, %v5030
        %v5032 = vrot.slane %v5030, 4
        %v5033 = vrot.slane %v4926, 7
        %v5034 = vsel %vm1834, %v5032, %v5033
        %v5035 = vrot.slane %v4927, 7
        %v5036 = vrot.slane %v5035, 4
        %v5037 = vrot.slane %v4928, 7
        %v5038 = vsel %vm1834, %v5036, %v5037
        %v5039 = vrot.slane %v5037, 4
        %v5040 = vrot.slane %v4929, 7
        %v5041 = vsel %vm1834, %v5039, %v5040
        %v5042 = vrot.slane %v4930, 7
        %v5043 = vrot.slane %v5042, 4
        %v5044 = vrot.slane %v4931, 7
        %v5045 = vsel %vm1834, %v5043, %v5044
        %v5046 = vrot.slane %v5044, 4
        %v5047 = vrot.slane %v4932, 7
        %v5048 = vsel %vm1834, %v5046, %v5047
        %v5049 = vrot.slane %v4933, 7
        %v5050 = vrot.slane %v5049, 4
        %v5051 = vrot.slane %v4934, 7
        %v5052 = vsel %vm1834, %v5050, %v5051
        %v5053 = vrot.slane %v5051, 4
        %v5054 = vrot.slane %v4935, 7
        %v5055 = vsel %vm1834, %v5053, %v5054
        %v5056 = vrot.slane %v4936, 7
        %v5057 = vrot.slane %v5056, 4
        %v5058 = vrot.slane %v4937, 7
        %v5059 = vsel %vm1834, %v5057, %v5058
        %v5060 = vrot.slane %v5058, 4
        %v5061 = vrot.slane %v4938, 7
        %v5062 = vsel %vm1834, %v5060, %v5061
        %v5063 = vrot.slane %v4939, 7
        %v5064 = vrot.slane %v5063, 4
        %v5065 = vrot.slane %v4940, 7
        %v5066 = vsel %vm1834, %v5064, %v5065
        %v5067 = vrot.slane %v5065, 4
        %v5068 = vrot.slane %v4941, 7
        %v5069 = vsel %vm1834, %v5067, %v5068
        %s5070 = scalar_lea.vmem %s2, 36
        %v5071 = vld [vmem:[%s5070] sm:$0x3]
        %v5072 = vunpack.c.l.b16 %v5017
        %v5073 = vunpack.c.l.b16 %v5020
        %v5074 = vunpack.c.l.b16 %v5024
        %v5075 = vunpack.c.l.b16 %v5027
        %v5076 = vunpack.c.l.b16 %v5031
        %v5077 = vunpack.c.l.b16 %v5034
        %v5078 = vunpack.c.l.b16 %v5038
        %v5079 = vunpack.c.l.b16 %v5041
        %v5080 = vunpack.c.l.b16 %v5045
        %v5081 = vunpack.c.l.b16 %v5048
        %v5082 = vunpack.c.l.b16 %v5052
        %v5083 = vunpack.c.l.b16 %v5055
        %v5084 = vunpack.c.l.b16 %v5059
        %v5085 = vunpack.c.l.b16 %v5062
        %v5086 = vunpack.c.l.b16 %v5066
        %v5087 = vunpack.c.l.b16 %v5069
        %v5088 = vpack.c.b16 %v5073, %v5072
        %v5089 = vpack.c.b16 %v5075, %v5074
        %v5090 = vpack.c.b16 %v5077, %v5076
        %v5091 = vpack.c.b16 %v5079, %v5078
        %v5092 = vpack.c.b16 %v5081, %v5080
        %v5093 = vpack.c.b16 %v5083, %v5082
        %v5094 = vpack.c.b16 %v5085, %v5084
        %v5095 = vpack.c.b16 %v5087, %v5086
        %v5097 = vsel %vm354, %v5088, 0
        %v5100 = vsel %vm354, %v5089, 0
        %v5103 = vsel %vm354, %v5090, 0
        %v5106 = vsel %vm354, %v5091, 0
        %v5109 = vsel %vm354, %v5092, 0
        %v5112 = vsel %vm354, %v5093, 0
        %v5115 = vsel %vm354, %v5094, 0
        %v5118 = vsel %vm354, %v5095, 0
        %v5121 = vsel %vm379, %v5071, 0
        %5123 = vmatpush.bf16.msra.mxu0 0
        %5124 = vmatpush.bf16.msra.mxu0 0
        %5125 = vmatpush.bf16.msra.mxu0 0
        %5126 = vmatpush.bf16.msra.mxu0 0
        %5127 = vmatpush.bf16.msra.mxu0 0
        %5128 = vmatpush.bf16.msra.mxu0 0
        %5129 = vmatpush.bf16.msra.mxu0 0
        %5130 = vmatpush.bf16.msra.mxu0 %v5121
        %5131 = vmatmul.bf16.gmra.mxu0 %v5097
        %v5132 = vpop.f32.mrf.mxu0
        %v5133 = vadd.f32 0.0, %v5132
        %v5134 = vpop.f32.mrf.mxu0
        %v5135 = vadd.f32 0.0, %v5134
        %5136 = vmatmul.bf16.gmra.mxu0 %v5100
        %v5137 = vpop.f32.mrf.mxu0
        %v5138 = vadd.f32 0.0, %v5137
        %v5139 = vpop.f32.mrf.mxu0
        %v5140 = vadd.f32 0.0, %v5139
        %5141 = vmatmul.bf16.gmra.mxu0 %v5103
        %v5142 = vpop.f32.mrf.mxu0
        %v5143 = vadd.f32 0.0, %v5142
        %v5144 = vpop.f32.mrf.mxu0
        %v5145 = vadd.f32 0.0, %v5144
        %5146 = vmatmul.bf16.gmra.mxu0 %v5106
        %v5147 = vpop.f32.mrf.mxu0
        %v5148 = vadd.f32 0.0, %v5147
        %v5149 = vpop.f32.mrf.mxu0
        %v5150 = vadd.f32 0.0, %v5149
        %5151 = vmatmul.bf16.gmra.mxu0 %v5109
        %v5152 = vpop.f32.mrf.mxu0
        %v5153 = vadd.f32 0.0, %v5152
        %v5154 = vpop.f32.mrf.mxu0
        %v5155 = vadd.f32 0.0, %v5154
        %5156 = vmatmul.bf16.gmra.mxu0 %v5112
        %v5157 = vpop.f32.mrf.mxu0
        %v5158 = vadd.f32 0.0, %v5157
        %v5159 = vpop.f32.mrf.mxu0
        %v5160 = vadd.f32 0.0, %v5159
        %5161 = vmatmul.bf16.gmra.mxu0 %v5115
        %v5162 = vpop.f32.mrf.mxu0
        %v5163 = vadd.f32 0.0, %v5162
        %v5164 = vpop.f32.mrf.mxu0
        %v5165 = vadd.f32 0.0, %v5164
        %5166 = vmatmul.bf16.gmra.mxu0 %v5118
        %v5167 = vpop.f32.mrf.mxu0
        %v5168 = vadd.f32 0.0, %v5167
        %v5169 = vpop.f32.mrf.mxu0
        %v5170 = vadd.f32 0.0, %v5169
        %5171 = vdwg.mxu0
        %5172 = vst [vmem:[#allocation3] sm:$0xff] %v5133
        %5173 = vst [vmem:[#allocation3 + $0x8] sm:$0xff] %v5135
        %5174 = vst [vmem:[#allocation3 + $0x10] sm:$0xff] %v5138
        %5175 = vst [vmem:[#allocation3 + $0x18] sm:$0xff] %v5140
        %5176 = vst [vmem:[#allocation3 + $0x20] sm:$0xff] %v5143
        %5177 = vst [vmem:[#allocation3 + $0x28] sm:$0xff] %v5145
        %5178 = vst [vmem:[#allocation3 + $0x30] sm:$0xff] %v5148
        %5179 = vst [vmem:[#allocation3 + $0x38] sm:$0xff] %v5150
        %5180 = vst [vmem:[#allocation3 + $0x40] sm:$0xff] %v5153
        %5181 = vst [vmem:[#allocation3 + $0x48] sm:$0xff] %v5155
        %5182 = vst [vmem:[#allocation3 + $0x50] sm:$0xff] %v5158
        %5183 = vst [vmem:[#allocation3 + $0x58] sm:$0xff] %v5160
        %5184 = vst [vmem:[#allocation3 + $0x60] sm:$0xff] %v5163
        %5185 = vst [vmem:[#allocation3 + $0x68] sm:$0xff] %v5165
        %5186 = vst [vmem:[#allocation3 + $0x70] sm:$0xff] %v5168
        %5187 = vst [vmem:[#allocation3 + $0x78] sm:$0xff] %v5170
        %v5212 = vrot.slane %v4942, 7
        %v5213 = vrot.slane %v5212, 4
        %v5214 = vrot.slane %v4943, 7
        %v5215 = vsel %vm1834, %v5213, %v5214
        %v5216 = vrot.slane %v5214, 4
        %v5217 = vrot.slane %v4944, 7
        %v5218 = vsel %vm1834, %v5216, %v5217
        %v5219 = vrot.slane %v4945, 7
        %v5220 = vrot.slane %v5219, 4
        %v5221 = vrot.slane %v4946, 7
        %v5222 = vsel %vm1834, %v5220, %v5221
        %v5223 = vrot.slane %v5221, 4
        %v5224 = vrot.slane %v4947, 7
        %v5225 = vsel %vm1834, %v5223, %v5224
        %v5226 = vrot.slane %v4948, 7
        %v5227 = vrot.slane %v5226, 4
        %v5228 = vrot.slane %v4949, 7
        %v5229 = vsel %vm1834, %v5227, %v5228
        %v5230 = vrot.slane %v5228, 4
        %v5231 = vrot.slane %v4950, 7
        %v5232 = vsel %vm1834, %v5230, %v5231
        %v5233 = vrot.slane %v4951, 7
        %v5234 = vrot.slane %v5233, 4
        %v5235 = vrot.slane %v4952, 7
        %v5236 = vsel %vm1834, %v5234, %v5235
        %v5237 = vrot.slane %v5235, 4
        %v5238 = vrot.slane %v4953, 7
        %v5239 = vsel %vm1834, %v5237, %v5238
        %v5240 = vrot.slane %v4954, 7
        %v5241 = vrot.slane %v5240, 4
        %v5242 = vrot.slane %v4955, 7
        %v5243 = vsel %vm1834, %v5241, %v5242
        %v5244 = vrot.slane %v5242, 4
        %v5245 = vrot.slane %v4956, 7
        %v5246 = vsel %vm1834, %v5244, %v5245
        %v5247 = vrot.slane %v4957, 7
        %v5248 = vrot.slane %v5247, 4
        %v5249 = vrot.slane %v4958, 7
        %v5250 = vsel %vm1834, %v5248, %v5249
        %v5251 = vrot.slane %v5249, 4
        %v5252 = vrot.slane %v4959, 7
        %v5253 = vsel %vm1834, %v5251, %v5252
        %v5254 = vrot.slane %v4960, 7
        %v5255 = vrot.slane %v5254, 4
        %v5256 = vrot.slane %v4961, 7
        %v5257 = vsel %vm1834, %v5255, %v5256
        %v5258 = vrot.slane %v5256, 4
        %v5259 = vrot.slane %v4962, 7
        %v5260 = vsel %vm1834, %v5258, %v5259
        %v5261 = vrot.slane %v4963, 7
        %v5262 = vrot.slane %v5261, 4
        %v5263 = vrot.slane %v4964, 7
        %v5264 = vsel %vm1834, %v5262, %v5263
        %v5265 = vrot.slane %v5263, 4
        %v5266 = vrot.slane %v4965, 7
        %v5267 = vsel %vm1834, %v5265, %v5266
        %s5268 = scalar_lea.vmem %s2, 42
        %v5269 = vld [vmem:[%s5268] sm:$0x3]
        %v5270 = vunpack.c.l.b16 %v5215
        %v5271 = vunpack.c.l.b16 %v5218
        %v5272 = vunpack.c.l.b16 %v5222
        %v5273 = vunpack.c.l.b16 %v5225
        %v5274 = vunpack.c.l.b16 %v5229
        %v5275 = vunpack.c.l.b16 %v5232
        %v5276 = vunpack.c.l.b16 %v5236
        %v5277 = vunpack.c.l.b16 %v5239
        %v5278 = vunpack.c.l.b16 %v5243
        %v5279 = vunpack.c.l.b16 %v5246
        %v5280 = vunpack.c.l.b16 %v5250
        %v5281 = vunpack.c.l.b16 %v5253
        %v5282 = vunpack.c.l.b16 %v5257
        %v5283 = vunpack.c.l.b16 %v5260
        %v5284 = vunpack.c.l.b16 %v5264
        %v5285 = vunpack.c.l.b16 %v5267
        %v5286 = vpack.c.b16 %v5271, %v5270
        %v5287 = vpack.c.b16 %v5273, %v5272
        %v5288 = vpack.c.b16 %v5275, %v5274
        %v5289 = vpack.c.b16 %v5277, %v5276
        %v5290 = vpack.c.b16 %v5279, %v5278
        %v5291 = vpack.c.b16 %v5281, %v5280
        %v5292 = vpack.c.b16 %v5283, %v5282
        %v5293 = vpack.c.b16 %v5285, %v5284
        %v5295 = vsel %vm354, %v5286, 0
        %v5298 = vsel %vm354, %v5287, 0
        %v5301 = vsel %vm354, %v5288, 0
        %v5304 = vsel %vm354, %v5289, 0
        %v5307 = vsel %vm354, %v5290, 0
        %v5310 = vsel %vm354, %v5291, 0
        %v5313 = vsel %vm354, %v5292, 0
        %v5316 = vsel %vm354, %v5293, 0
        %v5319 = vsel %vm379, %v5269, 0
        %5321 = vmatpush.bf16.msra.mxu0 0
        %5322 = vmatpush.bf16.msra.mxu0 0
        %5323 = vmatpush.bf16.msra.mxu0 0
        %5324 = vmatpush.bf16.msra.mxu0 0
        %5325 = vmatpush.bf16.msra.mxu0 0
        %5326 = vmatpush.bf16.msra.mxu0 0
        %5327 = vmatpush.bf16.msra.mxu0 0
        %5328 = vmatpush.bf16.msra.mxu0 %v5319
        %5329 = vmatmul.bf16.gmra.mxu0 %v5295
        %v5330 = vpop.f32.mrf.mxu0
        %v5331 = vadd.f32 0.0, %v5330
        %v5332 = vpop.f32.mrf.mxu0
        %v5333 = vadd.f32 0.0, %v5332
        %5334 = vmatmul.bf16.gmra.mxu0 %v5298
        %v5335 = vpop.f32.mrf.mxu0
        %v5336 = vadd.f32 0.0, %v5335
        %v5337 = vpop.f32.mrf.mxu0
        %v5338 = vadd.f32 0.0, %v5337
        %5339 = vmatmul.bf16.gmra.mxu0 %v5301
        %v5340 = vpop.f32.mrf.mxu0
        %v5341 = vadd.f32 0.0, %v5340
        %v5342 = vpop.f32.mrf.mxu0
        %v5343 = vadd.f32 0.0, %v5342
        %5344 = vmatmul.bf16.gmra.mxu0 %v5304
        %v5345 = vpop.f32.mrf.mxu0
        %v5346 = vadd.f32 0.0, %v5345
        %v5347 = vpop.f32.mrf.mxu0
        %v5348 = vadd.f32 0.0, %v5347
        %5349 = vmatmul.bf16.gmra.mxu0 %v5307
        %v5350 = vpop.f32.mrf.mxu0
        %v5351 = vadd.f32 0.0, %v5350
        %v5352 = vpop.f32.mrf.mxu0
        %v5353 = vadd.f32 0.0, %v5352
        %5354 = vmatmul.bf16.gmra.mxu0 %v5310
        %v5355 = vpop.f32.mrf.mxu0
        %v5356 = vadd.f32 0.0, %v5355
        %v5357 = vpop.f32.mrf.mxu0
        %v5358 = vadd.f32 0.0, %v5357
        %5359 = vmatmul.bf16.gmra.mxu0 %v5313
        %v5360 = vpop.f32.mrf.mxu0
        %v5361 = vadd.f32 0.0, %v5360
        %v5362 = vpop.f32.mrf.mxu0
        %v5363 = vadd.f32 0.0, %v5362
        %5364 = vmatmul.bf16.gmra.mxu0 %v5316
        %v5365 = vpop.f32.mrf.mxu0
        %v5366 = vadd.f32 0.0, %v5365
        %v5367 = vpop.f32.mrf.mxu0
        %v5368 = vadd.f32 0.0, %v5367
        %5369 = vdwg.mxu0
        %v5370 = vld [vmem:[#allocation3] sm:$0xff]
        %v5371 = vld [vmem:[#allocation3 + $0x8] sm:$0xff]
        %v5372 = vld [vmem:[#allocation3 + $0x10] sm:$0xff]
        %v5373 = vld [vmem:[#allocation3 + $0x18] sm:$0xff]
        %v5374 = vld [vmem:[#allocation3 + $0x20] sm:$0xff]
        %v5375 = vld [vmem:[#allocation3 + $0x28] sm:$0xff]
        %v5376 = vld [vmem:[#allocation3 + $0x30] sm:$0xff]
        %v5377 = vld [vmem:[#allocation3 + $0x38] sm:$0xff]
        %v5378 = vld [vmem:[#allocation3 + $0x40] sm:$0xff]
        %v5379 = vld [vmem:[#allocation3 + $0x48] sm:$0xff]
        %v5380 = vld [vmem:[#allocation3 + $0x50] sm:$0xff]
        %v5381 = vld [vmem:[#allocation3 + $0x58] sm:$0xff]
        %v5382 = vld [vmem:[#allocation3 + $0x60] sm:$0xff]
        %v5383 = vld [vmem:[#allocation3 + $0x68] sm:$0xff]
        %v5384 = vld [vmem:[#allocation3 + $0x70] sm:$0xff]
        %v5385 = vld [vmem:[#allocation3 + $0x78] sm:$0xff]
        %v5386 = vadd.f32 %v5370, %v5331
        %v5387 = vadd.f32 %v5371, %v5333
        %v5388 = vadd.f32 %v5372, %v5336
        %v5389 = vadd.f32 %v5373, %v5338
        %v5390 = vadd.f32 %v5374, %v5341
        %v5391 = vadd.f32 %v5375, %v5343
        %v5392 = vadd.f32 %v5376, %v5346
        %v5393 = vadd.f32 %v5377, %v5348
        %v5394 = vadd.f32 %v5378, %v5351
        %v5395 = vadd.f32 %v5379, %v5353
        %v5396 = vadd.f32 %v5380, %v5356
        %v5397 = vadd.f32 %v5381, %v5358
        %v5398 = vadd.f32 %v5382, %v5361
        %v5399 = vadd.f32 %v5383, %v5363
        %v5400 = vadd.f32 %v5384, %v5366
        %v5401 = vadd.f32 %v5385, %v5368
        %5402 = vst [vmem:[#allocation3] sm:$0xff] %v5386
        %5403 = vst [vmem:[#allocation3 + $0x8] sm:$0xff] %v5387
        %5404 = vst [vmem:[#allocation3 + $0x10] sm:$0xff] %v5388
        %5405 = vst [vmem:[#allocation3 + $0x18] sm:$0xff] %v5389
        %5406 = vst [vmem:[#allocation3 + $0x20] sm:$0xff] %v5390
        %5407 = vst [vmem:[#allocation3 + $0x28] sm:$0xff] %v5391
        %5408 = vst [vmem:[#allocation3 + $0x30] sm:$0xff] %v5392
        %5409 = vst [vmem:[#allocation3 + $0x38] sm:$0xff] %v5393
        %5410 = vst [vmem:[#allocation3 + $0x40] sm:$0xff] %v5394
        %5411 = vst [vmem:[#allocation3 + $0x48] sm:$0xff] %v5395
        %5412 = vst [vmem:[#allocation3 + $0x50] sm:$0xff] %v5396
        %5413 = vst [vmem:[#allocation3 + $0x58] sm:$0xff] %v5397
        %5414 = vst [vmem:[#allocation3 + $0x60] sm:$0xff] %v5398
        %5415 = vst [vmem:[#allocation3 + $0x68] sm:$0xff] %v5399
        %5416 = vst [vmem:[#allocation3 + $0x70] sm:$0xff] %v5400
        %5417 = vst [vmem:[#allocation3 + $0x78] sm:$0xff] %v5401
        %v5442 = vrot.slane %v4966, 7
        %v5443 = vrot.slane %v5442, 4
        %v5444 = vrot.slane %v4967, 7
        %v5445 = vsel %vm1834, %v5443, %v5444
        %v5446 = vrot.slane %v5444, 4
        %v5447 = vrot.slane %v4968, 7
        %v5448 = vsel %vm1834, %v5446, %v5447
        %v5449 = vrot.slane %v4969, 7
        %v5450 = vrot.slane %v5449, 4
        %v5451 = vrot.slane %v4970, 7
        %v5452 = vsel %vm1834, %v5450, %v5451
        %v5453 = vrot.slane %v5451, 4
        %v5454 = vrot.slane %v4971, 7
        %v5455 = vsel %vm1834, %v5453, %v5454
        %v5456 = vrot.slane %v4972, 7
        %v5457 = vrot.slane %v5456, 4
        %v5458 = vrot.slane %v4973, 7
        %v5459 = vsel %vm1834, %v5457, %v5458
        %v5460 = vrot.slane %v5458, 4
        %v5461 = vrot.slane %v4974, 7
        %v5462 = vsel %vm1834, %v5460, %v5461
        %v5463 = vrot.slane %v4975, 7
        %v5464 = vrot.slane %v5463, 4
        %v5465 = vrot.slane %v4976, 7
        %v5466 = vsel %vm1834, %v5464, %v5465
        %v5467 = vrot.slane %v5465, 4
        %v5468 = vrot.slane %v4977, 7
        %v5469 = vsel %vm1834, %v5467, %v5468
        %v5470 = vrot.slane %v4978, 7
        %v5471 = vrot.slane %v5470, 4
        %v5472 = vrot.slane %v4979, 7
        %v5473 = vsel %vm1834, %v5471, %v5472
        %v5474 = vrot.slane %v5472, 4
        %v5475 = vrot.slane %v4980, 7
        %v5476 = vsel %vm1834, %v5474, %v5475
        %v5477 = vrot.slane %v4981, 7
        %v5478 = vrot.slane %v5477, 4
        %v5479 = vrot.slane %v4982, 7
        %v5480 = vsel %vm1834, %v5478, %v5479
        %v5481 = vrot.slane %v5479, 4
        %v5482 = vrot.slane %v4983, 7
        %v5483 = vsel %vm1834, %v5481, %v5482
        %v5484 = vrot.slane %v4984, 7
        %v5485 = vrot.slane %v5484, 4
        %v5486 = vrot.slane %v4985, 7
        %v5487 = vsel %vm1834, %v5485, %v5486
        %v5488 = vrot.slane %v5486, 4
        %v5489 = vrot.slane %v4986, 7
        %v5490 = vsel %vm1834, %v5488, %v5489
        %v5491 = vrot.slane %v4987, 7
        %v5492 = vrot.slane %v5491, 4
        %v5493 = vrot.slane %v4988, 7
        %v5494 = vsel %vm1834, %v5492, %v5493
        %v5495 = vrot.slane %v5493, 4
        %v5496 = vrot.slane %v4989, 7
        %v5497 = vsel %vm1834, %v5495, %v5496
        %s5498 = scalar_lea.vmem %s2, 48
        %v5499 = vld [vmem:[%s5498] sm:$0x3]
        %v5500 = vunpack.c.l.b16 %v5445
        %v5501 = vunpack.c.l.b16 %v5448
        %v5502 = vunpack.c.l.b16 %v5452
        %v5503 = vunpack.c.l.b16 %v5455
        %v5504 = vunpack.c.l.b16 %v5459
        %v5505 = vunpack.c.l.b16 %v5462
        %v5506 = vunpack.c.l.b16 %v5466
        %v5507 = vunpack.c.l.b16 %v5469
        %v5508 = vunpack.c.l.b16 %v5473
        %v5509 = vunpack.c.l.b16 %v5476
        %v5510 = vunpack.c.l.b16 %v5480
        %v5511 = vunpack.c.l.b16 %v5483
        %v5512 = vunpack.c.l.b16 %v5487
        %v5513 = vunpack.c.l.b16 %v5490
        %v5514 = vunpack.c.l.b16 %v5494
        %v5515 = vunpack.c.l.b16 %v5497
        %v5516 = vpack.c.b16 %v5501, %v5500
        %v5517 = vpack.c.b16 %v5503, %v5502
        %v5518 = vpack.c.b16 %v5505, %v5504
        %v5519 = vpack.c.b16 %v5507, %v5506
        %v5520 = vpack.c.b16 %v5509, %v5508
        %v5521 = vpack.c.b16 %v5511, %v5510
        %v5522 = vpack.c.b16 %v5513, %v5512
        %v5523 = vpack.c.b16 %v5515, %v5514
        %v5525 = vsel %vm354, %v5516, 0
        %v5528 = vsel %vm354, %v5517, 0
        %v5531 = vsel %vm354, %v5518, 0
        %v5534 = vsel %vm354, %v5519, 0
        %v5537 = vsel %vm354, %v5520, 0
        %v5540 = vsel %vm354, %v5521, 0
        %v5543 = vsel %vm354, %v5522, 0
        %v5546 = vsel %vm354, %v5523, 0
        %v5549 = vsel %vm379, %v5499, 0
        %5551 = vmatpush.bf16.msra.mxu0 0
        %5552 = vmatpush.bf16.msra.mxu0 0
        %5553 = vmatpush.bf16.msra.mxu0 0
        %5554 = vmatpush.bf16.msra.mxu0 0
        %5555 = vmatpush.bf16.msra.mxu0 0
        %5556 = vmatpush.bf16.msra.mxu0 0
        %5557 = vmatpush.bf16.msra.mxu0 0
        %5558 = vmatpush.bf16.msra.mxu0 %v5549
        %5559 = vmatmul.bf16.gmra.mxu0 %v5525
        %v5560 = vpop.f32.mrf.mxu0
        %v5561 = vadd.f32 0.0, %v5560
        %v5562 = vpop.f32.mrf.mxu0
        %v5563 = vadd.f32 0.0, %v5562
        %5564 = vmatmul.bf16.gmra.mxu0 %v5528
        %v5565 = vpop.f32.mrf.mxu0
        %v5566 = vadd.f32 0.0, %v5565
        %v5567 = vpop.f32.mrf.mxu0
        %v5568 = vadd.f32 0.0, %v5567
        %5569 = vmatmul.bf16.gmra.mxu0 %v5531
        %v5570 = vpop.f32.mrf.mxu0
        %v5571 = vadd.f32 0.0, %v5570
        %v5572 = vpop.f32.mrf.mxu0
        %v5573 = vadd.f32 0.0, %v5572
        %5574 = vmatmul.bf16.gmra.mxu0 %v5534
        %v5575 = vpop.f32.mrf.mxu0
        %v5576 = vadd.f32 0.0, %v5575
        %v5577 = vpop.f32.mrf.mxu0
        %v5578 = vadd.f32 0.0, %v5577
        %5579 = vmatmul.bf16.gmra.mxu0 %v5537
        %v5580 = vpop.f32.mrf.mxu0
        %v5581 = vadd.f32 0.0, %v5580
        %v5582 = vpop.f32.mrf.mxu0
        %v5583 = vadd.f32 0.0, %v5582
        %5584 = vmatmul.bf16.gmra.mxu0 %v5540
        %v5585 = vpop.f32.mrf.mxu0
        %v5586 = vadd.f32 0.0, %v5585
        %v5587 = vpop.f32.mrf.mxu0
        %v5588 = vadd.f32 0.0, %v5587
        %5589 = vmatmul.bf16.gmra.mxu0 %v5543
        %v5590 = vpop.f32.mrf.mxu0
        %v5591 = vadd.f32 0.0, %v5590
        %v5592 = vpop.f32.mrf.mxu0
        %v5593 = vadd.f32 0.0, %v5592
        %5594 = vmatmul.bf16.gmra.mxu0 %v5546
        %v5595 = vpop.f32.mrf.mxu0
        %v5596 = vadd.f32 0.0, %v5595
        %v5597 = vpop.f32.mrf.mxu0
        %v5598 = vadd.f32 0.0, %v5597
        %5599 = vdwg.mxu0
        %v5600 = vld [vmem:[#allocation3] sm:$0xff]
        %v5601 = vld [vmem:[#allocation3 + $0x8] sm:$0xff]
        %v5602 = vld [vmem:[#allocation3 + $0x10] sm:$0xff]
        %v5603 = vld [vmem:[#allocation3 + $0x18] sm:$0xff]
        %v5604 = vld [vmem:[#allocation3 + $0x20] sm:$0xff]
        %v5605 = vld [vmem:[#allocation3 + $0x28] sm:$0xff]
        %v5606 = vld [vmem:[#allocation3 + $0x30] sm:$0xff]
        %v5607 = vld [vmem:[#allocation3 + $0x38] sm:$0xff]
        %v5608 = vld [vmem:[#allocation3 + $0x40] sm:$0xff]
        %v5609 = vld [vmem:[#allocation3 + $0x48] sm:$0xff]
        %v5610 = vld [vmem:[#allocation3 + $0x50] sm:$0xff]
        %v5611 = vld [vmem:[#allocation3 + $0x58] sm:$0xff]
        %v5612 = vld [vmem:[#allocation3 + $0x60] sm:$0xff]
        %v5613 = vld [vmem:[#allocation3 + $0x68] sm:$0xff]
        %v5614 = vld [vmem:[#allocation3 + $0x70] sm:$0xff]
        %v5615 = vld [vmem:[#allocation3 + $0x78] sm:$0xff]
        %v5616 = vadd.f32 %v5600, %v5561
        %v5617 = vadd.f32 %v5601, %v5563
        %v5618 = vadd.f32 %v5602, %v5566
        %v5619 = vadd.f32 %v5603, %v5568
        %v5620 = vadd.f32 %v5604, %v5571
        %v5621 = vadd.f32 %v5605, %v5573
        %v5622 = vadd.f32 %v5606, %v5576
        %v5623 = vadd.f32 %v5607, %v5578
        %v5624 = vadd.f32 %v5608, %v5581
        %v5625 = vadd.f32 %v5609, %v5583
        %v5626 = vadd.f32 %v5610, %v5586
        %v5627 = vadd.f32 %v5611, %v5588
        %v5628 = vadd.f32 %v5612, %v5591
        %v5629 = vadd.f32 %v5613, %v5593
        %v5630 = vadd.f32 %v5614, %v5596
        %v5631 = vadd.f32 %v5615, %v5598
        %5632 = vst [vmem:[#allocation3] sm:$0xff] %v5616
        %5633 = vst [vmem:[#allocation3 + $0x8] sm:$0xff] %v5617
        %5634 = vst [vmem:[#allocation3 + $0x10] sm:$0xff] %v5618
        %5635 = vst [vmem:[#allocation3 + $0x18] sm:$0xff] %v5619
        %5636 = vst [vmem:[#allocation3 + $0x20] sm:$0xff] %v5620
        %5637 = vst [vmem:[#allocation3 + $0x28] sm:$0xff] %v5621
        %5638 = vst [vmem:[#allocation3 + $0x30] sm:$0xff] %v5622
        %5639 = vst [vmem:[#allocation3 + $0x38] sm:$0xff] %v5623
        %5640 = vst [vmem:[#allocation3 + $0x40] sm:$0xff] %v5624
        %5641 = vst [vmem:[#allocation3 + $0x48] sm:$0xff] %v5625
        %5642 = vst [vmem:[#allocation3 + $0x50] sm:$0xff] %v5626
        %5643 = vst [vmem:[#allocation3 + $0x58] sm:$0xff] %v5627
        %5644 = vst [vmem:[#allocation3 + $0x60] sm:$0xff] %v5628
        %5645 = vst [vmem:[#allocation3 + $0x68] sm:$0xff] %v5629
        %5646 = vst [vmem:[#allocation3 + $0x70] sm:$0xff] %v5630
        %5647 = vst [vmem:[#allocation3 + $0x78] sm:$0xff] %v5631
        %v5648 = vld [vmem:[%s4917 + $0xc] sm:$0xf]
        %v5649 = vld [vmem:[%s4917 + $0x10] sm:$0xf]
        %v5650 = vld [vmem:[%s4917 + $0x2c] sm:$0xf]
        %v5651 = vld [vmem:[%s4917 + $0x30] sm:$0xf]
        %v5652 = vld [vmem:[%s4917 + $0x4c] sm:$0xf]
        %v5653 = vld [vmem:[%s4917 + $0x50] sm:$0xf]
        %v5654 = vld [vmem:[%s4917 + $0x6c] sm:$0xf]
        %v5655 = vld [vmem:[%s4917 + $0x70] sm:$0xf]
        %v5656 = vld [vmem:[%s4917 + $0x8c] sm:$0xf]
        %v5657 = vld [vmem:[%s4917 + $0x90] sm:$0xf]
        %v5658 = vld [vmem:[%s4917 + $0xac] sm:$0xf]
        %v5659 = vld [vmem:[%s4917 + $0xb0] sm:$0xf]
        %v5660 = vld [vmem:[%s4917 + $0xcc] sm:$0xf]
        %v5661 = vld [vmem:[%s4917 + $0xd0] sm:$0xf]
        %v5662 = vld [vmem:[%s4917 + $0xec] sm:$0xf]
        %v5663 = vld [vmem:[%s4917 + $0xf0] sm:$0xf]
        %v5664 = vld [vmem:[%s4917 + $0x24c] sm:$0xf]
        %v5665 = vld [vmem:[%s4917 + $0x250] sm:$0xf]
        %v5666 = vld [vmem:[%s4917 + $0x26c] sm:$0xf]
        %v5667 = vld [vmem:[%s4917 + $0x270] sm:$0xf]
        %v5668 = vld [vmem:[%s4917 + $0x28c] sm:$0xf]
        %v5669 = vld [vmem:[%s4917 + $0x290] sm:$0xf]
        %v5670 = vld [vmem:[%s4917 + $0x2ac] sm:$0xf]
        %v5671 = vld [vmem:[%s4917 + $0x2b0] sm:$0xf]
        %v5672 = vld [vmem:[%s4917 + $0x2cc] sm:$0xf]
        %v5673 = vld [vmem:[%s4917 + $0x2d0] sm:$0xf]
        %v5674 = vld [vmem:[%s4917 + $0x2ec] sm:$0xf]
        %v5675 = vld [vmem:[%s4917 + $0x2f0] sm:$0xf]
        %v5676 = vld [vmem:[%s4917 + $0x30c] sm:$0xf]
        %v5677 = vld [vmem:[%s4917 + $0x310] sm:$0xf]
        %v5678 = vld [vmem:[%s4917 + $0x32c] sm:$0xf]
        %v5679 = vld [vmem:[%s4917 + $0x330] sm:$0xf]
        %v5680 = vld [vmem:[%s4917 + $0x48c] sm:$0xf]
        %v5681 = vld [vmem:[%s4917 + $0x490] sm:$0xf]
        %v5682 = vld [vmem:[%s4917 + $0x4ac] sm:$0xf]
        %v5683 = vld [vmem:[%s4917 + $0x4b0] sm:$0xf]
        %v5684 = vld [vmem:[%s4917 + $0x4cc] sm:$0xf]
        %v5685 = vld [vmem:[%s4917 + $0x4d0] sm:$0xf]
        %v5686 = vld [vmem:[%s4917 + $0x4ec] sm:$0xf]
        %v5687 = vld [vmem:[%s4917 + $0x4f0] sm:$0xf]
        %v5688 = vld [vmem:[%s4917 + $0x50c] sm:$0xf]
        %v5689 = vld [vmem:[%s4917 + $0x510] sm:$0xf]
        %v5690 = vld [vmem:[%s4917 + $0x52c] sm:$0xf]
        %v5691 = vld [vmem:[%s4917 + $0x530] sm:$0xf]
        %v5692 = vld [vmem:[%s4917 + $0x54c] sm:$0xf]
        %v5693 = vld [vmem:[%s4917 + $0x550] sm:$0xf]
        %v5694 = vld [vmem:[%s4917 + $0x56c] sm:$0xf]
        %v5695 = vld [vmem:[%s4917 + $0x570] sm:$0xf]
        %s5696 = scalar_lea.vmem %s2, 38
        %v5697 = vld [vmem:[%s5696] sm:$0x3]
        %v5714 = vunpack.c.l.b16 %v5648
        %v5715 = vunpack.c.l.b16 %v5649
        %v5716 = vunpack.c.l.b16 %v5650
        %v5717 = vunpack.c.l.b16 %v5651
        %v5718 = vunpack.c.l.b16 %v5652
        %v5719 = vunpack.c.l.b16 %v5653
        %v5720 = vunpack.c.l.b16 %v5654
        %v5721 = vunpack.c.l.b16 %v5655
        %v5722 = vunpack.c.l.b16 %v5656
        %v5723 = vunpack.c.l.b16 %v5657
        %v5724 = vunpack.c.l.b16 %v5658
        %v5725 = vunpack.c.l.b16 %v5659
        %v5726 = vunpack.c.l.b16 %v5660
        %v5727 = vunpack.c.l.b16 %v5661
        %v5728 = vunpack.c.l.b16 %v5662
        %v5729 = vunpack.c.l.b16 %v5663
        %v5730 = vpack.c.b16 %v5715, %v5714
        %v5731 = vpack.c.b16 %v5717, %v5716
        %v5732 = vpack.c.b16 %v5719, %v5718
        %v5733 = vpack.c.b16 %v5721, %v5720
        %v5734 = vpack.c.b16 %v5723, %v5722
        %v5735 = vpack.c.b16 %v5725, %v5724
        %v5736 = vpack.c.b16 %v5727, %v5726
        %v5737 = vpack.c.b16 %v5729, %v5728
        %v5739 = vsel %vm354, %v5730, 0
        %v5742 = vsel %vm354, %v5731, 0
        %v5745 = vsel %vm354, %v5732, 0
        %v5748 = vsel %vm354, %v5733, 0
        %v5751 = vsel %vm354, %v5734, 0
        %v5754 = vsel %vm354, %v5735, 0
        %v5757 = vsel %vm354, %v5736, 0
        %v5760 = vsel %vm354, %v5737, 0
        %v5763 = vsel %vm379, %v5697, 0
        %5765 = vmatpush.bf16.msra.mxu0 0
        %5766 = vmatpush.bf16.msra.mxu0 0
        %5767 = vmatpush.bf16.msra.mxu0 0
        %5768 = vmatpush.bf16.msra.mxu0 0
        %5769 = vmatpush.bf16.msra.mxu0 0
        %5770 = vmatpush.bf16.msra.mxu0 0
        %5771 = vmatpush.bf16.msra.mxu0 0
        %5772 = vmatpush.bf16.msra.mxu0 %v5763
        %5773 = vmatmul.bf16.gmra.mxu0 %v5739
        %v5774 = vpop.f32.mrf.mxu0
        %v5775 = vadd.f32 0.0, %v5774
        %v5776 = vpop.f32.mrf.mxu0
        %v5777 = vadd.f32 0.0, %v5776
        %5778 = vmatmul.bf16.gmra.mxu0 %v5742
        %v5779 = vpop.f32.mrf.mxu0
        %v5780 = vadd.f32 0.0, %v5779
        %v5781 = vpop.f32.mrf.mxu0
        %v5782 = vadd.f32 0.0, %v5781
        %5783 = vmatmul.bf16.gmra.mxu0 %v5745
        %v5784 = vpop.f32.mrf.mxu0
        %v5785 = vadd.f32 0.0, %v5784
        %v5786 = vpop.f32.mrf.mxu0
        %v5787 = vadd.f32 0.0, %v5786
        %5788 = vmatmul.bf16.gmra.mxu0 %v5748
        %v5789 = vpop.f32.mrf.mxu0
        %v5790 = vadd.f32 0.0, %v5789
        %v5791 = vpop.f32.mrf.mxu0
        %v5792 = vadd.f32 0.0, %v5791
        %5793 = vmatmul.bf16.gmra.mxu0 %v5751
        %v5794 = vpop.f32.mrf.mxu0
        %v5795 = vadd.f32 0.0, %v5794
        %v5796 = vpop.f32.mrf.mxu0
        %v5797 = vadd.f32 0.0, %v5796
        %5798 = vmatmul.bf16.gmra.mxu0 %v5754
        %v5799 = vpop.f32.mrf.mxu0
        %v5800 = vadd.f32 0.0, %v5799
        %v5801 = vpop.f32.mrf.mxu0
        %v5802 = vadd.f32 0.0, %v5801
        %5803 = vmatmul.bf16.gmra.mxu0 %v5757
        %v5804 = vpop.f32.mrf.mxu0
        %v5805 = vadd.f32 0.0, %v5804
        %v5806 = vpop.f32.mrf.mxu0
        %v5807 = vadd.f32 0.0, %v5806
        %5808 = vmatmul.bf16.gmra.mxu0 %v5760
        %v5809 = vpop.f32.mrf.mxu0
        %v5810 = vadd.f32 0.0, %v5809
        %v5811 = vpop.f32.mrf.mxu0
        %v5812 = vadd.f32 0.0, %v5811
        %5813 = vdwg.mxu0
        %v5814 = vld [vmem:[#allocation3] sm:$0xff]
        %v5815 = vld [vmem:[#allocation3 + $0x8] sm:$0xff]
        %v5816 = vld [vmem:[#allocation3 + $0x10] sm:$0xff]
        %v5817 = vld [vmem:[#allocation3 + $0x18] sm:$0xff]
        %v5818 = vld [vmem:[#allocation3 + $0x20] sm:$0xff]
        %v5819 = vld [vmem:[#allocation3 + $0x28] sm:$0xff]
        %v5820 = vld [vmem:[#allocation3 + $0x30] sm:$0xff]
        %v5821 = vld [vmem:[#allocation3 + $0x38] sm:$0xff]
        %v5822 = vld [vmem:[#allocation3 + $0x40] sm:$0xff]
        %v5823 = vld [vmem:[#allocation3 + $0x48] sm:$0xff]
        %v5824 = vld [vmem:[#allocation3 + $0x50] sm:$0xff]
        %v5825 = vld [vmem:[#allocation3 + $0x58] sm:$0xff]
        %v5826 = vld [vmem:[#allocation3 + $0x60] sm:$0xff]
        %v5827 = vld [vmem:[#allocation3 + $0x68] sm:$0xff]
        %v5828 = vld [vmem:[#allocation3 + $0x70] sm:$0xff]
        %v5829 = vld [vmem:[#allocation3 + $0x78] sm:$0xff]
        %v5830 = vadd.f32 %v5814, %v5775
        %v5831 = vadd.f32 %v5815, %v5777
        %v5832 = vadd.f32 %v5816, %v5780
        %v5833 = vadd.f32 %v5817, %v5782
        %v5834 = vadd.f32 %v5818, %v5785
        %v5835 = vadd.f32 %v5819, %v5787
        %v5836 = vadd.f32 %v5820, %v5790
        %v5837 = vadd.f32 %v5821, %v5792
        %v5838 = vadd.f32 %v5822, %v5795
        %v5839 = vadd.f32 %v5823, %v5797
        %v5840 = vadd.f32 %v5824, %v5800
        %v5841 = vadd.f32 %v5825, %v5802
        %v5842 = vadd.f32 %v5826, %v5805
        %v5843 = vadd.f32 %v5827, %v5807
        %v5844 = vadd.f32 %v5828, %v5810
        %v5845 = vadd.f32 %v5829, %v5812
        %5846 = vst [vmem:[#allocation3] sm:$0xff] %v5830
        %5847 = vst [vmem:[#allocation3 + $0x8] sm:$0xff] %v5831
        %5848 = vst [vmem:[#allocation3 + $0x10] sm:$0xff] %v5832
        %5849 = vst [vmem:[#allocation3 + $0x18] sm:$0xff] %v5833
        %5850 = vst [vmem:[#allocation3 + $0x20] sm:$0xff] %v5834
        %5851 = vst [vmem:[#allocation3 + $0x28] sm:$0xff] %v5835
        %5852 = vst [vmem:[#allocation3 + $0x30] sm:$0xff] %v5836
        %5853 = vst [vmem:[#allocation3 + $0x38] sm:$0xff] %v5837
        %5854 = vst [vmem:[#allocation3 + $0x40] sm:$0xff] %v5838
        %5855 = vst [vmem:[#allocation3 + $0x48] sm:$0xff] %v5839
        %5856 = vst [vmem:[#allocation3 + $0x50] sm:$0xff] %v5840
        %5857 = vst [vmem:[#allocation3 + $0x58] sm:$0xff] %v5841
        %5858 = vst [vmem:[#allocation3 + $0x60] sm:$0xff] %v5842
        %5859 = vst [vmem:[#allocation3 + $0x68] sm:$0xff] %v5843
        %5860 = vst [vmem:[#allocation3 + $0x70] sm:$0xff] %v5844
        %5861 = vst [vmem:[#allocation3 + $0x78] sm:$0xff] %v5845
        %s5862 = scalar_lea.vmem %s2, 44
        %v5863 = vld [vmem:[%s5862] sm:$0x3]
        %v5880 = vunpack.c.l.b16 %v5664
        %v5881 = vunpack.c.l.b16 %v5665
        %v5882 = vunpack.c.l.b16 %v5666
        %v5883 = vunpack.c.l.b16 %v5667
        %v5884 = vunpack.c.l.b16 %v5668
        %v5885 = vunpack.c.l.b16 %v5669
        %v5886 = vunpack.c.l.b16 %v5670
        %v5887 = vunpack.c.l.b16 %v5671
        %v5888 = vunpack.c.l.b16 %v5672
        %v5889 = vunpack.c.l.b16 %v5673
        %v5890 = vunpack.c.l.b16 %v5674
        %v5891 = vunpack.c.l.b16 %v5675
        %v5892 = vunpack.c.l.b16 %v5676
        %v5893 = vunpack.c.l.b16 %v5677
        %v5894 = vunpack.c.l.b16 %v5678
        %v5895 = vunpack.c.l.b16 %v5679
        %v5896 = vpack.c.b16 %v5881, %v5880
        %v5897 = vpack.c.b16 %v5883, %v5882
        %v5898 = vpack.c.b16 %v5885, %v5884
        %v5899 = vpack.c.b16 %v5887, %v5886
        %v5900 = vpack.c.b16 %v5889, %v5888
        %v5901 = vpack.c.b16 %v5891, %v5890
        %v5902 = vpack.c.b16 %v5893, %v5892
        %v5903 = vpack.c.b16 %v5895, %v5894
        %v5905 = vsel %vm354, %v5896, 0
        %v5908 = vsel %vm354, %v5897, 0
        %v5911 = vsel %vm354, %v5898, 0
        %v5914 = vsel %vm354, %v5899, 0
        %v5917 = vsel %vm354, %v5900, 0
        %v5920 = vsel %vm354, %v5901, 0
        %v5923 = vsel %vm354, %v5902, 0
        %v5926 = vsel %vm354, %v5903, 0
        %v5929 = vsel %vm379, %v5863, 0
        %5931 = vmatpush.bf16.msra.mxu0 0
        %5932 = vmatpush.bf16.msra.mxu0 0
        %5933 = vmatpush.bf16.msra.mxu0 0
        %5934 = vmatpush.bf16.msra.mxu0 0
        %5935 = vmatpush.bf16.msra.mxu0 0
        %5936 = vmatpush.bf16.msra.mxu0 0
        %5937 = vmatpush.bf16.msra.mxu0 0
        %5938 = vmatpush.bf16.msra.mxu0 %v5929
        %5939 = vmatmul.bf16.gmra.mxu0 %v5905
        %v5940 = vpop.f32.mrf.mxu0
        %v5941 = vadd.f32 0.0, %v5940
        %v5942 = vpop.f32.mrf.mxu0
        %v5943 = vadd.f32 0.0, %v5942
        %5944 = vmatmul.bf16.gmra.mxu0 %v5908
        %v5945 = vpop.f32.mrf.mxu0
        %v5946 = vadd.f32 0.0, %v5945
        %v5947 = vpop.f32.mrf.mxu0
        %v5948 = vadd.f32 0.0, %v5947
        %5949 = vmatmul.bf16.gmra.mxu0 %v5911
        %v5950 = vpop.f32.mrf.mxu0
        %v5951 = vadd.f32 0.0, %v5950
        %v5952 = vpop.f32.mrf.mxu0
        %v5953 = vadd.f32 0.0, %v5952
        %5954 = vmatmul.bf16.gmra.mxu0 %v5914
        %v5955 = vpop.f32.mrf.mxu0
        %v5956 = vadd.f32 0.0, %v5955
        %v5957 = vpop.f32.mrf.mxu0
        %v5958 = vadd.f32 0.0, %v5957
        %5959 = vmatmul.bf16.gmra.mxu0 %v5917
        %v5960 = vpop.f32.mrf.mxu0
        %v5961 = vadd.f32 0.0, %v5960
        %v5962 = vpop.f32.mrf.mxu0
        %v5963 = vadd.f32 0.0, %v5962
        %5964 = vmatmul.bf16.gmra.mxu0 %v5920
        %v5965 = vpop.f32.mrf.mxu0
        %v5966 = vadd.f32 0.0, %v5965
        %v5967 = vpop.f32.mrf.mxu0
        %v5968 = vadd.f32 0.0, %v5967
        %5969 = vmatmul.bf16.gmra.mxu0 %v5923
        %v5970 = vpop.f32.mrf.mxu0
        %v5971 = vadd.f32 0.0, %v5970
        %v5972 = vpop.f32.mrf.mxu0
        %v5973 = vadd.f32 0.0, %v5972
        %5974 = vmatmul.bf16.gmra.mxu0 %v5926
        %v5975 = vpop.f32.mrf.mxu0
        %v5976 = vadd.f32 0.0, %v5975
        %v5977 = vpop.f32.mrf.mxu0
        %v5978 = vadd.f32 0.0, %v5977
        %5979 = vdwg.mxu0
        %v5980 = vld [vmem:[#allocation3] sm:$0xff]
        %v5981 = vld [vmem:[#allocation3 + $0x8] sm:$0xff]
        %v5982 = vld [vmem:[#allocation3 + $0x10] sm:$0xff]
        %v5983 = vld [vmem:[#allocation3 + $0x18] sm:$0xff]
        %v5984 = vld [vmem:[#allocation3 + $0x20] sm:$0xff]
        %v5985 = vld [vmem:[#allocation3 + $0x28] sm:$0xff]
        %v5986 = vld [vmem:[#allocation3 + $0x30] sm:$0xff]
        %v5987 = vld [vmem:[#allocation3 + $0x38] sm:$0xff]
        %v5988 = vld [vmem:[#allocation3 + $0x40] sm:$0xff]
        %v5989 = vld [vmem:[#allocation3 + $0x48] sm:$0xff]
        %v5990 = vld [vmem:[#allocation3 + $0x50] sm:$0xff]
        %v5991 = vld [vmem:[#allocation3 + $0x58] sm:$0xff]
        %v5992 = vld [vmem:[#allocation3 + $0x60] sm:$0xff]
        %v5993 = vld [vmem:[#allocation3 + $0x68] sm:$0xff]
        %v5994 = vld [vmem:[#allocation3 + $0x70] sm:$0xff]
        %v5995 = vld [vmem:[#allocation3 + $0x78] sm:$0xff]
        %v5996 = vadd.f32 %v5980, %v5941
        %v5997 = vadd.f32 %v5981, %v5943
        %v5998 = vadd.f32 %v5982, %v5946
        %v5999 = vadd.f32 %v5983, %v5948
        %v6000 = vadd.f32 %v5984, %v5951
        %v6001 = vadd.f32 %v5985, %v5953
        %v6002 = vadd.f32 %v5986, %v5956
        %v6003 = vadd.f32 %v5987, %v5958
        %v6004 = vadd.f32 %v5988, %v5961
        %v6005 = vadd.f32 %v5989, %v5963
        %v6006 = vadd.f32 %v5990, %v5966
        %v6007 = vadd.f32 %v5991, %v5968
        %v6008 = vadd.f32 %v5992, %v5971
        %v6009 = vadd.f32 %v5993, %v5973
        %v6010 = vadd.f32 %v5994, %v5976
        %v6011 = vadd.f32 %v5995, %v5978
        %6012 = vst [vmem:[#allocation3] sm:$0xff] %v5996
        %6013 = vst [vmem:[#allocation3 + $0x8] sm:$0xff] %v5997
        %6014 = vst [vmem:[#allocation3 + $0x10] sm:$0xff] %v5998
        %6015 = vst [vmem:[#allocation3 + $0x18] sm:$0xff] %v5999
        %6016 = vst [vmem:[#allocation3 + $0x20] sm:$0xff] %v6000
        %6017 = vst [vmem:[#allocation3 + $0x28] sm:$0xff] %v6001
        %6018 = vst [vmem:[#allocation3 + $0x30] sm:$0xff] %v6002
        %6019 = vst [vmem:[#allocation3 + $0x38] sm:$0xff] %v6003
        %6020 = vst [vmem:[#allocation3 + $0x40] sm:$0xff] %v6004
        %6021 = vst [vmem:[#allocation3 + $0x48] sm:$0xff] %v6005
        %6022 = vst [vmem:[#allocation3 + $0x50] sm:$0xff] %v6006
        %6023 = vst [vmem:[#allocation3 + $0x58] sm:$0xff] %v6007
        %6024 = vst [vmem:[#allocation3 + $0x60] sm:$0xff] %v6008
        %6025 = vst [vmem:[#allocation3 + $0x68] sm:$0xff] %v6009
        %6026 = vst [vmem:[#allocation3 + $0x70] sm:$0xff] %v6010
        %6027 = vst [vmem:[#allocation3 + $0x78] sm:$0xff] %v6011
        %s6028 = scalar_lea.vmem %s2, 50
        %v6029 = vld [vmem:[%s6028] sm:$0x3]
        %v6046 = vunpack.c.l.b16 %v5680
        %v6047 = vunpack.c.l.b16 %v5681
        %v6048 = vunpack.c.l.b16 %v5682
        %v6049 = vunpack.c.l.b16 %v5683
        %v6050 = vunpack.c.l.b16 %v5684
        %v6051 = vunpack.c.l.b16 %v5685
        %v6052 = vunpack.c.l.b16 %v5686
        %v6053 = vunpack.c.l.b16 %v5687
        %v6054 = vunpack.c.l.b16 %v5688
        %v6055 = vunpack.c.l.b16 %v5689
        %v6056 = vunpack.c.l.b16 %v5690
        %v6057 = vunpack.c.l.b16 %v5691
        %v6058 = vunpack.c.l.b16 %v5692
        %v6059 = vunpack.c.l.b16 %v5693
        %v6060 = vunpack.c.l.b16 %v5694
        %v6061 = vunpack.c.l.b16 %v5695
        %v6062 = vpack.c.b16 %v6047, %v6046
        %v6063 = vpack.c.b16 %v6049, %v6048
        %v6064 = vpack.c.b16 %v6051, %v6050
        %v6065 = vpack.c.b16 %v6053, %v6052
        %v6066 = vpack.c.b16 %v6055, %v6054
        %v6067 = vpack.c.b16 %v6057, %v6056
        %v6068 = vpack.c.b16 %v6059, %v6058
        %v6069 = vpack.c.b16 %v6061, %v6060
        %v6071 = vsel %vm354, %v6062, 0
        %v6074 = vsel %vm354, %v6063, 0
        %v6077 = vsel %vm354, %v6064, 0
        %v6080 = vsel %vm354, %v6065, 0
        %v6083 = vsel %vm354, %v6066, 0
        %v6086 = vsel %vm354, %v6067, 0
        %v6089 = vsel %vm354, %v6068, 0
        %v6092 = vsel %vm354, %v6069, 0
        %v6095 = vsel %vm379, %v6029, 0
        %6097 = vmatpush.bf16.msra.mxu0 0
        %6098 = vmatpush.bf16.msra.mxu0 0
        %6099 = vmatpush.bf16.msra.mxu0 0
        %6100 = vmatpush.bf16.msra.mxu0 0
        %6101 = vmatpush.bf16.msra.mxu0 0
        %6102 = vmatpush.bf16.msra.mxu0 0
        %6103 = vmatpush.bf16.msra.mxu0 0
        %6104 = vmatpush.bf16.msra.mxu0 %v6095
        %6105 = vmatmul.bf16.gmra.mxu0 %v6071
        %v6106 = vpop.f32.mrf.mxu0
        %v6107 = vadd.f32 0.0, %v6106
        %v6108 = vpop.f32.mrf.mxu0
        %v6109 = vadd.f32 0.0, %v6108
        %6110 = vmatmul.bf16.gmra.mxu0 %v6074
        %v6111 = vpop.f32.mrf.mxu0
        %v6112 = vadd.f32 0.0, %v6111
        %v6113 = vpop.f32.mrf.mxu0
        %v6114 = vadd.f32 0.0, %v6113
        %6115 = vmatmul.bf16.gmra.mxu0 %v6077
        %v6116 = vpop.f32.mrf.mxu0
        %v6117 = vadd.f32 0.0, %v6116
        %v6118 = vpop.f32.mrf.mxu0
        %v6119 = vadd.f32 0.0, %v6118
        %6120 = vmatmul.bf16.gmra.mxu0 %v6080
        %v6121 = vpop.f32.mrf.mxu0
        %v6122 = vadd.f32 0.0, %v6121
        %v6123 = vpop.f32.mrf.mxu0
        %v6124 = vadd.f32 0.0, %v6123
        %6125 = vmatmul.bf16.gmra.mxu0 %v6083
        %v6126 = vpop.f32.mrf.mxu0
        %v6127 = vadd.f32 0.0, %v6126
        %v6128 = vpop.f32.mrf.mxu0
        %v6129 = vadd.f32 0.0, %v6128
        %6130 = vmatmul.bf16.gmra.mxu0 %v6086
        %v6131 = vpop.f32.mrf.mxu0
        %v6132 = vadd.f32 0.0, %v6131
        %v6133 = vpop.f32.mrf.mxu0
        %v6134 = vadd.f32 0.0, %v6133
        %6135 = vmatmul.bf16.gmra.mxu0 %v6089
        %v6136 = vpop.f32.mrf.mxu0
        %v6137 = vadd.f32 0.0, %v6136
        %v6138 = vpop.f32.mrf.mxu0
        %v6139 = vadd.f32 0.0, %v6138
        %6140 = vmatmul.bf16.gmra.mxu0 %v6092
        %v6141 = vpop.f32.mrf.mxu0
        %v6142 = vadd.f32 0.0, %v6141
        %v6143 = vpop.f32.mrf.mxu0
        %v6144 = vadd.f32 0.0, %v6143
        %6145 = vdwg.mxu0
        %v6146 = vld [vmem:[#allocation3] sm:$0xff]
        %v6147 = vld [vmem:[#allocation3 + $0x8] sm:$0xff]
        %v6148 = vld [vmem:[#allocation3 + $0x10] sm:$0xff]
        %v6149 = vld [vmem:[#allocation3 + $0x18] sm:$0xff]
        %v6150 = vld [vmem:[#allocation3 + $0x20] sm:$0xff]
        %v6151 = vld [vmem:[#allocation3 + $0x28] sm:$0xff]
        %v6152 = vld [vmem:[#allocation3 + $0x30] sm:$0xff]
        %v6153 = vld [vmem:[#allocation3 + $0x38] sm:$0xff]
        %v6154 = vld [vmem:[#allocation3 + $0x40] sm:$0xff]
        %v6155 = vld [vmem:[#allocation3 + $0x48] sm:$0xff]
        %v6156 = vld [vmem:[#allocation3 + $0x50] sm:$0xff]
        %v6157 = vld [vmem:[#allocation3 + $0x58] sm:$0xff]
        %v6158 = vld [vmem:[#allocation3 + $0x60] sm:$0xff]
        %v6159 = vld [vmem:[#allocation3 + $0x68] sm:$0xff]
        %v6160 = vld [vmem:[#allocation3 + $0x70] sm:$0xff]
        %v6161 = vld [vmem:[#allocation3 + $0x78] sm:$0xff]
        %v6162 = vadd.f32 %v6146, %v6107
        %v6163 = vadd.f32 %v6147, %v6109
        %v6164 = vadd.f32 %v6148, %v6112
        %v6165 = vadd.f32 %v6149, %v6114
        %v6166 = vadd.f32 %v6150, %v6117
        %v6167 = vadd.f32 %v6151, %v6119
        %v6168 = vadd.f32 %v6152, %v6122
        %v6169 = vadd.f32 %v6153, %v6124
        %v6170 = vadd.f32 %v6154, %v6127
        %v6171 = vadd.f32 %v6155, %v6129
        %v6172 = vadd.f32 %v6156, %v6132
        %v6173 = vadd.f32 %v6157, %v6134
        %v6174 = vadd.f32 %v6158, %v6137
        %v6175 = vadd.f32 %v6159, %v6139
        %v6176 = vadd.f32 %v6160, %v6142
        %v6177 = vadd.f32 %v6161, %v6144
        %6178 = vst [vmem:[#allocation3] sm:$0xff] %v6162
        %6179 = vst [vmem:[#allocation3 + $0x8] sm:$0xff] %v6163
        %6180 = vst [vmem:[#allocation3 + $0x10] sm:$0xff] %v6164
        %6181 = vst [vmem:[#allocation3 + $0x18] sm:$0xff] %v6165
        %6182 = vst [vmem:[#allocation3 + $0x20] sm:$0xff] %v6166
        %6183 = vst [vmem:[#allocation3 + $0x28] sm:$0xff] %v6167
        %6184 = vst [vmem:[#allocation3 + $0x30] sm:$0xff] %v6168
        %6185 = vst [vmem:[#allocation3 + $0x38] sm:$0xff] %v6169
        %6186 = vst [vmem:[#allocation3 + $0x40] sm:$0xff] %v6170
        %6187 = vst [vmem:[#allocation3 + $0x48] sm:$0xff] %v6171
        %6188 = vst [vmem:[#allocation3 + $0x50] sm:$0xff] %v6172
        %6189 = vst [vmem:[#allocation3 + $0x58] sm:$0xff] %v6173
        %6190 = vst [vmem:[#allocation3 + $0x60] sm:$0xff] %v6174
        %6191 = vst [vmem:[#allocation3 + $0x68] sm:$0xff] %v6175
        %6192 = vst [vmem:[#allocation3 + $0x70] sm:$0xff] %v6176
        %6193 = vst [vmem:[#allocation3 + $0x78] sm:$0xff] %v6177
        %v6194 = vld [vmem:[%s4917 + $0x14] sm:$0xe]
        %v6195 = vld [vmem:[%s4917 + $0x18] sm:$0xf]
        %v6196 = vld [vmem:[%s4917 + $0x1c] sm:$0x1]
        %v6197 = vld [vmem:[%s4917 + $0x34] sm:$0xe]
        %v6198 = vld [vmem:[%s4917 + $0x38] sm:$0xf]
        %v6199 = vld [vmem:[%s4917 + $0x3c] sm:$0x1]
        %v6200 = vld [vmem:[%s4917 + $0x54] sm:$0xe]
        %v6201 = vld [vmem:[%s4917 + $0x58] sm:$0xf]
        %v6202 = vld [vmem:[%s4917 + $0x5c] sm:$0x1]
        %v6203 = vld [vmem:[%s4917 + $0x74] sm:$0xe]
        %v6204 = vld [vmem:[%s4917 + $0x78] sm:$0xf]
        %v6205 = vld [vmem:[%s4917 + $0x7c] sm:$0x1]
        %v6206 = vld [vmem:[%s4917 + $0x94] sm:$0xe]
        %v6207 = vld [vmem:[%s4917 + $0x98] sm:$0xf]
        %v6208 = vld [vmem:[%s4917 + $0x9c] sm:$0x1]
        %v6209 = vld [vmem:[%s4917 + $0xb4] sm:$0xe]
        %v6210 = vld [vmem:[%s4917 + $0xb8] sm:$0xf]
        %v6211 = vld [vmem:[%s4917 + $0xbc] sm:$0x1]
        %v6212 = vld [vmem:[%s4917 + $0xd4] sm:$0xe]
        %v6213 = vld [vmem:[%s4917 + $0xd8] sm:$0xf]
        %v6214 = vld [vmem:[%s4917 + $0xdc] sm:$0x1]
        %v6215 = vld [vmem:[%s4917 + $0xf4] sm:$0xe]
        %v6216 = vld [vmem:[%s4917 + $0xf8] sm:$0xf]
        %v6217 = vld [vmem:[%s4917 + $0xfc] sm:$0x1]
        %v6218 = vld [vmem:[%s4917 + $0x254] sm:$0xe]
        %v6219 = vld [vmem:[%s4917 + $0x258] sm:$0xf]
        %v6220 = vld [vmem:[%s4917 + $0x25c] sm:$0x1]
        %v6221 = vld [vmem:[%s4917 + $0x274] sm:$0xe]
        %v6222 = vld [vmem:[%s4917 + $0x278] sm:$0xf]
        %v6223 = vld [vmem:[%s4917 + $0x27c] sm:$0x1]
        %v6224 = vld [vmem:[%s4917 + $0x294] sm:$0xe]
        %v6225 = vld [vmem:[%s4917 + $0x298] sm:$0xf]
        %v6226 = vld [vmem:[%s4917 + $0x29c] sm:$0x1]
        %v6227 = vld [vmem:[%s4917 + $0x2b4] sm:$0xe]
        %v6228 = vld [vmem:[%s4917 + $0x2b8] sm:$0xf]
        %v6229 = vld [vmem:[%s4917 + $0x2bc] sm:$0x1]
        %v6230 = vld [vmem:[%s4917 + $0x2d4] sm:$0xe]
        %v6231 = vld [vmem:[%s4917 + $0x2d8] sm:$0xf]
        %v6232 = vld [vmem:[%s4917 + $0x2dc] sm:$0x1]
        %v6233 = vld [vmem:[%s4917 + $0x2f4] sm:$0xe]
        %v6234 = vld [vmem:[%s4917 + $0x2f8] sm:$0xf]
        %v6235 = vld [vmem:[%s4917 + $0x2fc] sm:$0x1]
        %v6236 = vld [vmem:[%s4917 + $0x314] sm:$0xe]
        %v6237 = vld [vmem:[%s4917 + $0x318] sm:$0xf]
        %v6238 = vld [vmem:[%s4917 + $0x31c] sm:$0x1]
        %v6239 = vld [vmem:[%s4917 + $0x334] sm:$0xe]
        %v6240 = vld [vmem:[%s4917 + $0x338] sm:$0xf]
        %v6241 = vld [vmem:[%s4917 + $0x33c] sm:$0x1]
        %v6242 = vld [vmem:[%s4917 + $0x494] sm:$0xe]
        %v6243 = vld [vmem:[%s4917 + $0x498] sm:$0xf]
        %v6244 = vld [vmem:[%s4917 + $0x49c] sm:$0x1]
        %v6245 = vld [vmem:[%s4917 + $0x4b4] sm:$0xe]
        %v6246 = vld [vmem:[%s4917 + $0x4b8] sm:$0xf]
        %v6247 = vld [vmem:[%s4917 + $0x4bc] sm:$0x1]
        %v6248 = vld [vmem:[%s4917 + $0x4d4] sm:$0xe]
        %v6249 = vld [vmem:[%s4917 + $0x4d8] sm:$0xf]
        %v6250 = vld [vmem:[%s4917 + $0x4dc] sm:$0x1]
        %v6251 = vld [vmem:[%s4917 + $0x4f4] sm:$0xe]
        %v6252 = vld [vmem:[%s4917 + $0x4f8] sm:$0xf]
        %v6253 = vld [vmem:[%s4917 + $0x4fc] sm:$0x1]
        %v6254 = vld [vmem:[%s4917 + $0x514] sm:$0xe]
        %v6255 = vld [vmem:[%s4917 + $0x518] sm:$0xf]
        %v6256 = vld [vmem:[%s4917 + $0x51c] sm:$0x1]
        %v6257 = vld [vmem:[%s4917 + $0x534] sm:$0xe]
        %v6258 = vld [vmem:[%s4917 + $0x538] sm:$0xf]
        %v6259 = vld [vmem:[%s4917 + $0x53c] sm:$0x1]
        %v6260 = vld [vmem:[%s4917 + $0x554] sm:$0xe]
        %v6261 = vld [vmem:[%s4917 + $0x558] sm:$0xf]
        %v6262 = vld [vmem:[%s4917 + $0x55c] sm:$0x1]
        %v6263 = vld [vmem:[%s4917 + $0x574] sm:$0xe]
        %v6264 = vld [vmem:[%s4917 + $0x578] sm:$0xf]
        %v6265 = vld [vmem:[%s4917 + $0x57c] sm:$0x1]
        %v6290 = vrot.slane %v6194, 5
        %v6291 = vrot.slane %v6290, 4
        %v6292 = vrot.slane %v6195, 5
        %v6293 = vsel %vm672, %v6291, %v6292
        %v6294 = vrot.slane %v6292, 4
        %v6295 = vrot.slane %v6196, 5
        %v6296 = vsel %vm672, %v6294, %v6295
        %v6297 = vrot.slane %v6197, 5
        %v6298 = vrot.slane %v6297, 4
        %v6299 = vrot.slane %v6198, 5
        %v6300 = vsel %vm672, %v6298, %v6299
        %v6301 = vrot.slane %v6299, 4
        %v6302 = vrot.slane %v6199, 5
        %v6303 = vsel %vm672, %v6301, %v6302
        %v6304 = vrot.slane %v6200, 5
        %v6305 = vrot.slane %v6304, 4
        %v6306 = vrot.slane %v6201, 5
        %v6307 = vsel %vm672, %v6305, %v6306
        %v6308 = vrot.slane %v6306, 4
        %v6309 = vrot.slane %v6202, 5
        %v6310 = vsel %vm672, %v6308, %v6309
        %v6311 = vrot.slane %v6203, 5
        %v6312 = vrot.slane %v6311, 4
        %v6313 = vrot.slane %v6204, 5
        %v6314 = vsel %vm672, %v6312, %v6313
        %v6315 = vrot.slane %v6313, 4
        %v6316 = vrot.slane %v6205, 5
        %v6317 = vsel %vm672, %v6315, %v6316
        %v6318 = vrot.slane %v6206, 5
        %v6319 = vrot.slane %v6318, 4
        %v6320 = vrot.slane %v6207, 5
        %v6321 = vsel %vm672, %v6319, %v6320
        %v6322 = vrot.slane %v6320, 4
        %v6323 = vrot.slane %v6208, 5
        %v6324 = vsel %vm672, %v6322, %v6323
        %v6325 = vrot.slane %v6209, 5
        %v6326 = vrot.slane %v6325, 4
        %v6327 = vrot.slane %v6210, 5
        %v6328 = vsel %vm672, %v6326, %v6327
        %v6329 = vrot.slane %v6327, 4
        %v6330 = vrot.slane %v6211, 5
        %v6331 = vsel %vm672, %v6329, %v6330
        %v6332 = vrot.slane %v6212, 5
        %v6333 = vrot.slane %v6332, 4
        %v6334 = vrot.slane %v6213, 5
        %v6335 = vsel %vm672, %v6333, %v6334
        %v6336 = vrot.slane %v6334, 4
        %v6337 = vrot.slane %v6214, 5
        %v6338 = vsel %vm672, %v6336, %v6337
        %v6339 = vrot.slane %v6215, 5
        %v6340 = vrot.slane %v6339, 4
        %v6341 = vrot.slane %v6216, 5
        %v6342 = vsel %vm672, %v6340, %v6341
        %v6343 = vrot.slane %v6341, 4
        %v6344 = vrot.slane %v6217, 5
        %v6345 = vsel %vm672, %v6343, %v6344
        %s6346 = scalar_lea.vmem %s2, 40
        %v6347 = vld [vmem:[%s6346] sm:$0x3]
        %v6348 = vunpack.c.l.b16 %v6293
        %v6349 = vunpack.c.l.b16 %v6296
        %v6350 = vunpack.c.l.b16 %v6300
        %v6351 = vunpack.c.l.b16 %v6303
        %v6352 = vunpack.c.l.b16 %v6307
        %v6353 = vunpack.c.l.b16 %v6310
        %v6354 = vunpack.c.l.b16 %v6314
        %v6355 = vunpack.c.l.b16 %v6317
        %v6356 = vunpack.c.l.b16 %v6321
        %v6357 = vunpack.c.l.b16 %v6324
        %v6358 = vunpack.c.l.b16 %v6328
        %v6359 = vunpack.c.l.b16 %v6331
        %v6360 = vunpack.c.l.b16 %v6335
        %v6361 = vunpack.c.l.b16 %v6338
        %v6362 = vunpack.c.l.b16 %v6342
        %v6363 = vunpack.c.l.b16 %v6345
        %v6364 = vpack.c.b16 %v6349, %v6348
        %v6365 = vpack.c.b16 %v6351, %v6350
        %v6366 = vpack.c.b16 %v6353, %v6352
        %v6367 = vpack.c.b16 %v6355, %v6354
        %v6368 = vpack.c.b16 %v6357, %v6356
        %v6369 = vpack.c.b16 %v6359, %v6358
        %v6370 = vpack.c.b16 %v6361, %v6360
        %v6371 = vpack.c.b16 %v6363, %v6362
        %v6373 = vsel %vm354, %v6364, 0
        %v6376 = vsel %vm354, %v6365, 0
        %v6379 = vsel %vm354, %v6366, 0
        %v6382 = vsel %vm354, %v6367, 0
        %v6385 = vsel %vm354, %v6368, 0
        %v6388 = vsel %vm354, %v6369, 0
        %v6391 = vsel %vm354, %v6370, 0
        %v6394 = vsel %vm354, %v6371, 0
        %v6397 = vsel %vm379, %v6347, 0
        %6399 = vmatpush.bf16.msra.mxu0 0
        %6400 = vmatpush.bf16.msra.mxu0 0
        %6401 = vmatpush.bf16.msra.mxu0 0
        %6402 = vmatpush.bf16.msra.mxu0 0
        %6403 = vmatpush.bf16.msra.mxu0 0
        %6404 = vmatpush.bf16.msra.mxu0 0
        %6405 = vmatpush.bf16.msra.mxu0 0
        %6406 = vmatpush.bf16.msra.mxu0 %v6397
        %6407 = vmatmul.bf16.gmra.mxu0 %v6373
        %v6408 = vpop.f32.mrf.mxu0
        %v6409 = vadd.f32 0.0, %v6408
        %v6410 = vpop.f32.mrf.mxu0
        %v6411 = vadd.f32 0.0, %v6410
        %6412 = vmatmul.bf16.gmra.mxu0 %v6376
        %v6413 = vpop.f32.mrf.mxu0
        %v6414 = vadd.f32 0.0, %v6413
        %v6415 = vpop.f32.mrf.mxu0
        %v6416 = vadd.f32 0.0, %v6415
        %6417 = vmatmul.bf16.gmra.mxu0 %v6379
        %v6418 = vpop.f32.mrf.mxu0
        %v6419 = vadd.f32 0.0, %v6418
        %v6420 = vpop.f32.mrf.mxu0
        %v6421 = vadd.f32 0.0, %v6420
        %6422 = vmatmul.bf16.gmra.mxu0 %v6382
        %v6423 = vpop.f32.mrf.mxu0
        %v6424 = vadd.f32 0.0, %v6423
        %v6425 = vpop.f32.mrf.mxu0
        %v6426 = vadd.f32 0.0, %v6425
        %6427 = vmatmul.bf16.gmra.mxu0 %v6385
        %v6428 = vpop.f32.mrf.mxu0
        %v6429 = vadd.f32 0.0, %v6428
        %v6430 = vpop.f32.mrf.mxu0
        %v6431 = vadd.f32 0.0, %v6430
        %6432 = vmatmul.bf16.gmra.mxu0 %v6388
        %v6433 = vpop.f32.mrf.mxu0
        %v6434 = vadd.f32 0.0, %v6433
        %v6435 = vpop.f32.mrf.mxu0
        %v6436 = vadd.f32 0.0, %v6435
        %6437 = vmatmul.bf16.gmra.mxu0 %v6391
        %v6438 = vpop.f32.mrf.mxu0
        %v6439 = vadd.f32 0.0, %v6438
        %v6440 = vpop.f32.mrf.mxu0
        %v6441 = vadd.f32 0.0, %v6440
        %6442 = vmatmul.bf16.gmra.mxu0 %v6394
        %v6443 = vpop.f32.mrf.mxu0
        %v6444 = vadd.f32 0.0, %v6443
        %v6445 = vpop.f32.mrf.mxu0
        %v6446 = vadd.f32 0.0, %v6445
        %6447 = vdwg.mxu0
        %v6448 = vld [vmem:[#allocation3] sm:$0xff]
        %v6449 = vld [vmem:[#allocation3 + $0x8] sm:$0xff]
        %v6450 = vld [vmem:[#allocation3 + $0x10] sm:$0xff]
        %v6451 = vld [vmem:[#allocation3 + $0x18] sm:$0xff]
        %v6452 = vld [vmem:[#allocation3 + $0x20] sm:$0xff]
        %v6453 = vld [vmem:[#allocation3 + $0x28] sm:$0xff]
        %v6454 = vld [vmem:[#allocation3 + $0x30] sm:$0xff]
        %v6455 = vld [vmem:[#allocation3 + $0x38] sm:$0xff]
        %v6456 = vld [vmem:[#allocation3 + $0x40] sm:$0xff]
        %v6457 = vld [vmem:[#allocation3 + $0x48] sm:$0xff]
        %v6458 = vld [vmem:[#allocation3 + $0x50] sm:$0xff]
        %v6459 = vld [vmem:[#allocation3 + $0x58] sm:$0xff]
        %v6460 = vld [vmem:[#allocation3 + $0x60] sm:$0xff]
        %v6461 = vld [vmem:[#allocation3 + $0x68] sm:$0xff]
        %v6462 = vld [vmem:[#allocation3 + $0x70] sm:$0xff]
        %v6463 = vld [vmem:[#allocation3 + $0x78] sm:$0xff]
        %v6464 = vadd.f32 %v6448, %v6409
        %v6465 = vadd.f32 %v6449, %v6411
        %v6466 = vadd.f32 %v6450, %v6414
        %v6467 = vadd.f32 %v6451, %v6416
        %v6468 = vadd.f32 %v6452, %v6419
        %v6469 = vadd.f32 %v6453, %v6421
        %v6470 = vadd.f32 %v6454, %v6424
        %v6471 = vadd.f32 %v6455, %v6426
        %v6472 = vadd.f32 %v6456, %v6429
        %v6473 = vadd.f32 %v6457, %v6431
        %v6474 = vadd.f32 %v6458, %v6434
        %v6475 = vadd.f32 %v6459, %v6436
        %v6476 = vadd.f32 %v6460, %v6439
        %v6477 = vadd.f32 %v6461, %v6441
        %v6478 = vadd.f32 %v6462, %v6444
        %v6479 = vadd.f32 %v6463, %v6446
        %6480 = vst [vmem:[#allocation3] sm:$0xff] %v6464
        %6481 = vst [vmem:[#allocation3 + $0x8] sm:$0xff] %v6465
        %6482 = vst [vmem:[#allocation3 + $0x10] sm:$0xff] %v6466
        %6483 = vst [vmem:[#allocation3 + $0x18] sm:$0xff] %v6467
        %6484 = vst [vmem:[#allocation3 + $0x20] sm:$0xff] %v6468
        %6485 = vst [vmem:[#allocation3 + $0x28] sm:$0xff] %v6469
        %6486 = vst [vmem:[#allocation3 + $0x30] sm:$0xff] %v6470
        %6487 = vst [vmem:[#allocation3 + $0x38] sm:$0xff] %v6471
        %6488 = vst [vmem:[#allocation3 + $0x40] sm:$0xff] %v6472
        %6489 = vst [vmem:[#allocation3 + $0x48] sm:$0xff] %v6473
        %6490 = vst [vmem:[#allocation3 + $0x50] sm:$0xff] %v6474
        %6491 = vst [vmem:[#allocation3 + $0x58] sm:$0xff] %v6475
        %6492 = vst [vmem:[#allocation3 + $0x60] sm:$0xff] %v6476
        %6493 = vst [vmem:[#allocation3 + $0x68] sm:$0xff] %v6477
        %6494 = vst [vmem:[#allocation3 + $0x70] sm:$0xff] %v6478
        %6495 = vst [vmem:[#allocation3 + $0x78] sm:$0xff] %v6479
        %v6520 = vrot.slane %v6218, 5
        %v6521 = vrot.slane %v6520, 4
        %v6522 = vrot.slane %v6219, 5
        %v6523 = vsel %vm672, %v6521, %v6522
        %v6524 = vrot.slane %v6522, 4
        %v6525 = vrot.slane %v6220, 5
        %v6526 = vsel %vm672, %v6524, %v6525
        %v6527 = vrot.slane %v6221, 5
        %v6528 = vrot.slane %v6527, 4
        %v6529 = vrot.slane %v6222, 5
        %v6530 = vsel %vm672, %v6528, %v6529
        %v6531 = vrot.slane %v6529, 4
        %v6532 = vrot.slane %v6223, 5
        %v6533 = vsel %vm672, %v6531, %v6532
        %v6534 = vrot.slane %v6224, 5
        %v6535 = vrot.slane %v6534, 4
        %v6536 = vrot.slane %v6225, 5
        %v6537 = vsel %vm672, %v6535, %v6536
        %v6538 = vrot.slane %v6536, 4
        %v6539 = vrot.slane %v6226, 5
        %v6540 = vsel %vm672, %v6538, %v6539
        %v6541 = vrot.slane %v6227, 5
        %v6542 = vrot.slane %v6541, 4
        %v6543 = vrot.slane %v6228, 5
        %v6544 = vsel %vm672, %v6542, %v6543
        %v6545 = vrot.slane %v6543, 4
        %v6546 = vrot.slane %v6229, 5
        %v6547 = vsel %vm672, %v6545, %v6546
        %v6548 = vrot.slane %v6230, 5
        %v6549 = vrot.slane %v6548, 4
        %v6550 = vrot.slane %v6231, 5
        %v6551 = vsel %vm672, %v6549, %v6550
        %v6552 = vrot.slane %v6550, 4
        %v6553 = vrot.slane %v6232, 5
        %v6554 = vsel %vm672, %v6552, %v6553
        %v6555 = vrot.slane %v6233, 5
        %v6556 = vrot.slane %v6555, 4
        %v6557 = vrot.slane %v6234, 5
        %v6558 = vsel %vm672, %v6556, %v6557
        %v6559 = vrot.slane %v6557, 4
        %v6560 = vrot.slane %v6235, 5
        %v6561 = vsel %vm672, %v6559, %v6560
        %v6562 = vrot.slane %v6236, 5
        %v6563 = vrot.slane %v6562, 4
        %v6564 = vrot.slane %v6237, 5
        %v6565 = vsel %vm672, %v6563, %v6564
        %v6566 = vrot.slane %v6564, 4
        %v6567 = vrot.slane %v6238, 5
        %v6568 = vsel %vm672, %v6566, %v6567
        %v6569 = vrot.slane %v6239, 5
        %v6570 = vrot.slane %v6569, 4
        %v6571 = vrot.slane %v6240, 5
        %v6572 = vsel %vm672, %v6570, %v6571
        %v6573 = vrot.slane %v6571, 4
        %v6574 = vrot.slane %v6241, 5
        %v6575 = vsel %vm672, %v6573, %v6574
        %s6576 = scalar_lea.vmem %s2, 46
        %v6577 = vld [vmem:[%s6576] sm:$0x3]
        %v6578 = vunpack.c.l.b16 %v6523
        %v6579 = vunpack.c.l.b16 %v6526
        %v6580 = vunpack.c.l.b16 %v6530
        %v6581 = vunpack.c.l.b16 %v6533
        %v6582 = vunpack.c.l.b16 %v6537
        %v6583 = vunpack.c.l.b16 %v6540
        %v6584 = vunpack.c.l.b16 %v6544
        %v6585 = vunpack.c.l.b16 %v6547
        %v6586 = vunpack.c.l.b16 %v6551
        %v6587 = vunpack.c.l.b16 %v6554
        %v6588 = vunpack.c.l.b16 %v6558
        %v6589 = vunpack.c.l.b16 %v6561
        %v6590 = vunpack.c.l.b16 %v6565
        %v6591 = vunpack.c.l.b16 %v6568
        %v6592 = vunpack.c.l.b16 %v6572
        %v6593 = vunpack.c.l.b16 %v6575
        %v6594 = vpack.c.b16 %v6579, %v6578
        %v6595 = vpack.c.b16 %v6581, %v6580
        %v6596 = vpack.c.b16 %v6583, %v6582
        %v6597 = vpack.c.b16 %v6585, %v6584
        %v6598 = vpack.c.b16 %v6587, %v6586
        %v6599 = vpack.c.b16 %v6589, %v6588
        %v6600 = vpack.c.b16 %v6591, %v6590
        %v6601 = vpack.c.b16 %v6593, %v6592
        %v6603 = vsel %vm354, %v6594, 0
        %v6606 = vsel %vm354, %v6595, 0
        %v6609 = vsel %vm354, %v6596, 0
        %v6612 = vsel %vm354, %v6597, 0
        %v6615 = vsel %vm354, %v6598, 0
        %v6618 = vsel %vm354, %v6599, 0
        %v6621 = vsel %vm354, %v6600, 0
        %v6624 = vsel %vm354, %v6601, 0
        %v6627 = vsel %vm379, %v6577, 0
        %6629 = vmatpush.bf16.msra.mxu0 0
        %6630 = vmatpush.bf16.msra.mxu0 0
        %6631 = vmatpush.bf16.msra.mxu0 0
        %6632 = vmatpush.bf16.msra.mxu0 0
        %6633 = vmatpush.bf16.msra.mxu0 0
        %6634 = vmatpush.bf16.msra.mxu0 0
        %6635 = vmatpush.bf16.msra.mxu0 0
        %6636 = vmatpush.bf16.msra.mxu0 %v6627
        %6637 = vmatmul.bf16.gmra.mxu0 %v6603
        %v6638 = vpop.f32.mrf.mxu0
        %v6639 = vadd.f32 0.0, %v6638
        %v6640 = vpop.f32.mrf.mxu0
        %v6641 = vadd.f32 0.0, %v6640
        %6642 = vmatmul.bf16.gmra.mxu0 %v6606
        %v6643 = vpop.f32.mrf.mxu0
        %v6644 = vadd.f32 0.0, %v6643
        %v6645 = vpop.f32.mrf.mxu0
        %v6646 = vadd.f32 0.0, %v6645
        %6647 = vmatmul.bf16.gmra.mxu0 %v6609
        %v6648 = vpop.f32.mrf.mxu0
        %v6649 = vadd.f32 0.0, %v6648
        %v6650 = vpop.f32.mrf.mxu0
        %v6651 = vadd.f32 0.0, %v6650
        %6652 = vmatmul.bf16.gmra.mxu0 %v6612
        %v6653 = vpop.f32.mrf.mxu0
        %v6654 = vadd.f32 0.0, %v6653
        %v6655 = vpop.f32.mrf.mxu0
        %v6656 = vadd.f32 0.0, %v6655
        %6657 = vmatmul.bf16.gmra.mxu0 %v6615
        %v6658 = vpop.f32.mrf.mxu0
        %v6659 = vadd.f32 0.0, %v6658
        %v6660 = vpop.f32.mrf.mxu0
        %v6661 = vadd.f32 0.0, %v6660
        %6662 = vmatmul.bf16.gmra.mxu0 %v6618
        %v6663 = vpop.f32.mrf.mxu0
        %v6664 = vadd.f32 0.0, %v6663
        %v6665 = vpop.f32.mrf.mxu0
        %v6666 = vadd.f32 0.0, %v6665
        %6667 = vmatmul.bf16.gmra.mxu0 %v6621
        %v6668 = vpop.f32.mrf.mxu0
        %v6669 = vadd.f32 0.0, %v6668
        %v6670 = vpop.f32.mrf.mxu0
        %v6671 = vadd.f32 0.0, %v6670
        %6672 = vmatmul.bf16.gmra.mxu0 %v6624
        %v6673 = vpop.f32.mrf.mxu0
        %v6674 = vadd.f32 0.0, %v6673
        %v6675 = vpop.f32.mrf.mxu0
        %v6676 = vadd.f32 0.0, %v6675
        %6677 = vdwg.mxu0
        %v6678 = vld [vmem:[#allocation3] sm:$0xff]
        %v6679 = vld [vmem:[#allocation3 + $0x8] sm:$0xff]
        %v6680 = vld [vmem:[#allocation3 + $0x10] sm:$0xff]
        %v6681 = vld [vmem:[#allocation3 + $0x18] sm:$0xff]
        %v6682 = vld [vmem:[#allocation3 + $0x20] sm:$0xff]
        %v6683 = vld [vmem:[#allocation3 + $0x28] sm:$0xff]
        %v6684 = vld [vmem:[#allocation3 + $0x30] sm:$0xff]
        %v6685 = vld [vmem:[#allocation3 + $0x38] sm:$0xff]
        %v6686 = vld [vmem:[#allocation3 + $0x40] sm:$0xff]
        %v6687 = vld [vmem:[#allocation3 + $0x48] sm:$0xff]
        %v6688 = vld [vmem:[#allocation3 + $0x50] sm:$0xff]
        %v6689 = vld [vmem:[#allocation3 + $0x58] sm:$0xff]
        %v6690 = vld [vmem:[#allocation3 + $0x60] sm:$0xff]
        %v6691 = vld [vmem:[#allocation3 + $0x68] sm:$0xff]
        %v6692 = vld [vmem:[#allocation3 + $0x70] sm:$0xff]
        %v6693 = vld [vmem:[#allocation3 + $0x78] sm:$0xff]
        %v6694 = vadd.f32 %v6678, %v6639
        %v6695 = vadd.f32 %v6679, %v6641
        %v6696 = vadd.f32 %v6680, %v6644
        %v6697 = vadd.f32 %v6681, %v6646
        %v6698 = vadd.f32 %v6682, %v6649
        %v6699 = vadd.f32 %v6683, %v6651
        %v6700 = vadd.f32 %v6684, %v6654
        %v6701 = vadd.f32 %v6685, %v6656
        %v6702 = vadd.f32 %v6686, %v6659
        %v6703 = vadd.f32 %v6687, %v6661
        %v6704 = vadd.f32 %v6688, %v6664
        %v6705 = vadd.f32 %v6689, %v6666
        %v6706 = vadd.f32 %v6690, %v6669
        %v6707 = vadd.f32 %v6691, %v6671
        %v6708 = vadd.f32 %v6692, %v6674
        %v6709 = vadd.f32 %v6693, %v6676
        %6710 = vst [vmem:[#allocation3] sm:$0xff] %v6694
        %6711 = vst [vmem:[#allocation3 + $0x8] sm:$0xff] %v6695
        %6712 = vst [vmem:[#allocation3 + $0x10] sm:$0xff] %v6696
        %6713 = vst [vmem:[#allocation3 + $0x18] sm:$0xff] %v6697
        %6714 = vst [vmem:[#allocation3 + $0x20] sm:$0xff] %v6698
        %6715 = vst [vmem:[#allocation3 + $0x28] sm:$0xff] %v6699
        %6716 = vst [vmem:[#allocation3 + $0x30] sm:$0xff] %v6700
        %6717 = vst [vmem:[#allocation3 + $0x38] sm:$0xff] %v6701
        %6718 = vst [vmem:[#allocation3 + $0x40] sm:$0xff] %v6702
        %6719 = vst [vmem:[#allocation3 + $0x48] sm:$0xff] %v6703
        %6720 = vst [vmem:[#allocation3 + $0x50] sm:$0xff] %v6704
        %6721 = vst [vmem:[#allocation3 + $0x58] sm:$0xff] %v6705
        %6722 = vst [vmem:[#allocation3 + $0x60] sm:$0xff] %v6706
        %6723 = vst [vmem:[#allocation3 + $0x68] sm:$0xff] %v6707
        %6724 = vst [vmem:[#allocation3 + $0x70] sm:$0xff] %v6708
        %6725 = vst [vmem:[#allocation3 + $0x78] sm:$0xff] %v6709
        %v6750 = vrot.slane %v6242, 5
        %v6751 = vrot.slane %v6750, 4
        %v6752 = vrot.slane %v6243, 5
        %v6753 = vsel %vm672, %v6751, %v6752
        %v6754 = vrot.slane %v6752, 4
        %v6755 = vrot.slane %v6244, 5
        %v6756 = vsel %vm672, %v6754, %v6755
        %v6757 = vrot.slane %v6245, 5
        %v6758 = vrot.slane %v6757, 4
        %v6759 = vrot.slane %v6246, 5
        %v6760 = vsel %vm672, %v6758, %v6759
        %v6761 = vrot.slane %v6759, 4
        %v6762 = vrot.slane %v6247, 5
        %v6763 = vsel %vm672, %v6761, %v6762
        %v6764 = vrot.slane %v6248, 5
        %v6765 = vrot.slane %v6764, 4
        %v6766 = vrot.slane %v6249, 5
        %v6767 = vsel %vm672, %v6765, %v6766
        %v6768 = vrot.slane %v6766, 4
        %v6769 = vrot.slane %v6250, 5
        %v6770 = vsel %vm672, %v6768, %v6769
        %v6771 = vrot.slane %v6251, 5
        %v6772 = vrot.slane %v6771, 4
        %v6773 = vrot.slane %v6252, 5
        %v6774 = vsel %vm672, %v6772, %v6773
        %v6775 = vrot.slane %v6773, 4
        %v6776 = vrot.slane %v6253, 5
        %v6777 = vsel %vm672, %v6775, %v6776
        %v6778 = vrot.slane %v6254, 5
        %v6779 = vrot.slane %v6778, 4
        %v6780 = vrot.slane %v6255, 5
        %v6781 = vsel %vm672, %v6779, %v6780
        %v6782 = vrot.slane %v6780, 4
        %v6783 = vrot.slane %v6256, 5
        %v6784 = vsel %vm672, %v6782, %v6783
        %v6785 = vrot.slane %v6257, 5
        %v6786 = vrot.slane %v6785, 4
        %v6787 = vrot.slane %v6258, 5
        %v6788 = vsel %vm672, %v6786, %v6787
        %v6789 = vrot.slane %v6787, 4
        %v6790 = vrot.slane %v6259, 5
        %v6791 = vsel %vm672, %v6789, %v6790
        %v6792 = vrot.slane %v6260, 5
        %v6793 = vrot.slane %v6792, 4
        %v6794 = vrot.slane %v6261, 5
        %v6795 = vsel %vm672, %v6793, %v6794
        %v6796 = vrot.slane %v6794, 4
        %v6797 = vrot.slane %v6262, 5
        %v6798 = vsel %vm672, %v6796, %v6797
        %v6799 = vrot.slane %v6263, 5
        %v6800 = vrot.slane %v6799, 4
        %v6801 = vrot.slane %v6264, 5
        %v6802 = vsel %vm672, %v6800, %v6801
        %v6803 = vrot.slane %v6801, 4
        %v6804 = vrot.slane %v6265, 5
        %v6805 = vsel %vm672, %v6803, %v6804
        %s6806 = scalar_lea.vmem %s2, 52
        %v6807 = vld [vmem:[%s6806] sm:$0x3]
        %v6808 = vunpack.c.l.b16 %v6753
        %v6809 = vunpack.c.l.b16 %v6756
        %v6810 = vunpack.c.l.b16 %v6760
        %v6811 = vunpack.c.l.b16 %v6763
        %v6812 = vunpack.c.l.b16 %v6767
        %v6813 = vunpack.c.l.b16 %v6770
        %v6814 = vunpack.c.l.b16 %v6774
        %v6815 = vunpack.c.l.b16 %v6777
        %v6816 = vunpack.c.l.b16 %v6781
        %v6817 = vunpack.c.l.b16 %v6784
        %v6818 = vunpack.c.l.b16 %v6788
        %v6819 = vunpack.c.l.b16 %v6791
        %v6820 = vunpack.c.l.b16 %v6795
        %v6821 = vunpack.c.l.b16 %v6798
        %v6822 = vunpack.c.l.b16 %v6802
        %v6823 = vunpack.c.l.b16 %v6805
        %v6824 = vpack.c.b16 %v6809, %v6808
        %v6825 = vpack.c.b16 %v6811, %v6810
        %v6826 = vpack.c.b16 %v6813, %v6812
        %v6827 = vpack.c.b16 %v6815, %v6814
        %v6828 = vpack.c.b16 %v6817, %v6816
        %v6829 = vpack.c.b16 %v6819, %v6818
        %v6830 = vpack.c.b16 %v6821, %v6820
        %v6831 = vpack.c.b16 %v6823, %v6822
        %v6833 = vsel %vm354, %v6824, 0
        %v6836 = vsel %vm354, %v6825, 0
        %v6839 = vsel %vm354, %v6826, 0
        %v6842 = vsel %vm354, %v6827, 0
        %v6845 = vsel %vm354, %v6828, 0
        %v6848 = vsel %vm354, %v6829, 0
        %v6851 = vsel %vm354, %v6830, 0
        %v6854 = vsel %vm354, %v6831, 0
        %v6857 = vsel %vm379, %v6807, 0
        %6859 = vmatpush.bf16.msra.mxu0 0
        %6860 = vmatpush.bf16.msra.mxu0 0
        %6861 = vmatpush.bf16.msra.mxu0 0
        %6862 = vmatpush.bf16.msra.mxu0 0
        %6863 = vmatpush.bf16.msra.mxu0 0
        %6864 = vmatpush.bf16.msra.mxu0 0
        %6865 = vmatpush.bf16.msra.mxu0 0
        %6866 = vmatpush.bf16.msra.mxu0 %v6857
        %6867 = vmatmul.bf16.gmra.mxu0 %v6833
        %v6868 = vpop.f32.mrf.mxu0
        %v6869 = vadd.f32 0.0, %v6868
        %v6870 = vpop.f32.mrf.mxu0
        %v6871 = vadd.f32 0.0, %v6870
        %6872 = vmatmul.bf16.gmra.mxu0 %v6836
        %v6873 = vpop.f32.mrf.mxu0
        %v6874 = vadd.f32 0.0, %v6873
        %v6875 = vpop.f32.mrf.mxu0
        %v6876 = vadd.f32 0.0, %v6875
        %6877 = vmatmul.bf16.gmra.mxu0 %v6839
        %v6878 = vpop.f32.mrf.mxu0
        %v6879 = vadd.f32 0.0, %v6878
        %v6880 = vpop.f32.mrf.mxu0
        %v6881 = vadd.f32 0.0, %v6880
        %6882 = vmatmul.bf16.gmra.mxu0 %v6842
        %v6883 = vpop.f32.mrf.mxu0
        %v6884 = vadd.f32 0.0, %v6883
        %v6885 = vpop.f32.mrf.mxu0
        %v6886 = vadd.f32 0.0, %v6885
        %6887 = vmatmul.bf16.gmra.mxu0 %v6845
        %v6888 = vpop.f32.mrf.mxu0
        %v6889 = vadd.f32 0.0, %v6888
        %v6890 = vpop.f32.mrf.mxu0
        %v6891 = vadd.f32 0.0, %v6890
        %6892 = vmatmul.bf16.gmra.mxu0 %v6848
        %v6893 = vpop.f32.mrf.mxu0
        %v6894 = vadd.f32 0.0, %v6893
        %v6895 = vpop.f32.mrf.mxu0
        %v6896 = vadd.f32 0.0, %v6895
        %6897 = vmatmul.bf16.gmra.mxu0 %v6851
        %v6898 = vpop.f32.mrf.mxu0
        %v6899 = vadd.f32 0.0, %v6898
        %v6900 = vpop.f32.mrf.mxu0
        %v6901 = vadd.f32 0.0, %v6900
        %6902 = vmatmul.bf16.gmra.mxu0 %v6854
        %v6903 = vpop.f32.mrf.mxu0
        %v6904 = vadd.f32 0.0, %v6903
        %v6905 = vpop.f32.mrf.mxu0
        %v6906 = vadd.f32 0.0, %v6905
        %6907 = vdwg.mxu0
        %v6908 = vld [vmem:[#allocation3] sm:$0xff]
        %v6909 = vld [vmem:[#allocation3 + $0x8] sm:$0xff]
        %v6910 = vld [vmem:[#allocation3 + $0x10] sm:$0xff]
        %v6911 = vld [vmem:[#allocation3 + $0x18] sm:$0xff]
        %v6912 = vld [vmem:[#allocation3 + $0x20] sm:$0xff]
        %v6913 = vld [vmem:[#allocation3 + $0x28] sm:$0xff]
        %v6914 = vld [vmem:[#allocation3 + $0x30] sm:$0xff]
        %v6915 = vld [vmem:[#allocation3 + $0x38] sm:$0xff]
        %v6916 = vld [vmem:[#allocation3 + $0x40] sm:$0xff]
        %v6917 = vld [vmem:[#allocation3 + $0x48] sm:$0xff]
        %v6918 = vld [vmem:[#allocation3 + $0x50] sm:$0xff]
        %v6919 = vld [vmem:[#allocation3 + $0x58] sm:$0xff]
        %v6920 = vld [vmem:[#allocation3 + $0x60] sm:$0xff]
        %v6921 = vld [vmem:[#allocation3 + $0x68] sm:$0xff]
        %v6922 = vld [vmem:[#allocation3 + $0x70] sm:$0xff]
        %v6923 = vld [vmem:[#allocation3 + $0x78] sm:$0xff]
        %v6924 = vadd.f32 %v6908, %v6869
        %v6925 = vadd.f32 %v6909, %v6871
        %v6926 = vadd.f32 %v6910, %v6874
        %v6927 = vadd.f32 %v6911, %v6876
        %v6928 = vadd.f32 %v6912, %v6879
        %v6929 = vadd.f32 %v6913, %v6881
        %v6930 = vadd.f32 %v6914, %v6884
        %v6931 = vadd.f32 %v6915, %v6886
        %v6932 = vadd.f32 %v6916, %v6889
        %v6933 = vadd.f32 %v6917, %v6891
        %v6934 = vadd.f32 %v6918, %v6894
        %v6935 = vadd.f32 %v6919, %v6896
        %v6936 = vadd.f32 %v6920, %v6899
        %v6937 = vadd.f32 %v6921, %v6901
        %v6938 = vadd.f32 %v6922, %v6904
        %v6939 = vadd.f32 %v6923, %v6906
        %6940 = vst [vmem:[#allocation3] sm:$0xff] %v6924
        %6941 = vst [vmem:[#allocation3 + $0x8] sm:$0xff] %v6925
        %6942 = vst [vmem:[#allocation3 + $0x10] sm:$0xff] %v6926
        %6943 = vst [vmem:[#allocation3 + $0x18] sm:$0xff] %v6927
        %6944 = vst [vmem:[#allocation3 + $0x20] sm:$0xff] %v6928
        %6945 = vst [vmem:[#allocation3 + $0x28] sm:$0xff] %v6929
        %6946 = vst [vmem:[#allocation3 + $0x30] sm:$0xff] %v6930
        %6947 = vst [vmem:[#allocation3 + $0x38] sm:$0xff] %v6931
        %6948 = vst [vmem:[#allocation3 + $0x40] sm:$0xff] %v6932
        %6949 = vst [vmem:[#allocation3 + $0x48] sm:$0xff] %v6933
        %6950 = vst [vmem:[#allocation3 + $0x50] sm:$0xff] %v6934
        %6951 = vst [vmem:[#allocation3 + $0x58] sm:$0xff] %v6935
        %6952 = vst [vmem:[#allocation3 + $0x60] sm:$0xff] %v6936
        %6953 = vst [vmem:[#allocation3 + $0x68] sm:$0xff] %v6937
        %6954 = vst [vmem:[#allocation3 + $0x70] sm:$0xff] %v6938
        %6955 = vst [vmem:[#allocation3 + $0x78] sm:$0xff] %v6939
        %v6956 = vld [vmem:[#allocation3] sm:$0xff]
        %v6957 = vld [vmem:[#allocation3 + $0x8] sm:$0xff]
        %v6958 = vld [vmem:[#allocation3 + $0x10] sm:$0xff]
        %v6959 = vld [vmem:[#allocation3 + $0x18] sm:$0xff]
        %v6960 = vld [vmem:[#allocation3 + $0x20] sm:$0xff]
        %v6961 = vld [vmem:[#allocation3 + $0x28] sm:$0xff]
        %v6962 = vld [vmem:[#allocation3 + $0x30] sm:$0xff]
        %v6963 = vld [vmem:[#allocation3 + $0x38] sm:$0xff]
        %v6964 = vld [vmem:[#allocation3 + $0x40] sm:$0xff]
        %v6965 = vld [vmem:[#allocation3 + $0x48] sm:$0xff]
        %v6966 = vld [vmem:[#allocation3 + $0x50] sm:$0xff]
        %v6967 = vld [vmem:[#allocation3 + $0x58] sm:$0xff]
        %v6968 = vld [vmem:[#allocation3 + $0x60] sm:$0xff]
        %v6969 = vld [vmem:[#allocation3 + $0x68] sm:$0xff]
        %v6970 = vld [vmem:[#allocation3 + $0x70] sm:$0xff]
        %v6971 = vld [vmem:[#allocation3 + $0x78] sm:$0xff]
        %v6972 = vld [vmem:[%s4 + $0x3] sm:$0x1]
        %v6973 = vperm.slane %v6972, 0
        %v6974 = vadd.f32 %v6956, %v6973
        %v6975 = vadd.f32 %v6957, %v6973
        %v6976 = vadd.f32 %v6958, %v6973
        %v6977 = vadd.f32 %v6959, %v6973
        %v6978 = vadd.f32 %v6960, %v6973
        %v6979 = vadd.f32 %v6961, %v6973
        %v6980 = vadd.f32 %v6962, %v6973
        %v6981 = vadd.f32 %v6963, %v6973
        %v6982 = vadd.f32 %v6964, %v6973
        %v6983 = vadd.f32 %v6965, %v6973
        %v6984 = vadd.f32 %v6966, %v6973
        %v6985 = vadd.f32 %v6967, %v6973
        %v6986 = vadd.f32 %v6968, %v6973
        %v6987 = vadd.f32 %v6969, %v6973
        %v6988 = vadd.f32 %v6970, %v6973
        %v6989 = vadd.f32 %v6971, %v6973
        %v6990 = vmax.f32 %v6974, 0.0
        %v6991 = vmax.f32 %v6975, 0.0
        %v6992 = vmax.f32 %v6976, 0.0
        %v6993 = vmax.f32 %v6977, 0.0
        %v6994 = vmax.f32 %v6978, 0.0
        %v6995 = vmax.f32 %v6979, 0.0
        %v6996 = vmax.f32 %v6980, 0.0
        %v6997 = vmax.f32 %v6981, 0.0
        %v6998 = vmax.f32 %v6982, 0.0
        %v6999 = vmax.f32 %v6983, 0.0
        %v7000 = vmax.f32 %v6984, 0.0
        %v7001 = vmax.f32 %v6985, 0.0
        %v7002 = vmax.f32 %v6986, 0.0
        %v7003 = vmax.f32 %v6987, 0.0
        %v7004 = vmax.f32 %v6988, 0.0
        %v7005 = vmax.f32 %v6989, 0.0
        %v7006 = vld [vmem:[#allocation2] sm:$0xff]
        %v7007 = vld [vmem:[#allocation2 + $0x8] sm:$0xff]
        %v7008 = vld [vmem:[#allocation2 + $0x10] sm:$0xff]
        %v7009 = vld [vmem:[#allocation2 + $0x18] sm:$0xff]
        %v7010 = vld [vmem:[#allocation2 + $0x20] sm:$0xff]
        %v7011 = vld [vmem:[#allocation2 + $0x28] sm:$0xff]
        %v7012 = vld [vmem:[#allocation2 + $0x30] sm:$0xff]
        %v7013 = vld [vmem:[#allocation2 + $0x38] sm:$0xff]
        %v7014 = vld [vmem:[#allocation2 + $0x40] sm:$0xff]
        %v7015 = vld [vmem:[#allocation2 + $0x48] sm:$0xff]
        %v7016 = vld [vmem:[#allocation2 + $0x50] sm:$0xff]
        %v7017 = vld [vmem:[#allocation2 + $0x58] sm:$0xff]
        %v7018 = vld [vmem:[#allocation2 + $0x60] sm:$0xff]
        %v7019 = vld [vmem:[#allocation2 + $0x68] sm:$0xff]
        %v7020 = vld [vmem:[#allocation2 + $0x70] sm:$0xff]
        %v7021 = vld [vmem:[#allocation2 + $0x78] sm:$0xff]
        %v7022 = vpack.c.bf16 %v6991, %v6990
        %v7023 = vpack.c.bf16 %v6993, %v6992
        %v7024 = vpack.c.bf16 %v6995, %v6994
        %v7025 = vpack.c.bf16 %v6997, %v6996
        %v7026 = vpack.c.bf16 %v6999, %v6998
        %v7027 = vpack.c.bf16 %v7001, %v7000
        %v7028 = vpack.c.bf16 %v7003, %v7002
        %v7029 = vpack.c.bf16 %v7005, %v7004
        %v7030 = vld [vmem:[%s3 + $0xc0] sm:$0xf]
        %v7031 = vld [vmem:[%s3 + $0xc4] sm:$0xf]
        %v7032 = vld [vmem:[%s3 + $0xc8] sm:$0xf]
        %v7033 = vld [vmem:[%s3 + $0xcc] sm:$0xf]
        %v7034 = vld [vmem:[%s3 + $0xd0] sm:$0xf]
        %v7035 = vld [vmem:[%s3 + $0xd4] sm:$0xf]
        %v7036 = vld [vmem:[%s3 + $0xd8] sm:$0xf]
        %v7037 = vld [vmem:[%s3 + $0xdc] sm:$0xf]
        %v7038 = vld [vmem:[%s3 + $0xe0] sm:$0xf]
        %v7039 = vld [vmem:[%s3 + $0xe4] sm:$0xf]
        %v7040 = vld [vmem:[%s3 + $0xe8] sm:$0xf]
        %v7041 = vld [vmem:[%s3 + $0xec] sm:$0xf]
        %v7042 = vld [vmem:[%s3 + $0xf0] sm:$0xf]
        %v7043 = vld [vmem:[%s3 + $0xf4] sm:$0xf]
        %v7044 = vld [vmem:[%s3 + $0xf8] sm:$0xf]
        %v7045 = vld [vmem:[%s3 + $0xfc] sm:$0xf]
        %v7062 = vunpack.c.l.b16 %v7030
        %v7063 = vunpack.c.l.b16 %v7031
        %v7064 = vunpack.c.l.b16 %v7032
        %v7065 = vunpack.c.l.b16 %v7033
        %v7066 = vunpack.c.l.b16 %v7034
        %v7067 = vunpack.c.l.b16 %v7035
        %v7068 = vunpack.c.l.b16 %v7036
        %v7069 = vunpack.c.l.b16 %v7037
        %v7070 = vunpack.c.l.b16 %v7038
        %v7071 = vunpack.c.l.b16 %v7039
        %v7072 = vunpack.c.l.b16 %v7040
        %v7073 = vunpack.c.l.b16 %v7041
        %v7074 = vunpack.c.l.b16 %v7042
        %v7075 = vunpack.c.l.b16 %v7043
        %v7076 = vunpack.c.l.b16 %v7044
        %v7077 = vunpack.c.l.b16 %v7045
        %v7078 = vpack.c.b16 %v7063, %v7062
        %v7079 = vpack.c.b16 %v7065, %v7064
        %v7080 = vpack.c.b16 %v7067, %v7066
        %v7081 = vpack.c.b16 %v7069, %v7068
        %v7082 = vpack.c.b16 %v7071, %v7070
        %v7083 = vpack.c.b16 %v7073, %v7072
        %v7084 = vpack.c.b16 %v7075, %v7074
        %v7085 = vpack.c.b16 %v7077, %v7076
        %7094 = vmatpush.bf16.msra.mxu0 %v7085
        %7095 = vmatpush.bf16.msra.mxu0 %v7084
        %7096 = vmatpush.bf16.msra.mxu0 %v7083
        %7097 = vmatpush.bf16.msra.mxu0 %v7082
        %7098 = vmatpush.bf16.msra.mxu0 %v7081
        %7099 = vmatpush.bf16.msra.mxu0 %v7080
        %7100 = vmatpush.bf16.msra.mxu0 %v7079
        %7101 = vmatpush.bf16.msra.mxu0 %v7078
        %7102 = vmatmul.bf16.gmra.mxu0 %v7022
        %v7103 = vpop.f32.mrf.mxu0
        %v7104 = vadd.f32 0.0, %v7103
        %v7105 = vpop.f32.mrf.mxu0
        %v7106 = vadd.f32 0.0, %v7105
        %7107 = vmatmul.bf16.gmra.mxu0 %v7023
        %v7108 = vpop.f32.mrf.mxu0
        %v7109 = vadd.f32 0.0, %v7108
        %v7110 = vpop.f32.mrf.mxu0
        %v7111 = vadd.f32 0.0, %v7110
        %7112 = vmatmul.bf16.gmra.mxu0 %v7024
        %v7113 = vpop.f32.mrf.mxu0
        %v7114 = vadd.f32 0.0, %v7113
        %v7115 = vpop.f32.mrf.mxu0
        %v7116 = vadd.f32 0.0, %v7115
        %7117 = vmatmul.bf16.gmra.mxu0 %v7025
        %v7118 = vpop.f32.mrf.mxu0
        %v7119 = vadd.f32 0.0, %v7118
        %v7120 = vpop.f32.mrf.mxu0
        %v7121 = vadd.f32 0.0, %v7120
        %7122 = vmatmul.bf16.gmra.mxu0 %v7026
        %v7123 = vpop.f32.mrf.mxu0
        %v7124 = vadd.f32 0.0, %v7123
        %v7125 = vpop.f32.mrf.mxu0
        %v7126 = vadd.f32 0.0, %v7125
        %7127 = vmatmul.bf16.gmra.mxu0 %v7027
        %v7128 = vpop.f32.mrf.mxu0
        %v7129 = vadd.f32 0.0, %v7128
        %v7130 = vpop.f32.mrf.mxu0
        %v7131 = vadd.f32 0.0, %v7130
        %7132 = vmatmul.bf16.gmra.mxu0 %v7028
        %v7133 = vpop.f32.mrf.mxu0
        %v7134 = vadd.f32 0.0, %v7133
        %v7135 = vpop.f32.mrf.mxu0
        %v7136 = vadd.f32 0.0, %v7135
        %7137 = vmatmul.bf16.gmra.mxu0 %v7029
        %v7138 = vpop.f32.mrf.mxu0
        %v7139 = vadd.f32 0.0, %v7138
        %v7140 = vpop.f32.mrf.mxu0
        %v7141 = vadd.f32 0.0, %v7140
        %7142 = vdwg.mxu0
        %v7143 = vadd.f32 %v7006, %v7104
        %v7144 = vadd.f32 %v7007, %v7106
        %v7145 = vadd.f32 %v7008, %v7109
        %v7146 = vadd.f32 %v7009, %v7111
        %v7147 = vadd.f32 %v7010, %v7114
        %v7148 = vadd.f32 %v7011, %v7116
        %v7149 = vadd.f32 %v7012, %v7119
        %v7150 = vadd.f32 %v7013, %v7121
        %v7151 = vadd.f32 %v7014, %v7124
        %v7152 = vadd.f32 %v7015, %v7126
        %v7153 = vadd.f32 %v7016, %v7129
        %v7154 = vadd.f32 %v7017, %v7131
        %v7155 = vadd.f32 %v7018, %v7134
        %v7156 = vadd.f32 %v7019, %v7136
        %v7157 = vadd.f32 %v7020, %v7139
        %v7158 = vadd.f32 %v7021, %v7141
        %7159 = vst [vmem:[#allocation2] sm:$0xff] %v7143
        %7160 = vst [vmem:[#allocation2 + $0x8] sm:$0xff] %v7144
        %7161 = vst [vmem:[#allocation2 + $0x10] sm:$0xff] %v7145
        %7162 = vst [vmem:[#allocation2 + $0x18] sm:$0xff] %v7146
        %7163 = vst [vmem:[#allocation2 + $0x20] sm:$0xff] %v7147
        %7164 = vst [vmem:[#allocation2 + $0x28] sm:$0xff] %v7148
        %7165 = vst [vmem:[#allocation2 + $0x30] sm:$0xff] %v7149
        %7166 = vst [vmem:[#allocation2 + $0x38] sm:$0xff] %v7150
        %7167 = vst [vmem:[#allocation2 + $0x40] sm:$0xff] %v7151
        %7168 = vst [vmem:[#allocation2 + $0x48] sm:$0xff] %v7152
        %7169 = vst [vmem:[#allocation2 + $0x50] sm:$0xff] %v7153
        %7170 = vst [vmem:[#allocation2 + $0x58] sm:$0xff] %v7154
        %7171 = vst [vmem:[#allocation2 + $0x60] sm:$0xff] %v7155
        %7172 = vst [vmem:[#allocation2 + $0x68] sm:$0xff] %v7156
        %7173 = vst [vmem:[#allocation2 + $0x70] sm:$0xff] %v7157
        %7174 = vst [vmem:[#allocation2 + $0x78] sm:$0xff] %v7158
        %v7175 = vld [vmem:[#allocation2] sm:$0xff]
        %v7176 = vld [vmem:[#allocation2 + $0x8] sm:$0xff]
        %v7177 = vld [vmem:[#allocation2 + $0x10] sm:$0xff]
        %v7178 = vld [vmem:[#allocation2 + $0x18] sm:$0xff]
        %v7179 = vld [vmem:[#allocation2 + $0x20] sm:$0xff]
        %v7180 = vld [vmem:[#allocation2 + $0x28] sm:$0xff]
        %v7181 = vld [vmem:[#allocation2 + $0x30] sm:$0xff]
        %v7182 = vld [vmem:[#allocation2 + $0x38] sm:$0xff]
        %v7183 = vld [vmem:[#allocation2 + $0x40] sm:$0xff]
        %v7184 = vld [vmem:[#allocation2 + $0x48] sm:$0xff]
        %v7185 = vld [vmem:[#allocation2 + $0x50] sm:$0xff]
        %v7186 = vld [vmem:[#allocation2 + $0x58] sm:$0xff]
        %v7187 = vld [vmem:[#allocation2 + $0x60] sm:$0xff]
        %v7188 = vld [vmem:[#allocation2 + $0x68] sm:$0xff]
        %v7189 = vld [vmem:[#allocation2 + $0x70] sm:$0xff]
        %v7190 = vld [vmem:[#allocation2 + $0x78] sm:$0xff]
        %v7191 = vld [vmem:[%s291] sm:$0x1]
        %v7193 = vperm.slane %v7191, 0
        %v7195 = vadd.f32 %v7175, %v7193
        %v7196 = vadd.f32 %v7176, %v7193
        %v7197 = vadd.f32 %v7177, %v7193
        %v7198 = vadd.f32 %v7178, %v7193
        %v7199 = vadd.f32 %v7179, %v7193
        %v7200 = vadd.f32 %v7180, %v7193
        %v7201 = vadd.f32 %v7181, %v7193
        %v7202 = vadd.f32 %v7182, %v7193
        %v7203 = vadd.f32 %v7183, %v7193
        %v7204 = vadd.f32 %v7184, %v7193
        %v7205 = vadd.f32 %v7185, %v7193
        %v7206 = vadd.f32 %v7186, %v7193
        %v7207 = vadd.f32 %v7187, %v7193
        %v7208 = vadd.f32 %v7188, %v7193
        %v7209 = vadd.f32 %v7189, %v7193
        %v7210 = vadd.f32 %v7190, %v7193
        %v7211 = vmax.f32 %v7195, 0.0
        %v7212 = vmax.f32 %v7196, 0.0
        %v7213 = vmax.f32 %v7197, 0.0
        %v7214 = vmax.f32 %v7198, 0.0
        %v7215 = vmax.f32 %v7199, 0.0
        %v7216 = vmax.f32 %v7200, 0.0
        %v7217 = vmax.f32 %v7201, 0.0
        %v7218 = vmax.f32 %v7202, 0.0
        %v7219 = vmax.f32 %v7203, 0.0
        %v7220 = vmax.f32 %v7204, 0.0
        %v7221 = vmax.f32 %v7205, 0.0
        %v7222 = vmax.f32 %v7206, 0.0
        %v7223 = vmax.f32 %v7207, 0.0
        %v7224 = vmax.f32 %v7208, 0.0
        %v7225 = vmax.f32 %v7209, 0.0
        %v7226 = vmax.f32 %v7210, 0.0
        %7227 = vst [vmem:[%s279] sm:$0xff] %v7211
        %7228 = vst [vmem:[%s279 + $0x8] sm:$0xff] %v7212
        %7229 = vst [vmem:[%s279 + $0x10] sm:$0xff] %v7213
        %7230 = vst [vmem:[%s279 + $0x18] sm:$0xff] %v7214
        %7231 = vst [vmem:[%s279 + $0x20] sm:$0xff] %v7215
        %7232 = vst [vmem:[%s279 + $0x28] sm:$0xff] %v7216
        %7233 = vst [vmem:[%s279 + $0x30] sm:$0xff] %v7217
        %7234 = vst [vmem:[%s279 + $0x38] sm:$0xff] %v7218
        %7235 = vst [vmem:[%s279 + $0x40] sm:$0xff] %v7219
        %7236 = vst [vmem:[%s279 + $0x48] sm:$0xff] %v7220
        %7237 = vst [vmem:[%s279 + $0x50] sm:$0xff] %v7221
        %7238 = vst [vmem:[%s279 + $0x58] sm:$0xff] %v7222
        %7239 = vst [vmem:[%s279 + $0x60] sm:$0xff] %v7223
        %7240 = vst [vmem:[%s279 + $0x68] sm:$0xff] %v7224
        %7241 = vst [vmem:[%s279 + $0x70] sm:$0xff] %v7225
        %7242 = vst [vmem:[%s279 + $0x78] sm:$0xff] %v7226
        %s7243 = sand.u32 %s180, 1
        %s7244 = scalar_lea.sflag [#allocation5], %s7243
        %s7245 = sand.u32 %s180, 1
        %s7246 = smul.addr %s7245, 128
        %s7247 = scalar_lea.vmem [#allocation4], %s7246
        // Predicated region
        $region45: #{tpu_custom_call.1} parent=43 // pred_check
          %p7248 = pneg %p190
        $region46: #{tpu_custom_call.1} parent=43 // pred_check_branch
          %7250 = sbr.rel (%p7248) target = $region48
        $region47: #{tpu_custom_call.1} parent=43 // pred_region
          %s7251 = smul.u32 8, %s25
          %7253 = vsyncadd %s7244, 0
          %s7254 = smul.addr %s7251, 2
          %s7255 = smul.addr %s24, 32
          %s7256 = sadd.s32 %s7254, %s7255
          %s7257 = smul.addr %s7256, 8
          %s7258 = scalar_lea.hbm %s6, %s7257
          %s7259 = sshll.u32 %s7247, 4
          %s7260 = int_to_ptr.vmem [resolvable:$true] %s7259
          %s7261 = sshll.u32 %s7258, 4
          %s7262 = int_to_ptr.hbm [resolvable:$true] %s7261
          %7267 = dma.vmem_to_hbm [thread:$0]  %s7260, 2048, %s7262, %s7244, 128, 128, 8
        $region48: #{tpu_custom_call.1} parent=43 // pred_fallthru
          _
      $region44: #{tpu_custom_call.1} parent=5 // pred_fallthru
        _
      %p7268 = scmp.le.s32.totalorder 2, %s15
      // Predicated region
      $region49: #{tpu_custom_call.1} parent=5 // pred_check
        %p7269 = pneg %p7268
      $region50: #{tpu_custom_call.1} parent=5 // pred_check_branch
        %7271 = sbr.rel (%p7269) target = $region52
      $region51: #{tpu_custom_call.1} parent=5 // pred_region
        %s7272 = ssub.s32 %s15, 2
        // Predicated region
        $region53: #{tpu_custom_call.1} parent=51 // pred_check
          %p7273 = pneg %p196
        $region54: #{tpu_custom_call.1} parent=51 // pred_check_branch
          %7275 = sbr.rel (%p7273) target = $region56
        $region55: #{tpu_custom_call.1} parent=51 // pred_region
          %s7276 = sand.u32 %s181, 1
          %s7277 = scalar_lea.sflag [#allocation5], %s7276
          %s7278 = sand.u32 %s181, 1
          %s7279 = smul.addr %s7278, 128
          %s7280 = scalar_lea.vmem [#allocation4], %s7279
          %7282 = dma.done %s7277, 2048
        $region56: #{tpu_custom_call.1} parent=51 // pred_fallthru
          _
      $region52: #{tpu_custom_call.1} parent=5 // pred_fallthru
        _
    $region6: #{tpu_custom_call.1} parent=1 // loop_footer
      %s19 = sadd.s32 1, %s15
    $region7: #{tpu_custom_call.1} parent=1 // loop_footer_branch
      %14 = sbr.rel target = $region3
    $region8: #{tpu_custom_call.1} parent=1 // loop_exit
      _
    %7283 = vsyncpa [#allocation5], 1
    %s7284 = scalar_lea.sflag [#allocation5], 1
    %7285 = vsyncpa %s7284, 1

</llo_original>
